<compile_context>
chip_gen: v7x
topology: tpu7x:2x2x1
jax: 0.10.0
libtpu: 0.0.40
codegen_flags: <defaults>
</compile_context>

<pallas_src>
import functools

import jax
import jax.numpy as jnp
from jax import lax
from jax.experimental import pallas as pl
from jax.experimental.pallas import tpu as pltpu

EPS = 1e-5


def _round_up(x, m):
    return (x + m - 1) // m * m


def _pick_divisor_tile(total, target, multiple):
    """Largest divisor of `total` that is <= target and a multiple of
    `multiple`; falls back to `total` (full-extent block is always legal)."""
    if total <= target:
        return total
    t = (target // multiple) * multiple
    while t >= multiple:
        if total % t == 0:
            return t
        t -= multiple
    return total


def _fold_bn(b, gamma, beta, mean, var):
    scale = gamma / jnp.sqrt(var + EPS)
    bias = (b - mean) * scale + beta
    return scale, bias


# ----------------------------------------------------------------------------
# Pallas kernels
# ----------------------------------------------------------------------------
def _conv_pool_kernel(x_ref, w_ref, sb_ref, o_ref, *, q_blocks, rows, half):
    """Fused conv (Q shifted matmuls) + BN(scale/bias) + ReLU + maxpool(2,2).

    x_ref:  (rows + Q - 1, T*Cin)  time-packed padded input (one sample), bf16
    w_ref:  (Q, T*Cin, T*Cout)     block-Toeplitz weights, [even | odd] cols
    sb_ref: (2, T*Cout)            row0 = scale, row1 = bias (folded BN)
    o_ref:  (rows, (T//2)*Cout)    pooled output, lane-dense (128 wide)
    """
    acc = jnp.zeros((rows, 2 * half), jnp.float32)
    for q in range(q_blocks):
        acc = acc + jnp.dot(x_ref[q:q + rows, :], w_ref[q],
                            preferred_element_type=jnp.float32)
    y = acc * sb_ref[0:1, :] + sb_ref[1:2, :]
    y = jnp.maximum(y, 0.0)                                    # ReLU
    # maxpool(2,2): even-timestep half vs odd-timestep half (128-aligned split)
    o_ref[...] = jnp.maximum(y[:, :half], y[:, half:]).astype(o_ref.dtype)


def _fc1_fc2_kernel(f_ref, w1_ref, sb1_ref, w2_ref, part_ref, acc_ref):
    """fc1 (K-tiled, bf16, f32 accum) + bn5 + relu + partial fc2 for one
    N-half of fc1's output columns.  Grid dim 0 ('parallel') is the N-half, so
    on v7x each TensorCore streams half of the fc1 weight; grid dim 1 is the
    K reduction ('arbitrary')."""
    k = pl.program_id(1)

    @pl.when(k == 0)
    def _():
        acc_ref[...] = jnp.zeros_like(acc_ref)

    acc_ref[...] += jnp.dot(f_ref[...], w1_ref[...],
                            preferred_element_type=jnp.float32)

    @pl.when(k == pl.num_programs(1) - 1)
    def _():
        h = jnp.maximum(acc_ref[...] * sb1_ref[0:1, :] + sb1_ref[1:2, :], 0.0)
        part_ref[...] = jnp.dot(h.astype(jnp.bfloat16), w2_ref[...],
                                preferred_element_type=jnp.float32)


def _head_kernel(part_ref, sb2_ref, w3_ref, b3_ref, o_ref):
    """Combine fc2 partial sums + bn6 + relu + fc3 + bias."""
    h = jnp.sum(part_ref[...], axis=0)                         # (B, N2p)
    h = jnp.maximum(h * sb2_ref[0:1, :] + sb2_ref[1:2, :], 0.0)
    out = jnp.dot(h.astype(jnp.bfloat16), w3_ref[...],
                  preferred_element_type=jnp.float32)
    o_ref[...] = out + b3_ref[...]


# ----------------------------------------------------------------------------
# Conv block wrapper (Toeplitz weights, pallas_call setup)
# ----------------------------------------------------------------------------
def _toeplitz_weight(w, T, Q):
    """Block-Toeplitz weights for T-packed conv-as-matmul.

    Returns (Q, T*Cin, T*Cout).  Output columns are ordered
    [even output timesteps | odd output timesteps], each half (T//2)*Cout wide,
    so the maxpool is a whole-vreg max of the two halves.
    """
    Cout, Cin, k = w.shape
    w_t = jnp.transpose(w, (2, 1, 0))                      # (k, Cin, Cout)
    q_idx = jnp.arange(Q)[:, None, None]
    r_idx = jnp.arange(T)[None, :, None]
    s_idx = jnp.arange(T)[None, None, :]
    tap = q_idx * T + r_idx - s_idx                        # (Q, T, T)
    valid = (tap >= 0) & (tap < k)
    Wq = jnp.where(valid[..., None, None],
                   w_t[jnp.clip(tap, 0, k - 1)], 0.0)      # (Q, T, T, Cin, Cout)
    s_perm = jnp.concatenate([jnp.arange(0, T, 2), jnp.arange(1, T, 2)])
    Wq = Wq[:, :, s_perm]                                  # even cols | odd cols
    Wq = jnp.transpose(Wq, (0, 1, 3, 2, 4))                # (Q, r, Cin, s', Cout)
    return Wq.reshape(Q, T * Cin, T * Cout)


def conv_bn_relu_pool(x_nlc, w, b, gamma, beta, mean, var, *, k, pad, T):
    """Conv1d(k, stride=1, pad) + BN(eval) + ReLU + max_pool1d(2,2), fused."""
    N, L, Cin = x_nlc.shape
    Cout, Cin2, kk = w.shape
    assert kk == k and Cin2 == Cin
    Lo = L + 2 * pad - k + 1          # conv output length
    Lh = Lo // 2                      # pooled length (odd tail dropped)
    assert (2 * Lh) % T == 0, "time-packing factor must divide 2*pooled length"
    rows = (2 * Lh) // T              # packed rows per sample
    Q = 1 + -(-(k - 1) // T)          # 1 + ceil((k-1)/T) shifted matmuls
    Lpp = (rows + Q - 1) * T          # padded + zero-extended length
    assert Lpp >= 2 * Lh + k - 1 and Lpp >= L + pad

    # Pad + reshape only (no im2col duplication), bf16 for HBM/MXU.
    xp = jnp.pad(x_nlc.astype(jnp.bfloat16),
                 ((0, 0), (pad, Lpp - L - pad), (0, 0)))
    x_rows = xp.reshape(N, rows + Q - 1, T * Cin)

    Wq = _toeplitz_weight(w, T, Q).astype(jnp.bfloat16)    # (Q, T*Cin, T*Cout)
    scale, bias = _fold_bn(b, gamma, beta, mean, var)
    sb = jnp.stack([jnp.tile(scale, T), jnp.tile(bias, T)]).astype(jnp.float32)

    half = (T // 2) * Cout            # pooled width per row (= 128 here)
    out = pl.pallas_call(
        functools.partial(_conv_pool_kernel, q_blocks=Q, rows=rows, half=half),
        out_shape=jax.ShapeDtypeStruct((N, rows, half), jnp.bfloat16),
        grid_spec=pltpu.PrefetchScalarGridSpec(
            num_scalar_prefetch=0,
            grid=(N,),
            in_specs=[
                pl.BlockSpec((None, rows + Q - 1, T * Cin), lambda n: (n, 0, 0)),
                pl.BlockSpec((Q, T * Cin, T * Cout), lambda n: (0, 0, 0)),
                pl.BlockSpec((2, T * Cout), lambda n: (0, 0)),
            ],
            out_specs=pl.BlockSpec((None, rows, half), lambda n: (n, 0, 0)),
        ),
        compiler_params=pltpu.CompilerParams(
            dimension_semantics=("parallel",)),   # v7x: batch over 2 TCs
    )(x_rows, Wq, sb)
    # (N, rows, (T/2)*Cout) rows hold (pooled-time, channel) -> plain reshape.
    return out.reshape(N, Lh, Cout)


# ----------------------------------------------------------------------------
# Classifier wrapper
# ----------------------------------------------------------------------------
def classifier_forward(x_nlc, p):
    """Linear(7168,700)+BN+ReLU + Linear(700,70)+BN+ReLU + Linear(70,classes).
    x_nlc: conv4 output in (N, L, C) layout (bf16)."""
    (w1, b1), (g1, be1, m1, v1) = p["fc1"], p["bn5"]
    (w2, b2), (g2, be2, m2, v2) = p["fc2"], p["bn6"]
    (w3, b3) = p["fc3"]

    B, L4, C4 = x_nlc.shape
    K = L4 * C4
    N1, N2, classes = w1.shape[0], w2.shape[0], w3.shape[0]
    N1p = _round_up(N1, 128)
    N2p = _round_up(N2, 128)
    N3p = _round_up(classes, 128)
    NH = 2                            # fc1 N-halves (-> 2 TCs on v7x)
    N1h = N1p // NH

    s1, o1 = _fold_bn(b1, g1, be1, m1, v1)
    s2, o2 = _fold_bn(b2, g2, be2, m2, v2)

    # fc1 rows permuted to the (L, C)-major flatten order of x_nlc, transposed,
    # zero-padded to lane-dense N, bf16 (padding feeds zero scale/bias/weights).
    w1_lc = jnp.transpose(w1.reshape(N1, C4, L4), (2, 1, 0)).reshape(K, N1)
    w1p = jnp.zeros((K, N1p), jnp.bfloat16).at[:, :N1].set(
        w1_lc.astype(jnp.bfloat16))
    sb1 = jnp.zeros((2, N1p), jnp.float32).at[:, :N1].set(jnp.stack([s1, o1]))
    w2p = jnp.zeros((N1p, N2p), jnp.bfloat16).at[:N1, :N2].set(
        w2.T.astype(jnp.bfloat16))
    sb2 = jnp.zeros((2, N2p), jnp.float32).at[:, :N2].set(jnp.stack([s2, o2]))
    w3p = jnp.zeros((N2p, N3p), jnp.bfloat16).at[:N2, :classes].set(
        w3.T.astype(jnp.bfloat16))
    b3p = jnp.zeros((1, N3p), jnp.float32).at[0, :classes].set(b3)

    f_lc = x_nlc.reshape(B, K)                       # bf16, (L, C)-major
    kt = _pick_divisor_tile(K, 1792, 128)            # 7168 = 4 * 1792

    part = pl.pallas_call(
        _fc1_fc2_kernel,
        out_shape=jax.ShapeDtypeStruct((NH, B, N2p), jnp.float32),
        grid_spec=pltpu.PrefetchScalarGridSpec(
            num_scalar_prefetch=0,
            grid=(NH, K // kt),
            in_specs=[
                pl.BlockSpec((B, kt), lambda h, k: (0, k)),
                pl.BlockSpec((kt, N1h), lambda h, k: (k, h)),
                pl.BlockSpec((2, N1h), lambda h, k: (0, h)),
                pl.BlockSpec((N1h, N2p), lambda h, k: (h, 0)),
            ],
            out_specs=pl.BlockSpec((None, B, N2p), lambda h, k: (h, 0, 0)),
            scratch_shapes=[pltpu.VMEM((B, N1h), jnp.float32)],
        ),
        compiler_params=pltpu.CompilerParams(
            dimension_semantics=("parallel", "arbitrary")),
    )(f_lc, w1p, sb1, w2p)

    logits_p = pl.pallas_call(
        _head_kernel,
        out_shape=jax.ShapeDtypeStruct((B, N3p), jnp.float32),
        grid_spec=pltpu.PrefetchScalarGridSpec(
            num_scalar_prefetch=0,
            grid=(1,),
            in_specs=[
                pl.BlockSpec((NH, B, N2p), lambda i: (0, 0, 0)),
                pl.BlockSpec((2, N2p), lambda i: (0, 0)),
                pl.BlockSpec((N2p, N3p), lambda i: (0, 0)),
                pl.BlockSpec((1, N3p), lambda i: (0, 0)),
            ],
            out_specs=pl.BlockSpec((B, N3p), lambda i: (0, 0)),
        ),
    )(part, sb2, w3p, b3p)
    return logits_p[:, :classes]


def network_forward(x_ncl, p):
    """x_ncl: (N, input_channels, L) -- PyTorch NCL layout."""
    x = jnp.transpose(x_ncl, (0, 2, 1))  # -> (N, L, C), once at the boundary
    x = conv_bn_relu_pool(x, *p["conv1"], *p["bn1"], k=64, pad=32, T=16)
    x = conv_bn_relu_pool(x, *p["conv2"], *p["bn2"], k=5, pad=2, T=8)
    x = conv_bn_relu_pool(x, *p["conv3"], *p["bn3"], k=5, pad=2, T=4)
    x = conv_bn_relu_pool(x, *p["conv4"], *p["bn4"], k=5, pad=2, T=4)
    # Returned features in PyTorch (N, C, L)-flatten order.
    f = jnp.transpose(x, (0, 2, 1)).reshape(x.shape[0], -1).astype(jnp.float32)
    # Classifier consumes the (L, C)-major slab directly (fc1 rows permuted).
    logits = classifier_forward(x, p)
    return logits, f


# ----------------------------------------------------------------------------
# Deterministic parameter initialization (shapes per Network.__init__)
# ----------------------------------------------------------------------------
def init_params(key, input_channels, classes):
    keys = iter(jax.random.split(key, 32))

    def uni(shape, fan_in):
        bound = 1.0 / float(fan_in) ** 0.5
        return jax.random.uniform(next(keys), shape, jnp.float32, -bound, bound)

    def conv(cin, cout, k):
        return uni((cout, cin, k), cin * k), uni((cout,), cin * k)

    def lin(fin, fout):
        return uni((fout, fin), fin), uni((fout,), fin)

    def bn(c):
        gamma = 1.0 + 0.1 * jax.random.normal(next(keys), (c,), jnp.float32)
        beta = 0.1 * jax.random.normal(next(keys), (c,), jnp.float32)
        return gamma, beta, jnp.zeros((c,), jnp.float32), jnp.ones((c,), jnp.float32)

    p = {}
    p["conv1"] = conv(input_channels, 16, 64)
    p["bn1"] = bn(16)
    p["conv2"] = conv(16, 32, 5)
    p["bn2"] = bn(32)
    p["conv3"] = conv(32, 64, 5)
    p["bn3"] = bn(64)
    p["conv4"] = conv(64, 64, 5)
    p["bn4"] = bn(64)
    p["fc1"] = lin(7168, 700)
    p["bn5"] = bn(700)
    p["fc2"] = lin(700, 70)
    p["bn6"] = bn(70)
    p["fc3"] = lin(70, classes)
    return p


# ----------------------------------------------------------------------------
# Pure-JAX reference for verification
# ----------------------------------------------------------------------------
def ref_forward(x_ncl, p):
    def conv_block(y, w, b, gamma, beta, mean, var, pad):
        y = lax.conv_general_dilated(y, w, (1,), [(pad, pad)],
                                     dimension_numbers=("NCH", "OIH", "NCH"))
        y = y + b[None, :, None]
        y = ((y - mean[None, :, None]) / jnp.sqrt(var[None, :, None] + EPS)
             * gamma[None, :, None] + beta[None, :, None])
        y = jnp.maximum(y, 0.0)
        N, C, L = y.shape
        Lo = L // 2
        return y[:, :, :2 * Lo].reshape(N, C, Lo, 2).max(axis=-1)

    y = conv_block(x_ncl, *p["conv1"], *p["bn1"], 32)
    y = conv_block(y, *p["conv2"], *p["bn2"], 2)
    y = conv_block(y, *p["conv3"], *p["bn3"], 2)
    y = conv_block(y, *p["conv4"], *p["bn4"], 2)
    f = y.reshape(y.shape[0], -1)

    def lin_bn_relu(h, w, b, gamma, beta, mean, var):
        h = h @ w.T + b
        h = (h - mean) / jnp.sqrt(var + EPS) * gamma + beta
        return jnp.maximum(h, 0.0)

    h = lin_bn_relu(f, *p["fc1"], *p["bn5"])
    h = lin_bn_relu(h, *p["fc2"], *p["bn6"])
    logits = h @ p["fc3"][0].T + p["fc3"][1]
    return logits, f


# ----------------------------------------------------------------------------
if __name__ == "__main__":
    # Linear(7168, ...) forces the flattened feature size 64*112, which the
    # conv/pool stack produces for L=1792.
    batch, input_channels, input_sample_points, classes = 2, 3, 1792, 10

    key = jax.random.PRNGKey(0)
    k_params, k_x = jax.random.split(key)
    params = init_params(k_params, input_channels, classes)
    x = jax.random.normal(k_x, (batch, input_channels, input_sample_points),
                          jnp.float32)

    fwd = jax.jit(network_forward)
    logits, feats = fwd(x, params)
    logits = jax.block_until_ready(logits)
    feats = jax.block_until_ready(feats)

    ref_logits, ref_feats = ref_forward(x, params)

    def check(a, b, name):
        err = float(jnp.max(jnp.abs(a - b)))
        scale = float(jnp.max(jnp.abs(b))) + 1e-6
        assert err <= 2e-2 * scale, f"{name} mismatch: err={err}, scale={scale}"

    assert logits.shape == (batch, classes)
    assert feats.shape == (batch, 7168)
    check(feats, ref_feats, "features")
    check(logits, ref_logits, "logits")

    print("KERNEL_OK")
</pallas_src>

<mosaic_0001>
module attributes {stable_mosaic.version = 11 : i64} {
  func.func @_conv_pool_kernel(%arg0: i32, %arg1: memref<1x116x48xbf16, #tpu.memory_space<vmem>>, %arg2: memref<5x48x256xbf16, #tpu.memory_space<vmem>>, %arg3: memref<2x256xf32, #tpu.memory_space<vmem>>, %arg4: memref<1x112x128xbf16, #tpu.memory_space<vmem>>) attributes {dimension_semantics = [#tpu.dimension_semantics<parallel>], iteration_bounds = array<i64: 2>, scalar_prefetch = 0 : i64, scratch_operands = 0 : i64, tpu.core_type = #tpu.core_type<tc>, window_params = [{transform_indices = @transform_0, window_bounds = array<i64: 1, 116, 48>}, {pipeline_mode = #tpu.pipeline_mode<synchronous>, transform_indices = @transform_1, window_bounds = array<i64: 5, 48, 256>}, {pipeline_mode = #tpu.pipeline_mode<synchronous>, transform_indices = @transform_2, window_bounds = array<i64: 2, 256>}, {transform_indices = @transform_3, window_bounds = array<i64: 1, 112, 128>}]} {
    %cst = arith.constant 0.000000e+00 : f32
    %0 = vector.broadcast %cst : f32 to vector<112x256xf32>
    %c0 = arith.constant 0 : index
    %c0_0 = arith.constant 0 : index
    %c0_1 = arith.constant 0 : index
    %1 = vector.load %arg1[%c0, %c0_0, %c0_1] : memref<1x116x48xbf16, #tpu.memory_space<vmem>>, vector<1x112x48xbf16>
    %2 = vector.shape_cast %1 : vector<1x112x48xbf16> to vector<112x48xbf16>
    %c0_2 = arith.constant 0 : index
    %c0_3 = arith.constant 0 : index
    %c0_4 = arith.constant 0 : index
    %3 = vector.load %arg2[%c0_2, %c0_3, %c0_4] : memref<5x48x256xbf16, #tpu.memory_space<vmem>>, vector<1x48x256xbf16>
    %4 = vector.shape_cast %3 : vector<1x48x256xbf16> to vector<48x256xbf16>
    %cst_5 = arith.constant dense<0.000000e+00> : vector<112x256xf32>
    %5 = tpu.matmul %2, %4, %cst_5 {dimension_numbers = #tpu.dot_dimension_numbers<[1], [0], [0], [1], [0, 0, 1, 1], [], []>} : vector<112x48xbf16>, vector<48x256xbf16>, vector<112x256xf32> -> vector<112x256xf32>
    %6 = arith.addf %0, %5 : vector<112x256xf32>
    %c0_6 = arith.constant 0 : index
    %c1 = arith.constant 1 : index
    %c0_7 = arith.constant 0 : index
    %7 = vector.load %arg1[%c0_6, %c1, %c0_7] : memref<1x116x48xbf16, #tpu.memory_space<vmem>>, vector<1x112x48xbf16>
    %8 = vector.shape_cast %7 : vector<1x112x48xbf16> to vector<112x48xbf16>
    %c1_8 = arith.constant 1 : index
    %c0_9 = arith.constant 0 : index
    %c0_10 = arith.constant 0 : index
    %9 = vector.load %arg2[%c1_8, %c0_9, %c0_10] : memref<5x48x256xbf16, #tpu.memory_space<vmem>>, vector<1x48x256xbf16>
    %10 = vector.shape_cast %9 : vector<1x48x256xbf16> to vector<48x256xbf16>
    %cst_11 = arith.constant dense<0.000000e+00> : vector<112x256xf32>
    %11 = tpu.matmul %8, %10, %cst_11 {dimension_numbers = #tpu.dot_dimension_numbers<[1], [0], [0], [1], [0, 0, 1, 1], [], []>} : vector<112x48xbf16>, vector<48x256xbf16>, vector<112x256xf32> -> vector<112x256xf32>
    %12 = arith.addf %6, %11 : vector<112x256xf32>
    %c0_12 = arith.constant 0 : index
    %c2 = arith.constant 2 : index
    %c0_13 = arith.constant 0 : index
    %13 = vector.load %arg1[%c0_12, %c2, %c0_13] : memref<1x116x48xbf16, #tpu.memory_space<vmem>>, vector<1x112x48xbf16>
    %14 = vector.shape_cast %13 : vector<1x112x48xbf16> to vector<112x48xbf16>
    %c2_14 = arith.constant 2 : index
    %c0_15 = arith.constant 0 : index
    %c0_16 = arith.constant 0 : index
    %15 = vector.load %arg2[%c2_14, %c0_15, %c0_16] : memref<5x48x256xbf16, #tpu.memory_space<vmem>>, vector<1x48x256xbf16>
    %16 = vector.shape_cast %15 : vector<1x48x256xbf16> to vector<48x256xbf16>
    %cst_17 = arith.constant dense<0.000000e+00> : vector<112x256xf32>
    %17 = tpu.matmul %14, %16, %cst_17 {dimension_numbers = #tpu.dot_dimension_numbers<[1], [0], [0], [1], [0, 0, 1, 1], [], []>} : vector<112x48xbf16>, vector<48x256xbf16>, vector<112x256xf32> -> vector<112x256xf32>
    %18 = arith.addf %12, %17 : vector<112x256xf32>
    %c0_18 = arith.constant 0 : index
    %c3 = arith.constant 3 : index
    %c0_19 = arith.constant 0 : index
    %19 = vector.load %arg1[%c0_18, %c3, %c0_19] : memref<1x116x48xbf16, #tpu.memory_space<vmem>>, vector<1x112x48xbf16>
    %20 = vector.shape_cast %19 : vector<1x112x48xbf16> to vector<112x48xbf16>
    %c3_20 = arith.constant 3 : index
    %c0_21 = arith.constant 0 : index
    %c0_22 = arith.constant 0 : index
    %21 = vector.load %arg2[%c3_20, %c0_21, %c0_22] : memref<5x48x256xbf16, #tpu.memory_space<vmem>>, vector<1x48x256xbf16>
    %22 = vector.shape_cast %21 : vector<1x48x256xbf16> to vector<48x256xbf16>
    %cst_23 = arith.constant dense<0.000000e+00> : vector<112x256xf32>
    %23 = tpu.matmul %20, %22, %cst_23 {dimension_numbers = #tpu.dot_dimension_numbers<[1], [0], [0], [1], [0, 0, 1, 1], [], []>} : vector<112x48xbf16>, vector<48x256xbf16>, vector<112x256xf32> -> vector<112x256xf32>
    %24 = arith.addf %18, %23 : vector<112x256xf32>
    %c0_24 = arith.constant 0 : index
    %c4 = arith.constant 4 : index
    %c0_25 = arith.constant 0 : index
    %25 = vector.load %arg1[%c0_24, %c4, %c0_25] : memref<1x116x48xbf16, #tpu.memory_space<vmem>>, vector<1x112x48xbf16>
    %26 = vector.shape_cast %25 : vector<1x112x48xbf16> to vector<112x48xbf16>
    %c4_26 = arith.constant 4 : index
    %c0_27 = arith.constant 0 : index
    %c0_28 = arith.constant 0 : index
    %27 = vector.load %arg2[%c4_26, %c0_27, %c0_28] : memref<5x48x256xbf16, #tpu.memory_space<vmem>>, vector<1x48x256xbf16>
    %28 = vector.shape_cast %27 : vector<1x48x256xbf16> to vector<48x256xbf16>
    %cst_29 = arith.constant dense<0.000000e+00> : vector<112x256xf32>
    %29 = tpu.matmul %26, %28, %cst_29 {dimension_numbers = #tpu.dot_dimension_numbers<[1], [0], [0], [1], [0, 0, 1, 1], [], []>} : vector<112x48xbf16>, vector<48x256xbf16>, vector<112x256xf32> -> vector<112x256xf32>
    %30 = arith.addf %24, %29 : vector<112x256xf32>
    %c0_30 = arith.constant 0 : index
    %c0_31 = arith.constant 0 : index
    %31 = vector.load %arg3[%c0_30, %c0_31] : memref<2x256xf32, #tpu.memory_space<vmem>>, vector<1x256xf32>
    %32 = vector.broadcast %31 : vector<1x256xf32> to vector<112x256xf32>
    %33 = arith.mulf %30, %32 : vector<112x256xf32>
    %c1_32 = arith.constant 1 : index
    %c0_33 = arith.constant 0 : index
    %34 = vector.load %arg3[%c1_32, %c0_33] : memref<2x256xf32, #tpu.memory_space<vmem>>, vector<1x256xf32>
    %35 = vector.broadcast %34 : vector<1x256xf32> to vector<112x256xf32>
    %36 = arith.addf %33, %35 : vector<112x256xf32>
    %cst_34 = arith.constant 0.000000e+00 : f32
    %37 = vector.broadcast %cst_34 : f32 to vector<112x256xf32>
    %38 = arith.maximumf %36, %37 : vector<112x256xf32>
    %39 = vector.extract_strided_slice %38 {offsets = [0, 0], sizes = [112, 128], strides = [1, 1]} : vector<112x256xf32> to vector<112x128xf32>
    %40 = vector.extract_strided_slice %38 {offsets = [0, 128], sizes = [112, 128], strides = [1, 1]} : vector<112x256xf32> to vector<112x128xf32>
    %41 = arith.maximumf %39, %40 : vector<112x128xf32>
    %42 = arith.truncf %41 : vector<112x128xf32> to vector<112x128xbf16>
    %c0_35 = arith.constant 0 : index
    %c0_36 = arith.constant 0 : index
    %c0_37 = arith.constant 0 : index
    %43 = vector.load %arg4[%c0_35, %c0_36, %c0_37] : memref<1x112x128xbf16, #tpu.memory_space<vmem>>, vector<1x112x128xbf16>
    %44 = vector.shape_cast %43 : vector<1x112x128xbf16> to vector<112x128xbf16>
    %45 = vector.shape_cast %42 : vector<112x128xbf16> to vector<1x112x128xbf16>
    tpu.vector_store %arg4[%c0_35, %c0_36, %c0_37], %45 {strides = array<i32>} : memref<1x112x128xbf16, #tpu.memory_space<vmem>>, vector<1x112x128xbf16>,
    return
  }
  func.func @transform_0(%arg0: i32) -> (i32, i32, i32) {
    %c0_i32 = arith.constant 0 : i32
    %c0_i32_0 = arith.constant 0 : i32
    %c0_i32_1 = arith.constant 0 : i32
    return %arg0, %c0_i32, %c0_i32_0 : i32, i32, i32
  }
  func.func @transform_1(%arg0: i32) -> (i32, i32, i32) {
    %c0_i32 = arith.constant 0 : i32
    %c0_i32_0 = arith.constant 0 : i32
    %c0_i32_1 = arith.constant 0 : i32
    %c0_i32_2 = arith.constant 0 : i32
    return %c0_i32, %c0_i32_0, %c0_i32_1 : i32, i32, i32
  }
  func.func @transform_2(%arg0: i32) -> (i32, i32) {
    %c0_i32 = arith.constant 0 : i32
    %c0_i32_0 = arith.constant 0 : i32
    %c0_i32_1 = arith.constant 0 : i32
    return %c0_i32, %c0_i32_0 : i32, i32
  }
  func.func @transform_3(%arg0: i32) -> (i32, i32, i32) {
    %c0_i32 = arith.constant 0 : i32
    %c0_i32_0 = arith.constant 0 : i32
    %c0_i32_1 = arith.constant 0 : i32
    return %arg0, %c0_i32, %c0_i32_0 : i32, i32, i32
  }
}

module attributes {stable_mosaic.version = 11 : i64} {
  func.func @_conv_pool_kernel(%arg0: i32, %arg1: memref<1x113x128xbf16, #tpu.memory_space<vmem>>, %arg2: memref<2x128x256xbf16, #tpu.memory_space<vmem>>, %arg3: memref<2x256xf32, #tpu.memory_space<vmem>>, %arg4: memref<1x112x128xbf16, #tpu.memory_space<vmem>>) attributes {dimension_semantics = [#tpu.dimension_semantics<parallel>], iteration_bounds = array<i64: 2>, scalar_prefetch = 0 : i64, scratch_operands = 0 : i64, tpu.core_type = #tpu.core_type<tc>, window_params = [{transform_indices = @transform_0, window_bounds = array<i64: 1, 113, 128>}, {pipeline_mode = #tpu.pipeline_mode<synchronous>, transform_indices = @transform_1, window_bounds = array<i64: 2, 128, 256>}, {pipeline_mode = #tpu.pipeline_mode<synchronous>, transform_indices = @transform_2, window_bounds = array<i64: 2, 256>}, {transform_indices = @transform_3, window_bounds = array<i64: 1, 112, 128>}]} {
    %cst = arith.constant 0.000000e+00 : f32
    %0 = vector.broadcast %cst : f32 to vector<112x256xf32>
    %c0 = arith.constant 0 : index
    %c0_0 = arith.constant 0 : index
    %c0_1 = arith.constant 0 : index
    %1 = vector.load %arg1[%c0, %c0_0, %c0_1] : memref<1x113x128xbf16, #tpu.memory_space<vmem>>, vector<1x112x128xbf16>
    %2 = vector.shape_cast %1 : vector<1x112x128xbf16> to vector<112x128xbf16>
    %c0_2 = arith.constant 0 : index
    %c0_3 = arith.constant 0 : index
    %c0_4 = arith.constant 0 : index
    %3 = vector.load %arg2[%c0_2, %c0_3, %c0_4] : memref<2x128x256xbf16, #tpu.memory_space<vmem>>, vector<1x128x256xbf16>
    %4 = vector.shape_cast %3 : vector<1x128x256xbf16> to vector<128x256xbf16>
    %cst_5 = arith.constant dense<0.000000e+00> : vector<112x256xf32>
    %5 = tpu.matmul %2, %4, %cst_5 {dimension_numbers = #tpu.dot_dimension_numbers<[1], [0], [0], [1], [0, 0, 1, 1], [], []>} : vector<112x128xbf16>, vector<128x256xbf16>, vector<112x256xf32> -> vector<112x256xf32>
    %6 = arith.addf %0, %5 : vector<112x256xf32>
    %c0_6 = arith.constant 0 : index
    %c1 = arith.constant 1 : index
    %c0_7 = arith.constant 0 : index
    %7 = vector.load %arg1[%c0_6, %c1, %c0_7] : memref<1x113x128xbf16, #tpu.memory_space<vmem>>, vector<1x112x128xbf16>
    %8 = vector.shape_cast %7 : vector<1x112x128xbf16> to vector<112x128xbf16>
    %c1_8 = arith.constant 1 : index
    %c0_9 = arith.constant 0 : index
    %c0_10 = arith.constant 0 : index
    %9 = vector.load %arg2[%c1_8, %c0_9, %c0_10] : memref<2x128x256xbf16, #tpu.memory_space<vmem>>, vector<1x128x256xbf16>
    %10 = vector.shape_cast %9 : vector<1x128x256xbf16> to vector<128x256xbf16>
    %cst_11 = arith.constant dense<0.000000e+00> : vector<112x256xf32>
    %11 = tpu.matmul %8, %10, %cst_11 {dimension_numbers = #tpu.dot_dimension_numbers<[1], [0], [0], [1], [0, 0, 1, 1], [], []>} : vector<112x128xbf16>, vector<128x256xbf16>, vector<112x256xf32> -> vector<112x256xf32>
    %12 = arith.addf %6, %11 : vector<112x256xf32>
    %c0_12 = arith.constant 0 : index
    %c0_13 = arith.constant 0 : index
    %13 = vector.load %arg3[%c0_12, %c0_13] : memref<2x256xf32, #tpu.memory_space<vmem>>, vector<1x256xf32>
    %14 = vector.broadcast %13 : vector<1x256xf32> to vector<112x256xf32>
    %15 = arith.mulf %12, %14 : vector<112x256xf32>
    %c1_14 = arith.constant 1 : index
    %c0_15 = arith.constant 0 : index
    %16 = vector.load %arg3[%c1_14, %c0_15] : memref<2x256xf32, #tpu.memory_space<vmem>>, vector<1x256xf32>
    %17 = vector.broadcast %16 : vector<1x256xf32> to vector<112x256xf32>
    %18 = arith.addf %15, %17 : vector<112x256xf32>
    %cst_16 = arith.constant 0.000000e+00 : f32
    %19 = vector.broadcast %cst_16 : f32 to vector<112x256xf32>
    %20 = arith.maximumf %18, %19 : vector<112x256xf32>
    %21 = vector.extract_strided_slice %20 {offsets = [0, 0], sizes = [112, 128], strides = [1, 1]} : vector<112x256xf32> to vector<112x128xf32>
    %22 = vector.extract_strided_slice %20 {offsets = [0, 128], sizes = [112, 128], strides = [1, 1]} : vector<112x256xf32> to vector<112x128xf32>
    %23 = arith.maximumf %21, %22 : vector<112x128xf32>
    %24 = arith.truncf %23 : vector<112x128xf32> to vector<112x128xbf16>
    %c0_17 = arith.constant 0 : index
    %c0_18 = arith.constant 0 : index
    %c0_19 = arith.constant 0 : index
    %25 = vector.load %arg4[%c0_17, %c0_18, %c0_19] : memref<1x112x128xbf16, #tpu.memory_space<vmem>>, vector<1x112x128xbf16>
    %26 = vector.shape_cast %25 : vector<1x112x128xbf16> to vector<112x128xbf16>
    %27 = vector.shape_cast %24 : vector<112x128xbf16> to vector<1x112x128xbf16>
    tpu.vector_store %arg4[%c0_17, %c0_18, %c0_19], %27 {strides = array<i32>} : memref<1x112x128xbf16, #tpu.memory_space<vmem>>, vector<1x112x128xbf16>,
    return
  }
  func.func @transform_0(%arg0: i32) -> (i32, i32, i32) {
    %c0_i32 = arith.constant 0 : i32
    %c0_i32_0 = arith.constant 0 : i32
    %c0_i32_1 = arith.constant 0 : i32
    return %arg0, %c0_i32, %c0_i32_0 : i32, i32, i32
  }
  func.func @transform_1(%arg0: i32) -> (i32, i32, i32) {
    %c0_i32 = arith.constant 0 : i32
    %c0_i32_0 = arith.constant 0 : i32
    %c0_i32_1 = arith.constant 0 : i32
    %c0_i32_2 = arith.constant 0 : i32
    return %c0_i32, %c0_i32_0, %c0_i32_1 : i32, i32, i32
  }
  func.func @transform_2(%arg0: i32) -> (i32, i32) {
    %c0_i32 = arith.constant 0 : i32
    %c0_i32_0 = arith.constant 0 : i32
    %c0_i32_1 = arith.constant 0 : i32
    return %c0_i32, %c0_i32_0 : i32, i32
  }
  func.func @transform_3(%arg0: i32) -> (i32, i32, i32) {
    %c0_i32 = arith.constant 0 : i32
    %c0_i32_0 = arith.constant 0 : i32
    %c0_i32_1 = arith.constant 0 : i32
    return %arg0, %c0_i32, %c0_i32_0 : i32, i32, i32
  }
}

module attributes {stable_mosaic.version = 11 : i64} {
  func.func @_conv_pool_kernel(%arg0: i32, %arg1: memref<1x57x256xbf16, #tpu.memory_space<vmem>>, %arg2: memref<2x256x256xbf16, #tpu.memory_space<vmem>>, %arg3: memref<2x256xf32, #tpu.memory_space<vmem>>, %arg4: memref<1x56x128xbf16, #tpu.memory_space<vmem>>) attributes {dimension_semantics = [#tpu.dimension_semantics<parallel>], iteration_bounds = array<i64: 2>, scalar_prefetch = 0 : i64, scratch_operands = 0 : i64, tpu.core_type = #tpu.core_type<tc>, window_params = [{transform_indices = @transform_0, window_bounds = array<i64: 1, 57, 256>}, {pipeline_mode = #tpu.pipeline_mode<synchronous>, transform_indices = @transform_1, window_bounds = array<i64: 2, 256, 256>}, {pipeline_mode = #tpu.pipeline_mode<synchronous>, transform_indices = @transform_2, window_bounds = array<i64: 2, 256>}, {transform_indices = @transform_3, window_bounds = array<i64: 1, 56, 128>}]} {
    %cst = arith.constant 0.000000e+00 : f32
    %0 = vector.broadcast %cst : f32 to vector<56x256xf32>
    %c0 = arith.constant 0 : index
    %c0_0 = arith.constant 0 : index
    %c0_1 = arith.constant 0 : index
    %1 = vector.load %arg1[%c0, %c0_0, %c0_1] : memref<1x57x256xbf16, #tpu.memory_space<vmem>>, vector<1x56x256xbf16>
    %2 = vector.shape_cast %1 : vector<1x56x256xbf16> to vector<56x256xbf16>
    %c0_2 = arith.constant 0 : index
    %c0_3 = arith.constant 0 : index
    %c0_4 = arith.constant 0 : index
    %3 = vector.load %arg2[%c0_2, %c0_3, %c0_4] : memref<2x256x256xbf16, #tpu.memory_space<vmem>>, vector<1x256x256xbf16>
    %4 = vector.shape_cast %3 : vector<1x256x256xbf16> to vector<256x256xbf16>
    %cst_5 = arith.constant dense<0.000000e+00> : vector<56x256xf32>
    %5 = tpu.matmul %2, %4, %cst_5 {dimension_numbers = #tpu.dot_dimension_numbers<[1], [0], [0], [1], [0, 0, 1, 1], [], []>} : vector<56x256xbf16>, vector<256x256xbf16>, vector<56x256xf32> -> vector<56x256xf32>
    %6 = arith.addf %0, %5 : vector<56x256xf32>
    %c0_6 = arith.constant 0 : index
    %c1 = arith.constant 1 : index
    %c0_7 = arith.constant 0 : index
    %7 = vector.load %arg1[%c0_6, %c1, %c0_7] : memref<1x57x256xbf16, #tpu.memory_space<vmem>>, vector<1x56x256xbf16>
    %8 = vector.shape_cast %7 : vector<1x56x256xbf16> to vector<56x256xbf16>
    %c1_8 = arith.constant 1 : index
    %c0_9 = arith.constant 0 : index
    %c0_10 = arith.constant 0 : index
    %9 = vector.load %arg2[%c1_8, %c0_9, %c0_10] : memref<2x256x256xbf16, #tpu.memory_space<vmem>>, vector<1x256x256xbf16>
    %10 = vector.shape_cast %9 : vector<1x256x256xbf16> to vector<256x256xbf16>
    %cst_11 = arith.constant dense<0.000000e+00> : vector<56x256xf32>
    %11 = tpu.matmul %8, %10, %cst_11 {dimension_numbers = #tpu.dot_dimension_numbers<[1], [0], [0], [1], [0, 0, 1, 1], [], []>} : vector<56x256xbf16>, vector<256x256xbf16>, vector<56x256xf32> -> vector<56x256xf32>
    %12 = arith.addf %6, %11 : vector<56x256xf32>
    %c0_12 = arith.constant 0 : index
    %c0_13 = arith.constant 0 : index
    %13 = vector.load %arg3[%c0_12, %c0_13] : memref<2x256xf32, #tpu.memory_space<vmem>>, vector<1x256xf32>
    %14 = vector.broadcast %13 : vector<1x256xf32> to vector<56x256xf32>
    %15 = arith.mulf %12, %14 : vector<56x256xf32>
    %c1_14 = arith.constant 1 : index
    %c0_15 = arith.constant 0 : index
    %16 = vector.load %arg3[%c1_14, %c0_15] : memref<2x256xf32, #tpu.memory_space<vmem>>, vector<1x256xf32>
    %17 = vector.broadcast %16 : vector<1x256xf32> to vector<56x256xf32>
    %18 = arith.addf %15, %17 : vector<56x256xf32>
    %cst_16 = arith.constant 0.000000e+00 : f32
    %19 = vector.broadcast %cst_16 : f32 to vector<56x256xf32>
    %20 = arith.maximumf %18, %19 : vector<56x256xf32>
    %21 = vector.extract_strided_slice %20 {offsets = [0, 0], sizes = [56, 128], strides = [1, 1]} : vector<56x256xf32> to vector<56x128xf32>
    %22 = vector.extract_strided_slice %20 {offsets = [0, 128], sizes = [56, 128], strides = [1, 1]} : vector<56x256xf32> to vector<56x128xf32>
    %23 = arith.maximumf %21, %22 : vector<56x128xf32>
    %24 = arith.truncf %23 : vector<56x128xf32> to vector<56x128xbf16>
    %c0_17 = arith.constant 0 : index
    %c0_18 = arith.constant 0 : index
    %c0_19 = arith.constant 0 : index
    %25 = vector.load %arg4[%c0_17, %c0_18, %c0_19] : memref<1x56x128xbf16, #tpu.memory_space<vmem>>, vector<1x56x128xbf16>
    %26 = vector.shape_cast %25 : vector<1x56x128xbf16> to vector<56x128xbf16>
    %27 = vector.shape_cast %24 : vector<56x128xbf16> to vector<1x56x128xbf16>
    tpu.vector_store %arg4[%c0_17, %c0_18, %c0_19], %27 {strides = array<i32>} : memref<1x56x128xbf16, #tpu.memory_space<vmem>>, vector<1x56x128xbf16>,
    return
  }
  func.func @transform_0(%arg0: i32) -> (i32, i32, i32) {
    %c0_i32 = arith.constant 0 : i32
    %c0_i32_0 = arith.constant 0 : i32
    %c0_i32_1 = arith.constant 0 : i32
    return %arg0, %c0_i32, %c0_i32_0 : i32, i32, i32
  }
  func.func @transform_1(%arg0: i32) -> (i32, i32, i32) {
    %c0_i32 = arith.constant 0 : i32
    %c0_i32_0 = arith.constant 0 : i32
    %c0_i32_1 = arith.constant 0 : i32
    %c0_i32_2 = arith.constant 0 : i32
    return %c0_i32, %c0_i32_0, %c0_i32_1 : i32, i32, i32
  }
  func.func @transform_2(%arg0: i32) -> (i32, i32) {
    %c0_i32 = arith.constant 0 : i32
    %c0_i32_0 = arith.constant 0 : i32
    %c0_i32_1 = arith.constant 0 : i32
    return %c0_i32, %c0_i32_0 : i32, i32
  }
  func.func @transform_3(%arg0: i32) -> (i32, i32, i32) {
    %c0_i32 = arith.constant 0 : i32
    %c0_i32_0 = arith.constant 0 : i32
    %c0_i32_1 = arith.constant 0 : i32
    return %arg0, %c0_i32, %c0_i32_0 : i32, i32, i32
  }
}

module attributes {stable_mosaic.version = 11 : i64} {
  func.func @_fc1_fc2_kernel(%arg0: i32, %arg1: i32, %arg2: memref<2x1792xbf16, #tpu.memory_space<vmem>>, %arg3: memref<1792x384xbf16, #tpu.memory_space<vmem>>, %arg4: memref<2x384xf32, #tpu.memory_space<vmem>>, %arg5: memref<384x128xbf16, #tpu.memory_space<vmem>>, %arg6: memref<1x2x128xf32, #tpu.memory_space<vmem>>, %arg7: memref<2x384xf32, #tpu.memory_space<vmem>>) attributes {dimension_semantics = [#tpu.dimension_semantics<parallel>, #tpu.dimension_semantics<arbitrary>], iteration_bounds = array<i64: 2, 4>, scalar_prefetch = 0 : i64, scratch_operands = 1 : i64, tpu.core_type = #tpu.core_type<tc>, window_params = [{transform_indices = @transform_0, window_bounds = array<i64: 2, 1792>}, {transform_indices = @transform_1, window_bounds = array<i64: 1792, 384>}, {transform_indices = @transform_2, window_bounds = array<i64: 2, 384>}, {transform_indices = @transform_3, window_bounds = array<i64: 384, 128>}, {transform_indices = @transform_4, window_bounds = array<i64: 1, 2, 128>}]} {
    %c0_i32 = arith.constant 0 : i32
    %0 = arith.cmpi eq, %arg1, %c0_i32 : i32
    %1 = arith.extui %0 : i1 to i32
    %c0_i32_0 = arith.constant 0 : i32
    %2 = arith.cmpi ne, %1, %c0_i32_0 : i32
    scf.if %2 {
      %cst_9 = arith.constant 0.000000e+00 : f32
      %12 = vector.broadcast %cst_9 : f32 to vector<2x384xf32>
      %c0_10 = arith.constant 0 : index
      %c0_11 = arith.constant 0 : index
      %13 = vector.load %arg7[%c0_10, %c0_11] : memref<2x384xf32, #tpu.memory_space<vmem>>, vector<2x384xf32>
      tpu.vector_store %arg7[%c0_10, %c0_11], %12 {strides = array<i32>} : memref<2x384xf32, #tpu.memory_space<vmem>>, vector<2x384xf32>,
    } else {
    }
    %c0 = arith.constant 0 : index
    %c0_1 = arith.constant 0 : index
    %3 = vector.load %arg7[%c0, %c0_1] : memref<2x384xf32, #tpu.memory_space<vmem>>, vector<2x384xf32>
    %c0_2 = arith.constant 0 : index
    %c0_3 = arith.constant 0 : index
    %4 = vector.load %arg2[%c0_2, %c0_3] : memref<2x1792xbf16, #tpu.memory_space<vmem>>, vector<2x1792xbf16>
    %c0_4 = arith.constant 0 : index
    %c0_5 = arith.constant 0 : index
    %5 = vector.load %arg3[%c0_4, %c0_5] : memref<1792x384xbf16, #tpu.memory_space<vmem>>, vector<1792x384xbf16>
    %cst = arith.constant dense<0.000000e+00> : vector<2x384xf32>
    %6 = tpu.matmul %4, %5, %cst {dimension_numbers = #tpu.dot_dimension_numbers<[1], [0], [0], [1], [0, 0, 1, 1], [], []>} : vector<2x1792xbf16>, vector<1792x384xbf16>, vector<2x384xf32> -> vector<2x384xf32>
    %7 = arith.addf %3, %6 : vector<2x384xf32>
    %c0_6 = arith.constant 0 : index
    %c0_7 = arith.constant 0 : index
    %8 = vector.load %arg7[%c0_6, %c0_7] : memref<2x384xf32, #tpu.memory_space<vmem>>, vector<2x384xf32>
    tpu.vector_store %arg7[%c0_6, %c0_7], %7 {strides = array<i32>} : memref<2x384xf32, #tpu.memory_space<vmem>>, vector<2x384xf32>,
    %c3_i32 = arith.constant 3 : i32
    %9 = arith.cmpi eq, %arg1, %c3_i32 : i32
    %10 = arith.extui %9 : i1 to i32
    %c0_i32_8 = arith.constant 0 : i32
    %11 = arith.cmpi ne, %10, %c0_i32_8 : i32
    scf.if %11 {
      %c0_9 = arith.constant 0 : index
      %c0_10 = arith.constant 0 : index
      %12 = vector.load %arg7[%c0_9, %c0_10] : memref<2x384xf32, #tpu.memory_space<vmem>>, vector<2x384xf32>
      %c0_11 = arith.constant 0 : index
      %c0_12 = arith.constant 0 : index
      %13 = vector.load %arg4[%c0_11, %c0_12] : memref<2x384xf32, #tpu.memory_space<vmem>>, vector<1x384xf32>
      %14 = vector.broadcast %13 : vector<1x384xf32> to vector<2x384xf32>
      %15 = arith.mulf %12, %14 : vector<2x384xf32>
      %c1 = arith.constant 1 : index
      %c0_13 = arith.constant 0 : index
      %16 = vector.load %arg4[%c1, %c0_13] : memref<2x384xf32, #tpu.memory_space<vmem>>, vector<1x384xf32>
      %17 = vector.broadcast %16 : vector<1x384xf32> to vector<2x384xf32>
      %18 = arith.addf %15, %17 : vector<2x384xf32>
      %cst_14 = arith.constant 0.000000e+00 : f32
      %19 = vector.broadcast %cst_14 : f32 to vector<2x384xf32>
      %20 = arith.maximumf %18, %19 : vector<2x384xf32>
      %21 = arith.truncf %20 : vector<2x384xf32> to vector<2x384xbf16>
      %c0_15 = arith.constant 0 : index
      %c0_16 = arith.constant 0 : index
      %22 = vector.load %arg5[%c0_15, %c0_16] : memref<384x128xbf16, #tpu.memory_space<vmem>>, vector<384x128xbf16>
      %cst_17 = arith.constant dense<0.000000e+00> : vector<2x128xf32>
      %23 = tpu.matmul %21, %22, %cst_17 {dimension_numbers = #tpu.dot_dimension_numbers<[1], [0], [0], [1], [0, 0, 1, 1], [], []>} : vector<2x384xbf16>, vector<384x128xbf16>, vector<2x128xf32> -> vector<2x128xf32>
      %c0_18 = arith.constant 0 : index
      %c0_19 = arith.constant 0 : index
      %c0_20 = arith.constant 0 : index
      %24 = vector.load %arg6[%c0_18, %c0_19, %c0_20] : memref<1x2x128xf32, #tpu.memory_space<vmem>>, vector<1x2x128xf32>
      %25 = vector.shape_cast %24 : vector<1x2x128xf32> to vector<2x128xf32>
      %26 = vector.shape_cast %23 : vector<2x128xf32> to vector<1x2x128xf32>
      tpu.vector_store %arg6[%c0_18, %c0_19, %c0_20], %26 {strides = array<i32>} : memref<1x2x128xf32, #tpu.memory_space<vmem>>, vector<1x2x128xf32>,
    } else {
    }
    return
  }
  func.func @transform_0(%arg0: i32, %arg1: i32) -> (i32, i32) {
    %c0_i32 = arith.constant 0 : i32
    %c0_i32_0 = arith.constant 0 : i32
    return %c0_i32, %arg1 : i32, i32
  }
  func.func @transform_1(%arg0: i32, %arg1: i32) -> (i32, i32) {
    %c0_i32 = arith.constant 0 : i32
    return %arg1, %arg0 : i32, i32
  }
  func.func @transform_2(%arg0: i32, %arg1: i32) -> (i32, i32) {
    %c0_i32 = arith.constant 0 : i32
    %c0_i32_0 = arith.constant 0 : i32
    return %c0_i32, %arg0 : i32, i32
  }
  func.func @transform_3(%arg0: i32, %arg1: i32) -> (i32, i32) {
    %c0_i32 = arith.constant 0 : i32
    %c0_i32_0 = arith.constant 0 : i32
    return %arg0, %c0_i32 : i32, i32
  }
  func.func @transform_4(%arg0: i32, %arg1: i32) -> (i32, i32, i32) {
    %c0_i32 = arith.constant 0 : i32
    %c0_i32_0 = arith.constant 0 : i32
    %c0_i32_1 = arith.constant 0 : i32
    return %arg0, %c0_i32, %c0_i32_0 : i32, i32, i32
  }
}

module attributes {stable_mosaic.version = 11 : i64} {
  func.func @_head_kernel(%arg0: i32, %arg1: memref<2x2x128xf32, #tpu.memory_space<vmem>>, %arg2: memref<2x128xf32, #tpu.memory_space<vmem>>, %arg3: memref<128x128xbf16, #tpu.memory_space<vmem>>, %arg4: memref<1x128xf32, #tpu.memory_space<vmem>>, %arg5: memref<2x128xf32, #tpu.memory_space<vmem>>) attributes {dimension_semantics = [#tpu.dimension_semantics<arbitrary>], iteration_bounds = array<i64: 1>, scalar_prefetch = 0 : i64, scratch_operands = 0 : i64, tpu.core_type = #tpu.core_type<tc>, window_params = [{pipeline_mode = #tpu.pipeline_mode<synchronous>, transform_indices = @transform_0, window_bounds = array<i64: 2, 2, 128>}, {pipeline_mode = #tpu.pipeline_mode<synchronous>, transform_indices = @transform_1, window_bounds = array<i64: 2, 128>}, {pipeline_mode = #tpu.pipeline_mode<synchronous>, transform_indices = @transform_2, window_bounds = array<i64: 128, 128>}, {pipeline_mode = #tpu.pipeline_mode<synchronous>, transform_indices = @transform_3, window_bounds = array<i64: 1, 128>}, {pipeline_mode = #tpu.pipeline_mode<synchronous>, transform_indices = @transform_4, window_bounds = array<i64: 2, 128>}]} {
    %c0 = arith.constant 0 : index
    %c0_0 = arith.constant 0 : index
    %c0_1 = arith.constant 0 : index
    %0 = vector.load %arg1[%c0, %c0_0, %c0_1] : memref<2x2x128xf32, #tpu.memory_space<vmem>>, vector<2x2x128xf32>
    %cst = arith.constant dense<0.000000e+00> : vector<2x128xf32>
    %1 = vector.multi_reduction <add>, %0, %cst [0] : vector<2x2x128xf32> to vector<2x128xf32>
    %c0_2 = arith.constant 0 : index
    %c0_3 = arith.constant 0 : index
    %2 = vector.load %arg2[%c0_2, %c0_3] : memref<2x128xf32, #tpu.memory_space<vmem>>, vector<1x128xf32>
    %3 = vector.broadcast %2 : vector<1x128xf32> to vector<2x128xf32>
    %4 = arith.mulf %1, %3 : vector<2x128xf32>
    %c1 = arith.constant 1 : index
    %c0_4 = arith.constant 0 : index
    %5 = vector.load %arg2[%c1, %c0_4] : memref<2x128xf32, #tpu.memory_space<vmem>>, vector<1x128xf32>
    %6 = vector.broadcast %5 : vector<1x128xf32> to vector<2x128xf32>
    %7 = arith.addf %4, %6 : vector<2x128xf32>
    %cst_5 = arith.constant 0.000000e+00 : f32
    %8 = vector.broadcast %cst_5 : f32 to vector<2x128xf32>
    %9 = arith.maximumf %7, %8 : vector<2x128xf32>
    %10 = arith.truncf %9 : vector<2x128xf32> to vector<2x128xbf16>
    %c0_6 = arith.constant 0 : index
    %c0_7 = arith.constant 0 : index
    %11 = vector.load %arg3[%c0_6, %c0_7] : memref<128x128xbf16, #tpu.memory_space<vmem>>, vector<128x128xbf16>
    %cst_8 = arith.constant dense<0.000000e+00> : vector<2x128xf32>
    %12 = tpu.matmul %10, %11, %cst_8 {dimension_numbers = #tpu.dot_dimension_numbers<[1], [0], [0], [1], [0, 0, 1, 1], [], []>} : vector<2x128xbf16>, vector<128x128xbf16>, vector<2x128xf32> -> vector<2x128xf32>
    %c0_9 = arith.constant 0 : index
    %c0_10 = arith.constant 0 : index
    %13 = vector.load %arg4[%c0_9, %c0_10] : memref<1x128xf32, #tpu.memory_space<vmem>>, vector<1x128xf32>
    %14 = vector.broadcast %13 : vector<1x128xf32> to vector<2x128xf32>
    %15 = arith.addf %12, %14 : vector<2x128xf32>
    %c0_11 = arith.constant 0 : index
    %c0_12 = arith.constant 0 : index
    %16 = vector.load %arg5[%c0_11, %c0_12] : memref<2x128xf32, #tpu.memory_space<vmem>>, vector<2x128xf32>
    tpu.vector_store %arg5[%c0_11, %c0_12], %15 {strides = array<i32>} : memref<2x128xf32, #tpu.memory_space<vmem>>, vector<2x128xf32>,
    return
  }
  func.func @transform_0(%arg0: i32) -> (i32, i32, i32) {
    %c0_i32 = arith.constant 0 : i32
    %c0_i32_0 = arith.constant 0 : i32
    %c0_i32_1 = arith.constant 0 : i32
    %c0_i32_2 = arith.constant 0 : i32
    return %c0_i32, %c0_i32_0, %c0_i32_1 : i32, i32, i32
  }
  func.func @transform_1(%arg0: i32) -> (i32, i32) {
    %c0_i32 = arith.constant 0 : i32
    %c0_i32_0 = arith.constant 0 : i32
    %c0_i32_1 = arith.constant 0 : i32
    return %c0_i32, %c0_i32_0 : i32, i32
  }
  func.func @transform_2(%arg0: i32) -> (i32, i32) {
    %c0_i32 = arith.constant 0 : i32
    %c0_i32_0 = arith.constant 0 : i32
    %c0_i32_1 = arith.constant 0 : i32
    return %c0_i32, %c0_i32_0 : i32, i32
  }
  func.func @transform_3(%arg0: i32) -> (i32, i32) {
    %c0_i32 = arith.constant 0 : i32
    %c0_i32_0 = arith.constant 0 : i32
    %c0_i32_1 = arith.constant 0 : i32
    return %c0_i32, %c0_i32_0 : i32, i32
  }
  func.func @transform_4(%arg0: i32) -> (i32, i32) {
    %c0_i32 = arith.constant 0 : i32
    %c0_i32_0 = arith.constant 0 : i32
    %c0_i32_1 = arith.constant 0 : i32
    return %c0_i32, %c0_i32_0 : i32, i32
  }
}

</mosaic_0001>

<llo_original>
// kernel: tile.47
$region0: #{tile.47}
  #allocation0 [shape = 's32[1]{0}', space=sflag, size = 0x4, scoped, tag = 'scoped memory for tile.47']
  %s0 = inlined_call_operand.vmem [shape: f32[16], index: 0, kind: input, shape index: {}]
  %s1 = inlined_call_operand.vmem [shape: f32[16,16], index: 1, kind: output, shape index: {}]
  // Predicated region
  $region2: #{tile.47} parent=0 // pred_check
    _
  $region3: #{tile.47} parent=0 // pred_check_branch
    %3 = sbr.rel (0) target = $region5
  $region4: #{tile.47} parent=0 // pred_region
    _
  $region5: #{tile.47} parent=0 // pred_fallthru
    _
  %v4 = vld [vmem:[%s0] ss:$0 sm:$0xff]
  %5 = vst [vmem:[%s1] sm:$0xff] %v4
  %s6 = scalar_lea.vmem %s1, 8
  %7 = vst [vmem:[%s6] sm:$0xff] %v4

// kernel: tile.49
$region0: #{tile.49}
  %s0 = inlined_call_operand.vmem [shape: f32[16,16], index: 0, kind: input, shape index: {}]
  %s1 = inlined_call_operand.vmem [shape: f32[1,256], index: 1, kind: output, shape index: {}]
  $region1: #{tile.49} parent=0
    #allocation0 [shape = 'u8[8192]{0}', space=vmem, size = 0x2000, scoped, tag = 'scoped mem for output reshape']
    %s2 = smov 3
    %v3 = vld [vmem:[%s0] ss:$8 sm:%s2]
    %vm4 = vcmask 130048
    %5 = vst.msk [vmem:[#allocation0] ss:$8 sm:$0x3] %vm4, %v3
    %s6 = scalar_lea.vmem %s0, 7
    %s7 = smov 3
    %v8 = vld [vmem:[%s6] ss:$8 sm:%s7]
    %9 = vrot.lane.b32.xlu0 %v8, 112
    %v10 = vpop.permute.xlu0 %9
    %vm11 = vcmask 1048448
    %12 = vst.msk [vmem:[#allocation0] ss:$8 sm:$0x3] %vm11, %v10
    %s13 = scalar_lea.vmem %s0, 6
    %s14 = smov 3
    %v15 = vld [vmem:[%s13] ss:$8 sm:%s14]
    %16 = vrot.lane.b32.xlu0 %v15, 96
    %v17 = vpop.permute.xlu0 %16
    %vm18 = vcmask 917248
    %19 = vst.msk [vmem:[#allocation0] ss:$8 sm:$0x3] %vm18, %v17
    %s20 = scalar_lea.vmem %s0, 5
    %s21 = smov 3
    %v22 = vld [vmem:[%s20] ss:$8 sm:%s21]
    %23 = vrot.lane.b32.xlu0 %v22, 80
    %v24 = vpop.permute.xlu0 %23
    %vm25 = vcmask 786048
    %26 = vst.msk [vmem:[#allocation0] ss:$8 sm:$0x3] %vm25, %v24
    %s27 = scalar_lea.vmem %s0, 4
    %s28 = smov 3
    %v29 = vld [vmem:[%s27] ss:$8 sm:%s28]
    %30 = vrot.lane.b32.xlu0 %v29, 64
    %v31 = vpop.permute.xlu0 %30
    %vm32 = vcmask 654848
    %33 = vst.msk [vmem:[#allocation0] ss:$8 sm:$0x3] %vm32, %v31
    %s34 = scalar_lea.vmem %s0, 3
    %s35 = smov 3
    %v36 = vld [vmem:[%s34] ss:$8 sm:%s35]
    %37 = vrot.lane.b32.xlu0 %v36, 48
    %v38 = vpop.permute.xlu0 %37
    %vm39 = vcmask 523648
    %40 = vst.msk [vmem:[#allocation0] ss:$8 sm:$0x3] %vm39, %v38
    %s41 = scalar_lea.vmem %s0, 2
    %s42 = smov 3
    %v43 = vld [vmem:[%s41] ss:$8 sm:%s42]
    %44 = vrot.lane.b32.xlu0 %v43, 32
    %v45 = vpop.permute.xlu0 %44
    %vm46 = vcmask 392448
    %47 = vst.msk [vmem:[#allocation0] ss:$8 sm:$0x3] %vm46, %v45
    %s48 = scalar_lea.vmem %s0, 1
    %s49 = smov 3
    %v50 = vld [vmem:[%s48] ss:$8 sm:%s49]
    %51 = vrot.lane.b32.xlu0 %v50, 16
    %v52 = vpop.permute.xlu0 %51
    %vm53 = vcmask 261248
    %54 = vst.msk [vmem:[#allocation0] ss:$8 sm:$0x3] %vm53, %v52
    %s56 = sshllo.u32 0, 1
    %v58 = vld [vmem:[#allocation0] sm:%s56]
    %s59 = sshllo.u32 0, 1
    %60 = vst [vmem:[%s1] sm:%s59] %v58
    %s61 = scalar_lea.vmem [#allocation0], 8
    %v62 = vld [vmem:[%s61] sm:%s56]
    %s63 = sshllo.u32 0, 1
    %s64 = scalar_lea.vmem %s1, 1
    %65 = vst [vmem:[%s64] sm:%s63] %v62

// kernel: network_forward.6
$region0: #{network_forward.6}
  #allocation0 [shape = 'u32[]', space=smem, size = 0x4, offset = 0x4, fixed_abs, tag = 'smem constant byte address 0x4 - core index']
  #allocation1 [shape = 'u32[144,128]{1,0:T(1,128)}', space=vmem, size = 0x12000, scoped, tag = 'internal scratch']
  %s0 = inlined_call_operand.vmem [shape: bf16[2,116,48], index: 0, kind: input, shape index: {}]
  %s1 = inlined_call_operand.vmem [shape: bf16[5,48,256], index: 1, kind: input, shape index: {}]
  %s2 = inlined_call_operand.vmem [shape: f32[2,256], index: 2, kind: input, shape index: {}]
  %s3 = inlined_call_operand.vmem [shape: bf16[2,112,128], index: 3, kind: output, shape index: {}]
  %s4 = sld [smem:[#allocation0]]
  $region45: #{network_forward.6} parent=0
    _
  %s6 = ssub.s32 1, %s4
  %s7 = scalar_select 0, %s6, %s4
  loop: start=0, step=1, limit=4
  $region2: #{network_forward.6} parent=0 // loop_pre_header
    _
  $region3: #{network_forward.6} parent=0 // loop_header
    %s9 = sphi 0, %s13
    %p10 = scmp.ge.s32.totalorder %s9, 4
    %s19 = sphi 0, %s21
    %s22 = sphi 0, %s19
    %s23 = sphi 0, %s22
    %s39 = sphi 0, %s23
    %s43 = sphi 0, %s43
    %s45 = sphi 0, %s43
    %s46 = sphi 0, %s45
    %s60 = sphi 0, %s46
    %s64 = sphi 0, %s64
    %s66 = sphi 0, %s64
    %s67 = sphi 0, %s66
    %s81 = sphi 0, %s67
    %s87 = sphi 0, %s89
    %s90 = sphi 0, %s87
    %s91 = sphi 0, %s90
    %s107 = sphi 0, %s91
  $region4: #{network_forward.6} parent=0 // loop_header_branch
    %12 = sbr.rel (%p10) target = $region8
  $region5: #{network_forward.6} parent=0 // loop_body
    %s14 = ssub.s32 %s9, 1
    %s15 = ssub.s32 %s9, 2
    %s16 = sadd.s32 %s9, 1
    %s17 = ssub.s32 %s9, %s16
    %p18 = scmp.eq.s32.totalorder %s17, 0
    %s20 = sadd.s32 %s19, 1
    %s21 = scalar_select %p18, %s19, %s20
    %p24 = pneg %p18
    %p25 = scmp.eq.s32.totalorder %s9, 1
    %p26 = por %p24, %p25
    %p27 = scmp.ne.s32.totalorder %s19, %s22
    %p28 = scmp.eq.s32.totalorder %s9, 0
    %p29 = por %p27, %p28
    %p30 = scmp.ne.s32.totalorder %s19, %s22
    %p31 = scmp.eq.s32.totalorder %s14, 1
    %p32 = por %p30, %p31
    %p33 = scmp.ne.s32.totalorder %s22, %s23
    %p34 = scmp.eq.s32.totalorder %s14, 0
    %p35 = por %p33, %p34
    %p36 = scmp.ne.s32.totalorder %s22, %s23
    %p37 = scmp.eq.s32.totalorder %s15, 1
    %p38 = por %p36, %p37
    %p40 = scmp.ne.s32.totalorder %s23, %s39
    %p41 = scmp.eq.s32.totalorder %s15, 0
    %p42 = por %p40, %p41
    %s44 = sadd.s32 %s43, 1
    %p47 = scmp.eq.s32.totalorder %s9, 1
    %p48 = scmp.ne.s32.totalorder %s43, %s45
    %p49 = scmp.eq.s32.totalorder %s9, 0
    %p50 = por %p48, %p49
    %p51 = scmp.ne.s32.totalorder %s43, %s45
    %p52 = scmp.eq.s32.totalorder %s14, 1
    %p53 = por %p51, %p52
    %p54 = scmp.ne.s32.totalorder %s45, %s46
    %p55 = scmp.eq.s32.totalorder %s14, 0
    %p56 = por %p54, %p55
    %p57 = scmp.ne.s32.totalorder %s45, %s46
    %p58 = scmp.eq.s32.totalorder %s15, 1
    %p59 = por %p57, %p58
    %p61 = scmp.ne.s32.totalorder %s46, %s60
    %p62 = scmp.eq.s32.totalorder %s15, 0
    %p63 = por %p61, %p62
    %s65 = sadd.s32 %s64, 1
    %p68 = scmp.eq.s32.totalorder %s9, 1
    %p69 = scmp.ne.s32.totalorder %s64, %s66
    %p70 = scmp.eq.s32.totalorder %s9, 0
    %p71 = por %p69, %p70
    %p72 = scmp.ne.s32.totalorder %s64, %s66
    %p73 = scmp.eq.s32.totalorder %s14, 1
    %p74 = por %p72, %p73
    %p75 = scmp.ne.s32.totalorder %s66, %s67
    %p76 = scmp.eq.s32.totalorder %s14, 0
    %p77 = por %p75, %p76
    %p78 = scmp.ne.s32.totalorder %s66, %s67
    %p79 = scmp.eq.s32.totalorder %s15, 1
    %p80 = por %p78, %p79
    %p82 = scmp.ne.s32.totalorder %s67, %s81
    %p83 = scmp.eq.s32.totalorder %s15, 0
    %p84 = por %p82, %p83
    %s85 = ssub.s32 %s9, %s16
    %p86 = scmp.eq.s32.totalorder %s85, 0
    %s88 = sadd.s32 %s87, 1
    %s89 = scalar_select %p86, %s87, %s88
    %p92 = pneg %p86
    %p93 = scmp.eq.s32.totalorder %s9, 1
    %p94 = por %p92, %p93
    %p95 = scmp.ne.s32.totalorder %s87, %s90
    %p96 = scmp.eq.s32.totalorder %s9, 0
    %p97 = por %p95, %p96
    %p98 = scmp.ne.s32.totalorder %s87, %s90
    %p99 = scmp.eq.s32.totalorder %s14, 1
    %p100 = por %p98, %p99
    %p101 = scmp.ne.s32.totalorder %s90, %s91
    %p102 = scmp.eq.s32.totalorder %s14, 0
    %p103 = por %p101, %p102
    %p104 = scmp.ne.s32.totalorder %s90, %s91
    %p105 = scmp.eq.s32.totalorder %s15, 1
    %p106 = por %p104, %p105
    %p108 = scmp.ne.s32.totalorder %s91, %s107
    %p109 = scmp.eq.s32.totalorder %s15, 0
    %p110 = por %p108, %p109
    %p111 = scmp.le.s32.totalorder 1, %s9
    %p112 = scmp.lt.s32.totalorder %s9, 3
    %p113 = pnand %p111, %p112
    %p114 = pneg %p113
    // Predicated region
    $region9: #{network_forward.6} parent=5 // pred_check
      _
    $region10: #{network_forward.6} parent=5 // pred_check_branch
      %116 = sbr.rel (%p113) target = $region12
    $region11: #{network_forward.6} parent=5 // pred_region
      %s117 = ssub.s32 %s9, 1
      // Predicated region
      $region13: #{network_forward.6} parent=11 // pred_check
        %p118 = pneg %p56
      $region14: #{network_forward.6} parent=11 // pred_check_branch
        %120 = sbr.rel (%p118) target = $region16
      $region15: #{network_forward.6} parent=11 // pred_region
        _
      $region16: #{network_forward.6} parent=11 // pred_fallthru
        _
      // Predicated region
      $region17: #{network_forward.6} parent=11 // pred_check
        %p121 = pneg %p77
      $region18: #{network_forward.6} parent=11 // pred_check_branch
        %123 = sbr.rel (%p121) target = $region20
      $region19: #{network_forward.6} parent=11 // pred_region
        _
      $region20: #{network_forward.6} parent=11 // pred_fallthru
        _
    $region12: #{network_forward.6} parent=5 // pred_fallthru
      _
    %p124 = scmp.lt.s32.totalorder %s9, 2
    // Predicated region
    $region21: #{network_forward.6} parent=5 // pred_check
      %p125 = pneg %p124
    $region22: #{network_forward.6} parent=5 // pred_check_branch
      %127 = sbr.rel (%p125) target = $region24
    $region23: #{network_forward.6} parent=5 // pred_region
      // Predicated region
      $region25: #{network_forward.6} parent=23 // pred_check
        %p128 = pneg %p29
      $region26: #{network_forward.6} parent=23 // pred_check_branch
        %130 = sbr.rel (%p128) target = $region28
      $region27: #{network_forward.6} parent=23 // pred_region
        %p131 = scmp.lt.s32.totalorder %s9, 1
        %s132 = scalar_select %p131, %s9, 1
        %s133 = smul.addr %s132, 15
        %s134 = smul.addr %s133, 4
        %s135 = scalar_lea.vmem %s0, %s134
      $region28: #{network_forward.6} parent=23 // pred_fallthru
        _
    $region24: #{network_forward.6} parent=5 // pred_fallthru
      _
    %p136 = scmp.le.s32.totalorder 1, %s9
    %p137 = scmp.lt.s32.totalorder %s9, 3
    %p138 = pnand %p136, %p137
    %p139 = pneg %p138
    // Predicated region
    $region29: #{network_forward.6} parent=5 // pred_check
      _
    $region30: #{network_forward.6} parent=5 // pred_check_branch
      %141 = sbr.rel (%p138) target = $region32
    $region31: #{network_forward.6} parent=5 // pred_region
      %s142 = ssub.s32 %s9, 1
      %p143 = scmp.lt.s32.totalorder %s14, 1
      %s144 = scalar_select %p143, %s14, 1
      %s145 = smul.addr %s144, 15
      %s146 = smul.addr %s145, 4
      %s147 = scalar_lea.vmem %s0, %s146
      %p148 = pneg %p35
      %p149 = pneg %p32
      %p150 = pneg %p56
      %p151 = pneg %p53
      %p152 = pneg %p77
      %p153 = pneg %p74
      %p154 = pneg %p103
      %p155 = pneg %p100
      %p156 = scmp.lt.s32.totalorder %s14, 1
      %s157 = scalar_select %p156, %s14, 1
      %s158 = smul.addr %s157, 14
      %s159 = smul.addr %s158, 4
      %s160 = scalar_lea.vmem %s3, %s159
      %p161 = scmp.lt.s32.totalorder %s14, 1
      %s162 = scalar_select %p161, %s14, 1
      %s163 = smul.addr %s162, 15
      %s164 = smul.addr %s163, 4
      %s165 = scalar_lea.vmem %s0, %s164
      %p166 = scmp.lt.s32.totalorder %s14, 1
      %s167 = scalar_select %p166, %s14, 1
      %s168 = smul.addr %s167, 14
      %s169 = smul.addr %s168, 4
      %s170 = scalar_lea.vmem %s3, %s169
      %v172 = vld [vmem:[%s165] sm:$0xf]
      %v173 = vld [vmem:[%s165 + $0x4] sm:$0xf]
      %v174 = vld [vmem:[%s165 + $0x8] sm:$0xf]
      %v175 = vld [vmem:[%s165 + $0xc] sm:$0xf]
      %v176 = vld [vmem:[%s165 + $0x10] sm:$0xf]
      %v177 = vld [vmem:[%s165 + $0x14] sm:$0xf]
      %v178 = vld [vmem:[%s165 + $0x18] sm:$0xf]
      %v179 = vld [vmem:[%s165 + $0x1c] sm:$0xf]
      %v180 = vld [vmem:[%s165 + $0x20] sm:$0xf]
      %v181 = vld [vmem:[%s165 + $0x24] sm:$0xf]
      %v182 = vld [vmem:[%s165 + $0x28] sm:$0xf]
      %v183 = vld [vmem:[%s165 + $0x2c] sm:$0xf]
      %v184 = vld [vmem:[%s165 + $0x30] sm:$0xf]
      %v185 = vld [vmem:[%s165 + $0x34] sm:$0xf]
      %v186 = vld [vmem:[%s1] sm:$0xff]
      %v187 = vld [vmem:[%s1 + $0x8] sm:$0xff]
      %v188 = vld [vmem:[%s1 + $0x10] sm:$0xff]
      %v189 = vld [vmem:[%s1 + $0x18] sm:$0xff]
      %v190 = vld [vmem:[%s1 + $0x20] sm:$0xff]
      %v191 = vld [vmem:[%s1 + $0x28] sm:$0xff]
      %v192 = vld [vmem:[%s165 + $0x38] sm:$0x1]
      %s193 = scalar_lea.vmem %s1, 48
      %v194 = vld [vmem:[%s193] sm:$0xff]
      %v195 = vld [vmem:[%s193 + $0x8] sm:$0xff]
      %v196 = vld [vmem:[%s193 + $0x10] sm:$0xff]
      %v197 = vld [vmem:[%s193 + $0x18] sm:$0xff]
      %v198 = vld [vmem:[%s193 + $0x20] sm:$0xff]
      %v199 = vld [vmem:[%s193 + $0x28] sm:$0xff]
      %v215 = vunpack.c.l.b16 %v172
      %v216 = vunpack.c.l.b16 %v173
      %v217 = vunpack.c.l.b16 %v174
      %v218 = vunpack.c.l.b16 %v175
      %v219 = vunpack.c.l.b16 %v176
      %v220 = vunpack.c.l.b16 %v177
      %v221 = vunpack.c.l.b16 %v178
      %v222 = vunpack.c.l.b16 %v179
      %v223 = vunpack.c.l.b16 %v180
      %v224 = vunpack.c.l.b16 %v181
      %v225 = vunpack.c.l.b16 %v182
      %v226 = vunpack.c.l.b16 %v183
      %v227 = vunpack.c.l.b16 %v184
      %v228 = vunpack.c.l.b16 %v185
      %v229 = vunpack.c.l.b16 %v192
      %v230 = vpack.c.b16 %v216, %v215
      %v231 = vpack.c.b16 %v218, %v217
      %v232 = vpack.c.b16 %v220, %v219
      %v233 = vpack.c.b16 %v222, %v221
      %v234 = vpack.c.b16 %v224, %v223
      %v235 = vpack.c.b16 %v226, %v225
      %v236 = vpack.c.b16 %v228, %v227
      %v237 = vpack.c.b16 %v229, %v229
      %vm238 = vsmask.f32 7424
      %v240 = vshrl.u32 %v230, 16
      %v242 = vshll.u32 %v230, 16
      %v244 = vrot.slane %v242, 1
      %v245 = vor.u32 %v240, %v244
      %v247 = vshll.u32 %v231, 16
      %v249 = vrot.slane %v247, 1
      %v250 = vsel %vm238, %v245, %v249
      %v251 = vshrl.u32 %v231, 16
      %v253 = vor.u32 %v251, %v249
      %v255 = vshll.u32 %v232, 16
      %v257 = vrot.slane %v255, 1
      %v258 = vsel %vm238, %v253, %v257
      %v259 = vshrl.u32 %v232, 16
      %v261 = vor.u32 %v259, %v257
      %v263 = vshll.u32 %v233, 16
      %v265 = vrot.slane %v263, 1
      %v266 = vsel %vm238, %v261, %v265
      %v267 = vshrl.u32 %v233, 16
      %v269 = vor.u32 %v267, %v265
      %v271 = vshll.u32 %v234, 16
      %v273 = vrot.slane %v271, 1
      %v274 = vsel %vm238, %v269, %v273
      %v275 = vshrl.u32 %v234, 16
      %v277 = vor.u32 %v275, %v273
      %v279 = vshll.u32 %v235, 16
      %v281 = vrot.slane %v279, 1
      %v282 = vsel %vm238, %v277, %v281
      %v283 = vshrl.u32 %v235, 16
      %v285 = vor.u32 %v283, %v281
      %v287 = vshll.u32 %v236, 16
      %v289 = vrot.slane %v287, 1
      %v290 = vsel %vm238, %v285, %v289
      %v291 = vshrl.u32 %v236, 16
      %v293 = vor.u32 %v291, %v289
      %v295 = vshll.u32 %v237, 16
      %v297 = vrot.slane %v295, 1
      %v298 = vsel %vm238, %v293, %v297
      %v305 = vunpack.c.l.b16 %v194
      %v306 = vunpack.c.h.b16 %v194
      %v307 = vunpack.c.l.b16 %v195
      %v308 = vunpack.c.h.b16 %v195
      %v309 = vunpack.c.l.b16 %v196
      %v310 = vunpack.c.h.b16 %v196
      %v311 = vunpack.c.l.b16 %v197
      %v312 = vunpack.c.h.b16 %v197
      %v313 = vunpack.c.l.b16 %v198
      %v314 = vunpack.c.h.b16 %v198
      %v315 = vunpack.c.l.b16 %v199
      %v316 = vunpack.c.h.b16 %v199
      %v317 = vpack.c.b16 %v307, %v305
      %v318 = vpack.c.b16 %v308, %v306
      %v319 = vpack.c.b16 %v311, %v309
      %v320 = vpack.c.b16 %v312, %v310
      %v321 = vpack.c.b16 %v315, %v313
      %v322 = vpack.c.b16 %v316, %v314
      %vm329 = vcmask 392192
      %v331 = vsel %vm329, %v250, 0
      %v334 = vsel %vm329, %v258, 0
      %v337 = vsel %vm329, %v266, 0
      %v340 = vsel %vm329, %v274, 0
      %v343 = vsel %vm329, %v282, 0
      %v346 = vsel %vm329, %v290, 0
      %v349 = vsel %vm329, %v298, 0
      %351 = vmatprep.subr.bf16.mxu0 %v318
      %352 = vmatpush1.bf16.msra.mxu0 %v317
      %353 = vmatprep.subr.bf16.mxu0 %v320
      %354 = vmatpush1.bf16.msra.mxu0 %v319
      %355 = vmatprep.subr.bf16.mxu0 %v322
      %356 = vmatpush1.bf16.msra.mxu0 %v321
      %357 = vmatprep.subr.bf16.mxu0 0
      %358 = vmatpush1.bf16.msra.mxu0 0
      %359 = vmatprep.subr.bf16.mxu0 0
      %360 = vmatpush1.bf16.msra.mxu0 0
      %361 = vmatprep.subr.bf16.mxu0 0
      %362 = vmatpush1.bf16.msra.mxu0 0
      %363 = vmatprep.subr.bf16.mxu0 0
      %364 = vmatpush1.bf16.msra.mxu0 0
      %365 = vmatprep.subr.bf16.mxu0 0
      %366 = vmatpush1.bf16.msra.mxu0 0
      %367 = vmatprep.subr.bf16.mxu0 0
      %368 = vmatpush1.bf16.msra.mxu0 0
      %369 = vmatprep.subr.bf16.mxu0 0
      %370 = vmatpush1.bf16.msra.mxu0 0
      %371 = vmatprep.subr.bf16.mxu0 0
      %372 = vmatpush1.bf16.msra.mxu0 0
      %373 = vmatprep.subr.bf16.mxu0 0
      %374 = vmatpush1.bf16.msra.mxu0 0
      %375 = vmatprep.subr.bf16.mxu0 0
      %376 = vmatpush1.bf16.msra.mxu0 0
      %377 = vmatprep.subr.bf16.mxu0 0
      %378 = vmatpush1.bf16.msra.mxu0 0
      %379 = vmatprep.subr.bf16.mxu0 0
      %380 = vmatpush1.bf16.msra.mxu0 0
      %381 = vmatprep.subr.bf16.mxu0 0
      %382 = vmatpush1.bf16.msra.mxu0 0
      %383 = vmatprep.mubr.bf16.mxu0 0
      %384 = vmatmul.mubr.bf16.gmra.mrb[0].mxu0 %v331
      %v385 = vpop.f32.mrb[0].mxu0
      %v386 = vadd.f32 0.0, %v385
      %v387 = vpop.f32.mrb[0].mxu0
      %v388 = vadd.f32 0.0, %v387
      %v389 = vpop.f32.mrb[0].mxu0
      %v390 = vadd.f32 0.0, %v389
      %v391 = vpop.f32.mrb[0].mxu0
      %v392 = vadd.f32 0.0, %v391
      %393 = vmatprep.mubr.bf16.mxu0 0
      %394 = vmatmul.mubr.bf16.gmra.mrb[0].mxu0 %v334
      %v395 = vpop.f32.mrb[0].mxu0
      %v396 = vadd.f32 0.0, %v395
      %v397 = vpop.f32.mrb[0].mxu0
      %v398 = vadd.f32 0.0, %v397
      %v399 = vpop.f32.mrb[0].mxu0
      %v400 = vadd.f32 0.0, %v399
      %v401 = vpop.f32.mrb[0].mxu0
      %v402 = vadd.f32 0.0, %v401
      %403 = vmatprep.mubr.bf16.mxu0 0
      %404 = vmatmul.mubr.bf16.gmra.mrb[0].mxu0 %v337
      %v405 = vpop.f32.mrb[0].mxu0
      %v406 = vadd.f32 0.0, %v405
      %v407 = vpop.f32.mrb[0].mxu0
      %v408 = vadd.f32 0.0, %v407
      %v409 = vpop.f32.mrb[0].mxu0
      %v410 = vadd.f32 0.0, %v409
      %v411 = vpop.f32.mrb[0].mxu0
      %v412 = vadd.f32 0.0, %v411
      %413 = vmatprep.mubr.bf16.mxu0 0
      %414 = vmatmul.mubr.bf16.gmra.mrb[0].mxu0 %v340
      %v415 = vpop.f32.mrb[0].mxu0
      %v416 = vadd.f32 0.0, %v415
      %v417 = vpop.f32.mrb[0].mxu0
      %v418 = vadd.f32 0.0, %v417
      %v419 = vpop.f32.mrb[0].mxu0
      %v420 = vadd.f32 0.0, %v419
      %v421 = vpop.f32.mrb[0].mxu0
      %v422 = vadd.f32 0.0, %v421
      %423 = vmatprep.mubr.bf16.mxu0 0
      %424 = vmatmul.mubr.bf16.gmra.mrb[0].mxu0 %v343
      %v425 = vpop.f32.mrb[0].mxu0
      %v426 = vadd.f32 0.0, %v425
      %v427 = vpop.f32.mrb[0].mxu0
      %v428 = vadd.f32 0.0, %v427
      %v429 = vpop.f32.mrb[0].mxu0
      %v430 = vadd.f32 0.0, %v429
      %v431 = vpop.f32.mrb[0].mxu0
      %v432 = vadd.f32 0.0, %v431
      %433 = vmatprep.mubr.bf16.mxu0 0
      %434 = vmatmul.mubr.bf16.gmra.mrb[0].mxu0 %v346
      %v435 = vpop.f32.mrb[0].mxu0
      %v436 = vadd.f32 0.0, %v435
      %v437 = vpop.f32.mrb[0].mxu0
      %v438 = vadd.f32 0.0, %v437
      %v439 = vpop.f32.mrb[0].mxu0
      %v440 = vadd.f32 0.0, %v439
      %v441 = vpop.f32.mrb[0].mxu0
      %v442 = vadd.f32 0.0, %v441
      %443 = vmatprep.mubr.bf16.mxu0 0
      %444 = vmatmul.mubr.bf16.gmra.mrb[0].mxu0 %v349
      %v445 = vpop.f32.mrb[0].mxu0
      %v446 = vadd.f32 0.0, %v445
      %v447 = vpop.f32.mrb[0].mxu0
      %v448 = vadd.f32 0.0, %v447
      %v449 = vpop.f32.mrb[0].mxu0
      %v450 = vadd.f32 0.0, %v449
      %v451 = vpop.f32.mrb[0].mxu0
      %v452 = vadd.f32 0.0, %v451
      %453 = vdwg.mxu0
      %v460 = vunpack.c.l.b16 %v186
      %v461 = vunpack.c.h.b16 %v186
      %v462 = vunpack.c.l.b16 %v187
      %v463 = vunpack.c.h.b16 %v187
      %v464 = vunpack.c.l.b16 %v188
      %v465 = vunpack.c.h.b16 %v188
      %v466 = vunpack.c.l.b16 %v189
      %v467 = vunpack.c.h.b16 %v189
      %v468 = vunpack.c.l.b16 %v190
      %v469 = vunpack.c.h.b16 %v190
      %v470 = vunpack.c.l.b16 %v191
      %v471 = vunpack.c.h.b16 %v191
      %v472 = vpack.c.b16 %v462, %v460
      %v473 = vpack.c.b16 %v463, %v461
      %v474 = vpack.c.b16 %v466, %v464
      %v475 = vpack.c.b16 %v467, %v465
      %v476 = vpack.c.b16 %v470, %v468
      %v477 = vpack.c.b16 %v471, %v469
      %v484 = vsel %vm329, %v230, 0
      %v486 = vsel %vm329, %v231, 0
      %v488 = vsel %vm329, %v232, 0
      %v490 = vsel %vm329, %v233, 0
      %v492 = vsel %vm329, %v234, 0
      %v494 = vsel %vm329, %v235, 0
      %v496 = vsel %vm329, %v236, 0
      %498 = vmatprep.subr.bf16.mxu0 %v473
      %499 = vmatpush1.bf16.msra.mxu0 %v472
      %500 = vmatprep.subr.bf16.mxu0 %v475
      %501 = vmatpush1.bf16.msra.mxu0 %v474
      %502 = vmatprep.subr.bf16.mxu0 %v477
      %503 = vmatpush1.bf16.msra.mxu0 %v476
      %504 = vmatprep.subr.bf16.mxu0 0
      %505 = vmatpush1.bf16.msra.mxu0 0
      %506 = vmatprep.subr.bf16.mxu0 0
      %507 = vmatpush1.bf16.msra.mxu0 0
      %508 = vmatprep.subr.bf16.mxu0 0
      %509 = vmatpush1.bf16.msra.mxu0 0
      %510 = vmatprep.subr.bf16.mxu0 0
      %511 = vmatpush1.bf16.msra.mxu0 0
      %512 = vmatprep.subr.bf16.mxu0 0
      %513 = vmatpush1.bf16.msra.mxu0 0
      %514 = vmatprep.subr.bf16.mxu0 0
      %515 = vmatpush1.bf16.msra.mxu0 0
      %516 = vmatprep.subr.bf16.mxu0 0
      %517 = vmatpush1.bf16.msra.mxu0 0
      %518 = vmatprep.subr.bf16.mxu0 0
      %519 = vmatpush1.bf16.msra.mxu0 0
      %520 = vmatprep.subr.bf16.mxu0 0
      %521 = vmatpush1.bf16.msra.mxu0 0
      %522 = vmatprep.subr.bf16.mxu0 0
      %523 = vmatpush1.bf16.msra.mxu0 0
      %524 = vmatprep.subr.bf16.mxu0 0
      %525 = vmatpush1.bf16.msra.mxu0 0
      %526 = vmatprep.subr.bf16.mxu0 0
      %527 = vmatpush1.bf16.msra.mxu0 0
      %528 = vmatprep.subr.bf16.mxu0 0
      %529 = vmatpush1.bf16.msra.mxu0 0
      %530 = vmatprep.mubr.bf16.mxu0 0
      %531 = vmatmul.mubr.bf16.gmra.mrb[0].mxu0 %v484
      %v532 = vpop.f32.mrb[0].mxu0
      %v533 = vadd.f32 %v386, %v532
      %v534 = vpop.f32.mrb[0].mxu0
      %v535 = vadd.f32 %v388, %v534
      %v536 = vpop.f32.mrb[0].mxu0
      %v537 = vadd.f32 %v390, %v536
      %v538 = vpop.f32.mrb[0].mxu0
      %v539 = vadd.f32 %v392, %v538
      %540 = vmatprep.mubr.bf16.mxu0 0
      %541 = vmatmul.mubr.bf16.gmra.mrb[0].mxu0 %v486
      %v542 = vpop.f32.mrb[0].mxu0
      %v543 = vadd.f32 %v396, %v542
      %v544 = vpop.f32.mrb[0].mxu0
      %v545 = vadd.f32 %v398, %v544
      %v546 = vpop.f32.mrb[0].mxu0
      %v547 = vadd.f32 %v400, %v546
      %v548 = vpop.f32.mrb[0].mxu0
      %v549 = vadd.f32 %v402, %v548
      %550 = vmatprep.mubr.bf16.mxu0 0
      %551 = vmatmul.mubr.bf16.gmra.mrb[0].mxu0 %v488
      %v552 = vpop.f32.mrb[0].mxu0
      %v553 = vadd.f32 %v406, %v552
      %v554 = vpop.f32.mrb[0].mxu0
      %v555 = vadd.f32 %v408, %v554
      %v556 = vpop.f32.mrb[0].mxu0
      %v557 = vadd.f32 %v410, %v556
      %v558 = vpop.f32.mrb[0].mxu0
      %v559 = vadd.f32 %v412, %v558
      %560 = vmatprep.mubr.bf16.mxu0 0
      %561 = vmatmul.mubr.bf16.gmra.mrb[0].mxu0 %v490
      %v562 = vpop.f32.mrb[0].mxu0
      %v563 = vadd.f32 %v416, %v562
      %v564 = vpop.f32.mrb[0].mxu0
      %v565 = vadd.f32 %v418, %v564
      %v566 = vpop.f32.mrb[0].mxu0
      %v567 = vadd.f32 %v420, %v566
      %v568 = vpop.f32.mrb[0].mxu0
      %v569 = vadd.f32 %v422, %v568
      %570 = vmatprep.mubr.bf16.mxu0 0
      %571 = vmatmul.mubr.bf16.gmra.mrb[0].mxu0 %v492
      %v572 = vpop.f32.mrb[0].mxu0
      %v573 = vadd.f32 %v426, %v572
      %v574 = vpop.f32.mrb[0].mxu0
      %v575 = vadd.f32 %v428, %v574
      %v576 = vpop.f32.mrb[0].mxu0
      %v577 = vadd.f32 %v430, %v576
      %v578 = vpop.f32.mrb[0].mxu0
      %v579 = vadd.f32 %v432, %v578
      %580 = vmatprep.mubr.bf16.mxu0 0
      %581 = vmatmul.mubr.bf16.gmra.mrb[0].mxu0 %v494
      %v582 = vpop.f32.mrb[0].mxu0
      %v583 = vadd.f32 %v436, %v582
      %v584 = vpop.f32.mrb[0].mxu0
      %v585 = vadd.f32 %v438, %v584
      %v586 = vpop.f32.mrb[0].mxu0
      %v587 = vadd.f32 %v440, %v586
      %v588 = vpop.f32.mrb[0].mxu0
      %v589 = vadd.f32 %v442, %v588
      %590 = vmatprep.mubr.bf16.mxu0 0
      %591 = vmatmul.mubr.bf16.gmra.mrb[0].mxu0 %v496
      %v592 = vpop.f32.mrb[0].mxu0
      %v593 = vadd.f32 %v446, %v592
      %v594 = vpop.f32.mrb[0].mxu0
      %v595 = vadd.f32 %v448, %v594
      %v596 = vpop.f32.mrb[0].mxu0
      %v597 = vadd.f32 %v450, %v596
      %v598 = vpop.f32.mrb[0].mxu0
      %v599 = vadd.f32 %v452, %v598
      %600 = vdwg.mxu0
      %v601 = vld [vmem:[%s165] sm:$0xe]
      %s602 = scalar_lea.vmem %s1, 96
      %v603 = vld [vmem:[%s602] sm:$0xff]
      %v604 = vld [vmem:[%s602 + $0x8] sm:$0xff]
      %v605 = vld [vmem:[%s602 + $0x10] sm:$0xff]
      %v606 = vld [vmem:[%s602 + $0x18] sm:$0xff]
      %v607 = vld [vmem:[%s602 + $0x20] sm:$0xff]
      %v608 = vld [vmem:[%s602 + $0x28] sm:$0xff]
      %v610 = vunpack.c.l.b16 %v601
      %v611 = vpack.c.b16 %v216, %v610
      %vm612 = vcmask 1046528
      %v613 = vrot.slane %v611, 1
      %v614 = vrot.slane %v231, 1
      %v615 = vsel %vm612, %v613, %v614
      %v616 = vrot.slane %v232, 1
      %v617 = vsel %vm612, %v614, %v616
      %v618 = vrot.slane %v233, 1
      %v619 = vsel %vm612, %v616, %v618
      %v620 = vrot.slane %v234, 1
      %v621 = vsel %vm612, %v618, %v620
      %v622 = vrot.slane %v235, 1
      %v623 = vsel %vm612, %v620, %v622
      %v624 = vrot.slane %v236, 1
      %v625 = vsel %vm612, %v622, %v624
      %v626 = vrot.slane %v237, 1
      %v627 = vsel %vm612, %v624, %v626
      %v634 = vunpack.c.l.b16 %v603
      %v635 = vunpack.c.h.b16 %v603
      %v636 = vunpack.c.l.b16 %v604
      %v637 = vunpack.c.h.b16 %v604
      %v638 = vunpack.c.l.b16 %v605
      %v639 = vunpack.c.h.b16 %v605
      %v640 = vunpack.c.l.b16 %v606
      %v641 = vunpack.c.h.b16 %v606
      %v642 = vunpack.c.l.b16 %v607
      %v643 = vunpack.c.h.b16 %v607
      %v644 = vunpack.c.l.b16 %v608
      %v645 = vunpack.c.h.b16 %v608
      %v646 = vpack.c.b16 %v636, %v634
      %v647 = vpack.c.b16 %v637, %v635
      %v648 = vpack.c.b16 %v640, %v638
      %v649 = vpack.c.b16 %v641, %v639
      %v650 = vpack.c.b16 %v644, %v642
      %v651 = vpack.c.b16 %v645, %v643
      %v659 = vsel %vm329, %v615, 0
      %v662 = vsel %vm329, %v617, 0
      %v665 = vsel %vm329, %v619, 0
      %v668 = vsel %vm329, %v621, 0
      %v671 = vsel %vm329, %v623, 0
      %v674 = vsel %vm329, %v625, 0
      %v677 = vsel %vm329, %v627, 0
      %679 = vmatprep.subr.bf16.mxu0 %v647
      %680 = vmatpush1.bf16.msra.mxu0 %v646
      %681 = vmatprep.subr.bf16.mxu0 %v649
      %682 = vmatpush1.bf16.msra.mxu0 %v648
      %683 = vmatprep.subr.bf16.mxu0 %v651
      %684 = vmatpush1.bf16.msra.mxu0 %v650
      %685 = vmatprep.subr.bf16.mxu0 0
      %686 = vmatpush1.bf16.msra.mxu0 0
      %687 = vmatprep.subr.bf16.mxu0 0
      %688 = vmatpush1.bf16.msra.mxu0 0
      %689 = vmatprep.subr.bf16.mxu0 0
      %690 = vmatpush1.bf16.msra.mxu0 0
      %691 = vmatprep.subr.bf16.mxu0 0
      %692 = vmatpush1.bf16.msra.mxu0 0
      %693 = vmatprep.subr.bf16.mxu0 0
      %694 = vmatpush1.bf16.msra.mxu0 0
      %695 = vmatprep.subr.bf16.mxu0 0
      %696 = vmatpush1.bf16.msra.mxu0 0
      %697 = vmatprep.subr.bf16.mxu0 0
      %698 = vmatpush1.bf16.msra.mxu0 0
      %699 = vmatprep.subr.bf16.mxu0 0
      %700 = vmatpush1.bf16.msra.mxu0 0
      %701 = vmatprep.subr.bf16.mxu0 0
      %702 = vmatpush1.bf16.msra.mxu0 0
      %703 = vmatprep.subr.bf16.mxu0 0
      %704 = vmatpush1.bf16.msra.mxu0 0
      %705 = vmatprep.subr.bf16.mxu0 0
      %706 = vmatpush1.bf16.msra.mxu0 0
      %707 = vmatprep.subr.bf16.mxu0 0
      %708 = vmatpush1.bf16.msra.mxu0 0
      %709 = vmatprep.subr.bf16.mxu0 0
      %710 = vmatpush1.bf16.msra.mxu0 0
      %711 = vmatprep.mubr.bf16.mxu0 0
      %712 = vmatmul.mubr.bf16.gmra.mrb[0].mxu0 %v659
      %v713 = vpop.f32.mrb[0].mxu0
      %v714 = vadd.f32 0.0, %v713
      %v715 = vpop.f32.mrb[0].mxu0
      %v716 = vadd.f32 0.0, %v715
      %v717 = vpop.f32.mrb[0].mxu0
      %v718 = vadd.f32 0.0, %v717
      %v719 = vpop.f32.mrb[0].mxu0
      %v720 = vadd.f32 0.0, %v719
      %721 = vmatprep.mubr.bf16.mxu0 0
      %722 = vmatmul.mubr.bf16.gmra.mrb[0].mxu0 %v662
      %v723 = vpop.f32.mrb[0].mxu0
      %v724 = vadd.f32 0.0, %v723
      %v725 = vpop.f32.mrb[0].mxu0
      %v726 = vadd.f32 0.0, %v725
      %v727 = vpop.f32.mrb[0].mxu0
      %v728 = vadd.f32 0.0, %v727
      %v729 = vpop.f32.mrb[0].mxu0
      %v730 = vadd.f32 0.0, %v729
      %731 = vmatprep.mubr.bf16.mxu0 0
      %732 = vmatmul.mubr.bf16.gmra.mrb[0].mxu0 %v665
      %v733 = vpop.f32.mrb[0].mxu0
      %v734 = vadd.f32 0.0, %v733
      %v735 = vpop.f32.mrb[0].mxu0
      %v736 = vadd.f32 0.0, %v735
      %v737 = vpop.f32.mrb[0].mxu0
      %v738 = vadd.f32 0.0, %v737
      %v739 = vpop.f32.mrb[0].mxu0
      %v740 = vadd.f32 0.0, %v739
      %741 = vmatprep.mubr.bf16.mxu0 0
      %742 = vmatmul.mubr.bf16.gmra.mrb[0].mxu0 %v668
      %v743 = vpop.f32.mrb[0].mxu0
      %v744 = vadd.f32 0.0, %v743
      %v745 = vpop.f32.mrb[0].mxu0
      %v746 = vadd.f32 0.0, %v745
      %v747 = vpop.f32.mrb[0].mxu0
      %v748 = vadd.f32 0.0, %v747
      %v749 = vpop.f32.mrb[0].mxu0
      %v750 = vadd.f32 0.0, %v749
      %751 = vmatprep.mubr.bf16.mxu0 0
      %752 = vmatmul.mubr.bf16.gmra.mrb[0].mxu0 %v671
      %v753 = vpop.f32.mrb[0].mxu0
      %v754 = vadd.f32 0.0, %v753
      %v755 = vpop.f32.mrb[0].mxu0
      %v756 = vadd.f32 0.0, %v755
      %v757 = vpop.f32.mrb[0].mxu0
      %v758 = vadd.f32 0.0, %v757
      %v759 = vpop.f32.mrb[0].mxu0
      %v760 = vadd.f32 0.0, %v759
      %761 = vmatprep.mubr.bf16.mxu0 0
      %762 = vmatmul.mubr.bf16.gmra.mrb[0].mxu0 %v674
      %v763 = vpop.f32.mrb[0].mxu0
      %v764 = vadd.f32 0.0, %v763
      %v765 = vpop.f32.mrb[0].mxu0
      %v766 = vadd.f32 0.0, %v765
      %v767 = vpop.f32.mrb[0].mxu0
      %v768 = vadd.f32 0.0, %v767
      %v769 = vpop.f32.mrb[0].mxu0
      %v770 = vadd.f32 0.0, %v769
      %771 = vmatprep.mubr.bf16.mxu0 0
      %772 = vmatmul.mubr.bf16.gmra.mrb[0].mxu0 %v677
      %v773 = vpop.f32.mrb[0].mxu0
      %v774 = vadd.f32 0.0, %v773
      %v775 = vpop.f32.mrb[0].mxu0
      %v776 = vadd.f32 0.0, %v775
      %v777 = vpop.f32.mrb[0].mxu0
      %v778 = vadd.f32 0.0, %v777
      %v779 = vpop.f32.mrb[0].mxu0
      %v780 = vadd.f32 0.0, %v779
      %781 = vdwg.mxu0
      %v782 = vadd.f32 %v533, %v714
      %v783 = vadd.f32 %v535, %v716
      %v784 = vadd.f32 %v537, %v718
      %v785 = vadd.f32 %v539, %v720
      %v786 = vadd.f32 %v543, %v724
      %v787 = vadd.f32 %v545, %v726
      %v788 = vadd.f32 %v547, %v728
      %v789 = vadd.f32 %v549, %v730
      %v790 = vadd.f32 %v553, %v734
      %v791 = vadd.f32 %v555, %v736
      %v792 = vadd.f32 %v557, %v738
      %v793 = vadd.f32 %v559, %v740
      %v794 = vadd.f32 %v563, %v744
      %v795 = vadd.f32 %v565, %v746
      %v796 = vadd.f32 %v567, %v748
      %v797 = vadd.f32 %v569, %v750
      %v798 = vadd.f32 %v573, %v754
      %v799 = vadd.f32 %v575, %v756
      %v800 = vadd.f32 %v577, %v758
      %v801 = vadd.f32 %v579, %v760
      %v802 = vadd.f32 %v583, %v764
      %v803 = vadd.f32 %v585, %v766
      %v804 = vadd.f32 %v587, %v768
      %v805 = vadd.f32 %v589, %v770
      %v806 = vadd.f32 %v593, %v774
      %v807 = vadd.f32 %v595, %v776
      %v808 = vadd.f32 %v597, %v778
      %v809 = vadd.f32 %v599, %v780
      %v810 = vld [vmem:[%s165 + $0x38] sm:$0x3]
      %s811 = scalar_lea.vmem %s1, 144
      %v812 = vld [vmem:[%s811] sm:$0xff]
      %v813 = vld [vmem:[%s811 + $0x8] sm:$0xff]
      %v814 = vld [vmem:[%s811 + $0x10] sm:$0xff]
      %v815 = vld [vmem:[%s811 + $0x18] sm:$0xff]
      %v816 = vld [vmem:[%s811 + $0x20] sm:$0xff]
      %v817 = vld [vmem:[%s811 + $0x28] sm:$0xff]
      %v819 = vunpack.c.l.b16 %v810
      %v820 = vpack.c.b16 %v819, %v819
      %vm821 = vsmask.f32 6400
      %v823 = vshrl.u32 %v611, 16
      %v825 = vrot.slane %v823, 1
      %v826 = vshll.u32 %v611, 16
      %v828 = vrot.slane %v826, 2
      %v829 = vor.u32 %v825, %v828
      %v830 = vrot.slane %v251, 1
      %v831 = vrot.slane %v247, 2
      %v832 = vor.u32 %v830, %v831
      %v833 = vsel %vm821, %v829, %v832
      %v834 = vrot.slane %v259, 1
      %v835 = vrot.slane %v255, 2
      %v836 = vor.u32 %v834, %v835
      %v837 = vsel %vm821, %v832, %v836
      %v838 = vrot.slane %v267, 1
      %v839 = vrot.slane %v263, 2
      %v840 = vor.u32 %v838, %v839
      %v841 = vsel %vm821, %v836, %v840
      %v842 = vrot.slane %v275, 1
      %v843 = vrot.slane %v271, 2
      %v844 = vor.u32 %v842, %v843
      %v845 = vsel %vm821, %v840, %v844
      %v846 = vrot.slane %v283, 1
      %v847 = vrot.slane %v279, 2
      %v848 = vor.u32 %v846, %v847
      %v849 = vsel %vm821, %v844, %v848
      %v850 = vrot.slane %v291, 1
      %v851 = vrot.slane %v287, 2
      %v852 = vor.u32 %v850, %v851
      %v853 = vsel %vm821, %v848, %v852
      %v855 = vshrl.u32 %v820, 16
      %v857 = vrot.slane %v855, 1
      %v858 = vshll.u32 %v820, 16
      %v860 = vrot.slane %v858, 2
      %v861 = vor.u32 %v857, %v860
      %v862 = vsel %vm821, %v852, %v861
      %v869 = vunpack.c.l.b16 %v812
      %v870 = vunpack.c.h.b16 %v812
      %v871 = vunpack.c.l.b16 %v813
      %v872 = vunpack.c.h.b16 %v813
      %v873 = vunpack.c.l.b16 %v814
      %v874 = vunpack.c.h.b16 %v814
      %v875 = vunpack.c.l.b16 %v815
      %v876 = vunpack.c.h.b16 %v815
      %v877 = vunpack.c.l.b16 %v816
      %v878 = vunpack.c.h.b16 %v816
      %v879 = vunpack.c.l.b16 %v817
      %v880 = vunpack.c.h.b16 %v817
      %v881 = vpack.c.b16 %v871, %v869
      %v882 = vpack.c.b16 %v872, %v870
      %v883 = vpack.c.b16 %v875, %v873
      %v884 = vpack.c.b16 %v876, %v874
      %v885 = vpack.c.b16 %v879, %v877
      %v886 = vpack.c.b16 %v880, %v878
      %v894 = vsel %vm329, %v833, 0
      %v897 = vsel %vm329, %v837, 0
      %v900 = vsel %vm329, %v841, 0
      %v903 = vsel %vm329, %v845, 0
      %v906 = vsel %vm329, %v849, 0
      %v909 = vsel %vm329, %v853, 0
      %v912 = vsel %vm329, %v862, 0
      %914 = vmatprep.subr.bf16.mxu0 %v882
      %915 = vmatpush1.bf16.msra.mxu0 %v881
      %916 = vmatprep.subr.bf16.mxu0 %v884
      %917 = vmatpush1.bf16.msra.mxu0 %v883
      %918 = vmatprep.subr.bf16.mxu0 %v886
      %919 = vmatpush1.bf16.msra.mxu0 %v885
      %920 = vmatprep.subr.bf16.mxu0 0
      %921 = vmatpush1.bf16.msra.mxu0 0
      %922 = vmatprep.subr.bf16.mxu0 0
      %923 = vmatpush1.bf16.msra.mxu0 0
      %924 = vmatprep.subr.bf16.mxu0 0
      %925 = vmatpush1.bf16.msra.mxu0 0
      %926 = vmatprep.subr.bf16.mxu0 0
      %927 = vmatpush1.bf16.msra.mxu0 0
      %928 = vmatprep.subr.bf16.mxu0 0
      %929 = vmatpush1.bf16.msra.mxu0 0
      %930 = vmatprep.subr.bf16.mxu0 0
      %931 = vmatpush1.bf16.msra.mxu0 0
      %932 = vmatprep.subr.bf16.mxu0 0
      %933 = vmatpush1.bf16.msra.mxu0 0
      %934 = vmatprep.subr.bf16.mxu0 0
      %935 = vmatpush1.bf16.msra.mxu0 0
      %936 = vmatprep.subr.bf16.mxu0 0
      %937 = vmatpush1.bf16.msra.mxu0 0
      %938 = vmatprep.subr.bf16.mxu0 0
      %939 = vmatpush1.bf16.msra.mxu0 0
      %940 = vmatprep.subr.bf16.mxu0 0
      %941 = vmatpush1.bf16.msra.mxu0 0
      %942 = vmatprep.subr.bf16.mxu0 0
      %943 = vmatpush1.bf16.msra.mxu0 0
      %944 = vmatprep.subr.bf16.mxu0 0
      %945 = vmatpush1.bf16.msra.mxu0 0
      %946 = vmatprep.mubr.bf16.mxu0 0
      %947 = vmatmul.mubr.bf16.gmra.mrb[0].mxu0 %v894
      %v948 = vpop.f32.mrb[0].mxu0
      %v949 = vadd.f32 0.0, %v948
      %v950 = vpop.f32.mrb[0].mxu0
      %v951 = vadd.f32 0.0, %v950
      %v952 = vpop.f32.mrb[0].mxu0
      %v953 = vadd.f32 0.0, %v952
      %v954 = vpop.f32.mrb[0].mxu0
      %v955 = vadd.f32 0.0, %v954
      %956 = vmatprep.mubr.bf16.mxu0 0
      %957 = vmatmul.mubr.bf16.gmra.mrb[0].mxu0 %v897
      %v958 = vpop.f32.mrb[0].mxu0
      %v959 = vadd.f32 0.0, %v958
      %v960 = vpop.f32.mrb[0].mxu0
      %v961 = vadd.f32 0.0, %v960
      %v962 = vpop.f32.mrb[0].mxu0
      %v963 = vadd.f32 0.0, %v962
      %v964 = vpop.f32.mrb[0].mxu0
      %v965 = vadd.f32 0.0, %v964
      %966 = vmatprep.mubr.bf16.mxu0 0
      %967 = vmatmul.mubr.bf16.gmra.mrb[0].mxu0 %v900
      %v968 = vpop.f32.mrb[0].mxu0
      %v969 = vadd.f32 0.0, %v968
      %v970 = vpop.f32.mrb[0].mxu0
      %v971 = vadd.f32 0.0, %v970
      %v972 = vpop.f32.mrb[0].mxu0
      %v973 = vadd.f32 0.0, %v972
      %v974 = vpop.f32.mrb[0].mxu0
      %v975 = vadd.f32 0.0, %v974
      %976 = vmatprep.mubr.bf16.mxu0 0
      %977 = vmatmul.mubr.bf16.gmra.mrb[0].mxu0 %v903
      %v978 = vpop.f32.mrb[0].mxu0
      %v979 = vadd.f32 0.0, %v978
      %v980 = vpop.f32.mrb[0].mxu0
      %v981 = vadd.f32 0.0, %v980
      %v982 = vpop.f32.mrb[0].mxu0
      %v983 = vadd.f32 0.0, %v982
      %v984 = vpop.f32.mrb[0].mxu0
      %v985 = vadd.f32 0.0, %v984
      %986 = vmatprep.mubr.bf16.mxu0 0
      %987 = vmatmul.mubr.bf16.gmra.mrb[0].mxu0 %v906
      %v988 = vpop.f32.mrb[0].mxu0
      %v989 = vadd.f32 0.0, %v988
      %v990 = vpop.f32.mrb[0].mxu0
      %v991 = vadd.f32 0.0, %v990
      %v992 = vpop.f32.mrb[0].mxu0
      %v993 = vadd.f32 0.0, %v992
      %v994 = vpop.f32.mrb[0].mxu0
      %v995 = vadd.f32 0.0, %v994
      %996 = vmatprep.mubr.bf16.mxu0 0
      %997 = vmatmul.mubr.bf16.gmra.mrb[0].mxu0 %v909
      %v998 = vpop.f32.mrb[0].mxu0
      %v999 = vadd.f32 0.0, %v998
      %v1000 = vpop.f32.mrb[0].mxu0
      %v1001 = vadd.f32 0.0, %v1000
      %v1002 = vpop.f32.mrb[0].mxu0
      %v1003 = vadd.f32 0.0, %v1002
      %v1004 = vpop.f32.mrb[0].mxu0
      %v1005 = vadd.f32 0.0, %v1004
      %1006 = vmatprep.mubr.bf16.mxu0 0
      %1007 = vmatmul.mubr.bf16.gmra.mrb[0].mxu0 %v912
      %v1008 = vpop.f32.mrb[0].mxu0
      %v1009 = vadd.f32 0.0, %v1008
      %v1010 = vpop.f32.mrb[0].mxu0
      %v1011 = vadd.f32 0.0, %v1010
      %v1012 = vpop.f32.mrb[0].mxu0
      %v1013 = vadd.f32 0.0, %v1012
      %v1014 = vpop.f32.mrb[0].mxu0
      %v1015 = vadd.f32 0.0, %v1014
      %1016 = vdwg.mxu0
      %v1017 = vadd.f32 %v782, %v949
      %v1018 = vadd.f32 %v783, %v951
      %v1019 = vadd.f32 %v784, %v953
      %v1020 = vadd.f32 %v785, %v955
      %v1021 = vadd.f32 %v786, %v959
      %v1022 = vadd.f32 %v787, %v961
      %v1023 = vadd.f32 %v788, %v963
      %v1024 = vadd.f32 %v789, %v965
      %v1025 = vadd.f32 %v790, %v969
      %v1026 = vadd.f32 %v791, %v971
      %v1027 = vadd.f32 %v792, %v973
      %v1028 = vadd.f32 %v793, %v975
      %v1029 = vadd.f32 %v794, %v979
      %v1030 = vadd.f32 %v795, %v981
      %v1031 = vadd.f32 %v796, %v983
      %v1032 = vadd.f32 %v797, %v985
      %v1033 = vadd.f32 %v798, %v989
      %v1034 = vadd.f32 %v799, %v991
      %v1035 = vadd.f32 %v800, %v993
      %v1036 = vadd.f32 %v801, %v995
      %v1037 = vadd.f32 %v802, %v999
      %v1038 = vadd.f32 %v803, %v1001
      %v1039 = vadd.f32 %v804, %v1003
      %v1040 = vadd.f32 %v805, %v1005
      %v1041 = vadd.f32 %v806, %v1009
      %v1042 = vadd.f32 %v807, %v1011
      %v1043 = vadd.f32 %v808, %v1013
      %v1044 = vadd.f32 %v809, %v1015
      %v1045 = vld [vmem:[%s165] sm:$0xc]
      %s1046 = scalar_lea.vmem %s1, 192
      %v1047 = vld [vmem:[%s1046] sm:$0xff]
      %v1048 = vld [vmem:[%s1046 + $0x8] sm:$0xff]
      %v1049 = vld [vmem:[%s1046 + $0x10] sm:$0xff]
      %v1050 = vld [vmem:[%s1046 + $0x18] sm:$0xff]
      %v1051 = vld [vmem:[%s1046 + $0x20] sm:$0xff]
      %v1052 = vld [vmem:[%s1046 + $0x28] sm:$0xff]
      %v1054 = vunpack.c.l.b16 %v1045
      %v1055 = vpack.c.b16 %v216, %v1054
      %vm1056 = vcmask 1045504
      %v1057 = vrot.slane %v1055, 2
      %v1058 = vrot.slane %v231, 2
      %v1059 = vsel %vm1056, %v1057, %v1058
      %v1060 = vrot.slane %v232, 2
      %v1061 = vsel %vm1056, %v1058, %v1060
      %v1062 = vrot.slane %v233, 2
      %v1063 = vsel %vm1056, %v1060, %v1062
      %v1064 = vrot.slane %v234, 2
      %v1065 = vsel %vm1056, %v1062, %v1064
      %v1066 = vrot.slane %v235, 2
      %v1067 = vsel %vm1056, %v1064, %v1066
      %v1068 = vrot.slane %v236, 2
      %v1069 = vsel %vm1056, %v1066, %v1068
      %v1070 = vrot.slane %v820, 2
      %v1071 = vsel %vm1056, %v1068, %v1070
      %v1078 = vunpack.c.l.b16 %v1047
      %v1079 = vunpack.c.h.b16 %v1047
      %v1080 = vunpack.c.l.b16 %v1048
      %v1081 = vunpack.c.h.b16 %v1048
      %v1082 = vunpack.c.l.b16 %v1049
      %v1083 = vunpack.c.h.b16 %v1049
      %v1084 = vunpack.c.l.b16 %v1050
      %v1085 = vunpack.c.h.b16 %v1050
      %v1086 = vunpack.c.l.b16 %v1051
      %v1087 = vunpack.c.h.b16 %v1051
      %v1088 = vunpack.c.l.b16 %v1052
      %v1089 = vunpack.c.h.b16 %v1052
      %v1090 = vpack.c.b16 %v1080, %v1078
      %v1091 = vpack.c.b16 %v1081, %v1079
      %v1092 = vpack.c.b16 %v1084, %v1082
      %v1093 = vpack.c.b16 %v1085, %v1083
      %v1094 = vpack.c.b16 %v1088, %v1086
      %v1095 = vpack.c.b16 %v1089, %v1087
      %v1103 = vsel %vm329, %v1059, 0
      %v1106 = vsel %vm329, %v1061, 0
      %v1109 = vsel %vm329, %v1063, 0
      %v1112 = vsel %vm329, %v1065, 0
      %v1115 = vsel %vm329, %v1067, 0
      %v1118 = vsel %vm329, %v1069, 0
      %v1121 = vsel %vm329, %v1071, 0
      %1123 = vmatprep.subr.bf16.mxu0 %v1091
      %1124 = vmatpush1.bf16.msra.mxu0 %v1090
      %1125 = vmatprep.subr.bf16.mxu0 %v1093
      %1126 = vmatpush1.bf16.msra.mxu0 %v1092
      %1127 = vmatprep.subr.bf16.mxu0 %v1095
      %1128 = vmatpush1.bf16.msra.mxu0 %v1094
      %1129 = vmatprep.subr.bf16.mxu0 0
      %1130 = vmatpush1.bf16.msra.mxu0 0
      %1131 = vmatprep.subr.bf16.mxu0 0
      %1132 = vmatpush1.bf16.msra.mxu0 0
      %1133 = vmatprep.subr.bf16.mxu0 0
      %1134 = vmatpush1.bf16.msra.mxu0 0
      %1135 = vmatprep.subr.bf16.mxu0 0
      %1136 = vmatpush1.bf16.msra.mxu0 0
      %1137 = vmatprep.subr.bf16.mxu0 0
      %1138 = vmatpush1.bf16.msra.mxu0 0
      %1139 = vmatprep.subr.bf16.mxu0 0
      %1140 = vmatpush1.bf16.msra.mxu0 0
      %1141 = vmatprep.subr.bf16.mxu0 0
      %1142 = vmatpush1.bf16.msra.mxu0 0
      %1143 = vmatprep.subr.bf16.mxu0 0
      %1144 = vmatpush1.bf16.msra.mxu0 0
      %1145 = vmatprep.subr.bf16.mxu0 0
      %1146 = vmatpush1.bf16.msra.mxu0 0
      %1147 = vmatprep.subr.bf16.mxu0 0
      %1148 = vmatpush1.bf16.msra.mxu0 0
      %1149 = vmatprep.subr.bf16.mxu0 0
      %1150 = vmatpush1.bf16.msra.mxu0 0
      %1151 = vmatprep.subr.bf16.mxu0 0
      %1152 = vmatpush1.bf16.msra.mxu0 0
      %1153 = vmatprep.subr.bf16.mxu0 0
      %1154 = vmatpush1.bf16.msra.mxu0 0
      %1155 = vmatprep.mubr.bf16.mxu0 0
      %1156 = vmatmul.mubr.bf16.gmra.mrb[0].mxu0 %v1103
      %v1157 = vpop.f32.mrb[0].mxu0
      %v1158 = vadd.f32 0.0, %v1157
      %v1159 = vpop.f32.mrb[0].mxu0
      %v1160 = vadd.f32 0.0, %v1159
      %v1161 = vpop.f32.mrb[0].mxu0
      %v1162 = vadd.f32 0.0, %v1161
      %v1163 = vpop.f32.mrb[0].mxu0
      %v1164 = vadd.f32 0.0, %v1163
      %1165 = vmatprep.mubr.bf16.mxu0 0
      %1166 = vmatmul.mubr.bf16.gmra.mrb[0].mxu0 %v1106
      %v1167 = vpop.f32.mrb[0].mxu0
      %v1168 = vadd.f32 0.0, %v1167
      %v1169 = vpop.f32.mrb[0].mxu0
      %v1170 = vadd.f32 0.0, %v1169
      %v1171 = vpop.f32.mrb[0].mxu0
      %v1172 = vadd.f32 0.0, %v1171
      %v1173 = vpop.f32.mrb[0].mxu0
      %v1174 = vadd.f32 0.0, %v1173
      %1175 = vmatprep.mubr.bf16.mxu0 0
      %1176 = vmatmul.mubr.bf16.gmra.mrb[0].mxu0 %v1109
      %v1177 = vpop.f32.mrb[0].mxu0
      %v1178 = vadd.f32 0.0, %v1177
      %v1179 = vpop.f32.mrb[0].mxu0
      %v1180 = vadd.f32 0.0, %v1179
      %v1181 = vpop.f32.mrb[0].mxu0
      %v1182 = vadd.f32 0.0, %v1181
      %v1183 = vpop.f32.mrb[0].mxu0
      %v1184 = vadd.f32 0.0, %v1183
      %1185 = vmatprep.mubr.bf16.mxu0 0
      %1186 = vmatmul.mubr.bf16.gmra.mrb[0].mxu0 %v1112
      %v1187 = vpop.f32.mrb[0].mxu0
      %v1188 = vadd.f32 0.0, %v1187
      %v1189 = vpop.f32.mrb[0].mxu0
      %v1190 = vadd.f32 0.0, %v1189
      %v1191 = vpop.f32.mrb[0].mxu0
      %v1192 = vadd.f32 0.0, %v1191
      %v1193 = vpop.f32.mrb[0].mxu0
      %v1194 = vadd.f32 0.0, %v1193
      %1195 = vmatprep.mubr.bf16.mxu0 0
      %1196 = vmatmul.mubr.bf16.gmra.mrb[0].mxu0 %v1115
      %v1197 = vpop.f32.mrb[0].mxu0
      %v1198 = vadd.f32 0.0, %v1197
      %v1199 = vpop.f32.mrb[0].mxu0
      %v1200 = vadd.f32 0.0, %v1199
      %v1201 = vpop.f32.mrb[0].mxu0
      %v1202 = vadd.f32 0.0, %v1201
      %v1203 = vpop.f32.mrb[0].mxu0
      %v1204 = vadd.f32 0.0, %v1203
      %1205 = vmatprep.mubr.bf16.mxu0 0
      %1206 = vmatmul.mubr.bf16.gmra.mrb[0].mxu0 %v1118
      %v1207 = vpop.f32.mrb[0].mxu0
      %v1208 = vadd.f32 0.0, %v1207
      %v1209 = vpop.f32.mrb[0].mxu0
      %v1210 = vadd.f32 0.0, %v1209
      %v1211 = vpop.f32.mrb[0].mxu0
      %v1212 = vadd.f32 0.0, %v1211
      %v1213 = vpop.f32.mrb[0].mxu0
      %v1214 = vadd.f32 0.0, %v1213
      %1215 = vmatprep.mubr.bf16.mxu0 0
      %1216 = vmatmul.mubr.bf16.gmra.mrb[0].mxu0 %v1121
      %v1217 = vpop.f32.mrb[0].mxu0
      %v1218 = vadd.f32 0.0, %v1217
      %v1219 = vpop.f32.mrb[0].mxu0
      %v1220 = vadd.f32 0.0, %v1219
      %v1221 = vpop.f32.mrb[0].mxu0
      %v1222 = vadd.f32 0.0, %v1221
      %v1223 = vpop.f32.mrb[0].mxu0
      %v1224 = vadd.f32 0.0, %v1223
      %1225 = vdwg.mxu0
      %v1226 = vadd.f32 %v1017, %v1158
      %v1227 = vadd.f32 %v1018, %v1160
      %v1228 = vadd.f32 %v1019, %v1162
      %v1229 = vadd.f32 %v1020, %v1164
      %v1230 = vadd.f32 %v1021, %v1168
      %v1231 = vadd.f32 %v1022, %v1170
      %v1232 = vadd.f32 %v1023, %v1172
      %v1233 = vadd.f32 %v1024, %v1174
      %v1234 = vadd.f32 %v1025, %v1178
      %v1235 = vadd.f32 %v1026, %v1180
      %v1236 = vadd.f32 %v1027, %v1182
      %v1237 = vadd.f32 %v1028, %v1184
      %v1238 = vadd.f32 %v1029, %v1188
      %v1239 = vadd.f32 %v1030, %v1190
      %v1240 = vadd.f32 %v1031, %v1192
      %v1241 = vadd.f32 %v1032, %v1194
      %v1242 = vadd.f32 %v1033, %v1198
      %v1243 = vadd.f32 %v1034, %v1200
      %v1244 = vadd.f32 %v1035, %v1202
      %v1245 = vadd.f32 %v1036, %v1204
      %v1246 = vadd.f32 %v1037, %v1208
      %v1247 = vadd.f32 %v1038, %v1210
      %v1248 = vadd.f32 %v1039, %v1212
      %v1249 = vadd.f32 %v1040, %v1214
      %v1250 = vadd.f32 %v1041, %v1218
      %v1251 = vadd.f32 %v1042, %v1220
      %v1252 = vadd.f32 %v1043, %v1222
      %v1253 = vadd.f32 %v1044, %v1224
      %v1254 = vld [vmem:[%s2] ss:$2 sm:$0x3]
      %v1256 = vlaneseq
      %v1257 = vshrl.u32 %v1256, 7
      %v1258 = vsub.s32 0, %v1257
      %v1259 = vrot.slane %v1254, %v1258
      %v1260 = vlaneseq
      %v1261 = vshrl.u32 %v1260, 7
      %v1262 = vsub.s32 1, %v1261
      %v1263 = vrot.slane %v1254, %v1262
      %v1266 = vmul.f32 %v1226, %v1259
      %v1267 = vmul.f32 %v1227, %v1263
      %v1268 = vmul.f32 %v1228, %v1259
      %v1269 = vmul.f32 %v1229, %v1263
      %v1270 = vmul.f32 %v1230, %v1259
      %v1271 = vmul.f32 %v1231, %v1263
      %v1272 = vmul.f32 %v1232, %v1259
      %v1273 = vmul.f32 %v1233, %v1263
      %v1274 = vmul.f32 %v1234, %v1259
      %v1275 = vmul.f32 %v1235, %v1263
      %v1276 = vmul.f32 %v1236, %v1259
      %v1277 = vmul.f32 %v1237, %v1263
      %v1278 = vmul.f32 %v1238, %v1259
      %v1279 = vmul.f32 %v1239, %v1263
      %v1280 = vmul.f32 %v1240, %v1259
      %v1281 = vmul.f32 %v1241, %v1263
      %v1282 = vmul.f32 %v1242, %v1259
      %v1283 = vmul.f32 %v1243, %v1263
      %v1284 = vmul.f32 %v1244, %v1259
      %v1285 = vmul.f32 %v1245, %v1263
      %v1286 = vmul.f32 %v1246, %v1259
      %v1287 = vmul.f32 %v1247, %v1263
      %v1288 = vmul.f32 %v1248, %v1259
      %v1289 = vmul.f32 %v1249, %v1263
      %v1290 = vmul.f32 %v1250, %v1259
      %v1291 = vmul.f32 %v1251, %v1263
      %v1292 = vmul.f32 %v1252, %v1259
      %v1293 = vmul.f32 %v1253, %v1263
      %s1294 = scalar_lea.vmem %s2, 1
      %v1295 = vld [vmem:[%s1294] ss:$2 sm:$0x3]
      %v1297 = vlaneseq
      %v1298 = vshrl.u32 %v1297, 7
      %v1299 = vsub.s32 0, %v1298
      %v1300 = vrot.slane %v1295, %v1299
      %v1301 = vlaneseq
      %v1302 = vshrl.u32 %v1301, 7
      %v1303 = vsub.s32 1, %v1302
      %v1304 = vrot.slane %v1295, %v1303
      %v1307 = vadd.f32 %v1266, %v1300
      %v1308 = vadd.f32 %v1267, %v1304
      %v1309 = vadd.f32 %v1268, %v1300
      %v1310 = vadd.f32 %v1269, %v1304
      %v1311 = vadd.f32 %v1270, %v1300
      %v1312 = vadd.f32 %v1271, %v1304
      %v1313 = vadd.f32 %v1272, %v1300
      %v1314 = vadd.f32 %v1273, %v1304
      %v1315 = vadd.f32 %v1274, %v1300
      %v1316 = vadd.f32 %v1275, %v1304
      %v1317 = vadd.f32 %v1276, %v1300
      %v1318 = vadd.f32 %v1277, %v1304
      %v1319 = vadd.f32 %v1278, %v1300
      %v1320 = vadd.f32 %v1279, %v1304
      %v1321 = vadd.f32 %v1280, %v1300
      %v1322 = vadd.f32 %v1281, %v1304
      %v1323 = vadd.f32 %v1282, %v1300
      %v1324 = vadd.f32 %v1283, %v1304
      %v1325 = vadd.f32 %v1284, %v1300
      %v1326 = vadd.f32 %v1285, %v1304
      %v1327 = vadd.f32 %v1286, %v1300
      %v1328 = vadd.f32 %v1287, %v1304
      %v1329 = vadd.f32 %v1288, %v1300
      %v1330 = vadd.f32 %v1289, %v1304
      %v1331 = vadd.f32 %v1290, %v1300
      %v1332 = vadd.f32 %v1291, %v1304
      %v1333 = vadd.f32 %v1292, %v1300
      %v1334 = vadd.f32 %v1293, %v1304
      %v1335 = vmax.f32 %v1307, 0.0
      %v1336 = vmax.f32 %v1308, 0.0
      %v1337 = vmax.f32 %v1309, 0.0
      %v1338 = vmax.f32 %v1310, 0.0
      %v1339 = vmax.f32 %v1311, 0.0
      %v1340 = vmax.f32 %v1312, 0.0
      %v1341 = vmax.f32 %v1313, 0.0
      %v1342 = vmax.f32 %v1314, 0.0
      %v1343 = vmax.f32 %v1315, 0.0
      %v1344 = vmax.f32 %v1316, 0.0
      %v1345 = vmax.f32 %v1317, 0.0
      %v1346 = vmax.f32 %v1318, 0.0
      %v1347 = vmax.f32 %v1319, 0.0
      %v1348 = vmax.f32 %v1320, 0.0
      %v1349 = vmax.f32 %v1321, 0.0
      %v1350 = vmax.f32 %v1322, 0.0
      %v1351 = vmax.f32 %v1323, 0.0
      %v1352 = vmax.f32 %v1324, 0.0
      %v1353 = vmax.f32 %v1325, 0.0
      %v1354 = vmax.f32 %v1326, 0.0
      %v1355 = vmax.f32 %v1327, 0.0
      %v1356 = vmax.f32 %v1328, 0.0
      %v1357 = vmax.f32 %v1329, 0.0
      %v1358 = vmax.f32 %v1330, 0.0
      %v1359 = vmax.f32 %v1331, 0.0
      %v1360 = vmax.f32 %v1332, 0.0
      %v1361 = vmax.f32 %v1333, 0.0
      %v1362 = vmax.f32 %v1334, 0.0
      %v1363 = vmax.f32 %v1335, %v1336
      %v1364 = vmax.f32 %v1337, %v1338
      %v1365 = vmax.f32 %v1339, %v1340
      %v1366 = vmax.f32 %v1341, %v1342
      %v1367 = vmax.f32 %v1343, %v1344
      %v1368 = vmax.f32 %v1345, %v1346
      %v1369 = vmax.f32 %v1347, %v1348
      %v1370 = vmax.f32 %v1349, %v1350
      %v1371 = vmax.f32 %v1351, %v1352
      %v1372 = vmax.f32 %v1353, %v1354
      %v1373 = vmax.f32 %v1355, %v1356
      %v1374 = vmax.f32 %v1357, %v1358
      %v1375 = vmax.f32 %v1359, %v1360
      %v1376 = vmax.f32 %v1361, %v1362
      %v1377 = vpack.c.bf16 %v1364, %v1363
      %v1378 = vpack.c.bf16 %v1366, %v1365
      %v1379 = vpack.c.bf16 %v1368, %v1367
      %v1380 = vpack.c.bf16 %v1370, %v1369
      %v1381 = vpack.c.bf16 %v1372, %v1371
      %v1382 = vpack.c.bf16 %v1374, %v1373
      %v1383 = vpack.c.bf16 %v1376, %v1375
      %v1391 = vunpack.c.l.b16 %v1377
      %v1392 = vunpack.c.h.b16 %v1377
      %v1393 = vunpack.c.l.b16 %v1378
      %v1394 = vunpack.c.h.b16 %v1378
      %v1395 = vunpack.c.l.b16 %v1379
      %v1396 = vunpack.c.h.b16 %v1379
      %v1397 = vunpack.c.l.b16 %v1380
      %v1398 = vunpack.c.h.b16 %v1380
      %v1399 = vunpack.c.l.b16 %v1381
      %v1400 = vunpack.c.h.b16 %v1381
      %v1401 = vunpack.c.l.b16 %v1382
      %v1402 = vunpack.c.h.b16 %v1382
      %v1403 = vunpack.c.l.b16 %v1383
      %v1404 = vunpack.c.h.b16 %v1383
      %v1405 = vpack.c.b16 %v1391, %v1391
      %v1406 = vpack.c.b16 %v1392, %v1392
      %v1407 = vpack.c.b16 %v1393, %v1393
      %v1408 = vpack.c.b16 %v1394, %v1394
      %v1409 = vpack.c.b16 %v1395, %v1395
      %v1410 = vpack.c.b16 %v1396, %v1396
      %v1411 = vpack.c.b16 %v1397, %v1397
      %v1412 = vpack.c.b16 %v1398, %v1398
      %v1413 = vpack.c.b16 %v1399, %v1399
      %v1414 = vpack.c.b16 %v1400, %v1400
      %v1415 = vpack.c.b16 %v1401, %v1401
      %v1416 = vpack.c.b16 %v1402, %v1402
      %v1417 = vpack.c.b16 %v1403, %v1403
      %v1418 = vpack.c.b16 %v1404, %v1404
      %1433 = vst [vmem:[%s170] sm:$0xf] %v1405
      %1434 = vst [vmem:[%s170 + $0x4] sm:$0xf] %v1406
      %1435 = vst [vmem:[%s170 + $0x8] sm:$0xf] %v1407
      %1436 = vst [vmem:[%s170 + $0xc] sm:$0xf] %v1408
      %1437 = vst [vmem:[%s170 + $0x10] sm:$0xf] %v1409
      %1438 = vst [vmem:[%s170 + $0x14] sm:$0xf] %v1410
      %1439 = vst [vmem:[%s170 + $0x18] sm:$0xf] %v1411
      %1440 = vst [vmem:[%s170 + $0x1c] sm:$0xf] %v1412
      %1441 = vst [vmem:[%s170 + $0x20] sm:$0xf] %v1413
      %1442 = vst [vmem:[%s170 + $0x24] sm:$0xf] %v1414
      %1443 = vst [vmem:[%s170 + $0x28] sm:$0xf] %v1415
      %1444 = vst [vmem:[%s170 + $0x2c] sm:$0xf] %v1416
      %1445 = vst [vmem:[%s170 + $0x30] sm:$0xf] %v1417
      %1446 = vst [vmem:[%s170 + $0x34] sm:$0xf] %v1418
      %p1447 = scmp.lt.s32.totalorder %s14, 1
      %s1448 = scalar_select %p1447, %s14, 1
      %s1449 = smul.addr %s1448, 14
      %s1450 = smul.addr %s1449, 4
      %s1451 = scalar_lea.vmem %s3, %s1450
      // Predicated region
      $region33: #{network_forward.6} parent=31 // pred_check
        %p1452 = pneg %p100
      $region34: #{network_forward.6} parent=31 // pred_check_branch
        %1454 = sbr.rel (%p1452) target = $region36
      $region35: #{network_forward.6} parent=31 // pred_region
        _
      $region36: #{network_forward.6} parent=31 // pred_fallthru
        _
    $region32: #{network_forward.6} parent=5 // pred_fallthru
      _
    %p1455 = scmp.le.s32.totalorder 2, %s9
    // Predicated region
    $region37: #{network_forward.6} parent=5 // pred_check
      %p1456 = pneg %p1455
    $region38: #{network_forward.6} parent=5 // pred_check_branch
      %1458 = sbr.rel (%p1456) target = $region40
    $region39: #{network_forward.6} parent=5 // pred_region
      %s1459 = ssub.s32 %s9, 2
      // Predicated region
      $region41: #{network_forward.6} parent=39 // pred_check
        %p1460 = pneg %p106
      $region42: #{network_forward.6} parent=39 // pred_check_branch
        %1462 = sbr.rel (%p1460) target = $region44
      $region43: #{network_forward.6} parent=39 // pred_region
        %p1463 = scmp.lt.s32.totalorder %s15, 1
        %s1464 = scalar_select %p1463, %s15, 1
        %s1465 = smul.addr %s1464, 14
        %s1466 = smul.addr %s1465, 4
        %s1467 = scalar_lea.vmem %s3, %s1466
      $region44: #{network_forward.6} parent=39 // pred_fallthru
        _
    $region40: #{network_forward.6} parent=5 // pred_fallthru
      _
  $region6: #{network_forward.6} parent=0 // loop_footer
    %s13 = sadd.s32 1, %s9
  $region7: #{network_forward.6} parent=0 // loop_footer_branch
    %8 = sbr.rel target = $region3
  $region8: #{network_forward.6} parent=0 // loop_exit
    _

// kernel: tile.57
$region0: #{tile.57}
  #allocation0 [shape = 's32[1]{0}', space=sflag, size = 0x4, scoped, tag = 'scoped memory for tile.57']
  %s0 = inlined_call_operand.vmem [shape: f32[32], index: 0, kind: input, shape index: {}]
  %s1 = inlined_call_operand.vmem [shape: f32[8,32], index: 1, kind: output, shape index: {}]
  // Predicated region
  $region2: #{tile.57} parent=0 // pred_check
    _
  $region3: #{tile.57} parent=0 // pred_check_branch
    %3 = sbr.rel (0) target = $region5
  $region4: #{tile.57} parent=0 // pred_region
    _
  $region5: #{tile.57} parent=0 // pred_fallthru
    _
  %v4 = vld [vmem:[%s0] ss:$0 sm:$0xff]
  %5 = vst [vmem:[%s1] sm:$0xff] %v4

// kernel: tile.59
$region0: #{tile.59}
  %s0 = inlined_call_operand.vmem [shape: f32[8,32], index: 0, kind: input, shape index: {}]
  %s1 = inlined_call_operand.vmem [shape: f32[1,256], index: 1, kind: output, shape index: {}]
  $region1: #{tile.59} parent=0
    #allocation0 [shape = 'u8[8192]{0}', space=vmem, size = 0x2000, scoped, tag = 'scoped mem for output reshape']
    %s2 = smov 3
    %v3 = vld [vmem:[%s0] ss:$4 sm:%s2]
    %vm4 = vcmask 261120
    %5 = vst.msk [vmem:[#allocation0] ss:$8 sm:$0x3] %vm4, %v3
    %s6 = scalar_lea.vmem %s0, 3
    %s7 = smov 3
    %v8 = vld [vmem:[%s6] ss:$4 sm:%s7]
    %9 = vrot.lane.b32.xlu0 %v8, 96
    %v10 = vpop.permute.xlu0 %9
    %vm11 = vcmask 1048320
    %12 = vst.msk [vmem:[#allocation0] ss:$8 sm:$0x3] %vm11, %v10
    %s13 = scalar_lea.vmem %s0, 2
    %s14 = smov 3
    %v15 = vld [vmem:[%s13] ss:$4 sm:%s14]
    %16 = vrot.lane.b32.xlu0 %v15, 64
    %v17 = vpop.permute.xlu0 %16
    %vm18 = vcmask 785920
    %19 = vst.msk [vmem:[#allocation0] ss:$8 sm:$0x3] %vm18, %v17
    %s20 = scalar_lea.vmem %s0, 1
    %s21 = smov 3
    %v22 = vld [vmem:[%s20] ss:$4 sm:%s21]
    %23 = vrot.lane.b32.xlu0 %v22, 32
    %v24 = vpop.permute.xlu0 %23
    %vm25 = vcmask 523520
    %26 = vst.msk [vmem:[#allocation0] ss:$8 sm:$0x3] %vm25, %v24
    %s28 = sshllo.u32 0, 1
    %v30 = vld [vmem:[#allocation0] sm:%s28]
    %s31 = sshllo.u32 0, 1
    %32 = vst [vmem:[%s1] sm:%s31] %v30
    %s33 = scalar_lea.vmem [#allocation0], 8
    %v34 = vld [vmem:[%s33] sm:%s28]
    %s35 = sshllo.u32 0, 1
    %s36 = scalar_lea.vmem %s1, 1
    %37 = vst [vmem:[%s36] sm:%s35] %v34

// kernel: network_forward.7
$region0: #{network_forward.7}
  #allocation0 [shape = 'u32[]', space=smem, size = 0x4, offset = 0x4, fixed_abs, tag = 'smem constant byte address 0x4 - core index']
  #allocation1 [shape = 'u32[144,128]{1,0:T(1,128)}', space=vmem, size = 0x12000, scoped, tag = 'internal scratch']
  %s0 = inlined_call_operand.vmem [shape: bf16[2,113,128], index: 0, kind: input, shape index: {}]
  %s1 = inlined_call_operand.vmem [shape: bf16[2,128,256], index: 1, kind: input, shape index: {}]
  %s2 = inlined_call_operand.vmem [shape: f32[2,256], index: 2, kind: input, shape index: {}]
  %s3 = inlined_call_operand.vmem [shape: bf16[2,112,128], index: 3, kind: output, shape index: {}]
  %s4 = sld [smem:[#allocation0]]
  $region45: #{network_forward.7} parent=0
    _
  %s6 = ssub.s32 1, %s4
  %s7 = scalar_select 0, %s6, %s4
  loop: start=0, step=1, limit=4
  $region2: #{network_forward.7} parent=0 // loop_pre_header
    _
  $region3: #{network_forward.7} parent=0 // loop_header
    %s9 = sphi 0, %s13
    %p10 = scmp.ge.s32.totalorder %s9, 4
    %s19 = sphi 0, %s21
    %s22 = sphi 0, %s19
    %s23 = sphi 0, %s22
    %s39 = sphi 0, %s23
    %s43 = sphi 0, %s43
    %s45 = sphi 0, %s43
    %s46 = sphi 0, %s45
    %s60 = sphi 0, %s46
    %s64 = sphi 0, %s64
    %s66 = sphi 0, %s64
    %s67 = sphi 0, %s66
    %s81 = sphi 0, %s67
    %s87 = sphi 0, %s89
    %s90 = sphi 0, %s87
    %s91 = sphi 0, %s90
    %s107 = sphi 0, %s91
  $region4: #{network_forward.7} parent=0 // loop_header_branch
    %12 = sbr.rel (%p10) target = $region8
  $region5: #{network_forward.7} parent=0 // loop_body
    %s14 = ssub.s32 %s9, 1
    %s15 = ssub.s32 %s9, 2
    %s16 = sadd.s32 %s9, 1
    %s17 = ssub.s32 %s9, %s16
    %p18 = scmp.eq.s32.totalorder %s17, 0
    %s20 = sadd.s32 %s19, 1
    %s21 = scalar_select %p18, %s19, %s20
    %p24 = pneg %p18
    %p25 = scmp.eq.s32.totalorder %s9, 1
    %p26 = por %p24, %p25
    %p27 = scmp.ne.s32.totalorder %s19, %s22
    %p28 = scmp.eq.s32.totalorder %s9, 0
    %p29 = por %p27, %p28
    %p30 = scmp.ne.s32.totalorder %s19, %s22
    %p31 = scmp.eq.s32.totalorder %s14, 1
    %p32 = por %p30, %p31
    %p33 = scmp.ne.s32.totalorder %s22, %s23
    %p34 = scmp.eq.s32.totalorder %s14, 0
    %p35 = por %p33, %p34
    %p36 = scmp.ne.s32.totalorder %s22, %s23
    %p37 = scmp.eq.s32.totalorder %s15, 1
    %p38 = por %p36, %p37
    %p40 = scmp.ne.s32.totalorder %s23, %s39
    %p41 = scmp.eq.s32.totalorder %s15, 0
    %p42 = por %p40, %p41
    %s44 = sadd.s32 %s43, 1
    %p47 = scmp.eq.s32.totalorder %s9, 1
    %p48 = scmp.ne.s32.totalorder %s43, %s45
    %p49 = scmp.eq.s32.totalorder %s9, 0
    %p50 = por %p48, %p49
    %p51 = scmp.ne.s32.totalorder %s43, %s45
    %p52 = scmp.eq.s32.totalorder %s14, 1
    %p53 = por %p51, %p52
    %p54 = scmp.ne.s32.totalorder %s45, %s46
    %p55 = scmp.eq.s32.totalorder %s14, 0
    %p56 = por %p54, %p55
    %p57 = scmp.ne.s32.totalorder %s45, %s46
    %p58 = scmp.eq.s32.totalorder %s15, 1
    %p59 = por %p57, %p58
    %p61 = scmp.ne.s32.totalorder %s46, %s60
    %p62 = scmp.eq.s32.totalorder %s15, 0
    %p63 = por %p61, %p62
    %s65 = sadd.s32 %s64, 1
    %p68 = scmp.eq.s32.totalorder %s9, 1
    %p69 = scmp.ne.s32.totalorder %s64, %s66
    %p70 = scmp.eq.s32.totalorder %s9, 0
    %p71 = por %p69, %p70
    %p72 = scmp.ne.s32.totalorder %s64, %s66
    %p73 = scmp.eq.s32.totalorder %s14, 1
    %p74 = por %p72, %p73
    %p75 = scmp.ne.s32.totalorder %s66, %s67
    %p76 = scmp.eq.s32.totalorder %s14, 0
    %p77 = por %p75, %p76
    %p78 = scmp.ne.s32.totalorder %s66, %s67
    %p79 = scmp.eq.s32.totalorder %s15, 1
    %p80 = por %p78, %p79
    %p82 = scmp.ne.s32.totalorder %s67, %s81
    %p83 = scmp.eq.s32.totalorder %s15, 0
    %p84 = por %p82, %p83
    %s85 = ssub.s32 %s9, %s16
    %p86 = scmp.eq.s32.totalorder %s85, 0
    %s88 = sadd.s32 %s87, 1
    %s89 = scalar_select %p86, %s87, %s88
    %p92 = pneg %p86
    %p93 = scmp.eq.s32.totalorder %s9, 1
    %p94 = por %p92, %p93
    %p95 = scmp.ne.s32.totalorder %s87, %s90
    %p96 = scmp.eq.s32.totalorder %s9, 0
    %p97 = por %p95, %p96
    %p98 = scmp.ne.s32.totalorder %s87, %s90
    %p99 = scmp.eq.s32.totalorder %s14, 1
    %p100 = por %p98, %p99
    %p101 = scmp.ne.s32.totalorder %s90, %s91
    %p102 = scmp.eq.s32.totalorder %s14, 0
    %p103 = por %p101, %p102
    %p104 = scmp.ne.s32.totalorder %s90, %s91
    %p105 = scmp.eq.s32.totalorder %s15, 1
    %p106 = por %p104, %p105
    %p108 = scmp.ne.s32.totalorder %s91, %s107
    %p109 = scmp.eq.s32.totalorder %s15, 0
    %p110 = por %p108, %p109
    %p111 = scmp.le.s32.totalorder 1, %s9
    %p112 = scmp.lt.s32.totalorder %s9, 3
    %p113 = pnand %p111, %p112
    %p114 = pneg %p113
    // Predicated region
    $region9: #{network_forward.7} parent=5 // pred_check
      _
    $region10: #{network_forward.7} parent=5 // pred_check_branch
      %116 = sbr.rel (%p113) target = $region12
    $region11: #{network_forward.7} parent=5 // pred_region
      %s117 = ssub.s32 %s9, 1
      // Predicated region
      $region13: #{network_forward.7} parent=11 // pred_check
        %p118 = pneg %p56
      $region14: #{network_forward.7} parent=11 // pred_check_branch
        %120 = sbr.rel (%p118) target = $region16
      $region15: #{network_forward.7} parent=11 // pred_region
        _
      $region16: #{network_forward.7} parent=11 // pred_fallthru
        _
      // Predicated region
      $region17: #{network_forward.7} parent=11 // pred_check
        %p121 = pneg %p77
      $region18: #{network_forward.7} parent=11 // pred_check_branch
        %123 = sbr.rel (%p121) target = $region20
      $region19: #{network_forward.7} parent=11 // pred_region
        _
      $region20: #{network_forward.7} parent=11 // pred_fallthru
        _
    $region12: #{network_forward.7} parent=5 // pred_fallthru
      _
    %p124 = scmp.lt.s32.totalorder %s9, 2
    // Predicated region
    $region21: #{network_forward.7} parent=5 // pred_check
      %p125 = pneg %p124
    $region22: #{network_forward.7} parent=5 // pred_check_branch
      %127 = sbr.rel (%p125) target = $region24
    $region23: #{network_forward.7} parent=5 // pred_region
      // Predicated region
      $region25: #{network_forward.7} parent=23 // pred_check
        %p128 = pneg %p29
      $region26: #{network_forward.7} parent=23 // pred_check_branch
        %130 = sbr.rel (%p128) target = $region28
      $region27: #{network_forward.7} parent=23 // pred_region
        %p131 = scmp.lt.s32.totalorder %s9, 1
        %s132 = scalar_select %p131, %s9, 1
        %s133 = smul.addr %s132, 15
        %s134 = smul.addr %s133, 4
        %s135 = scalar_lea.vmem %s0, %s134
      $region28: #{network_forward.7} parent=23 // pred_fallthru
        _
    $region24: #{network_forward.7} parent=5 // pred_fallthru
      _
    %p136 = scmp.le.s32.totalorder 1, %s9
    %p137 = scmp.lt.s32.totalorder %s9, 3
    %p138 = pnand %p136, %p137
    %p139 = pneg %p138
    // Predicated region
    $region29: #{network_forward.7} parent=5 // pred_check
      _
    $region30: #{network_forward.7} parent=5 // pred_check_branch
      %141 = sbr.rel (%p138) target = $region32
    $region31: #{network_forward.7} parent=5 // pred_region
      %s142 = ssub.s32 %s9, 1
      %p143 = scmp.lt.s32.totalorder %s14, 1
      %s144 = scalar_select %p143, %s14, 1
      %s145 = smul.addr %s144, 15
      %s146 = smul.addr %s145, 4
      %s147 = scalar_lea.vmem %s0, %s146
      %p148 = pneg %p35
      %p149 = pneg %p32
      %p150 = pneg %p56
      %p151 = pneg %p53
      %p152 = pneg %p77
      %p153 = pneg %p74
      %p154 = pneg %p103
      %p155 = pneg %p100
      %p156 = scmp.lt.s32.totalorder %s14, 1
      %s157 = scalar_select %p156, %s14, 1
      %s158 = smul.addr %s157, 14
      %s159 = smul.addr %s158, 4
      %s160 = scalar_lea.vmem %s3, %s159
      %p161 = scmp.lt.s32.totalorder %s14, 1
      %s162 = scalar_select %p161, %s14, 1
      %s163 = smul.addr %s162, 15
      %s164 = smul.addr %s163, 4
      %s165 = scalar_lea.vmem %s0, %s164
      %p166 = scmp.lt.s32.totalorder %s14, 1
      %s167 = scalar_select %p166, %s14, 1
      %s168 = smul.addr %s167, 14
      %s169 = smul.addr %s168, 4
      %s170 = scalar_lea.vmem %s3, %s169
      %v172 = vld [vmem:[%s165] sm:$0xf]
      %v173 = vld [vmem:[%s165 + $0x4] sm:$0xf]
      %v174 = vld [vmem:[%s165 + $0x8] sm:$0xf]
      %v175 = vld [vmem:[%s165 + $0xc] sm:$0xf]
      %v176 = vld [vmem:[%s165 + $0x10] sm:$0xf]
      %v177 = vld [vmem:[%s165 + $0x14] sm:$0xf]
      %v178 = vld [vmem:[%s165 + $0x18] sm:$0xf]
      %v179 = vld [vmem:[%s165 + $0x1c] sm:$0xf]
      %v180 = vld [vmem:[%s165 + $0x20] sm:$0xf]
      %v181 = vld [vmem:[%s165 + $0x24] sm:$0xf]
      %v182 = vld [vmem:[%s165 + $0x28] sm:$0xf]
      %v183 = vld [vmem:[%s165 + $0x2c] sm:$0xf]
      %v184 = vld [vmem:[%s165 + $0x30] sm:$0xf]
      %v185 = vld [vmem:[%s165 + $0x34] sm:$0xf]
      %v186 = vld [vmem:[%s1] sm:$0xff]
      %v187 = vld [vmem:[%s1 + $0x8] sm:$0xff]
      %v188 = vld [vmem:[%s1 + $0x10] sm:$0xff]
      %v189 = vld [vmem:[%s1 + $0x18] sm:$0xff]
      %v190 = vld [vmem:[%s1 + $0x20] sm:$0xff]
      %v191 = vld [vmem:[%s1 + $0x28] sm:$0xff]
      %v192 = vld [vmem:[%s1 + $0x30] sm:$0xff]
      %v193 = vld [vmem:[%s1 + $0x38] sm:$0xff]
      %v194 = vld [vmem:[%s1 + $0x40] sm:$0xff]
      %v195 = vld [vmem:[%s1 + $0x48] sm:$0xff]
      %v196 = vld [vmem:[%s1 + $0x50] sm:$0xff]
      %v197 = vld [vmem:[%s1 + $0x58] sm:$0xff]
      %v198 = vld [vmem:[%s1 + $0x60] sm:$0xff]
      %v199 = vld [vmem:[%s1 + $0x68] sm:$0xff]
      %v200 = vld [vmem:[%s1 + $0x70] sm:$0xff]
      %v201 = vld [vmem:[%s1 + $0x78] sm:$0xff]
      %v202 = vld [vmem:[%s165 + $0x38] sm:$0x1]
      %s203 = scalar_lea.vmem %s1, 128
      %v204 = vld [vmem:[%s203] sm:$0xff]
      %v205 = vld [vmem:[%s203 + $0x8] sm:$0xff]
      %v206 = vld [vmem:[%s203 + $0x10] sm:$0xff]
      %v207 = vld [vmem:[%s203 + $0x18] sm:$0xff]
      %v208 = vld [vmem:[%s203 + $0x20] sm:$0xff]
      %v209 = vld [vmem:[%s203 + $0x28] sm:$0xff]
      %v210 = vld [vmem:[%s203 + $0x30] sm:$0xff]
      %v211 = vld [vmem:[%s203 + $0x38] sm:$0xff]
      %v212 = vld [vmem:[%s203 + $0x40] sm:$0xff]
      %v213 = vld [vmem:[%s203 + $0x48] sm:$0xff]
      %v214 = vld [vmem:[%s203 + $0x50] sm:$0xff]
      %v215 = vld [vmem:[%s203 + $0x58] sm:$0xff]
      %v216 = vld [vmem:[%s203 + $0x60] sm:$0xff]
      %v217 = vld [vmem:[%s203 + $0x68] sm:$0xff]
      %v218 = vld [vmem:[%s203 + $0x70] sm:$0xff]
      %v219 = vld [vmem:[%s203 + $0x78] sm:$0xff]
      %v235 = vunpack.c.l.b16 %v172
      %v236 = vunpack.c.l.b16 %v173
      %v237 = vunpack.c.l.b16 %v174
      %v238 = vunpack.c.l.b16 %v175
      %v239 = vunpack.c.l.b16 %v176
      %v240 = vunpack.c.l.b16 %v177
      %v241 = vunpack.c.l.b16 %v178
      %v242 = vunpack.c.l.b16 %v179
      %v243 = vunpack.c.l.b16 %v180
      %v244 = vunpack.c.l.b16 %v181
      %v245 = vunpack.c.l.b16 %v182
      %v246 = vunpack.c.l.b16 %v183
      %v247 = vunpack.c.l.b16 %v184
      %v248 = vunpack.c.l.b16 %v185
      %v249 = vunpack.c.l.b16 %v202
      %v250 = vpack.c.b16 %v236, %v235
      %v251 = vpack.c.b16 %v238, %v237
      %v252 = vpack.c.b16 %v240, %v239
      %v253 = vpack.c.b16 %v242, %v241
      %v254 = vpack.c.b16 %v244, %v243
      %v255 = vpack.c.b16 %v246, %v245
      %v256 = vpack.c.b16 %v248, %v247
      %v257 = vpack.c.b16 %v249, %v249
      %vm258 = vsmask.f32 7424
      %v260 = vshrl.u32 %v250, 16
      %v262 = vshll.u32 %v250, 16
      %v264 = vrot.slane %v262, 1
      %v265 = vor.u32 %v260, %v264
      %v267 = vshll.u32 %v251, 16
      %v269 = vrot.slane %v267, 1
      %v270 = vsel %vm258, %v265, %v269
      %v271 = vshrl.u32 %v251, 16
      %v273 = vor.u32 %v271, %v269
      %v275 = vshll.u32 %v252, 16
      %v277 = vrot.slane %v275, 1
      %v278 = vsel %vm258, %v273, %v277
      %v279 = vshrl.u32 %v252, 16
      %v281 = vor.u32 %v279, %v277
      %v283 = vshll.u32 %v253, 16
      %v285 = vrot.slane %v283, 1
      %v286 = vsel %vm258, %v281, %v285
      %v287 = vshrl.u32 %v253, 16
      %v289 = vor.u32 %v287, %v285
      %v291 = vshll.u32 %v254, 16
      %v293 = vrot.slane %v291, 1
      %v294 = vsel %vm258, %v289, %v293
      %v295 = vshrl.u32 %v254, 16
      %v297 = vor.u32 %v295, %v293
      %v299 = vshll.u32 %v255, 16
      %v301 = vrot.slane %v299, 1
      %v302 = vsel %vm258, %v297, %v301
      %v303 = vshrl.u32 %v255, 16
      %v305 = vor.u32 %v303, %v301
      %v307 = vshll.u32 %v256, 16
      %v309 = vrot.slane %v307, 1
      %v310 = vsel %vm258, %v305, %v309
      %v311 = vshrl.u32 %v256, 16
      %v313 = vor.u32 %v311, %v309
      %v315 = vshll.u32 %v257, 16
      %v317 = vrot.slane %v315, 1
      %v318 = vsel %vm258, %v313, %v317
      %v342 = vunpack.c.l.b16 %v204
      %v343 = vunpack.c.h.b16 %v204
      %v344 = vunpack.c.l.b16 %v205
      %v345 = vunpack.c.h.b16 %v205
      %v346 = vunpack.c.l.b16 %v206
      %v347 = vunpack.c.h.b16 %v206
      %v348 = vunpack.c.l.b16 %v207
      %v349 = vunpack.c.h.b16 %v207
      %v350 = vunpack.c.l.b16 %v208
      %v351 = vunpack.c.h.b16 %v208
      %v352 = vunpack.c.l.b16 %v209
      %v353 = vunpack.c.h.b16 %v209
      %v354 = vunpack.c.l.b16 %v210
      %v355 = vunpack.c.h.b16 %v210
      %v356 = vunpack.c.l.b16 %v211
      %v357 = vunpack.c.h.b16 %v211
      %v358 = vunpack.c.l.b16 %v212
      %v359 = vunpack.c.h.b16 %v212
      %v360 = vunpack.c.l.b16 %v213
      %v361 = vunpack.c.h.b16 %v213
      %v362 = vunpack.c.l.b16 %v214
      %v363 = vunpack.c.h.b16 %v214
      %v364 = vunpack.c.l.b16 %v215
      %v365 = vunpack.c.h.b16 %v215
      %v366 = vunpack.c.l.b16 %v216
      %v367 = vunpack.c.h.b16 %v216
      %v368 = vunpack.c.l.b16 %v217
      %v369 = vunpack.c.h.b16 %v217
      %v370 = vunpack.c.l.b16 %v218
      %v371 = vunpack.c.h.b16 %v218
      %v372 = vunpack.c.l.b16 %v219
      %v373 = vunpack.c.h.b16 %v219
      %v374 = vpack.c.b16 %v344, %v342
      %v375 = vpack.c.b16 %v345, %v343
      %v376 = vpack.c.b16 %v348, %v346
      %v377 = vpack.c.b16 %v349, %v347
      %v378 = vpack.c.b16 %v352, %v350
      %v379 = vpack.c.b16 %v353, %v351
      %v380 = vpack.c.b16 %v356, %v354
      %v381 = vpack.c.b16 %v357, %v355
      %v382 = vpack.c.b16 %v360, %v358
      %v383 = vpack.c.b16 %v361, %v359
      %v384 = vpack.c.b16 %v364, %v362
      %v385 = vpack.c.b16 %v365, %v363
      %v386 = vpack.c.b16 %v368, %v366
      %v387 = vpack.c.b16 %v369, %v367
      %v388 = vpack.c.b16 %v372, %v370
      %v389 = vpack.c.b16 %v373, %v371
      %406 = vmatprep.subr.bf16.mxu0 %v375
      %407 = vmatpush1.bf16.msra.mxu0 %v374
      %408 = vmatprep.subr.bf16.mxu0 %v377
      %409 = vmatpush1.bf16.msra.mxu0 %v376
      %410 = vmatprep.subr.bf16.mxu0 %v379
      %411 = vmatpush1.bf16.msra.mxu0 %v378
      %412 = vmatprep.subr.bf16.mxu0 %v381
      %413 = vmatpush1.bf16.msra.mxu0 %v380
      %414 = vmatprep.subr.bf16.mxu0 %v383
      %415 = vmatpush1.bf16.msra.mxu0 %v382
      %416 = vmatprep.subr.bf16.mxu0 %v385
      %417 = vmatpush1.bf16.msra.mxu0 %v384
      %418 = vmatprep.subr.bf16.mxu0 %v387
      %419 = vmatpush1.bf16.msra.mxu0 %v386
      %420 = vmatprep.subr.bf16.mxu0 %v389
      %421 = vmatpush1.bf16.msra.mxu0 %v388
      %422 = vmatprep.subr.bf16.mxu0 0
      %423 = vmatpush1.bf16.msra.mxu0 0
      %424 = vmatprep.subr.bf16.mxu0 0
      %425 = vmatpush1.bf16.msra.mxu0 0
      %426 = vmatprep.subr.bf16.mxu0 0
      %427 = vmatpush1.bf16.msra.mxu0 0
      %428 = vmatprep.subr.bf16.mxu0 0
      %429 = vmatpush1.bf16.msra.mxu0 0
      %430 = vmatprep.subr.bf16.mxu0 0
      %431 = vmatpush1.bf16.msra.mxu0 0
      %432 = vmatprep.subr.bf16.mxu0 0
      %433 = vmatpush1.bf16.msra.mxu0 0
      %434 = vmatprep.subr.bf16.mxu0 0
      %435 = vmatpush1.bf16.msra.mxu0 0
      %436 = vmatprep.subr.bf16.mxu0 0
      %437 = vmatpush1.bf16.msra.mxu0 0
      %438 = vmatprep.mubr.bf16.mxu0 0
      %439 = vmatmul.mubr.bf16.gmra.mrb[0].mxu0 %v270
      %v440 = vpop.f32.mrb[0].mxu0
      %v441 = vadd.f32 0.0, %v440
      %v442 = vpop.f32.mrb[0].mxu0
      %v443 = vadd.f32 0.0, %v442
      %v444 = vpop.f32.mrb[0].mxu0
      %v445 = vadd.f32 0.0, %v444
      %v446 = vpop.f32.mrb[0].mxu0
      %v447 = vadd.f32 0.0, %v446
      %448 = vmatprep.mubr.bf16.mxu0 0
      %449 = vmatmul.mubr.bf16.gmra.mrb[0].mxu0 %v278
      %v450 = vpop.f32.mrb[0].mxu0
      %v451 = vadd.f32 0.0, %v450
      %v452 = vpop.f32.mrb[0].mxu0
      %v453 = vadd.f32 0.0, %v452
      %v454 = vpop.f32.mrb[0].mxu0
      %v455 = vadd.f32 0.0, %v454
      %v456 = vpop.f32.mrb[0].mxu0
      %v457 = vadd.f32 0.0, %v456
      %458 = vmatprep.mubr.bf16.mxu0 0
      %459 = vmatmul.mubr.bf16.gmra.mrb[0].mxu0 %v286
      %v460 = vpop.f32.mrb[0].mxu0
      %v461 = vadd.f32 0.0, %v460
      %v462 = vpop.f32.mrb[0].mxu0
      %v463 = vadd.f32 0.0, %v462
      %v464 = vpop.f32.mrb[0].mxu0
      %v465 = vadd.f32 0.0, %v464
      %v466 = vpop.f32.mrb[0].mxu0
      %v467 = vadd.f32 0.0, %v466
      %468 = vmatprep.mubr.bf16.mxu0 0
      %469 = vmatmul.mubr.bf16.gmra.mrb[0].mxu0 %v294
      %v470 = vpop.f32.mrb[0].mxu0
      %v471 = vadd.f32 0.0, %v470
      %v472 = vpop.f32.mrb[0].mxu0
      %v473 = vadd.f32 0.0, %v472
      %v474 = vpop.f32.mrb[0].mxu0
      %v475 = vadd.f32 0.0, %v474
      %v476 = vpop.f32.mrb[0].mxu0
      %v477 = vadd.f32 0.0, %v476
      %478 = vmatprep.mubr.bf16.mxu0 0
      %479 = vmatmul.mubr.bf16.gmra.mrb[0].mxu0 %v302
      %v480 = vpop.f32.mrb[0].mxu0
      %v481 = vadd.f32 0.0, %v480
      %v482 = vpop.f32.mrb[0].mxu0
      %v483 = vadd.f32 0.0, %v482
      %v484 = vpop.f32.mrb[0].mxu0
      %v485 = vadd.f32 0.0, %v484
      %v486 = vpop.f32.mrb[0].mxu0
      %v487 = vadd.f32 0.0, %v486
      %488 = vmatprep.mubr.bf16.mxu0 0
      %489 = vmatmul.mubr.bf16.gmra.mrb[0].mxu0 %v310
      %v490 = vpop.f32.mrb[0].mxu0
      %v491 = vadd.f32 0.0, %v490
      %v492 = vpop.f32.mrb[0].mxu0
      %v493 = vadd.f32 0.0, %v492
      %v494 = vpop.f32.mrb[0].mxu0
      %v495 = vadd.f32 0.0, %v494
      %v496 = vpop.f32.mrb[0].mxu0
      %v497 = vadd.f32 0.0, %v496
      %498 = vmatprep.mubr.bf16.mxu0 0
      %499 = vmatmul.mubr.bf16.gmra.mrb[0].mxu0 %v318
      %v500 = vpop.f32.mrb[0].mxu0
      %v501 = vadd.f32 0.0, %v500
      %v502 = vpop.f32.mrb[0].mxu0
      %v503 = vadd.f32 0.0, %v502
      %v504 = vpop.f32.mrb[0].mxu0
      %v505 = vadd.f32 0.0, %v504
      %v506 = vpop.f32.mrb[0].mxu0
      %v507 = vadd.f32 0.0, %v506
      %508 = vdwg.mxu0
      %v532 = vunpack.c.l.b16 %v186
      %v533 = vunpack.c.h.b16 %v186
      %v534 = vunpack.c.l.b16 %v187
      %v535 = vunpack.c.h.b16 %v187
      %v536 = vunpack.c.l.b16 %v188
      %v537 = vunpack.c.h.b16 %v188
      %v538 = vunpack.c.l.b16 %v189
      %v539 = vunpack.c.h.b16 %v189
      %v540 = vunpack.c.l.b16 %v190
      %v541 = vunpack.c.h.b16 %v190
      %v542 = vunpack.c.l.b16 %v191
      %v543 = vunpack.c.h.b16 %v191
      %v544 = vunpack.c.l.b16 %v192
      %v545 = vunpack.c.h.b16 %v192
      %v546 = vunpack.c.l.b16 %v193
      %v547 = vunpack.c.h.b16 %v193
      %v548 = vunpack.c.l.b16 %v194
      %v549 = vunpack.c.h.b16 %v194
      %v550 = vunpack.c.l.b16 %v195
      %v551 = vunpack.c.h.b16 %v195
      %v552 = vunpack.c.l.b16 %v196
      %v553 = vunpack.c.h.b16 %v196
      %v554 = vunpack.c.l.b16 %v197
      %v555 = vunpack.c.h.b16 %v197
      %v556 = vunpack.c.l.b16 %v198
      %v557 = vunpack.c.h.b16 %v198
      %v558 = vunpack.c.l.b16 %v199
      %v559 = vunpack.c.h.b16 %v199
      %v560 = vunpack.c.l.b16 %v200
      %v561 = vunpack.c.h.b16 %v200
      %v562 = vunpack.c.l.b16 %v201
      %v563 = vunpack.c.h.b16 %v201
      %v564 = vpack.c.b16 %v534, %v532
      %v565 = vpack.c.b16 %v535, %v533
      %v566 = vpack.c.b16 %v538, %v536
      %v567 = vpack.c.b16 %v539, %v537
      %v568 = vpack.c.b16 %v542, %v540
      %v569 = vpack.c.b16 %v543, %v541
      %v570 = vpack.c.b16 %v546, %v544
      %v571 = vpack.c.b16 %v547, %v545
      %v572 = vpack.c.b16 %v550, %v548
      %v573 = vpack.c.b16 %v551, %v549
      %v574 = vpack.c.b16 %v554, %v552
      %v575 = vpack.c.b16 %v555, %v553
      %v576 = vpack.c.b16 %v558, %v556
      %v577 = vpack.c.b16 %v559, %v557
      %v578 = vpack.c.b16 %v562, %v560
      %v579 = vpack.c.b16 %v563, %v561
      %596 = vmatprep.subr.bf16.mxu0 %v565
      %597 = vmatpush1.bf16.msra.mxu0 %v564
      %598 = vmatprep.subr.bf16.mxu0 %v567
      %599 = vmatpush1.bf16.msra.mxu0 %v566
      %600 = vmatprep.subr.bf16.mxu0 %v569
      %601 = vmatpush1.bf16.msra.mxu0 %v568
      %602 = vmatprep.subr.bf16.mxu0 %v571
      %603 = vmatpush1.bf16.msra.mxu0 %v570
      %604 = vmatprep.subr.bf16.mxu0 %v573
      %605 = vmatpush1.bf16.msra.mxu0 %v572
      %606 = vmatprep.subr.bf16.mxu0 %v575
      %607 = vmatpush1.bf16.msra.mxu0 %v574
      %608 = vmatprep.subr.bf16.mxu0 %v577
      %609 = vmatpush1.bf16.msra.mxu0 %v576
      %610 = vmatprep.subr.bf16.mxu0 %v579
      %611 = vmatpush1.bf16.msra.mxu0 %v578
      %612 = vmatprep.subr.bf16.mxu0 0
      %613 = vmatpush1.bf16.msra.mxu0 0
      %614 = vmatprep.subr.bf16.mxu0 0
      %615 = vmatpush1.bf16.msra.mxu0 0
      %616 = vmatprep.subr.bf16.mxu0 0
      %617 = vmatpush1.bf16.msra.mxu0 0
      %618 = vmatprep.subr.bf16.mxu0 0
      %619 = vmatpush1.bf16.msra.mxu0 0
      %620 = vmatprep.subr.bf16.mxu0 0
      %621 = vmatpush1.bf16.msra.mxu0 0
      %622 = vmatprep.subr.bf16.mxu0 0
      %623 = vmatpush1.bf16.msra.mxu0 0
      %624 = vmatprep.subr.bf16.mxu0 0
      %625 = vmatpush1.bf16.msra.mxu0 0
      %626 = vmatprep.subr.bf16.mxu0 0
      %627 = vmatpush1.bf16.msra.mxu0 0
      %628 = vmatprep.mubr.bf16.mxu0 0
      %629 = vmatmul.mubr.bf16.gmra.mrb[0].mxu0 %v250
      %v630 = vpop.f32.mrb[0].mxu0
      %v631 = vadd.f32 %v441, %v630
      %v632 = vpop.f32.mrb[0].mxu0
      %v633 = vadd.f32 %v443, %v632
      %v634 = vpop.f32.mrb[0].mxu0
      %v635 = vadd.f32 %v445, %v634
      %v636 = vpop.f32.mrb[0].mxu0
      %v637 = vadd.f32 %v447, %v636
      %638 = vmatprep.mubr.bf16.mxu0 0
      %639 = vmatmul.mubr.bf16.gmra.mrb[0].mxu0 %v251
      %v640 = vpop.f32.mrb[0].mxu0
      %v641 = vadd.f32 %v451, %v640
      %v642 = vpop.f32.mrb[0].mxu0
      %v643 = vadd.f32 %v453, %v642
      %v644 = vpop.f32.mrb[0].mxu0
      %v645 = vadd.f32 %v455, %v644
      %v646 = vpop.f32.mrb[0].mxu0
      %v647 = vadd.f32 %v457, %v646
      %648 = vmatprep.mubr.bf16.mxu0 0
      %649 = vmatmul.mubr.bf16.gmra.mrb[0].mxu0 %v252
      %v650 = vpop.f32.mrb[0].mxu0
      %v651 = vadd.f32 %v461, %v650
      %v652 = vpop.f32.mrb[0].mxu0
      %v653 = vadd.f32 %v463, %v652
      %v654 = vpop.f32.mrb[0].mxu0
      %v655 = vadd.f32 %v465, %v654
      %v656 = vpop.f32.mrb[0].mxu0
      %v657 = vadd.f32 %v467, %v656
      %658 = vmatprep.mubr.bf16.mxu0 0
      %659 = vmatmul.mubr.bf16.gmra.mrb[0].mxu0 %v253
      %v660 = vpop.f32.mrb[0].mxu0
      %v661 = vadd.f32 %v471, %v660
      %v662 = vpop.f32.mrb[0].mxu0
      %v663 = vadd.f32 %v473, %v662
      %v664 = vpop.f32.mrb[0].mxu0
      %v665 = vadd.f32 %v475, %v664
      %v666 = vpop.f32.mrb[0].mxu0
      %v667 = vadd.f32 %v477, %v666
      %668 = vmatprep.mubr.bf16.mxu0 0
      %669 = vmatmul.mubr.bf16.gmra.mrb[0].mxu0 %v254
      %v670 = vpop.f32.mrb[0].mxu0
      %v671 = vadd.f32 %v481, %v670
      %v672 = vpop.f32.mrb[0].mxu0
      %v673 = vadd.f32 %v483, %v672
      %v674 = vpop.f32.mrb[0].mxu0
      %v675 = vadd.f32 %v485, %v674
      %v676 = vpop.f32.mrb[0].mxu0
      %v677 = vadd.f32 %v487, %v676
      %678 = vmatprep.mubr.bf16.mxu0 0
      %679 = vmatmul.mubr.bf16.gmra.mrb[0].mxu0 %v255
      %v680 = vpop.f32.mrb[0].mxu0
      %v681 = vadd.f32 %v491, %v680
      %v682 = vpop.f32.mrb[0].mxu0
      %v683 = vadd.f32 %v493, %v682
      %v684 = vpop.f32.mrb[0].mxu0
      %v685 = vadd.f32 %v495, %v684
      %v686 = vpop.f32.mrb[0].mxu0
      %v687 = vadd.f32 %v497, %v686
      %688 = vmatprep.mubr.bf16.mxu0 0
      %689 = vmatmul.mubr.bf16.gmra.mrb[0].mxu0 %v256
      %v690 = vpop.f32.mrb[0].mxu0
      %v691 = vadd.f32 %v501, %v690
      %v692 = vpop.f32.mrb[0].mxu0
      %v693 = vadd.f32 %v503, %v692
      %v694 = vpop.f32.mrb[0].mxu0
      %v695 = vadd.f32 %v505, %v694
      %v696 = vpop.f32.mrb[0].mxu0
      %v697 = vadd.f32 %v507, %v696
      %698 = vdwg.mxu0
      %v699 = vld [vmem:[%s2] ss:$2 sm:$0x3]
      %v701 = vlaneseq
      %v702 = vshrl.u32 %v701, 7
      %v703 = vsub.s32 0, %v702
      %v704 = vrot.slane %v699, %v703
      %v705 = vlaneseq
      %v706 = vshrl.u32 %v705, 7
      %v707 = vsub.s32 1, %v706
      %v708 = vrot.slane %v699, %v707
      %v711 = vmul.f32 %v631, %v704
      %v712 = vmul.f32 %v633, %v708
      %v713 = vmul.f32 %v635, %v704
      %v714 = vmul.f32 %v637, %v708
      %v715 = vmul.f32 %v641, %v704
      %v716 = vmul.f32 %v643, %v708
      %v717 = vmul.f32 %v645, %v704
      %v718 = vmul.f32 %v647, %v708
      %v719 = vmul.f32 %v651, %v704
      %v720 = vmul.f32 %v653, %v708
      %v721 = vmul.f32 %v655, %v704
      %v722 = vmul.f32 %v657, %v708
      %v723 = vmul.f32 %v661, %v704
      %v724 = vmul.f32 %v663, %v708
      %v725 = vmul.f32 %v665, %v704
      %v726 = vmul.f32 %v667, %v708
      %v727 = vmul.f32 %v671, %v704
      %v728 = vmul.f32 %v673, %v708
      %v729 = vmul.f32 %v675, %v704
      %v730 = vmul.f32 %v677, %v708
      %v731 = vmul.f32 %v681, %v704
      %v732 = vmul.f32 %v683, %v708
      %v733 = vmul.f32 %v685, %v704
      %v734 = vmul.f32 %v687, %v708
      %v735 = vmul.f32 %v691, %v704
      %v736 = vmul.f32 %v693, %v708
      %v737 = vmul.f32 %v695, %v704
      %v738 = vmul.f32 %v697, %v708
      %s739 = scalar_lea.vmem %s2, 1
      %v740 = vld [vmem:[%s739] ss:$2 sm:$0x3]
      %v742 = vlaneseq
      %v743 = vshrl.u32 %v742, 7
      %v744 = vsub.s32 0, %v743
      %v745 = vrot.slane %v740, %v744
      %v746 = vlaneseq
      %v747 = vshrl.u32 %v746, 7
      %v748 = vsub.s32 1, %v747
      %v749 = vrot.slane %v740, %v748
      %v752 = vadd.f32 %v711, %v745
      %v753 = vadd.f32 %v712, %v749
      %v754 = vadd.f32 %v713, %v745
      %v755 = vadd.f32 %v714, %v749
      %v756 = vadd.f32 %v715, %v745
      %v757 = vadd.f32 %v716, %v749
      %v758 = vadd.f32 %v717, %v745
      %v759 = vadd.f32 %v718, %v749
      %v760 = vadd.f32 %v719, %v745
      %v761 = vadd.f32 %v720, %v749
      %v762 = vadd.f32 %v721, %v745
      %v763 = vadd.f32 %v722, %v749
      %v764 = vadd.f32 %v723, %v745
      %v765 = vadd.f32 %v724, %v749
      %v766 = vadd.f32 %v725, %v745
      %v767 = vadd.f32 %v726, %v749
      %v768 = vadd.f32 %v727, %v745
      %v769 = vadd.f32 %v728, %v749
      %v770 = vadd.f32 %v729, %v745
      %v771 = vadd.f32 %v730, %v749
      %v772 = vadd.f32 %v731, %v745
      %v773 = vadd.f32 %v732, %v749
      %v774 = vadd.f32 %v733, %v745
      %v775 = vadd.f32 %v734, %v749
      %v776 = vadd.f32 %v735, %v745
      %v777 = vadd.f32 %v736, %v749
      %v778 = vadd.f32 %v737, %v745
      %v779 = vadd.f32 %v738, %v749
      %v780 = vmax.f32 %v752, 0.0
      %v781 = vmax.f32 %v753, 0.0
      %v782 = vmax.f32 %v754, 0.0
      %v783 = vmax.f32 %v755, 0.0
      %v784 = vmax.f32 %v756, 0.0
      %v785 = vmax.f32 %v757, 0.0
      %v786 = vmax.f32 %v758, 0.0
      %v787 = vmax.f32 %v759, 0.0
      %v788 = vmax.f32 %v760, 0.0
      %v789 = vmax.f32 %v761, 0.0
      %v790 = vmax.f32 %v762, 0.0
      %v791 = vmax.f32 %v763, 0.0
      %v792 = vmax.f32 %v764, 0.0
      %v793 = vmax.f32 %v765, 0.0
      %v794 = vmax.f32 %v766, 0.0
      %v795 = vmax.f32 %v767, 0.0
      %v796 = vmax.f32 %v768, 0.0
      %v797 = vmax.f32 %v769, 0.0
      %v798 = vmax.f32 %v770, 0.0
      %v799 = vmax.f32 %v771, 0.0
      %v800 = vmax.f32 %v772, 0.0
      %v801 = vmax.f32 %v773, 0.0
      %v802 = vmax.f32 %v774, 0.0
      %v803 = vmax.f32 %v775, 0.0
      %v804 = vmax.f32 %v776, 0.0
      %v805 = vmax.f32 %v777, 0.0
      %v806 = vmax.f32 %v778, 0.0
      %v807 = vmax.f32 %v779, 0.0
      %v808 = vmax.f32 %v780, %v781
      %v809 = vmax.f32 %v782, %v783
      %v810 = vmax.f32 %v784, %v785
      %v811 = vmax.f32 %v786, %v787
      %v812 = vmax.f32 %v788, %v789
      %v813 = vmax.f32 %v790, %v791
      %v814 = vmax.f32 %v792, %v793
      %v815 = vmax.f32 %v794, %v795
      %v816 = vmax.f32 %v796, %v797
      %v817 = vmax.f32 %v798, %v799
      %v818 = vmax.f32 %v800, %v801
      %v819 = vmax.f32 %v802, %v803
      %v820 = vmax.f32 %v804, %v805
      %v821 = vmax.f32 %v806, %v807
      %v822 = vpack.c.bf16 %v809, %v808
      %v823 = vpack.c.bf16 %v811, %v810
      %v824 = vpack.c.bf16 %v813, %v812
      %v825 = vpack.c.bf16 %v815, %v814
      %v826 = vpack.c.bf16 %v817, %v816
      %v827 = vpack.c.bf16 %v819, %v818
      %v828 = vpack.c.bf16 %v821, %v820
      %v836 = vunpack.c.l.b16 %v822
      %v837 = vunpack.c.h.b16 %v822
      %v838 = vunpack.c.l.b16 %v823
      %v839 = vunpack.c.h.b16 %v823
      %v840 = vunpack.c.l.b16 %v824
      %v841 = vunpack.c.h.b16 %v824
      %v842 = vunpack.c.l.b16 %v825
      %v843 = vunpack.c.h.b16 %v825
      %v844 = vunpack.c.l.b16 %v826
      %v845 = vunpack.c.h.b16 %v826
      %v846 = vunpack.c.l.b16 %v827
      %v847 = vunpack.c.h.b16 %v827
      %v848 = vunpack.c.l.b16 %v828
      %v849 = vunpack.c.h.b16 %v828
      %v850 = vpack.c.b16 %v836, %v836
      %v851 = vpack.c.b16 %v837, %v837
      %v852 = vpack.c.b16 %v838, %v838
      %v853 = vpack.c.b16 %v839, %v839
      %v854 = vpack.c.b16 %v840, %v840
      %v855 = vpack.c.b16 %v841, %v841
      %v856 = vpack.c.b16 %v842, %v842
      %v857 = vpack.c.b16 %v843, %v843
      %v858 = vpack.c.b16 %v844, %v844
      %v859 = vpack.c.b16 %v845, %v845
      %v860 = vpack.c.b16 %v846, %v846
      %v861 = vpack.c.b16 %v847, %v847
      %v862 = vpack.c.b16 %v848, %v848
      %v863 = vpack.c.b16 %v849, %v849
      %878 = vst [vmem:[%s170] sm:$0xf] %v850
      %879 = vst [vmem:[%s170 + $0x4] sm:$0xf] %v851
      %880 = vst [vmem:[%s170 + $0x8] sm:$0xf] %v852
      %881 = vst [vmem:[%s170 + $0xc] sm:$0xf] %v853
      %882 = vst [vmem:[%s170 + $0x10] sm:$0xf] %v854
      %883 = vst [vmem:[%s170 + $0x14] sm:$0xf] %v855
      %884 = vst [vmem:[%s170 + $0x18] sm:$0xf] %v856
      %885 = vst [vmem:[%s170 + $0x1c] sm:$0xf] %v857
      %886 = vst [vmem:[%s170 + $0x20] sm:$0xf] %v858
      %887 = vst [vmem:[%s170 + $0x24] sm:$0xf] %v859
      %888 = vst [vmem:[%s170 + $0x28] sm:$0xf] %v860
      %889 = vst [vmem:[%s170 + $0x2c] sm:$0xf] %v861
      %890 = vst [vmem:[%s170 + $0x30] sm:$0xf] %v862
      %891 = vst [vmem:[%s170 + $0x34] sm:$0xf] %v863
      %p892 = scmp.lt.s32.totalorder %s14, 1
      %s893 = scalar_select %p892, %s14, 1
      %s894 = smul.addr %s893, 14
      %s895 = smul.addr %s894, 4
      %s896 = scalar_lea.vmem %s3, %s895
      // Predicated region
      $region33: #{network_forward.7} parent=31 // pred_check
        %p897 = pneg %p100
      $region34: #{network_forward.7} parent=31 // pred_check_branch
        %899 = sbr.rel (%p897) target = $region36
      $region35: #{network_forward.7} parent=31 // pred_region
        _
      $region36: #{network_forward.7} parent=31 // pred_fallthru
        _
    $region32: #{network_forward.7} parent=5 // pred_fallthru
      _
    %p900 = scmp.le.s32.totalorder 2, %s9
    // Predicated region
    $region37: #{network_forward.7} parent=5 // pred_check
      %p901 = pneg %p900
    $region38: #{network_forward.7} parent=5 // pred_check_branch
      %903 = sbr.rel (%p901) target = $region40
    $region39: #{network_forward.7} parent=5 // pred_region
      %s904 = ssub.s32 %s9, 2
      // Predicated region
      $region41: #{network_forward.7} parent=39 // pred_check
        %p905 = pneg %p106
      $region42: #{network_forward.7} parent=39 // pred_check_branch
        %907 = sbr.rel (%p905) target = $region44
      $region43: #{network_forward.7} parent=39 // pred_region
        %p908 = scmp.lt.s32.totalorder %s15, 1
        %s909 = scalar_select %p908, %s15, 1
        %s910 = smul.addr %s909, 14
        %s911 = smul.addr %s910, 4
        %s912 = scalar_lea.vmem %s3, %s911
      $region44: #{network_forward.7} parent=39 // pred_fallthru
        _
    $region40: #{network_forward.7} parent=5 // pred_fallthru
      _
  $region6: #{network_forward.7} parent=0 // loop_footer
    %s13 = sadd.s32 1, %s9
  $region7: #{network_forward.7} parent=0 // loop_footer_branch
    %8 = sbr.rel target = $region3
  $region8: #{network_forward.7} parent=0 // loop_exit
    _

// kernel: tile.67
$region0: #{tile.67}
  #allocation0 [shape = 's32[1]{0}', space=sflag, size = 0x4, scoped, tag = 'scoped memory for tile.67']
  %s0 = inlined_call_operand.vmem [shape: f32[64], index: 0, kind: input, shape index: {}]
  %s1 = inlined_call_operand.vmem [shape: f32[4,64], index: 1, kind: output, shape index: {}]
  // Predicated region
  $region2: #{tile.67} parent=0 // pred_check
    _
  $region3: #{tile.67} parent=0 // pred_check_branch
    %3 = sbr.rel (0) target = $region5
  $region4: #{tile.67} parent=0 // pred_region
    _
  $region5: #{tile.67} parent=0 // pred_fallthru
    _
  %v4 = vld [vmem:[%s0] ss:$0 sm:$0xff]
  %5 = vst [vmem:[%s1] sm:$0xf] %v4

// kernel: tile.69
$region0: #{tile.69}
  %s0 = inlined_call_operand.vmem [shape: f32[4,64], index: 0, kind: input, shape index: {}]
  %s1 = inlined_call_operand.vmem [shape: f32[1,256], index: 1, kind: output, shape index: {}]
  $region1: #{tile.69} parent=0
    #allocation0 [shape = 'u8[8192]{0}', space=vmem, size = 0x2000, scoped, tag = 'scoped mem for output reshape']
    #allocation1 [shape = 'u8[4096]{0}', space=vmem, size = 0x1000, scoped, tag = 'scoped mem for input reshape']
    %s3 = sshllo.u32 0, 4
    %v4 = vld [vmem:[%s0] sm:%s3]
    %5 = vst [vmem:[#allocation1] sm:%s3] %v4
    %s6 = smov 3
    %v7 = vld [vmem:[#allocation1] ss:$2 sm:%s6]
    %vm8 = vcmask 523264
    %9 = vst.msk [vmem:[#allocation0] ss:$8 sm:$0x3] %vm8, %v7
    %s10 = scalar_lea.vmem [#allocation1], 1
    %s11 = smov 3
    %v12 = vld [vmem:[%s10] ss:$2 sm:%s11]
    %13 = vrot.lane.b32.xlu0 %v12, 64
    %v14 = vpop.permute.xlu0 %13
    %vm15 = vcmask 1048064
    %16 = vst.msk [vmem:[#allocation0] ss:$8 sm:$0x3] %vm15, %v14
    %s18 = sshllo.u32 0, 1
    %v20 = vld [vmem:[#allocation0] sm:%s18]
    %s21 = sshllo.u32 0, 1
    %22 = vst [vmem:[%s1] sm:%s21] %v20
    %s23 = scalar_lea.vmem [#allocation0], 8
    %v24 = vld [vmem:[%s23] sm:%s18]
    %s25 = sshllo.u32 0, 1
    %s26 = scalar_lea.vmem %s1, 1
    %27 = vst [vmem:[%s26] sm:%s25] %v24

// kernel: network_forward.9
$region0: #{network_forward.9}
  #allocation0 [shape = 'u32[]', space=smem, size = 0x4, offset = 0x4, fixed_abs, tag = 'smem constant byte address 0x4 - core index']
  #allocation1 [shape = 'u32[144,128]{1,0:T(1,128)}', space=vmem, size = 0x12000, scoped, tag = 'internal scratch']
  %s0 = inlined_call_operand.vmem [shape: bf16[2,57,256], index: 0, kind: input, shape index: {}]
  %s1 = inlined_call_operand.vmem [shape: bf16[2,256,256], index: 1, kind: input, shape index: {}]
  %s2 = inlined_call_operand.vmem [shape: f32[2,256], index: 2, kind: input, shape index: {}]
  %s3 = inlined_call_operand.vmem [shape: bf16[2,56,128], index: 3, kind: output, shape index: {}]
  %s4 = sld [smem:[#allocation0]]
  $region45: #{network_forward.9} parent=0
    _
  %s6 = ssub.s32 1, %s4
  %s7 = scalar_select 0, %s6, %s4
  loop: start=0, step=1, limit=4
  $region2: #{network_forward.9} parent=0 // loop_pre_header
    _
  $region3: #{network_forward.9} parent=0 // loop_header
    %s9 = sphi 0, %s13
    %p10 = scmp.ge.s32.totalorder %s9, 4
    %s19 = sphi 0, %s21
    %s22 = sphi 0, %s19
    %s23 = sphi 0, %s22
    %s39 = sphi 0, %s23
    %s43 = sphi 0, %s43
    %s45 = sphi 0, %s43
    %s46 = sphi 0, %s45
    %s60 = sphi 0, %s46
    %s64 = sphi 0, %s64
    %s66 = sphi 0, %s64
    %s67 = sphi 0, %s66
    %s81 = sphi 0, %s67
    %s87 = sphi 0, %s89
    %s90 = sphi 0, %s87
    %s91 = sphi 0, %s90
    %s107 = sphi 0, %s91
  $region4: #{network_forward.9} parent=0 // loop_header_branch
    %12 = sbr.rel (%p10) target = $region8
  $region5: #{network_forward.9} parent=0 // loop_body
    %s14 = ssub.s32 %s9, 1
    %s15 = ssub.s32 %s9, 2
    %s16 = sadd.s32 %s9, 1
    %s17 = ssub.s32 %s9, %s16
    %p18 = scmp.eq.s32.totalorder %s17, 0
    %s20 = sadd.s32 %s19, 1
    %s21 = scalar_select %p18, %s19, %s20
    %p24 = pneg %p18
    %p25 = scmp.eq.s32.totalorder %s9, 1
    %p26 = por %p24, %p25
    %p27 = scmp.ne.s32.totalorder %s19, %s22
    %p28 = scmp.eq.s32.totalorder %s9, 0
    %p29 = por %p27, %p28
    %p30 = scmp.ne.s32.totalorder %s19, %s22
    %p31 = scmp.eq.s32.totalorder %s14, 1
    %p32 = por %p30, %p31
    %p33 = scmp.ne.s32.totalorder %s22, %s23
    %p34 = scmp.eq.s32.totalorder %s14, 0
    %p35 = por %p33, %p34
    %p36 = scmp.ne.s32.totalorder %s22, %s23
    %p37 = scmp.eq.s32.totalorder %s15, 1
    %p38 = por %p36, %p37
    %p40 = scmp.ne.s32.totalorder %s23, %s39
    %p41 = scmp.eq.s32.totalorder %s15, 0
    %p42 = por %p40, %p41
    %s44 = sadd.s32 %s43, 1
    %p47 = scmp.eq.s32.totalorder %s9, 1
    %p48 = scmp.ne.s32.totalorder %s43, %s45
    %p49 = scmp.eq.s32.totalorder %s9, 0
    %p50 = por %p48, %p49
    %p51 = scmp.ne.s32.totalorder %s43, %s45
    %p52 = scmp.eq.s32.totalorder %s14, 1
    %p53 = por %p51, %p52
    %p54 = scmp.ne.s32.totalorder %s45, %s46
    %p55 = scmp.eq.s32.totalorder %s14, 0
    %p56 = por %p54, %p55
    %p57 = scmp.ne.s32.totalorder %s45, %s46
    %p58 = scmp.eq.s32.totalorder %s15, 1
    %p59 = por %p57, %p58
    %p61 = scmp.ne.s32.totalorder %s46, %s60
    %p62 = scmp.eq.s32.totalorder %s15, 0
    %p63 = por %p61, %p62
    %s65 = sadd.s32 %s64, 1
    %p68 = scmp.eq.s32.totalorder %s9, 1
    %p69 = scmp.ne.s32.totalorder %s64, %s66
    %p70 = scmp.eq.s32.totalorder %s9, 0
    %p71 = por %p69, %p70
    %p72 = scmp.ne.s32.totalorder %s64, %s66
    %p73 = scmp.eq.s32.totalorder %s14, 1
    %p74 = por %p72, %p73
    %p75 = scmp.ne.s32.totalorder %s66, %s67
    %p76 = scmp.eq.s32.totalorder %s14, 0
    %p77 = por %p75, %p76
    %p78 = scmp.ne.s32.totalorder %s66, %s67
    %p79 = scmp.eq.s32.totalorder %s15, 1
    %p80 = por %p78, %p79
    %p82 = scmp.ne.s32.totalorder %s67, %s81
    %p83 = scmp.eq.s32.totalorder %s15, 0
    %p84 = por %p82, %p83
    %s85 = ssub.s32 %s9, %s16
    %p86 = scmp.eq.s32.totalorder %s85, 0
    %s88 = sadd.s32 %s87, 1
    %s89 = scalar_select %p86, %s87, %s88
    %p92 = pneg %p86
    %p93 = scmp.eq.s32.totalorder %s9, 1
    %p94 = por %p92, %p93
    %p95 = scmp.ne.s32.totalorder %s87, %s90
    %p96 = scmp.eq.s32.totalorder %s9, 0
    %p97 = por %p95, %p96
    %p98 = scmp.ne.s32.totalorder %s87, %s90
    %p99 = scmp.eq.s32.totalorder %s14, 1
    %p100 = por %p98, %p99
    %p101 = scmp.ne.s32.totalorder %s90, %s91
    %p102 = scmp.eq.s32.totalorder %s14, 0
    %p103 = por %p101, %p102
    %p104 = scmp.ne.s32.totalorder %s90, %s91
    %p105 = scmp.eq.s32.totalorder %s15, 1
    %p106 = por %p104, %p105
    %p108 = scmp.ne.s32.totalorder %s91, %s107
    %p109 = scmp.eq.s32.totalorder %s15, 0
    %p110 = por %p108, %p109
    %p111 = scmp.le.s32.totalorder 1, %s9
    %p112 = scmp.lt.s32.totalorder %s9, 3
    %p113 = pnand %p111, %p112
    %p114 = pneg %p113
    // Predicated region
    $region9: #{network_forward.9} parent=5 // pred_check
      _
    $region10: #{network_forward.9} parent=5 // pred_check_branch
      %116 = sbr.rel (%p113) target = $region12
    $region11: #{network_forward.9} parent=5 // pred_region
      %s117 = ssub.s32 %s9, 1
      // Predicated region
      $region13: #{network_forward.9} parent=11 // pred_check
        %p118 = pneg %p56
      $region14: #{network_forward.9} parent=11 // pred_check_branch
        %120 = sbr.rel (%p118) target = $region16
      $region15: #{network_forward.9} parent=11 // pred_region
        _
      $region16: #{network_forward.9} parent=11 // pred_fallthru
        _
      // Predicated region
      $region17: #{network_forward.9} parent=11 // pred_check
        %p121 = pneg %p77
      $region18: #{network_forward.9} parent=11 // pred_check_branch
        %123 = sbr.rel (%p121) target = $region20
      $region19: #{network_forward.9} parent=11 // pred_region
        _
      $region20: #{network_forward.9} parent=11 // pred_fallthru
        _
    $region12: #{network_forward.9} parent=5 // pred_fallthru
      _
    %p124 = scmp.lt.s32.totalorder %s9, 2
    // Predicated region
    $region21: #{network_forward.9} parent=5 // pred_check
      %p125 = pneg %p124
    $region22: #{network_forward.9} parent=5 // pred_check_branch
      %127 = sbr.rel (%p125) target = $region24
    $region23: #{network_forward.9} parent=5 // pred_region
      // Predicated region
      $region25: #{network_forward.9} parent=23 // pred_check
        %p128 = pneg %p29
      $region26: #{network_forward.9} parent=23 // pred_check_branch
        %130 = sbr.rel (%p128) target = $region28
      $region27: #{network_forward.9} parent=23 // pred_region
        %p131 = scmp.lt.s32.totalorder %s9, 1
        %s132 = scalar_select %p131, %s9, 1
        %s133 = smul.addr %s132, 16
        %s134 = smul.addr %s133, 4
        %s135 = scalar_lea.vmem %s0, %s134
      $region28: #{network_forward.9} parent=23 // pred_fallthru
        _
    $region24: #{network_forward.9} parent=5 // pred_fallthru
      _
    %p136 = scmp.le.s32.totalorder 1, %s9
    %p137 = scmp.lt.s32.totalorder %s9, 3
    %p138 = pnand %p136, %p137
    %p139 = pneg %p138
    // Predicated region
    $region29: #{network_forward.9} parent=5 // pred_check
      _
    $region30: #{network_forward.9} parent=5 // pred_check_branch
      %141 = sbr.rel (%p138) target = $region32
    $region31: #{network_forward.9} parent=5 // pred_region
      %s142 = ssub.s32 %s9, 1
      %p143 = scmp.lt.s32.totalorder %s14, 1
      %s144 = scalar_select %p143, %s14, 1
      %s145 = smul.addr %s144, 16
      %s146 = smul.addr %s145, 4
      %s147 = scalar_lea.vmem %s0, %s146
      %p148 = pneg %p35
      %p149 = pneg %p32
      %p150 = pneg %p56
      %p151 = pneg %p53
      %p152 = pneg %p77
      %p153 = pneg %p74
      %p154 = pneg %p103
      %p155 = pneg %p100
      %p156 = scmp.lt.s32.totalorder %s14, 1
      %s157 = scalar_select %p156, %s14, 1
      %s158 = smul.addr %s157, 7
      %s159 = smul.addr %s158, 4
      %s160 = scalar_lea.vmem %s3, %s159
      %p161 = scmp.lt.s32.totalorder %s14, 1
      %s162 = scalar_select %p161, %s14, 1
      %s163 = smul.addr %s162, 16
      %s164 = smul.addr %s163, 4
      %s165 = scalar_lea.vmem %s0, %s164
      %p166 = scmp.lt.s32.totalorder %s14, 1
      %s167 = scalar_select %p166, %s14, 1
      %s168 = smul.addr %s167, 7
      %s169 = smul.addr %s168, 4
      %s170 = scalar_lea.vmem %s3, %s169
      %v171 = vld [vmem:[%s165] sm:$0xff]
      %v172 = vld [vmem:[%s165 + $0x8] sm:$0xff]
      %v173 = vld [vmem:[%s165 + $0x10] sm:$0xff]
      %v174 = vld [vmem:[%s165 + $0x18] sm:$0xff]
      %v175 = vld [vmem:[%s165 + $0x20] sm:$0xff]
      %v176 = vld [vmem:[%s165 + $0x28] sm:$0xff]
      %v177 = vld [vmem:[%s165 + $0x30] sm:$0xff]
      %v178 = vld [vmem:[%s1] sm:$0xff]
      %v179 = vld [vmem:[%s1 + $0x8] sm:$0xff]
      %v180 = vld [vmem:[%s1 + $0x10] sm:$0xff]
      %v181 = vld [vmem:[%s1 + $0x18] sm:$0xff]
      %v182 = vld [vmem:[%s1 + $0x20] sm:$0xff]
      %v183 = vld [vmem:[%s1 + $0x28] sm:$0xff]
      %v184 = vld [vmem:[%s1 + $0x30] sm:$0xff]
      %v185 = vld [vmem:[%s1 + $0x38] sm:$0xff]
      %v186 = vld [vmem:[%s1 + $0x40] sm:$0xff]
      %v187 = vld [vmem:[%s1 + $0x48] sm:$0xff]
      %v188 = vld [vmem:[%s1 + $0x50] sm:$0xff]
      %v189 = vld [vmem:[%s1 + $0x58] sm:$0xff]
      %v190 = vld [vmem:[%s1 + $0x60] sm:$0xff]
      %v191 = vld [vmem:[%s1 + $0x68] sm:$0xff]
      %v192 = vld [vmem:[%s1 + $0x70] sm:$0xff]
      %v193 = vld [vmem:[%s1 + $0x78] sm:$0xff]
      %v194 = vld [vmem:[%s1 + $0x80] sm:$0xff]
      %v195 = vld [vmem:[%s1 + $0x88] sm:$0xff]
      %v196 = vld [vmem:[%s1 + $0x90] sm:$0xff]
      %v197 = vld [vmem:[%s1 + $0x98] sm:$0xff]
      %v198 = vld [vmem:[%s1 + $0xa0] sm:$0xff]
      %v199 = vld [vmem:[%s1 + $0xa8] sm:$0xff]
      %v200 = vld [vmem:[%s1 + $0xb0] sm:$0xff]
      %v201 = vld [vmem:[%s1 + $0xb8] sm:$0xff]
      %v202 = vld [vmem:[%s1 + $0xc0] sm:$0xff]
      %v203 = vld [vmem:[%s1 + $0xc8] sm:$0xff]
      %v204 = vld [vmem:[%s1 + $0xd0] sm:$0xff]
      %v205 = vld [vmem:[%s1 + $0xd8] sm:$0xff]
      %v206 = vld [vmem:[%s1 + $0xe0] sm:$0xff]
      %v207 = vld [vmem:[%s1 + $0xe8] sm:$0xff]
      %v208 = vld [vmem:[%s1 + $0xf0] sm:$0xff]
      %v209 = vld [vmem:[%s1 + $0xf8] sm:$0xff]
      %v210 = vld [vmem:[%s165 + $0x38] sm:$0x11]
      %s211 = scalar_lea.vmem %s1, 256
      %v212 = vld [vmem:[%s211] sm:$0xff]
      %v213 = vld [vmem:[%s211 + $0x8] sm:$0xff]
      %v214 = vld [vmem:[%s211 + $0x10] sm:$0xff]
      %v215 = vld [vmem:[%s211 + $0x18] sm:$0xff]
      %v216 = vld [vmem:[%s211 + $0x20] sm:$0xff]
      %v217 = vld [vmem:[%s211 + $0x28] sm:$0xff]
      %v218 = vld [vmem:[%s211 + $0x30] sm:$0xff]
      %v219 = vld [vmem:[%s211 + $0x38] sm:$0xff]
      %v220 = vld [vmem:[%s211 + $0x40] sm:$0xff]
      %v221 = vld [vmem:[%s211 + $0x48] sm:$0xff]
      %v222 = vld [vmem:[%s211 + $0x50] sm:$0xff]
      %v223 = vld [vmem:[%s211 + $0x58] sm:$0xff]
      %v224 = vld [vmem:[%s211 + $0x60] sm:$0xff]
      %v225 = vld [vmem:[%s211 + $0x68] sm:$0xff]
      %v226 = vld [vmem:[%s211 + $0x70] sm:$0xff]
      %v227 = vld [vmem:[%s211 + $0x78] sm:$0xff]
      %v228 = vld [vmem:[%s211 + $0x80] sm:$0xff]
      %v229 = vld [vmem:[%s211 + $0x88] sm:$0xff]
      %v230 = vld [vmem:[%s211 + $0x90] sm:$0xff]
      %v231 = vld [vmem:[%s211 + $0x98] sm:$0xff]
      %v232 = vld [vmem:[%s211 + $0xa0] sm:$0xff]
      %v233 = vld [vmem:[%s211 + $0xa8] sm:$0xff]
      %v234 = vld [vmem:[%s211 + $0xb0] sm:$0xff]
      %v235 = vld [vmem:[%s211 + $0xb8] sm:$0xff]
      %v236 = vld [vmem:[%s211 + $0xc0] sm:$0xff]
      %v237 = vld [vmem:[%s211 + $0xc8] sm:$0xff]
      %v238 = vld [vmem:[%s211 + $0xd0] sm:$0xff]
      %v239 = vld [vmem:[%s211 + $0xd8] sm:$0xff]
      %v240 = vld [vmem:[%s211 + $0xe0] sm:$0xff]
      %v241 = vld [vmem:[%s211 + $0xe8] sm:$0xff]
      %v242 = vld [vmem:[%s211 + $0xf0] sm:$0xff]
      %v243 = vld [vmem:[%s211 + $0xf8] sm:$0xff]
      %v252 = vunpack.c.l.b16 %v171
      %v253 = vunpack.c.h.b16 %v171
      %v254 = vunpack.c.l.b16 %v172
      %v255 = vunpack.c.h.b16 %v172
      %v256 = vunpack.c.l.b16 %v173
      %v257 = vunpack.c.h.b16 %v173
      %v258 = vunpack.c.l.b16 %v174
      %v259 = vunpack.c.h.b16 %v174
      %v260 = vunpack.c.l.b16 %v175
      %v261 = vunpack.c.h.b16 %v175
      %v262 = vunpack.c.l.b16 %v176
      %v263 = vunpack.c.h.b16 %v176
      %v264 = vunpack.c.l.b16 %v177
      %v265 = vunpack.c.h.b16 %v177
      %v266 = vunpack.c.l.b16 %v210
      %v267 = vunpack.c.h.b16 %v210
      %v268 = vpack.c.b16 %v254, %v252
      %v269 = vpack.c.b16 %v255, %v253
      %v270 = vpack.c.b16 %v258, %v256
      %v271 = vpack.c.b16 %v259, %v257
      %v272 = vpack.c.b16 %v262, %v260
      %v273 = vpack.c.b16 %v263, %v261
      %v274 = vpack.c.b16 %v266, %v264
      %v275 = vpack.c.b16 %v267, %v265
      %vm276 = vsmask.f32 7424
      %v278 = vshrl.u32 %v268, 16
      %v280 = vshll.u32 %v268, 16
      %v282 = vrot.slane %v280, 1
      %v283 = vor.u32 %v278, %v282
      %v285 = vshll.u32 %v270, 16
      %v287 = vrot.slane %v285, 1
      %v288 = vsel %vm276, %v283, %v287
      %v290 = vshrl.u32 %v269, 16
      %v292 = vshll.u32 %v269, 16
      %v294 = vrot.slane %v292, 1
      %v295 = vor.u32 %v290, %v294
      %v297 = vshll.u32 %v271, 16
      %v299 = vrot.slane %v297, 1
      %v300 = vsel %vm276, %v295, %v299
      %v301 = vshrl.u32 %v270, 16
      %v303 = vor.u32 %v301, %v287
      %v305 = vshll.u32 %v272, 16
      %v307 = vrot.slane %v305, 1
      %v308 = vsel %vm276, %v303, %v307
      %v309 = vshrl.u32 %v271, 16
      %v311 = vor.u32 %v309, %v299
      %v313 = vshll.u32 %v273, 16
      %v315 = vrot.slane %v313, 1
      %v316 = vsel %vm276, %v311, %v315
      %v317 = vshrl.u32 %v272, 16
      %v319 = vor.u32 %v317, %v307
      %v321 = vshll.u32 %v274, 16
      %v323 = vrot.slane %v321, 1
      %v324 = vsel %vm276, %v319, %v323
      %v325 = vshrl.u32 %v273, 16
      %v327 = vor.u32 %v325, %v315
      %v329 = vshll.u32 %v275, 16
      %v331 = vrot.slane %v329, 1
      %v332 = vsel %vm276, %v327, %v331
      %v333 = vshrl.u32 %v274, 16
      %v335 = vor.u32 %v333, %v323
      %v336 = vshrl.u32 %v275, 16
      %v338 = vor.u32 %v336, %v331
      %v379 = vunpack.c.l.b16 %v212
      %v380 = vunpack.c.h.b16 %v212
      %v381 = vunpack.c.l.b16 %v213
      %v382 = vunpack.c.h.b16 %v213
      %v383 = vunpack.c.l.b16 %v214
      %v384 = vunpack.c.h.b16 %v214
      %v385 = vunpack.c.l.b16 %v215
      %v386 = vunpack.c.h.b16 %v215
      %v387 = vunpack.c.l.b16 %v216
      %v388 = vunpack.c.h.b16 %v216
      %v389 = vunpack.c.l.b16 %v217
      %v390 = vunpack.c.h.b16 %v217
      %v391 = vunpack.c.l.b16 %v218
      %v392 = vunpack.c.h.b16 %v218
      %v393 = vunpack.c.l.b16 %v219
      %v394 = vunpack.c.h.b16 %v219
      %v395 = vunpack.c.l.b16 %v220
      %v396 = vunpack.c.h.b16 %v220
      %v397 = vunpack.c.l.b16 %v221
      %v398 = vunpack.c.h.b16 %v221
      %v399 = vunpack.c.l.b16 %v222
      %v400 = vunpack.c.h.b16 %v222
      %v401 = vunpack.c.l.b16 %v223
      %v402 = vunpack.c.h.b16 %v223
      %v403 = vunpack.c.l.b16 %v224
      %v404 = vunpack.c.h.b16 %v224
      %v405 = vunpack.c.l.b16 %v225
      %v406 = vunpack.c.h.b16 %v225
      %v407 = vunpack.c.l.b16 %v226
      %v408 = vunpack.c.h.b16 %v226
      %v409 = vunpack.c.l.b16 %v227
      %v410 = vunpack.c.h.b16 %v227
      %v411 = vunpack.c.l.b16 %v228
      %v412 = vunpack.c.h.b16 %v228
      %v413 = vunpack.c.l.b16 %v229
      %v414 = vunpack.c.h.b16 %v229
      %v415 = vunpack.c.l.b16 %v230
      %v416 = vunpack.c.h.b16 %v230
      %v417 = vunpack.c.l.b16 %v231
      %v418 = vunpack.c.h.b16 %v231
      %v419 = vunpack.c.l.b16 %v232
      %v420 = vunpack.c.h.b16 %v232
      %v421 = vunpack.c.l.b16 %v233
      %v422 = vunpack.c.h.b16 %v233
      %v423 = vunpack.c.l.b16 %v234
      %v424 = vunpack.c.h.b16 %v234
      %v425 = vunpack.c.l.b16 %v235
      %v426 = vunpack.c.h.b16 %v235
      %v427 = vunpack.c.l.b16 %v236
      %v428 = vunpack.c.h.b16 %v236
      %v429 = vunpack.c.l.b16 %v237
      %v430 = vunpack.c.h.b16 %v237
      %v431 = vunpack.c.l.b16 %v238
      %v432 = vunpack.c.h.b16 %v238
      %v433 = vunpack.c.l.b16 %v239
      %v434 = vunpack.c.h.b16 %v239
      %v435 = vunpack.c.l.b16 %v240
      %v436 = vunpack.c.h.b16 %v240
      %v437 = vunpack.c.l.b16 %v241
      %v438 = vunpack.c.h.b16 %v241
      %v439 = vunpack.c.l.b16 %v242
      %v440 = vunpack.c.h.b16 %v242
      %v441 = vunpack.c.l.b16 %v243
      %v442 = vunpack.c.h.b16 %v243
      %v443 = vpack.c.b16 %v381, %v379
      %v444 = vpack.c.b16 %v382, %v380
      %v445 = vpack.c.b16 %v385, %v383
      %v446 = vpack.c.b16 %v386, %v384
      %v447 = vpack.c.b16 %v389, %v387
      %v448 = vpack.c.b16 %v390, %v388
      %v449 = vpack.c.b16 %v393, %v391
      %v450 = vpack.c.b16 %v394, %v392
      %v451 = vpack.c.b16 %v397, %v395
      %v452 = vpack.c.b16 %v398, %v396
      %v453 = vpack.c.b16 %v401, %v399
      %v454 = vpack.c.b16 %v402, %v400
      %v455 = vpack.c.b16 %v405, %v403
      %v456 = vpack.c.b16 %v406, %v404
      %v457 = vpack.c.b16 %v409, %v407
      %v458 = vpack.c.b16 %v410, %v408
      %v459 = vpack.c.b16 %v413, %v411
      %v460 = vpack.c.b16 %v414, %v412
      %v461 = vpack.c.b16 %v417, %v415
      %v462 = vpack.c.b16 %v418, %v416
      %v463 = vpack.c.b16 %v421, %v419
      %v464 = vpack.c.b16 %v422, %v420
      %v465 = vpack.c.b16 %v425, %v423
      %v466 = vpack.c.b16 %v426, %v424
      %v467 = vpack.c.b16 %v429, %v427
      %v468 = vpack.c.b16 %v430, %v428
      %v469 = vpack.c.b16 %v433, %v431
      %v470 = vpack.c.b16 %v434, %v432
      %v471 = vpack.c.b16 %v437, %v435
      %v472 = vpack.c.b16 %v438, %v436
      %v473 = vpack.c.b16 %v441, %v439
      %v474 = vpack.c.b16 %v442, %v440
      %507 = vmatprep.subr.bf16.mxu0 %v444
      %508 = vmatpush1.bf16.msra.mxu0 %v443
      %509 = vmatprep.subr.bf16.mxu0 %v446
      %510 = vmatpush1.bf16.msra.mxu0 %v445
      %511 = vmatprep.subr.bf16.mxu0 %v448
      %512 = vmatpush1.bf16.msra.mxu0 %v447
      %513 = vmatprep.subr.bf16.mxu0 %v450
      %514 = vmatpush1.bf16.msra.mxu0 %v449
      %515 = vmatprep.subr.bf16.mxu0 %v452
      %516 = vmatpush1.bf16.msra.mxu0 %v451
      %517 = vmatprep.subr.bf16.mxu0 %v454
      %518 = vmatpush1.bf16.msra.mxu0 %v453
      %519 = vmatprep.subr.bf16.mxu0 %v456
      %520 = vmatpush1.bf16.msra.mxu0 %v455
      %521 = vmatprep.subr.bf16.mxu0 %v458
      %522 = vmatpush1.bf16.msra.mxu0 %v457
      %523 = vmatprep.subr.bf16.mxu0 %v460
      %524 = vmatpush1.bf16.msra.mxu0 %v459
      %525 = vmatprep.subr.bf16.mxu0 %v462
      %526 = vmatpush1.bf16.msra.mxu0 %v461
      %527 = vmatprep.subr.bf16.mxu0 %v464
      %528 = vmatpush1.bf16.msra.mxu0 %v463
      %529 = vmatprep.subr.bf16.mxu0 %v466
      %530 = vmatpush1.bf16.msra.mxu0 %v465
      %531 = vmatprep.subr.bf16.mxu0 %v468
      %532 = vmatpush1.bf16.msra.mxu0 %v467
      %533 = vmatprep.subr.bf16.mxu0 %v470
      %534 = vmatpush1.bf16.msra.mxu0 %v469
      %535 = vmatprep.subr.bf16.mxu0 %v472
      %536 = vmatpush1.bf16.msra.mxu0 %v471
      %537 = vmatprep.subr.bf16.mxu0 %v474
      %538 = vmatpush1.bf16.msra.mxu0 %v473
      %539 = vmatprep.mubr.bf16.mxu0 %v300
      %540 = vmatmul.mubr.bf16.gmra.mrb[0].mxu0 %v288
      %v541 = vpop.f32.mrb[0].mxu0
      %v542 = vadd.f32 0.0, %v541
      %v543 = vpop.f32.mrb[0].mxu0
      %v544 = vadd.f32 0.0, %v543
      %v545 = vpop.f32.mrb[0].mxu0
      %v546 = vadd.f32 0.0, %v545
      %v547 = vpop.f32.mrb[0].mxu0
      %v548 = vadd.f32 0.0, %v547
      %549 = vmatprep.mubr.bf16.mxu0 %v316
      %550 = vmatmul.mubr.bf16.gmra.mrb[0].mxu0 %v308
      %v551 = vpop.f32.mrb[0].mxu0
      %v552 = vadd.f32 0.0, %v551
      %v553 = vpop.f32.mrb[0].mxu0
      %v554 = vadd.f32 0.0, %v553
      %v555 = vpop.f32.mrb[0].mxu0
      %v556 = vadd.f32 0.0, %v555
      %v557 = vpop.f32.mrb[0].mxu0
      %v558 = vadd.f32 0.0, %v557
      %559 = vmatprep.mubr.bf16.mxu0 %v332
      %560 = vmatmul.mubr.bf16.gmra.mrb[0].mxu0 %v324
      %v561 = vpop.f32.mrb[0].mxu0
      %v562 = vadd.f32 0.0, %v561
      %v563 = vpop.f32.mrb[0].mxu0
      %v564 = vadd.f32 0.0, %v563
      %v565 = vpop.f32.mrb[0].mxu0
      %v566 = vadd.f32 0.0, %v565
      %v567 = vpop.f32.mrb[0].mxu0
      %v568 = vadd.f32 0.0, %v567
      %569 = vmatprep.mubr.bf16.mxu0 %v338
      %570 = vmatmul.mubr.bf16.gmra.mrb[0].mxu0 %v335
      %v571 = vpop.f32.mrb[0].mxu0
      %v572 = vadd.f32 0.0, %v571
      %v573 = vpop.f32.mrb[0].mxu0
      %v574 = vadd.f32 0.0, %v573
      %v575 = vpop.f32.mrb[0].mxu0
      %v576 = vpop.f32.mrb[0].mxu0
      %577 = vdwg.mxu0
      %v578 = vpack.c.b16 %v264, %v264
      %v579 = vpack.c.b16 %v265, %v265
      %v620 = vunpack.c.l.b16 %v178
      %v621 = vunpack.c.h.b16 %v178
      %v622 = vunpack.c.l.b16 %v179
      %v623 = vunpack.c.h.b16 %v179
      %v624 = vunpack.c.l.b16 %v180
      %v625 = vunpack.c.h.b16 %v180
      %v626 = vunpack.c.l.b16 %v181
      %v627 = vunpack.c.h.b16 %v181
      %v628 = vunpack.c.l.b16 %v182
      %v629 = vunpack.c.h.b16 %v182
      %v630 = vunpack.c.l.b16 %v183
      %v631 = vunpack.c.h.b16 %v183
      %v632 = vunpack.c.l.b16 %v184
      %v633 = vunpack.c.h.b16 %v184
      %v634 = vunpack.c.l.b16 %v185
      %v635 = vunpack.c.h.b16 %v185
      %v636 = vunpack.c.l.b16 %v186
      %v637 = vunpack.c.h.b16 %v186
      %v638 = vunpack.c.l.b16 %v187
      %v639 = vunpack.c.h.b16 %v187
      %v640 = vunpack.c.l.b16 %v188
      %v641 = vunpack.c.h.b16 %v188
      %v642 = vunpack.c.l.b16 %v189
      %v643 = vunpack.c.h.b16 %v189
      %v644 = vunpack.c.l.b16 %v190
      %v645 = vunpack.c.h.b16 %v190
      %v646 = vunpack.c.l.b16 %v191
      %v647 = vunpack.c.h.b16 %v191
      %v648 = vunpack.c.l.b16 %v192
      %v649 = vunpack.c.h.b16 %v192
      %v650 = vunpack.c.l.b16 %v193
      %v651 = vunpack.c.h.b16 %v193
      %v652 = vunpack.c.l.b16 %v194
      %v653 = vunpack.c.h.b16 %v194
      %v654 = vunpack.c.l.b16 %v195
      %v655 = vunpack.c.h.b16 %v195
      %v656 = vunpack.c.l.b16 %v196
      %v657 = vunpack.c.h.b16 %v196
      %v658 = vunpack.c.l.b16 %v197
      %v659 = vunpack.c.h.b16 %v197
      %v660 = vunpack.c.l.b16 %v198
      %v661 = vunpack.c.h.b16 %v198
      %v662 = vunpack.c.l.b16 %v199
      %v663 = vunpack.c.h.b16 %v199
      %v664 = vunpack.c.l.b16 %v200
      %v665 = vunpack.c.h.b16 %v200
      %v666 = vunpack.c.l.b16 %v201
      %v667 = vunpack.c.h.b16 %v201
      %v668 = vunpack.c.l.b16 %v202
      %v669 = vunpack.c.h.b16 %v202
      %v670 = vunpack.c.l.b16 %v203
      %v671 = vunpack.c.h.b16 %v203
      %v672 = vunpack.c.l.b16 %v204
      %v673 = vunpack.c.h.b16 %v204
      %v674 = vunpack.c.l.b16 %v205
      %v675 = vunpack.c.h.b16 %v205
      %v676 = vunpack.c.l.b16 %v206
      %v677 = vunpack.c.h.b16 %v206
      %v678 = vunpack.c.l.b16 %v207
      %v679 = vunpack.c.h.b16 %v207
      %v680 = vunpack.c.l.b16 %v208
      %v681 = vunpack.c.h.b16 %v208
      %v682 = vunpack.c.l.b16 %v209
      %v683 = vunpack.c.h.b16 %v209
      %v684 = vpack.c.b16 %v622, %v620
      %v685 = vpack.c.b16 %v623, %v621
      %v686 = vpack.c.b16 %v626, %v624
      %v687 = vpack.c.b16 %v627, %v625
      %v688 = vpack.c.b16 %v630, %v628
      %v689 = vpack.c.b16 %v631, %v629
      %v690 = vpack.c.b16 %v634, %v632
      %v691 = vpack.c.b16 %v635, %v633
      %v692 = vpack.c.b16 %v638, %v636
      %v693 = vpack.c.b16 %v639, %v637
      %v694 = vpack.c.b16 %v642, %v640
      %v695 = vpack.c.b16 %v643, %v641
      %v696 = vpack.c.b16 %v646, %v644
      %v697 = vpack.c.b16 %v647, %v645
      %v698 = vpack.c.b16 %v650, %v648
      %v699 = vpack.c.b16 %v651, %v649
      %v700 = vpack.c.b16 %v654, %v652
      %v701 = vpack.c.b16 %v655, %v653
      %v702 = vpack.c.b16 %v658, %v656
      %v703 = vpack.c.b16 %v659, %v657
      %v704 = vpack.c.b16 %v662, %v660
      %v705 = vpack.c.b16 %v663, %v661
      %v706 = vpack.c.b16 %v666, %v664
      %v707 = vpack.c.b16 %v667, %v665
      %v708 = vpack.c.b16 %v670, %v668
      %v709 = vpack.c.b16 %v671, %v669
      %v710 = vpack.c.b16 %v674, %v672
      %v711 = vpack.c.b16 %v675, %v673
      %v712 = vpack.c.b16 %v678, %v676
      %v713 = vpack.c.b16 %v679, %v677
      %v714 = vpack.c.b16 %v682, %v680
      %v715 = vpack.c.b16 %v683, %v681
      %748 = vmatprep.subr.bf16.mxu0 %v685
      %749 = vmatpush1.bf16.msra.mxu0 %v684
      %750 = vmatprep.subr.bf16.mxu0 %v687
      %751 = vmatpush1.bf16.msra.mxu0 %v686
      %752 = vmatprep.subr.bf16.mxu0 %v689
      %753 = vmatpush1.bf16.msra.mxu0 %v688
      %754 = vmatprep.subr.bf16.mxu0 %v691
      %755 = vmatpush1.bf16.msra.mxu0 %v690
      %756 = vmatprep.subr.bf16.mxu0 %v693
      %757 = vmatpush1.bf16.msra.mxu0 %v692
      %758 = vmatprep.subr.bf16.mxu0 %v695
      %759 = vmatpush1.bf16.msra.mxu0 %v694
      %760 = vmatprep.subr.bf16.mxu0 %v697
      %761 = vmatpush1.bf16.msra.mxu0 %v696
      %762 = vmatprep.subr.bf16.mxu0 %v699
      %763 = vmatpush1.bf16.msra.mxu0 %v698
      %764 = vmatprep.subr.bf16.mxu0 %v701
      %765 = vmatpush1.bf16.msra.mxu0 %v700
      %766 = vmatprep.subr.bf16.mxu0 %v703
      %767 = vmatpush1.bf16.msra.mxu0 %v702
      %768 = vmatprep.subr.bf16.mxu0 %v705
      %769 = vmatpush1.bf16.msra.mxu0 %v704
      %770 = vmatprep.subr.bf16.mxu0 %v707
      %771 = vmatpush1.bf16.msra.mxu0 %v706
      %772 = vmatprep.subr.bf16.mxu0 %v709
      %773 = vmatpush1.bf16.msra.mxu0 %v708
      %774 = vmatprep.subr.bf16.mxu0 %v711
      %775 = vmatpush1.bf16.msra.mxu0 %v710
      %776 = vmatprep.subr.bf16.mxu0 %v713
      %777 = vmatpush1.bf16.msra.mxu0 %v712
      %778 = vmatprep.subr.bf16.mxu0 %v715
      %779 = vmatpush1.bf16.msra.mxu0 %v714
      %780 = vmatprep.mubr.bf16.mxu0 %v269
      %781 = vmatmul.mubr.bf16.gmra.mrb[0].mxu0 %v268
      %v782 = vpop.f32.mrb[0].mxu0
      %v783 = vadd.f32 %v542, %v782
      %v784 = vpop.f32.mrb[0].mxu0
      %v785 = vadd.f32 %v544, %v784
      %v786 = vpop.f32.mrb[0].mxu0
      %v787 = vadd.f32 %v546, %v786
      %v788 = vpop.f32.mrb[0].mxu0
      %v789 = vadd.f32 %v548, %v788
      %790 = vmatprep.mubr.bf16.mxu0 %v271
      %791 = vmatmul.mubr.bf16.gmra.mrb[0].mxu0 %v270
      %v792 = vpop.f32.mrb[0].mxu0
      %v793 = vadd.f32 %v552, %v792
      %v794 = vpop.f32.mrb[0].mxu0
      %v795 = vadd.f32 %v554, %v794
      %v796 = vpop.f32.mrb[0].mxu0
      %v797 = vadd.f32 %v556, %v796
      %v798 = vpop.f32.mrb[0].mxu0
      %v799 = vadd.f32 %v558, %v798
      %800 = vmatprep.mubr.bf16.mxu0 %v273
      %801 = vmatmul.mubr.bf16.gmra.mrb[0].mxu0 %v272
      %v802 = vpop.f32.mrb[0].mxu0
      %v803 = vadd.f32 %v562, %v802
      %v804 = vpop.f32.mrb[0].mxu0
      %v805 = vadd.f32 %v564, %v804
      %v806 = vpop.f32.mrb[0].mxu0
      %v807 = vadd.f32 %v566, %v806
      %v808 = vpop.f32.mrb[0].mxu0
      %v809 = vadd.f32 %v568, %v808
      %810 = vmatprep.mubr.bf16.mxu0 %v579
      %811 = vmatmul.mubr.bf16.gmra.mrb[0].mxu0 %v578
      %v812 = vpop.f32.mrb[0].mxu0
      %v813 = vadd.f32 %v572, %v812
      %v814 = vpop.f32.mrb[0].mxu0
      %v815 = vadd.f32 %v574, %v814
      %v816 = vpop.f32.mrb[0].mxu0
      %v817 = vpop.f32.mrb[0].mxu0
      %818 = vdwg.mxu0
      %v819 = vld [vmem:[%s2] ss:$2 sm:$0x3]
      %v821 = vlaneseq
      %v822 = vshrl.u32 %v821, 7
      %v823 = vsub.s32 0, %v822
      %v824 = vrot.slane %v819, %v823
      %v825 = vlaneseq
      %v826 = vshrl.u32 %v825, 7
      %v827 = vsub.s32 1, %v826
      %v828 = vrot.slane %v819, %v827
      %v831 = vmul.f32 %v783, %v824
      %v832 = vmul.f32 %v785, %v828
      %v833 = vmul.f32 %v787, %v824
      %v834 = vmul.f32 %v789, %v828
      %v835 = vmul.f32 %v793, %v824
      %v836 = vmul.f32 %v795, %v828
      %v837 = vmul.f32 %v797, %v824
      %v838 = vmul.f32 %v799, %v828
      %v839 = vmul.f32 %v803, %v824
      %v840 = vmul.f32 %v805, %v828
      %v841 = vmul.f32 %v807, %v824
      %v842 = vmul.f32 %v809, %v828
      %v843 = vmul.f32 %v813, %v824
      %v844 = vmul.f32 %v815, %v828
      %s845 = scalar_lea.vmem %s2, 1
      %v846 = vld [vmem:[%s845] ss:$2 sm:$0x3]
      %v848 = vlaneseq
      %v849 = vshrl.u32 %v848, 7
      %v850 = vsub.s32 0, %v849
      %v851 = vrot.slane %v846, %v850
      %v852 = vlaneseq
      %v853 = vshrl.u32 %v852, 7
      %v854 = vsub.s32 1, %v853
      %v855 = vrot.slane %v846, %v854
      %v858 = vadd.f32 %v831, %v851
      %v859 = vadd.f32 %v832, %v855
      %v860 = vadd.f32 %v833, %v851
      %v861 = vadd.f32 %v834, %v855
      %v862 = vadd.f32 %v835, %v851
      %v863 = vadd.f32 %v836, %v855
      %v864 = vadd.f32 %v837, %v851
      %v865 = vadd.f32 %v838, %v855
      %v866 = vadd.f32 %v839, %v851
      %v867 = vadd.f32 %v840, %v855
      %v868 = vadd.f32 %v841, %v851
      %v869 = vadd.f32 %v842, %v855
      %v870 = vadd.f32 %v843, %v851
      %v871 = vadd.f32 %v844, %v855
      %v872 = vmax.f32 %v858, 0.0
      %v873 = vmax.f32 %v859, 0.0
      %v874 = vmax.f32 %v860, 0.0
      %v875 = vmax.f32 %v861, 0.0
      %v876 = vmax.f32 %v862, 0.0
      %v877 = vmax.f32 %v863, 0.0
      %v878 = vmax.f32 %v864, 0.0
      %v879 = vmax.f32 %v865, 0.0
      %v880 = vmax.f32 %v866, 0.0
      %v881 = vmax.f32 %v867, 0.0
      %v882 = vmax.f32 %v868, 0.0
      %v883 = vmax.f32 %v869, 0.0
      %v884 = vmax.f32 %v870, 0.0
      %v885 = vmax.f32 %v871, 0.0
      %v886 = vmax.f32 %v872, %v873
      %v887 = vmax.f32 %v874, %v875
      %v888 = vmax.f32 %v876, %v877
      %v889 = vmax.f32 %v878, %v879
      %v890 = vmax.f32 %v880, %v881
      %v891 = vmax.f32 %v882, %v883
      %v892 = vmax.f32 %v884, %v885
      %v893 = vpack.c.bf16 %v887, %v886
      %v894 = vpack.c.bf16 %v889, %v888
      %v895 = vpack.c.bf16 %v891, %v890
      %v896 = vpack.c.bf16 %v892, %v892
      %v901 = vunpack.c.l.b16 %v893
      %v902 = vunpack.c.h.b16 %v893
      %v903 = vunpack.c.l.b16 %v894
      %v904 = vunpack.c.h.b16 %v894
      %v905 = vunpack.c.l.b16 %v895
      %v906 = vunpack.c.h.b16 %v895
      %v907 = vunpack.c.l.b16 %v896
      %v908 = vpack.c.b16 %v901, %v901
      %v909 = vpack.c.b16 %v902, %v902
      %v910 = vpack.c.b16 %v903, %v903
      %v911 = vpack.c.b16 %v904, %v904
      %v912 = vpack.c.b16 %v905, %v905
      %v913 = vpack.c.b16 %v906, %v906
      %v914 = vpack.c.b16 %v907, %v907
      %922 = vst [vmem:[%s170] sm:$0xf] %v908
      %923 = vst [vmem:[%s170 + $0x4] sm:$0xf] %v909
      %924 = vst [vmem:[%s170 + $0x8] sm:$0xf] %v910
      %925 = vst [vmem:[%s170 + $0xc] sm:$0xf] %v911
      %926 = vst [vmem:[%s170 + $0x10] sm:$0xf] %v912
      %927 = vst [vmem:[%s170 + $0x14] sm:$0xf] %v913
      %928 = vst [vmem:[%s170 + $0x18] sm:$0xf] %v914
      %p929 = scmp.lt.s32.totalorder %s14, 1
      %s930 = scalar_select %p929, %s14, 1
      %s931 = smul.addr %s930, 7
      %s932 = smul.addr %s931, 4
      %s933 = scalar_lea.vmem %s3, %s932
      // Predicated region
      $region33: #{network_forward.9} parent=31 // pred_check
        %p934 = pneg %p100
      $region34: #{network_forward.9} parent=31 // pred_check_branch
        %936 = sbr.rel (%p934) target = $region36
      $region35: #{network_forward.9} parent=31 // pred_region
        _
      $region36: #{network_forward.9} parent=31 // pred_fallthru
        _
    $region32: #{network_forward.9} parent=5 // pred_fallthru
      _
    %p937 = scmp.le.s32.totalorder 2, %s9
    // Predicated region
    $region37: #{network_forward.9} parent=5 // pred_check
      %p938 = pneg %p937
    $region38: #{network_forward.9} parent=5 // pred_check_branch
      %940 = sbr.rel (%p938) target = $region40
    $region39: #{network_forward.9} parent=5 // pred_region
      %s941 = ssub.s32 %s9, 2
      // Predicated region
      $region41: #{network_forward.9} parent=39 // pred_check
        %p942 = pneg %p106
      $region42: #{network_forward.9} parent=39 // pred_check_branch
        %944 = sbr.rel (%p942) target = $region44
      $region43: #{network_forward.9} parent=39 // pred_region
        %p945 = scmp.lt.s32.totalorder %s15, 1
        %s946 = scalar_select %p945, %s15, 1
        %s947 = smul.addr %s946, 7
        %s948 = smul.addr %s947, 4
        %s949 = scalar_lea.vmem %s3, %s948
      $region44: #{network_forward.9} parent=39 // pred_fallthru
        _
    $region40: #{network_forward.9} parent=5 // pred_fallthru
      _
  $region6: #{network_forward.9} parent=0 // loop_footer
    %s13 = sadd.s32 1, %s9
  $region7: #{network_forward.9} parent=0 // loop_footer_branch
    %8 = sbr.rel target = $region3
  $region8: #{network_forward.9} parent=0 // loop_exit
    _

// kernel: network_forward.11
$region0: #{network_forward.11}
  #allocation0 [shape = 'u32[]', space=smem, size = 0x4, offset = 0x4, fixed_abs, tag = 'smem constant byte address 0x4 - core index']
  #allocation1 [shape = 'u32[144,128]{1,0:T(1,128)}', space=vmem, size = 0x12000, scoped, tag = 'internal scratch']
  %s0 = inlined_call_operand.vmem [shape: f32[2,2,128], index: 0, kind: input, shape index: {}]
  %s1 = inlined_call_operand.vmem [shape: f32[2,128], index: 1, kind: input, shape index: {}]
  %s2 = inlined_call_operand.vmem [shape: bf16[128,128], index: 2, kind: input, shape index: {}]
  %s3 = inlined_call_operand.vmem [shape: f32[1,128], index: 3, kind: input, shape index: {}]
  %s4 = inlined_call_operand.hbm [shape: f32[2,128], index: 4, kind: output, shape index: {}]
  %s5 = sld [smem:[#allocation0]]
  $region26: #{network_forward.11} parent=0
    _
  %s7 = ssub.s32 1, %s5
  %s8 = scalar_select 0, %s7, %s5
  $region1: #{network_forward.11} parent=0
    #allocation2 [shape = 'u8[1024]{0}', space=vmem, size = 0x400, scoped, tag = 'output window, operand 0, single buffered']
    #allocation3 [shape = 's32[1]{0}', space=sflag, size = 0x4, scoped, tag = 'scoped memory for network_forward.11']
    %9 = vsyncpa [#allocation3], 0
    // Predicated region
    $region2: #{network_forward.11} parent=1 // pred_check
      _
    $region3: #{network_forward.11} parent=1 // pred_check_branch
      %11 = sbr.rel (0) target = $region5
    $region4: #{network_forward.11} parent=1 // pred_region
      _
    $region5: #{network_forward.11} parent=1 // pred_fallthru
      _
    // Predicated region
    $region6: #{network_forward.11} parent=1 // pred_check
      _
    $region7: #{network_forward.11} parent=1 // pred_check_branch
      %13 = sbr.rel (0) target = $region9
    $region8: #{network_forward.11} parent=1 // pred_region
      _
    $region9: #{network_forward.11} parent=1 // pred_fallthru
      _
    // Predicated region
    $region10: #{network_forward.11} parent=1 // pred_check
      _
    $region11: #{network_forward.11} parent=1 // pred_check_branch
      %15 = sbr.rel (0) target = $region13
    $region12: #{network_forward.11} parent=1 // pred_region
      _
    $region13: #{network_forward.11} parent=1 // pred_fallthru
      _
    // Predicated region
    $region14: #{network_forward.11} parent=1 // pred_check
      _
    $region15: #{network_forward.11} parent=1 // pred_check_branch
      %17 = sbr.rel (0) target = $region17
    $region16: #{network_forward.11} parent=1 // pred_region
      _
    $region17: #{network_forward.11} parent=1 // pred_fallthru
      _
    %v19 = vld [vmem:[%s0] sm:$0x3]
    %v20 = vld [vmem:[%s0 + $0x2] sm:$0x3]
    %vm21 = vcmask 1041408
    %v22 = vsel %vm21, %v19, 0.0
    %v23 = vsel %vm21, %v20, 0.0
    %v24 = vadd.f32 %v22, %v23
    %v25 = vld [vmem:[%s1] sm:$0x1]
    %v26 = vlaneseq
    %v27 = vshrl.u32 %v26, 7
    %v28 = vsub.s32 0, %v27
    %v29 = vrot.slane %v25, %v28
    %v30 = vmul.f32 %v24, %v29
    %v31 = vld [vmem:[%s1 + $0x1] sm:$0x1]
    %v32 = vlaneseq
    %v33 = vshrl.u32 %v32, 7
    %v34 = vsub.s32 0, %v33
    %v35 = vrot.slane %v31, %v34
    %v36 = vadd.f32 %v30, %v35
    %v37 = vmax.f32 %v36, 0.0
    %v38 = vpack.c.bf16 %v37, %v37
    %v39 = vld [vmem:[%s2] sm:$0xf]
    %v40 = vld [vmem:[%s2 + $0x4] sm:$0xf]
    %v41 = vld [vmem:[%s2 + $0x8] sm:$0xf]
    %v42 = vld [vmem:[%s2 + $0xc] sm:$0xf]
    %v43 = vld [vmem:[%s2 + $0x10] sm:$0xf]
    %v44 = vld [vmem:[%s2 + $0x14] sm:$0xf]
    %v45 = vld [vmem:[%s2 + $0x18] sm:$0xf]
    %v46 = vld [vmem:[%s2 + $0x1c] sm:$0xf]
    %v47 = vld [vmem:[%s2 + $0x20] sm:$0xf]
    %v48 = vld [vmem:[%s2 + $0x24] sm:$0xf]
    %v49 = vld [vmem:[%s2 + $0x28] sm:$0xf]
    %v50 = vld [vmem:[%s2 + $0x2c] sm:$0xf]
    %v51 = vld [vmem:[%s2 + $0x30] sm:$0xf]
    %v52 = vld [vmem:[%s2 + $0x34] sm:$0xf]
    %v53 = vld [vmem:[%s2 + $0x38] sm:$0xf]
    %v54 = vld [vmem:[%s2 + $0x3c] sm:$0xf]
    %v55 = vld [vmem:[%s3] sm:$0x1]
    %v57 = vlaneseq
    %v58 = vshrl.u32 %v57, 7
    %v59 = vsub.s32 0, %v58
    %v60 = vrot.slane %v55, %v59
    %v78 = vunpack.c.l.b16 %v39
    %v79 = vunpack.c.l.b16 %v40
    %v80 = vunpack.c.l.b16 %v41
    %v81 = vunpack.c.l.b16 %v42
    %v82 = vunpack.c.l.b16 %v43
    %v83 = vunpack.c.l.b16 %v44
    %v84 = vunpack.c.l.b16 %v45
    %v85 = vunpack.c.l.b16 %v46
    %v86 = vunpack.c.l.b16 %v47
    %v87 = vunpack.c.l.b16 %v48
    %v88 = vunpack.c.l.b16 %v49
    %v89 = vunpack.c.l.b16 %v50
    %v90 = vunpack.c.l.b16 %v51
    %v91 = vunpack.c.l.b16 %v52
    %v92 = vunpack.c.l.b16 %v53
    %v93 = vunpack.c.l.b16 %v54
    %v94 = vpack.c.b16 %v79, %v78
    %v95 = vpack.c.b16 %v81, %v80
    %v96 = vpack.c.b16 %v83, %v82
    %v97 = vpack.c.b16 %v85, %v84
    %v98 = vpack.c.b16 %v87, %v86
    %v99 = vpack.c.b16 %v89, %v88
    %v100 = vpack.c.b16 %v91, %v90
    %v101 = vpack.c.b16 %v93, %v92
    %110 = vmatprep.subr.bf16.mxu0 0
    %111 = vmatpush1.bf16.msra.mxu0 %v94
    %112 = vmatprep.subr.bf16.mxu0 0
    %113 = vmatpush1.bf16.msra.mxu0 %v95
    %114 = vmatprep.subr.bf16.mxu0 0
    %115 = vmatpush1.bf16.msra.mxu0 %v96
    %116 = vmatprep.subr.bf16.mxu0 0
    %117 = vmatpush1.bf16.msra.mxu0 %v97
    %118 = vmatprep.subr.bf16.mxu0 0
    %119 = vmatpush1.bf16.msra.mxu0 %v98
    %120 = vmatprep.subr.bf16.mxu0 0
    %121 = vmatpush1.bf16.msra.mxu0 %v99
    %122 = vmatprep.subr.bf16.mxu0 0
    %123 = vmatpush1.bf16.msra.mxu0 %v100
    %124 = vmatprep.subr.bf16.mxu0 0
    %125 = vmatpush1.bf16.msra.mxu0 %v101
    %126 = vmatprep.subr.bf16.mxu0 0
    %127 = vmatpush1.bf16.msra.mxu0 0
    %128 = vmatprep.subr.bf16.mxu0 0
    %129 = vmatpush1.bf16.msra.mxu0 0
    %130 = vmatprep.subr.bf16.mxu0 0
    %131 = vmatpush1.bf16.msra.mxu0 0
    %132 = vmatprep.subr.bf16.mxu0 0
    %133 = vmatpush1.bf16.msra.mxu0 0
    %134 = vmatprep.subr.bf16.mxu0 0
    %135 = vmatpush1.bf16.msra.mxu0 0
    %136 = vmatprep.subr.bf16.mxu0 0
    %137 = vmatpush1.bf16.msra.mxu0 0
    %138 = vmatprep.subr.bf16.mxu0 0
    %139 = vmatpush1.bf16.msra.mxu0 0
    %140 = vmatprep.subr.bf16.mxu0 0
    %141 = vmatpush1.bf16.msra.mxu0 0
    %142 = vmatprep.mubr.bf16.mxu0 0
    %143 = vmatmul.mubr.bf16.gmra.mrb[0].mxu0 %v38
    %v144 = vpop.f32.mrb[0].mxu0
    %v145 = vadd.f32 %v60, %v144
    %v146 = vpop.f32.mrb[0].mxu0
    %v147 = vpop.f32.mrb[0].mxu0
    %v148 = vpop.f32.mrb[0].mxu0
    %149 = vdwg.mxu0
    %150 = vst [vmem:[#allocation2] sm:$0x3] %v145
    // Predicated region
    $region18: #{network_forward.11} parent=1 // pred_check
      _
    $region19: #{network_forward.11} parent=1 // pred_check_branch
      %152 = sbr.rel (0) target = $region21
    $region20: #{network_forward.11} parent=1 // pred_region
      %s154 = ssub.s32 32, 32
      %155 = vsyncadd [#allocation3], %s154
      %s157 = sshll.u32 [#allocation2], 4
      %s158 = int_to_ptr.vmem [resolvable:$true] %s157
      %160 = dma.vmem_to_hbm [thread:$0]  %s158, 32, %s4, [#allocation3]
    $region21: #{network_forward.11} parent=1 // pred_fallthru
      _
    // Predicated region
    $region22: #{network_forward.11} parent=1 // pred_check
      _
    $region23: #{network_forward.11} parent=1 // pred_check_branch
      %162 = sbr.rel (0) target = $region25
    $region24: #{network_forward.11} parent=1 // pred_region
      %163 = dma.done [#allocation3], 32
    $region25: #{network_forward.11} parent=1 // pred_fallthru
      _
    %164 = vsyncpa [#allocation3], 1

// kernel: network_forward.10
$region0: #{network_forward.10}
  #allocation0 [shape = 'u32[]', space=smem, size = 0x4, offset = 0x4, fixed_abs, tag = 'smem constant byte address 0x4 - core index']
  #allocation1 [shape = 'u32[144,128]{1,0:T(1,128)}', space=vmem, size = 0x12000, scoped, tag = 'internal scratch']
  #allocation2 [shape = 'f32[2,384]{1,0:T(2,128)}', space=vmem, size = 0xc00, scoped, tag = 'scratch operand']
  %s0 = inlined_call_operand.vmem [shape: bf16[2,7168], index: 0, kind: input, shape index: {}]
  %s1 = inlined_call_operand.vmem [shape: bf16[7168,768], index: 1, kind: input, shape index: {}]
  %s2 = inlined_call_operand.vmem [shape: f32[2,768], index: 2, kind: input, shape index: {}]
  %s3 = inlined_call_operand.vmem [shape: bf16[768,128], index: 3, kind: input, shape index: {}]
  %s4 = inlined_call_operand.vmem [shape: f32[2,2,128], index: 4, kind: output, shape index: {}]
  %s5 = sld [smem:[#allocation0]]
  $region83: #{network_forward.10} parent=0
    _
  %s7 = ssub.s32 1, %s5
  %s8 = scalar_select 0, %s7, %s5
  $region1: #{network_forward.10} parent=0
    #allocation3 [shape = 'u8[2752512]{0}', space=vmem, size = 0x2a0000, scoped, tag = 'input window, operand 1']
    loop: start=0, step=1, limit=10
    $region2: #{network_forward.10} parent=1 // loop_pre_header
      _
    $region3: #{network_forward.10} parent=1 // loop_header
      %s10 = sphi 0, %s14
      %p11 = scmp.ge.s32.totalorder %s10, 10
      %s17 = sphi 0, %s29
      %s18 = sphi 0, %s25
      %s19 = sphi 0, %s17
      %s20 = sphi 0, %s18
      %s21 = sphi 0, %s19
      %s22 = sphi 0, %s20
      %s32 = sphi 0, %s34
      %s35 = sphi 0, %s32
      %s36 = sphi 0, %s35
      %s52 = sphi 0, %s36
      %s60 = sphi 0, %s62
      %s63 = sphi 0, %s60
      %s64 = sphi 0, %s63
      %s80 = sphi 0, %s64
      %s86 = sphi 0, %s88
      %s89 = sphi 0, %s86
      %s90 = sphi 0, %s89
      %s106 = sphi 0, %s90
      %s112 = sphi 0, %s114
      %s115 = sphi 0, %s112
      %s116 = sphi 0, %s115
      %s132 = sphi 0, %s116
      %s138 = sphi 0, %s140
      %s141 = sphi 0, %s138
      %s142 = sphi 0, %s141
      %s158 = sphi 0, %s142
    $region4: #{network_forward.10} parent=1 // loop_header_branch
      %13 = sbr.rel (%p11) target = $region8
    $region5: #{network_forward.10} parent=1 // loop_body
      %s15 = ssub.s32 %s10, 1
      %s16 = ssub.s32 %s10, 2
      %s23 = sadd.s32 1, %s18
      %p24 = scmp.ge.s32.totalorder %s23, 4
      %s25 = scalar_select %p24, 0, %s23
      %s26 = sadd.s32 1, %s17
      %s27 = scalar_select %p24, %s26, %s17
      %p28 = scmp.ge.s32.totalorder %s27, 2
      %s29 = scalar_select %p28, 0, %s27
      %s30 = ssub.s32 %s18, %s25
      %p31 = scmp.eq.s32.totalorder %s30, 0
      %s33 = sadd.s32 %s32, 1
      %s34 = scalar_select %p31, %s32, %s33
      %p37 = pneg %p31
      %p38 = scmp.eq.s32.totalorder %s10, 7
      %p39 = por %p37, %p38
      %p40 = scmp.ne.s32.totalorder %s32, %s35
      %p41 = scmp.eq.s32.totalorder %s10, 0
      %p42 = por %p40, %p41
      %p43 = scmp.ne.s32.totalorder %s32, %s35
      %p44 = scmp.eq.s32.totalorder %s15, 7
      %p45 = por %p43, %p44
      %p46 = scmp.ne.s32.totalorder %s35, %s36
      %p47 = scmp.eq.s32.totalorder %s15, 0
      %p48 = por %p46, %p47
      %p49 = scmp.ne.s32.totalorder %s35, %s36
      %p50 = scmp.eq.s32.totalorder %s16, 7
      %p51 = por %p49, %p50
      %p53 = scmp.ne.s32.totalorder %s36, %s52
      %p54 = scmp.eq.s32.totalorder %s16, 0
      %p55 = por %p53, %p54
      %s56 = ssub.s32 %s18, %s25
      %s57 = ssub.s32 %s17, %s29
      %s58 = sor.u32 %s56, %s57
      %p59 = scmp.eq.s32.totalorder %s58, 0
      %s61 = sadd.s32 %s60, 1
      %s62 = scalar_select %p59, %s60, %s61
      %p65 = pneg %p59
      %p66 = scmp.eq.s32.totalorder %s10, 7
      %p67 = por %p65, %p66
      %p68 = scmp.ne.s32.totalorder %s60, %s63
      %p69 = scmp.eq.s32.totalorder %s10, 0
      %p70 = por %p68, %p69
      %p71 = scmp.ne.s32.totalorder %s60, %s63
      %p72 = scmp.eq.s32.totalorder %s15, 7
      %p73 = por %p71, %p72
      %p74 = scmp.ne.s32.totalorder %s63, %s64
      %p75 = scmp.eq.s32.totalorder %s15, 0
      %p76 = por %p74, %p75
      %p77 = scmp.ne.s32.totalorder %s63, %s64
      %p78 = scmp.eq.s32.totalorder %s16, 7
      %p79 = por %p77, %p78
      %p81 = scmp.ne.s32.totalorder %s64, %s80
      %p82 = scmp.eq.s32.totalorder %s16, 0
      %p83 = por %p81, %p82
      %s84 = ssub.s32 %s17, %s29
      %p85 = scmp.eq.s32.totalorder %s84, 0
      %s87 = sadd.s32 %s86, 1
      %s88 = scalar_select %p85, %s86, %s87
      %p91 = pneg %p85
      %p92 = scmp.eq.s32.totalorder %s10, 7
      %p93 = por %p91, %p92
      %p94 = scmp.ne.s32.totalorder %s86, %s89
      %p95 = scmp.eq.s32.totalorder %s10, 0
      %p96 = por %p94, %p95
      %p97 = scmp.ne.s32.totalorder %s86, %s89
      %p98 = scmp.eq.s32.totalorder %s15, 7
      %p99 = por %p97, %p98
      %p100 = scmp.ne.s32.totalorder %s89, %s90
      %p101 = scmp.eq.s32.totalorder %s15, 0
      %p102 = por %p100, %p101
      %p103 = scmp.ne.s32.totalorder %s89, %s90
      %p104 = scmp.eq.s32.totalorder %s16, 7
      %p105 = por %p103, %p104
      %p107 = scmp.ne.s32.totalorder %s90, %s106
      %p108 = scmp.eq.s32.totalorder %s16, 0
      %p109 = por %p107, %p108
      %s110 = ssub.s32 %s17, %s29
      %p111 = scmp.eq.s32.totalorder %s110, 0
      %s113 = sadd.s32 %s112, 1
      %s114 = scalar_select %p111, %s112, %s113
      %p117 = pneg %p111
      %p118 = scmp.eq.s32.totalorder %s10, 7
      %p119 = por %p117, %p118
      %p120 = scmp.ne.s32.totalorder %s112, %s115
      %p121 = scmp.eq.s32.totalorder %s10, 0
      %p122 = por %p120, %p121
      %p123 = scmp.ne.s32.totalorder %s112, %s115
      %p124 = scmp.eq.s32.totalorder %s15, 7
      %p125 = por %p123, %p124
      %p126 = scmp.ne.s32.totalorder %s115, %s116
      %p127 = scmp.eq.s32.totalorder %s15, 0
      %p128 = por %p126, %p127
      %p129 = scmp.ne.s32.totalorder %s115, %s116
      %p130 = scmp.eq.s32.totalorder %s16, 7
      %p131 = por %p129, %p130
      %p133 = scmp.ne.s32.totalorder %s116, %s132
      %p134 = scmp.eq.s32.totalorder %s16, 0
      %p135 = por %p133, %p134
      %s136 = ssub.s32 %s17, %s29
      %p137 = scmp.eq.s32.totalorder %s136, 0
      %s139 = sadd.s32 %s138, 1
      %s140 = scalar_select %p137, %s138, %s139
      %p143 = pneg %p137
      %p144 = scmp.eq.s32.totalorder %s10, 7
      %p145 = por %p143, %p144
      %p146 = scmp.ne.s32.totalorder %s138, %s141
      %p147 = scmp.eq.s32.totalorder %s10, 0
      %p148 = por %p146, %p147
      %p149 = scmp.ne.s32.totalorder %s138, %s141
      %p150 = scmp.eq.s32.totalorder %s15, 7
      %p151 = por %p149, %p150
      %p152 = scmp.ne.s32.totalorder %s141, %s142
      %p153 = scmp.eq.s32.totalorder %s15, 0
      %p154 = por %p152, %p153
      %p155 = scmp.ne.s32.totalorder %s141, %s142
      %p156 = scmp.eq.s32.totalorder %s16, 7
      %p157 = por %p155, %p156
      %p159 = scmp.ne.s32.totalorder %s142, %s158
      %p160 = scmp.eq.s32.totalorder %s16, 0
      %p161 = por %p159, %p160
      %p162 = scmp.le.s32.totalorder 1, %s10
      %p163 = scmp.lt.s32.totalorder %s10, 9
      %p164 = pnand %p162, %p163
      %p165 = pneg %p164
      // Predicated region
      $region9: #{network_forward.10} parent=5 // pred_check
        _
      $region10: #{network_forward.10} parent=5 // pred_check_branch
        %167 = sbr.rel (%p164) target = $region12
      $region11: #{network_forward.10} parent=5 // pred_region
        %s168 = ssub.s32 %s10, 1
      $region12: #{network_forward.10} parent=5 // pred_fallthru
        _
      %p169 = scmp.lt.s32.totalorder %s10, 8
      // Predicated region
      $region13: #{network_forward.10} parent=5 // pred_check
        %p170 = pneg %p169
      $region14: #{network_forward.10} parent=5 // pred_check_branch
        %172 = sbr.rel (%p170) target = $region16
      $region15: #{network_forward.10} parent=5 // pred_region
        // Predicated region
        $region17: #{network_forward.10} parent=15 // pred_check
          %p173 = pneg %p42
        $region18: #{network_forward.10} parent=15 // pred_check_branch
          %175 = sbr.rel (%p173) target = $region20
        $region19: #{network_forward.10} parent=15 // pred_region
          %s176 = smul.u32 14, %s18
          %p177 = scmp.lt.s32.totalorder %s176, 55
          %s178 = scalar_select %p177, %s176, 55
          %s179 = scalar_lea.vmem %s0, %s178
          %s180 = smul.u32 14, %s18
        $region20: #{network_forward.10} parent=15 // pred_fallthru
          _
        // Predicated region
        $region21: #{network_forward.10} parent=15 // pred_check
          %p181 = pneg %p70
        $region22: #{network_forward.10} parent=15 // pred_check_branch
          %183 = sbr.rel (%p181) target = $region24
        $region23: #{network_forward.10} parent=15 // pred_region
          %s184 = sand.u32 %s60, 1
          %s185 = sand.u32 %s60, 1
          %s186 = smul.addr %s185, 2688
          %s187 = scalar_lea.vmem [#allocation3], %s186
          %s188 = smul.u32 224, %s18
          %s189 = smul.u32 3, %s17
          %s190 = smul.addr %s188, 6
          %s191 = sadd.s32 %s189, %s190
          %s192 = smul.addr %s191, 4
          %s193 = scalar_lea.vmem %s1, %s192
          // Predicated region
          $region25: #{network_forward.10} parent=23 // pred_check
            _
          $region26: #{network_forward.10} parent=23 // pred_check_branch
            %195 = sbr.rel (0) target = $region28
          $region27: #{network_forward.10} parent=23 // pred_region
            // Predicated region
            $region29: #{network_forward.10} parent=27 // pred_check
              _
            $region30: #{network_forward.10} parent=27 // pred_check_branch
              %197 = sbr.rel (0) target = $region32
            $region31: #{network_forward.10} parent=27 // pred_region
              %s198 = scalar_lea.vmem %s193, 8
              %s199 = scalar_lea.vmem %s187, 8 [#allocation3]
              loop: start=0, step=1, limit=1
              $region33: #{network_forward.10} parent=31 // loop_pre_header
                _
              $region34: #{network_forward.10} parent=31 // loop_header
                %s201 = sphi 0, %s205
                %p202 = scmp.ge.s32.totalorder %s201, 1
                %s206 = sphi %s193, %s193
                %s207 = sphi %s187, %s187
              $region35: #{network_forward.10} parent=31 // loop_header_branch
                %204 = sbr.rel (%p202) target = $region39
              $region36: #{network_forward.10} parent=31 // loop_body
                %v208 = vld [vmem:[%s206] sm:$0xff]
                %209 = vst [vmem:[%s207] sm:$0xff] %v208
                %v210 = vld [vmem:[%s206 + $0x18] sm:$0xff]
                %211 = vst [vmem:[%s207 + $0xc] sm:$0xff] %v210
                %v212 = vld [vmem:[%s206 + $0x30] sm:$0xff]
                %213 = vst [vmem:[%s207 + $0x18] sm:$0xff] %v212
                %v214 = vld [vmem:[%s206 + $0x48] sm:$0xff]
                %215 = vst [vmem:[%s207 + $0x24] sm:$0xff] %v214
                %v216 = vld [vmem:[%s206 + $0x60] sm:$0xff]
                %217 = vst [vmem:[%s207 + $0x30] sm:$0xff] %v216
                %v218 = vld [vmem:[%s206 + $0x78] sm:$0xff]
                %219 = vst [vmem:[%s207 + $0x3c] sm:$0xff] %v218
                %v220 = vld [vmem:[%s206 + $0x90] sm:$0xff]
                %221 = vst [vmem:[%s207 + $0x48] sm:$0xff] %v220
                %v222 = vld [vmem:[%s206 + $0xa8] sm:$0xff]
                %223 = vst [vmem:[%s207 + $0x54] sm:$0xff] %v222
                %v224 = vld [vmem:[%s206 + $0xc0] sm:$0xff]
                %225 = vst [vmem:[%s207 + $0x60] sm:$0xff] %v224
                %v226 = vld [vmem:[%s206 + $0xd8] sm:$0xff]
                %227 = vst [vmem:[%s207 + $0x6c] sm:$0xff] %v226
                %v228 = vld [vmem:[%s206 + $0xf0] sm:$0xff]
                %229 = vst [vmem:[%s207 + $0x78] sm:$0xff] %v228
                %v230 = vld [vmem:[%s206 + $0x108] sm:$0xff]
                %231 = vst [vmem:[%s207 + $0x84] sm:$0xff] %v230
                %v232 = vld [vmem:[%s206 + $0x120] sm:$0xff]
                %233 = vst [vmem:[%s207 + $0x90] sm:$0xff] %v232
                %v234 = vld [vmem:[%s206 + $0x138] sm:$0xff]
                %235 = vst [vmem:[%s207 + $0x9c] sm:$0xff] %v234
                %v236 = vld [vmem:[%s206 + $0x150] sm:$0xff]
                %237 = vst [vmem:[%s207 + $0xa8] sm:$0xff] %v236
                %v238 = vld [vmem:[%s206 + $0x168] sm:$0xff]
                %239 = vst [vmem:[%s207 + $0xb4] sm:$0xff] %v238
                %v240 = vld [vmem:[%s206 + $0x180] sm:$0xff]
                %241 = vst [vmem:[%s207 + $0xc0] sm:$0xff] %v240
                %v242 = vld [vmem:[%s206 + $0x198] sm:$0xff]
                %243 = vst [vmem:[%s207 + $0xcc] sm:$0xff] %v242
                %v244 = vld [vmem:[%s206 + $0x1b0] sm:$0xff]
                %245 = vst [vmem:[%s207 + $0xd8] sm:$0xff] %v244
                %v246 = vld [vmem:[%s206 + $0x1c8] sm:$0xff]
                %247 = vst [vmem:[%s207 + $0xe4] sm:$0xff] %v246
                %v248 = vld [vmem:[%s206 + $0x1e0] sm:$0xff]
                %249 = vst [vmem:[%s207 + $0xf0] sm:$0xff] %v248
                %v250 = vld [vmem:[%s206 + $0x1f8] sm:$0xff]
                %251 = vst [vmem:[%s207 + $0xfc] sm:$0xff] %v250
                %v252 = vld [vmem:[%s206 + $0x210] sm:$0xff]
                %253 = vst [vmem:[%s207 + $0x108] sm:$0xff] %v252
                %v254 = vld [vmem:[%s206 + $0x228] sm:$0xff]
                %255 = vst [vmem:[%s207 + $0x114] sm:$0xff] %v254
                %v256 = vld [vmem:[%s206 + $0x240] sm:$0xff]
                %257 = vst [vmem:[%s207 + $0x120] sm:$0xff] %v256
                %v258 = vld [vmem:[%s206 + $0x258] sm:$0xff]
                %259 = vst [vmem:[%s207 + $0x12c] sm:$0xff] %v258
                %v260 = vld [vmem:[%s206 + $0x270] sm:$0xff]
                %261 = vst [vmem:[%s207 + $0x138] sm:$0xff] %v260
                %v262 = vld [vmem:[%s206 + $0x288] sm:$0xff]
                %263 = vst [vmem:[%s207 + $0x144] sm:$0xff] %v262
                %v264 = vld [vmem:[%s206 + $0x2a0] sm:$0xff]
                %265 = vst [vmem:[%s207 + $0x150] sm:$0xff] %v264
                %v266 = vld [vmem:[%s206 + $0x2b8] sm:$0xff]
                %267 = vst [vmem:[%s207 + $0x15c] sm:$0xff] %v266
                %v268 = vld [vmem:[%s206 + $0x2d0] sm:$0xff]
                %269 = vst [vmem:[%s207 + $0x168] sm:$0xff] %v268
                %v270 = vld [vmem:[%s206 + $0x2e8] sm:$0xff]
                %271 = vst [vmem:[%s207 + $0x174] sm:$0xff] %v270
                %v272 = vld [vmem:[%s206 + $0x300] sm:$0xff]
                %273 = vst [vmem:[%s207 + $0x180] sm:$0xff] %v272
                %v274 = vld [vmem:[%s206 + $0x318] sm:$0xff]
                %275 = vst [vmem:[%s207 + $0x18c] sm:$0xff] %v274
                %v276 = vld [vmem:[%s206 + $0x330] sm:$0xff]
                %277 = vst [vmem:[%s207 + $0x198] sm:$0xff] %v276
                %v278 = vld [vmem:[%s206 + $0x348] sm:$0xff]
                %279 = vst [vmem:[%s207 + $0x1a4] sm:$0xff] %v278
                %v280 = vld [vmem:[%s206 + $0x360] sm:$0xff]
                %281 = vst [vmem:[%s207 + $0x1b0] sm:$0xff] %v280
                %v282 = vld [vmem:[%s206 + $0x378] sm:$0xff]
                %283 = vst [vmem:[%s207 + $0x1bc] sm:$0xff] %v282
                %v284 = vld [vmem:[%s206 + $0x390] sm:$0xff]
                %285 = vst [vmem:[%s207 + $0x1c8] sm:$0xff] %v284
                %v286 = vld [vmem:[%s206 + $0x3a8] sm:$0xff]
                %287 = vst [vmem:[%s207 + $0x1d4] sm:$0xff] %v286
                %v288 = vld [vmem:[%s206 + $0x3c0] sm:$0xff]
                %289 = vst [vmem:[%s207 + $0x1e0] sm:$0xff] %v288
                %v290 = vld [vmem:[%s206 + $0x3d8] sm:$0xff]
                %291 = vst [vmem:[%s207 + $0x1ec] sm:$0xff] %v290
                %v292 = vld [vmem:[%s206 + $0x3f0] sm:$0xff]
                %293 = vst [vmem:[%s207 + $0x1f8] sm:$0xff] %v292
                %v294 = vld [vmem:[%s206 + $0x408] sm:$0xff]
                %295 = vst [vmem:[%s207 + $0x204] sm:$0xff] %v294
                %v296 = vld [vmem:[%s206 + $0x420] sm:$0xff]
                %297 = vst [vmem:[%s207 + $0x210] sm:$0xff] %v296
                %v298 = vld [vmem:[%s206 + $0x438] sm:$0xff]
                %299 = vst [vmem:[%s207 + $0x21c] sm:$0xff] %v298
                %v300 = vld [vmem:[%s206 + $0x450] sm:$0xff]
                %301 = vst [vmem:[%s207 + $0x228] sm:$0xff] %v300
                %v302 = vld [vmem:[%s206 + $0x468] sm:$0xff]
                %303 = vst [vmem:[%s207 + $0x234] sm:$0xff] %v302
                %v304 = vld [vmem:[%s206 + $0x480] sm:$0xff]
                %305 = vst [vmem:[%s207 + $0x240] sm:$0xff] %v304
                %v306 = vld [vmem:[%s206 + $0x498] sm:$0xff]
                %307 = vst [vmem:[%s207 + $0x24c] sm:$0xff] %v306
                %v308 = vld [vmem:[%s206 + $0x4b0] sm:$0xff]
                %309 = vst [vmem:[%s207 + $0x258] sm:$0xff] %v308
                %v310 = vld [vmem:[%s206 + $0x4c8] sm:$0xff]
                %311 = vst [vmem:[%s207 + $0x264] sm:$0xff] %v310
                %v312 = vld [vmem:[%s206 + $0x4e0] sm:$0xff]
                %313 = vst [vmem:[%s207 + $0x270] sm:$0xff] %v312
                %v314 = vld [vmem:[%s206 + $0x4f8] sm:$0xff]
                %315 = vst [vmem:[%s207 + $0x27c] sm:$0xff] %v314
                %v316 = vld [vmem:[%s206 + $0x510] sm:$0xff]
                %317 = vst [vmem:[%s207 + $0x288] sm:$0xff] %v316
                %v318 = vld [vmem:[%s206 + $0x528] sm:$0xff]
                %319 = vst [vmem:[%s207 + $0x294] sm:$0xff] %v318
                %v320 = vld [vmem:[%s206 + $0x540] sm:$0xff]
                %321 = vst [vmem:[%s207 + $0x2a0] sm:$0xff] %v320
                %v322 = vld [vmem:[%s206 + $0x558] sm:$0xff]
                %323 = vst [vmem:[%s207 + $0x2ac] sm:$0xff] %v322
                %v324 = vld [vmem:[%s206 + $0x570] sm:$0xff]
                %325 = vst [vmem:[%s207 + $0x2b8] sm:$0xff] %v324
                %v326 = vld [vmem:[%s206 + $0x588] sm:$0xff]
                %327 = vst [vmem:[%s207 + $0x2c4] sm:$0xff] %v326
                %v328 = vld [vmem:[%s206 + $0x5a0] sm:$0xff]
                %329 = vst [vmem:[%s207 + $0x2d0] sm:$0xff] %v328
                %v330 = vld [vmem:[%s206 + $0x5b8] sm:$0xff]
                %331 = vst [vmem:[%s207 + $0x2dc] sm:$0xff] %v330
                %v332 = vld [vmem:[%s206 + $0x5d0] sm:$0xff]
                %333 = vst [vmem:[%s207 + $0x2e8] sm:$0xff] %v332
                %v334 = vld [vmem:[%s206 + $0x5e8] sm:$0xff]
                %335 = vst [vmem:[%s207 + $0x2f4] sm:$0xff] %v334
                %v336 = vld [vmem:[%s206 + $0x600] sm:$0xff]
                %337 = vst [vmem:[%s207 + $0x300] sm:$0xff] %v336
                %v338 = vld [vmem:[%s206 + $0x618] sm:$0xff]
                %339 = vst [vmem:[%s207 + $0x30c] sm:$0xff] %v338
                %v340 = vld [vmem:[%s206 + $0x630] sm:$0xff]
                %341 = vst [vmem:[%s207 + $0x318] sm:$0xff] %v340
                %v342 = vld [vmem:[%s206 + $0x648] sm:$0xff]
                %343 = vst [vmem:[%s207 + $0x324] sm:$0xff] %v342
                %v344 = vld [vmem:[%s206 + $0x660] sm:$0xff]
                %345 = vst [vmem:[%s207 + $0x330] sm:$0xff] %v344
                %v346 = vld [vmem:[%s206 + $0x678] sm:$0xff]
                %347 = vst [vmem:[%s207 + $0x33c] sm:$0xff] %v346
                %v348 = vld [vmem:[%s206 + $0x690] sm:$0xff]
                %349 = vst [vmem:[%s207 + $0x348] sm:$0xff] %v348
                %v350 = vld [vmem:[%s206 + $0x6a8] sm:$0xff]
                %351 = vst [vmem:[%s207 + $0x354] sm:$0xff] %v350
                %v352 = vld [vmem:[%s206 + $0x6c0] sm:$0xff]
                %353 = vst [vmem:[%s207 + $0x360] sm:$0xff] %v352
                %v354 = vld [vmem:[%s206 + $0x6d8] sm:$0xff]
                %355 = vst [vmem:[%s207 + $0x36c] sm:$0xff] %v354
                %v356 = vld [vmem:[%s206 + $0x6f0] sm:$0xff]
                %357 = vst [vmem:[%s207 + $0x378] sm:$0xff] %v356
                %v358 = vld [vmem:[%s206 + $0x708] sm:$0xff]
                %359 = vst [vmem:[%s207 + $0x384] sm:$0xff] %v358
                %v360 = vld [vmem:[%s206 + $0x720] sm:$0xff]
                %361 = vst [vmem:[%s207 + $0x390] sm:$0xff] %v360
                %v362 = vld [vmem:[%s206 + $0x738] sm:$0xff]
                %363 = vst [vmem:[%s207 + $0x39c] sm:$0xff] %v362
                %v364 = vld [vmem:[%s206 + $0x750] sm:$0xff]
                %365 = vst [vmem:[%s207 + $0x3a8] sm:$0xff] %v364
                %v366 = vld [vmem:[%s206 + $0x768] sm:$0xff]
                %367 = vst [vmem:[%s207 + $0x3b4] sm:$0xff] %v366
                %v368 = vld [vmem:[%s206 + $0x780] sm:$0xff]
                %369 = vst [vmem:[%s207 + $0x3c0] sm:$0xff] %v368
                %v370 = vld [vmem:[%s206 + $0x798] sm:$0xff]
                %371 = vst [vmem:[%s207 + $0x3cc] sm:$0xff] %v370
                %v372 = vld [vmem:[%s206 + $0x7b0] sm:$0xff]
                %373 = vst [vmem:[%s207 + $0x3d8] sm:$0xff] %v372
                %v374 = vld [vmem:[%s206 + $0x7c8] sm:$0xff]
                %375 = vst [vmem:[%s207 + $0x3e4] sm:$0xff] %v374
                %v376 = vld [vmem:[%s206 + $0x7e0] sm:$0xff]
                %377 = vst [vmem:[%s207 + $0x3f0] sm:$0xff] %v376
                %v378 = vld [vmem:[%s206 + $0x7f8] sm:$0xff]
                %379 = vst [vmem:[%s207 + $0x3fc] sm:$0xff] %v378
                %v380 = vld [vmem:[%s206 + $0x810] sm:$0xff]
                %381 = vst [vmem:[%s207 + $0x408] sm:$0xff] %v380
                %v382 = vld [vmem:[%s206 + $0x828] sm:$0xff]
                %383 = vst [vmem:[%s207 + $0x414] sm:$0xff] %v382
                %v384 = vld [vmem:[%s206 + $0x840] sm:$0xff]
                %385 = vst [vmem:[%s207 + $0x420] sm:$0xff] %v384
                %v386 = vld [vmem:[%s206 + $0x858] sm:$0xff]
                %387 = vst [vmem:[%s207 + $0x42c] sm:$0xff] %v386
                %v388 = vld [vmem:[%s206 + $0x870] sm:$0xff]
                %389 = vst [vmem:[%s207 + $0x438] sm:$0xff] %v388
                %v390 = vld [vmem:[%s206 + $0x888] sm:$0xff]
                %391 = vst [vmem:[%s207 + $0x444] sm:$0xff] %v390
                %v392 = vld [vmem:[%s206 + $0x8a0] sm:$0xff]
                %393 = vst [vmem:[%s207 + $0x450] sm:$0xff] %v392
                %v394 = vld [vmem:[%s206 + $0x8b8] sm:$0xff]
                %395 = vst [vmem:[%s207 + $0x45c] sm:$0xff] %v394
                %v396 = vld [vmem:[%s206 + $0x8d0] sm:$0xff]
                %397 = vst [vmem:[%s207 + $0x468] sm:$0xff] %v396
                %v398 = vld [vmem:[%s206 + $0x8e8] sm:$0xff]
                %399 = vst [vmem:[%s207 + $0x474] sm:$0xff] %v398
                %v400 = vld [vmem:[%s206 + $0x900] sm:$0xff]
                %401 = vst [vmem:[%s207 + $0x480] sm:$0xff] %v400
                %v402 = vld [vmem:[%s206 + $0x918] sm:$0xff]
                %403 = vst [vmem:[%s207 + $0x48c] sm:$0xff] %v402
                %v404 = vld [vmem:[%s206 + $0x930] sm:$0xff]
                %405 = vst [vmem:[%s207 + $0x498] sm:$0xff] %v404
                %v406 = vld [vmem:[%s206 + $0x948] sm:$0xff]
                %407 = vst [vmem:[%s207 + $0x4a4] sm:$0xff] %v406
                %v408 = vld [vmem:[%s206 + $0x960] sm:$0xff]
                %409 = vst [vmem:[%s207 + $0x4b0] sm:$0xff] %v408
                %v410 = vld [vmem:[%s206 + $0x978] sm:$0xff]
                %411 = vst [vmem:[%s207 + $0x4bc] sm:$0xff] %v410
                %v412 = vld [vmem:[%s206 + $0x990] sm:$0xff]
                %413 = vst [vmem:[%s207 + $0x4c8] sm:$0xff] %v412
                %v414 = vld [vmem:[%s206 + $0x9a8] sm:$0xff]
                %415 = vst [vmem:[%s207 + $0x4d4] sm:$0xff] %v414
                %v416 = vld [vmem:[%s206 + $0x9c0] sm:$0xff]
                %417 = vst [vmem:[%s207 + $0x4e0] sm:$0xff] %v416
                %v418 = vld [vmem:[%s206 + $0x9d8] sm:$0xff]
                %419 = vst [vmem:[%s207 + $0x4ec] sm:$0xff] %v418
                %v420 = vld [vmem:[%s206 + $0x9f0] sm:$0xff]
                %421 = vst [vmem:[%s207 + $0x4f8] sm:$0xff] %v420
                %v422 = vld [vmem:[%s206 + $0xa08] sm:$0xff]
                %423 = vst [vmem:[%s207 + $0x504] sm:$0xff] %v422
                %v424 = vld [vmem:[%s206 + $0xa20] sm:$0xff]
                %425 = vst [vmem:[%s207 + $0x510] sm:$0xff] %v424
                %v426 = vld [vmem:[%s206 + $0xa38] sm:$0xff]
                %427 = vst [vmem:[%s207 + $0x51c] sm:$0xff] %v426
                %v428 = vld [vmem:[%s206 + $0xa50] sm:$0xff]
                %429 = vst [vmem:[%s207 + $0x528] sm:$0xff] %v428
                %v430 = vld [vmem:[%s206 + $0xa68] sm:$0xff]
                %431 = vst [vmem:[%s207 + $0x534] sm:$0xff] %v430
                %v432 = vld [vmem:[%s206 + $0xa80] sm:$0xff]
                %433 = vst [vmem:[%s207 + $0x540] sm:$0xff] %v432
                %v434 = vld [vmem:[%s206 + $0xa98] sm:$0xff]
                %435 = vst [vmem:[%s207 + $0x54c] sm:$0xff] %v434
                %v436 = vld [vmem:[%s206 + $0xab0] sm:$0xff]
                %437 = vst [vmem:[%s207 + $0x558] sm:$0xff] %v436
                %v438 = vld [vmem:[%s206 + $0xac8] sm:$0xff]
                %439 = vst [vmem:[%s207 + $0x564] sm:$0xff] %v438
                %v440 = vld [vmem:[%s206 + $0xae0] sm:$0xff]
                %441 = vst [vmem:[%s207 + $0x570] sm:$0xff] %v440
                %v442 = vld [vmem:[%s206 + $0xaf8] sm:$0xff]
                %443 = vst [vmem:[%s207 + $0x57c] sm:$0xff] %v442
                %v444 = vld [vmem:[%s206 + $0xb10] sm:$0xff]
                %445 = vst [vmem:[%s207 + $0x588] sm:$0xff] %v444
                %v446 = vld [vmem:[%s206 + $0xb28] sm:$0xff]
                %447 = vst [vmem:[%s207 + $0x594] sm:$0xff] %v446
                %v448 = vld [vmem:[%s206 + $0xb40] sm:$0xff]
                %449 = vst [vmem:[%s207 + $0x5a0] sm:$0xff] %v448
                %v450 = vld [vmem:[%s206 + $0xb58] sm:$0xff]
                %451 = vst [vmem:[%s207 + $0x5ac] sm:$0xff] %v450
                %v452 = vld [vmem:[%s206 + $0xb70] sm:$0xff]
                %453 = vst [vmem:[%s207 + $0x5b8] sm:$0xff] %v452
                %v454 = vld [vmem:[%s206 + $0xb88] sm:$0xff]
                %455 = vst [vmem:[%s207 + $0x5c4] sm:$0xff] %v454
                %v456 = vld [vmem:[%s206 + $0xba0] sm:$0xff]
                %457 = vst [vmem:[%s207 + $0x5d0] sm:$0xff] %v456
                %v458 = vld [vmem:[%s206 + $0xbb8] sm:$0xff]
                %459 = vst [vmem:[%s207 + $0x5dc] sm:$0xff] %v458
                %v460 = vld [vmem:[%s206 + $0xbd0] sm:$0xff]
                %461 = vst [vmem:[%s207 + $0x5e8] sm:$0xff] %v460
                %v462 = vld [vmem:[%s206 + $0xbe8] sm:$0xff]
                %463 = vst [vmem:[%s207 + $0x5f4] sm:$0xff] %v462
                %v464 = vld [vmem:[%s206 + $0xc00] sm:$0xff]
                %465 = vst [vmem:[%s207 + $0x600] sm:$0xff] %v464
                %v466 = vld [vmem:[%s206 + $0xc18] sm:$0xff]
                %467 = vst [vmem:[%s207 + $0x60c] sm:$0xff] %v466
                %v468 = vld [vmem:[%s206 + $0xc30] sm:$0xff]
                %469 = vst [vmem:[%s207 + $0x618] sm:$0xff] %v468
                %v470 = vld [vmem:[%s206 + $0xc48] sm:$0xff]
                %471 = vst [vmem:[%s207 + $0x624] sm:$0xff] %v470
                %v472 = vld [vmem:[%s206 + $0xc60] sm:$0xff]
                %473 = vst [vmem:[%s207 + $0x630] sm:$0xff] %v472
                %v474 = vld [vmem:[%s206 + $0xc78] sm:$0xff]
                %475 = vst [vmem:[%s207 + $0x63c] sm:$0xff] %v474
                %v476 = vld [vmem:[%s206 + $0xc90] sm:$0xff]
                %477 = vst [vmem:[%s207 + $0x648] sm:$0xff] %v476
                %v478 = vld [vmem:[%s206 + $0xca8] sm:$0xff]
                %479 = vst [vmem:[%s207 + $0x654] sm:$0xff] %v478
                %v480 = vld [vmem:[%s206 + $0xcc0] sm:$0xff]
                %481 = vst [vmem:[%s207 + $0x660] sm:$0xff] %v480
                %v482 = vld [vmem:[%s206 + $0xcd8] sm:$0xff]
                %483 = vst [vmem:[%s207 + $0x66c] sm:$0xff] %v482
                %v484 = vld [vmem:[%s206 + $0xcf0] sm:$0xff]
                %485 = vst [vmem:[%s207 + $0x678] sm:$0xff] %v484
                %v486 = vld [vmem:[%s206 + $0xd08] sm:$0xff]
                %487 = vst [vmem:[%s207 + $0x684] sm:$0xff] %v486
                %v488 = vld [vmem:[%s206 + $0xd20] sm:$0xff]
                %489 = vst [vmem:[%s207 + $0x690] sm:$0xff] %v488
                %v490 = vld [vmem:[%s206 + $0xd38] sm:$0xff]
                %491 = vst [vmem:[%s207 + $0x69c] sm:$0xff] %v490
                %v492 = vld [vmem:[%s206 + $0xd50] sm:$0xff]
                %493 = vst [vmem:[%s207 + $0x6a8] sm:$0xff] %v492
                %v494 = vld [vmem:[%s206 + $0xd68] sm:$0xff]
                %495 = vst [vmem:[%s207 + $0x6b4] sm:$0xff] %v494
                %v496 = vld [vmem:[%s206 + $0xd80] sm:$0xff]
                %497 = vst [vmem:[%s207 + $0x6c0] sm:$0xff] %v496
                %v498 = vld [vmem:[%s206 + $0xd98] sm:$0xff]
                %499 = vst [vmem:[%s207 + $0x6cc] sm:$0xff] %v498
                %v500 = vld [vmem:[%s206 + $0xdb0] sm:$0xff]
                %501 = vst [vmem:[%s207 + $0x6d8] sm:$0xff] %v500
                %v502 = vld [vmem:[%s206 + $0xdc8] sm:$0xff]
                %503 = vst [vmem:[%s207 + $0x6e4] sm:$0xff] %v502
                %v504 = vld [vmem:[%s206 + $0xde0] sm:$0xff]
                %505 = vst [vmem:[%s207 + $0x6f0] sm:$0xff] %v504
                %v506 = vld [vmem:[%s206 + $0xdf8] sm:$0xff]
                %507 = vst [vmem:[%s207 + $0x6fc] sm:$0xff] %v506
                %v508 = vld [vmem:[%s206 + $0xe10] sm:$0xff]
                %509 = vst [vmem:[%s207 + $0x708] sm:$0xff] %v508
                %v510 = vld [vmem:[%s206 + $0xe28] sm:$0xff]
                %511 = vst [vmem:[%s207 + $0x714] sm:$0xff] %v510
                %v512 = vld [vmem:[%s206 + $0xe40] sm:$0xff]
                %513 = vst [vmem:[%s207 + $0x720] sm:$0xff] %v512
                %v514 = vld [vmem:[%s206 + $0xe58] sm:$0xff]
                %515 = vst [vmem:[%s207 + $0x72c] sm:$0xff] %v514
                %v516 = vld [vmem:[%s206 + $0xe70] sm:$0xff]
                %517 = vst [vmem:[%s207 + $0x738] sm:$0xff] %v516
                %v518 = vld [vmem:[%s206 + $0xe88] sm:$0xff]
                %519 = vst [vmem:[%s207 + $0x744] sm:$0xff] %v518
                %v520 = vld [vmem:[%s206 + $0xea0] sm:$0xff]
                %521 = vst [vmem:[%s207 + $0x750] sm:$0xff] %v520
                %v522 = vld [vmem:[%s206 + $0xeb8] sm:$0xff]
                %523 = vst [vmem:[%s207 + $0x75c] sm:$0xff] %v522
                %v524 = vld [vmem:[%s206 + $0xed0] sm:$0xff]
                %525 = vst [vmem:[%s207 + $0x768] sm:$0xff] %v524
                %v526 = vld [vmem:[%s206 + $0xee8] sm:$0xff]
                %527 = vst [vmem:[%s207 + $0x774] sm:$0xff] %v526
                %v528 = vld [vmem:[%s206 + $0xf00] sm:$0xff]
                %529 = vst [vmem:[%s207 + $0x780] sm:$0xff] %v528
                %v530 = vld [vmem:[%s206 + $0xf18] sm:$0xff]
                %531 = vst [vmem:[%s207 + $0x78c] sm:$0xff] %v530
                %v532 = vld [vmem:[%s206 + $0xf30] sm:$0xff]
                %533 = vst [vmem:[%s207 + $0x798] sm:$0xff] %v532
                %v534 = vld [vmem:[%s206 + $0xf48] sm:$0xff]
                %535 = vst [vmem:[%s207 + $0x7a4] sm:$0xff] %v534
                %v536 = vld [vmem:[%s206 + $0xf60] sm:$0xff]
                %537 = vst [vmem:[%s207 + $0x7b0] sm:$0xff] %v536
                %v538 = vld [vmem:[%s206 + $0xf78] sm:$0xff]
                %539 = vst [vmem:[%s207 + $0x7bc] sm:$0xff] %v538
                %v540 = vld [vmem:[%s206 + $0xf90] sm:$0xff]
                %541 = vst [vmem:[%s207 + $0x7c8] sm:$0xff] %v540
                %v542 = vld [vmem:[%s206 + $0xfa8] sm:$0xff]
                %543 = vst [vmem:[%s207 + $0x7d4] sm:$0xff] %v542
                %v544 = vld [vmem:[%s206 + $0xfc0] sm:$0xff]
                %545 = vst [vmem:[%s207 + $0x7e0] sm:$0xff] %v544
                %v546 = vld [vmem:[%s206 + $0xfd8] sm:$0xff]
                %547 = vst [vmem:[%s207 + $0x7ec] sm:$0xff] %v546
                %v548 = vld [vmem:[%s206 + $0xff0] sm:$0xff]
                %549 = vst [vmem:[%s207 + $0x7f8] sm:$0xff] %v548
                %v550 = vld [vmem:[%s206 + $0x1008] sm:$0xff]
                %551 = vst [vmem:[%s207 + $0x804] sm:$0xff] %v550
                %v552 = vld [vmem:[%s206 + $0x1020] sm:$0xff]
                %553 = vst [vmem:[%s207 + $0x810] sm:$0xff] %v552
                %v554 = vld [vmem:[%s206 + $0x1038] sm:$0xff]
                %555 = vst [vmem:[%s207 + $0x81c] sm:$0xff] %v554
                %v556 = vld [vmem:[%s206 + $0x1050] sm:$0xff]
                %557 = vst [vmem:[%s207 + $0x828] sm:$0xff] %v556
                %v558 = vld [vmem:[%s206 + $0x1068] sm:$0xff]
                %559 = vst [vmem:[%s207 + $0x834] sm:$0xff] %v558
                %v560 = vld [vmem:[%s206 + $0x1080] sm:$0xff]
                %561 = vst [vmem:[%s207 + $0x840] sm:$0xff] %v560
                %v562 = vld [vmem:[%s206 + $0x1098] sm:$0xff]
                %563 = vst [vmem:[%s207 + $0x84c] sm:$0xff] %v562
                %v564 = vld [vmem:[%s206 + $0x10b0] sm:$0xff]
                %565 = vst [vmem:[%s207 + $0x858] sm:$0xff] %v564
                %v566 = vld [vmem:[%s206 + $0x10c8] sm:$0xff]
                %567 = vst [vmem:[%s207 + $0x864] sm:$0xff] %v566
                %v568 = vld [vmem:[%s206 + $0x10e0] sm:$0xff]
                %569 = vst [vmem:[%s207 + $0x870] sm:$0xff] %v568
                %v570 = vld [vmem:[%s206 + $0x10f8] sm:$0xff]
                %571 = vst [vmem:[%s207 + $0x87c] sm:$0xff] %v570
                %v572 = vld [vmem:[%s206 + $0x1110] sm:$0xff]
                %573 = vst [vmem:[%s207 + $0x888] sm:$0xff] %v572
                %v574 = vld [vmem:[%s206 + $0x1128] sm:$0xff]
                %575 = vst [vmem:[%s207 + $0x894] sm:$0xff] %v574
                %v576 = vld [vmem:[%s206 + $0x1140] sm:$0xff]
                %577 = vst [vmem:[%s207 + $0x8a0] sm:$0xff] %v576
                %v578 = vld [vmem:[%s206 + $0x1158] sm:$0xff]
                %579 = vst [vmem:[%s207 + $0x8ac] sm:$0xff] %v578
                %v580 = vld [vmem:[%s206 + $0x1170] sm:$0xff]
                %581 = vst [vmem:[%s207 + $0x8b8] sm:$0xff] %v580
                %v582 = vld [vmem:[%s206 + $0x1188] sm:$0xff]
                %583 = vst [vmem:[%s207 + $0x8c4] sm:$0xff] %v582
                %v584 = vld [vmem:[%s206 + $0x11a0] sm:$0xff]
                %585 = vst [vmem:[%s207 + $0x8d0] sm:$0xff] %v584
                %v586 = vld [vmem:[%s206 + $0x11b8] sm:$0xff]
                %587 = vst [vmem:[%s207 + $0x8dc] sm:$0xff] %v586
                %v588 = vld [vmem:[%s206 + $0x11d0] sm:$0xff]
                %589 = vst [vmem:[%s207 + $0x8e8] sm:$0xff] %v588
                %v590 = vld [vmem:[%s206 + $0x11e8] sm:$0xff]
                %591 = vst [vmem:[%s207 + $0x8f4] sm:$0xff] %v590
                %v592 = vld [vmem:[%s206 + $0x1200] sm:$0xff]
                %593 = vst [vmem:[%s207 + $0x900] sm:$0xff] %v592
                %v594 = vld [vmem:[%s206 + $0x1218] sm:$0xff]
                %595 = vst [vmem:[%s207 + $0x90c] sm:$0xff] %v594
                %v596 = vld [vmem:[%s206 + $0x1230] sm:$0xff]
                %597 = vst [vmem:[%s207 + $0x918] sm:$0xff] %v596
                %v598 = vld [vmem:[%s206 + $0x1248] sm:$0xff]
                %599 = vst [vmem:[%s207 + $0x924] sm:$0xff] %v598
                %v600 = vld [vmem:[%s206 + $0x1260] sm:$0xff]
                %601 = vst [vmem:[%s207 + $0x930] sm:$0xff] %v600
                %v602 = vld [vmem:[%s206 + $0x1278] sm:$0xff]
                %603 = vst [vmem:[%s207 + $0x93c] sm:$0xff] %v602
                %v604 = vld [vmem:[%s206 + $0x1290] sm:$0xff]
                %605 = vst [vmem:[%s207 + $0x948] sm:$0xff] %v604
                %v606 = vld [vmem:[%s206 + $0x12a8] sm:$0xff]
                %607 = vst [vmem:[%s207 + $0x954] sm:$0xff] %v606
                %v608 = vld [vmem:[%s206 + $0x12c0] sm:$0xff]
                %609 = vst [vmem:[%s207 + $0x960] sm:$0xff] %v608
                %v610 = vld [vmem:[%s206 + $0x12d8] sm:$0xff]
                %611 = vst [vmem:[%s207 + $0x96c] sm:$0xff] %v610
                %v612 = vld [vmem:[%s206 + $0x12f0] sm:$0xff]
                %613 = vst [vmem:[%s207 + $0x978] sm:$0xff] %v612
                %v614 = vld [vmem:[%s206 + $0x1308] sm:$0xff]
                %615 = vst [vmem:[%s207 + $0x984] sm:$0xff] %v614
                %v616 = vld [vmem:[%s206 + $0x1320] sm:$0xff]
                %617 = vst [vmem:[%s207 + $0x990] sm:$0xff] %v616
                %v618 = vld [vmem:[%s206 + $0x1338] sm:$0xff]
                %619 = vst [vmem:[%s207 + $0x99c] sm:$0xff] %v618
                %v620 = vld [vmem:[%s206 + $0x1350] sm:$0xff]
                %621 = vst [vmem:[%s207 + $0x9a8] sm:$0xff] %v620
                %v622 = vld [vmem:[%s206 + $0x1368] sm:$0xff]
                %623 = vst [vmem:[%s207 + $0x9b4] sm:$0xff] %v622
                %v624 = vld [vmem:[%s206 + $0x1380] sm:$0xff]
                %625 = vst [vmem:[%s207 + $0x9c0] sm:$0xff] %v624
                %v626 = vld [vmem:[%s206 + $0x1398] sm:$0xff]
                %627 = vst [vmem:[%s207 + $0x9cc] sm:$0xff] %v626
                %v628 = vld [vmem:[%s206 + $0x13b0] sm:$0xff]
                %629 = vst [vmem:[%s207 + $0x9d8] sm:$0xff] %v628
                %v630 = vld [vmem:[%s206 + $0x13c8] sm:$0xff]
                %631 = vst [vmem:[%s207 + $0x9e4] sm:$0xff] %v630
                %v632 = vld [vmem:[%s206 + $0x13e0] sm:$0xff]
                %633 = vst [vmem:[%s207 + $0x9f0] sm:$0xff] %v632
                %v634 = vld [vmem:[%s206 + $0x13f8] sm:$0xff]
                %635 = vst [vmem:[%s207 + $0x9fc] sm:$0xff] %v634
                %v636 = vld [vmem:[%s206 + $0x1410] sm:$0xff]
                %637 = vst [vmem:[%s207 + $0xa08] sm:$0xff] %v636
                %v638 = vld [vmem:[%s206 + $0x1428] sm:$0xff]
                %639 = vst [vmem:[%s207 + $0xa14] sm:$0xff] %v638
                %v640 = vld [vmem:[%s206 + $0x1440] sm:$0xff]
                %641 = vst [vmem:[%s207 + $0xa20] sm:$0xff] %v640
                %v642 = vld [vmem:[%s206 + $0x1458] sm:$0xff]
                %643 = vst [vmem:[%s207 + $0xa2c] sm:$0xff] %v642
                %v644 = vld [vmem:[%s206 + $0x1470] sm:$0xff]
                %645 = vst [vmem:[%s207 + $0xa38] sm:$0xff] %v644
                %v646 = vld [vmem:[%s206 + $0x1488] sm:$0xff]
                %647 = vst [vmem:[%s207 + $0xa44] sm:$0xff] %v646
                %v648 = vld [vmem:[%s206 + $0x14a0] sm:$0xff]
                %649 = vst [vmem:[%s207 + $0xa50] sm:$0xff] %v648
                %v650 = vld [vmem:[%s206 + $0x14b8] sm:$0xff]
                %651 = vst [vmem:[%s207 + $0xa5c] sm:$0xff] %v650
                %v652 = vld [vmem:[%s206 + $0x14d0] sm:$0xff]
                %653 = vst [vmem:[%s207 + $0xa68] sm:$0xff] %v652
                %v654 = vld [vmem:[%s206 + $0x14e8] sm:$0xff]
                %655 = vst [vmem:[%s207 + $0xa74] sm:$0xff] %v654
              $region37: #{network_forward.10} parent=31 // loop_footer
                %s205 = sadd.s32 1, %s201
              $region38: #{network_forward.10} parent=31 // loop_footer_branch
                %200 = sbr.rel target = $region34
              $region39: #{network_forward.10} parent=31 // loop_exit
                _
              loop: start=0, step=1, limit=1
              $region40: #{network_forward.10} parent=31 // loop_pre_header
                _
              $region41: #{network_forward.10} parent=31 // loop_header
                %s658 = sphi 0, %s662
                %p659 = scmp.ge.s32.totalorder %s658, 1
                %s663 = sphi %s198, %s198
                %s664 = sphi %s199, %s199
              $region42: #{network_forward.10} parent=31 // loop_header_branch
                %661 = sbr.rel (%p659) target = $region46
              $region43: #{network_forward.10} parent=31 // loop_body
                %v665 = vld [vmem:[%s663] sm:$0xf]
                %666 = vst [vmem:[%s664] sm:$0xf] %v665
                %v667 = vld [vmem:[%s663 + $0x18] sm:$0xf]
                %668 = vst [vmem:[%s664 + $0xc] sm:$0xf] %v667
                %v669 = vld [vmem:[%s663 + $0x30] sm:$0xf]
                %670 = vst [vmem:[%s664 + $0x18] sm:$0xf] %v669
                %v671 = vld [vmem:[%s663 + $0x48] sm:$0xf]
                %672 = vst [vmem:[%s664 + $0x24] sm:$0xf] %v671
                %v673 = vld [vmem:[%s663 + $0x60] sm:$0xf]
                %674 = vst [vmem:[%s664 + $0x30] sm:$0xf] %v673
                %v675 = vld [vmem:[%s663 + $0x78] sm:$0xf]
                %676 = vst [vmem:[%s664 + $0x3c] sm:$0xf] %v675
                %v677 = vld [vmem:[%s663 + $0x90] sm:$0xf]
                %678 = vst [vmem:[%s664 + $0x48] sm:$0xf] %v677
                %v679 = vld [vmem:[%s663 + $0xa8] sm:$0xf]
                %680 = vst [vmem:[%s664 + $0x54] sm:$0xf] %v679
                %v681 = vld [vmem:[%s663 + $0xc0] sm:$0xf]
                %682 = vst [vmem:[%s664 + $0x60] sm:$0xf] %v681
                %v683 = vld [vmem:[%s663 + $0xd8] sm:$0xf]
                %684 = vst [vmem:[%s664 + $0x6c] sm:$0xf] %v683
                %v685 = vld [vmem:[%s663 + $0xf0] sm:$0xf]
                %686 = vst [vmem:[%s664 + $0x78] sm:$0xf] %v685
                %v687 = vld [vmem:[%s663 + $0x108] sm:$0xf]
                %688 = vst [vmem:[%s664 + $0x84] sm:$0xf] %v687
                %v689 = vld [vmem:[%s663 + $0x120] sm:$0xf]
                %690 = vst [vmem:[%s664 + $0x90] sm:$0xf] %v689
                %v691 = vld [vmem:[%s663 + $0x138] sm:$0xf]
                %692 = vst [vmem:[%s664 + $0x9c] sm:$0xf] %v691
                %v693 = vld [vmem:[%s663 + $0x150] sm:$0xf]
                %694 = vst [vmem:[%s664 + $0xa8] sm:$0xf] %v693
                %v695 = vld [vmem:[%s663 + $0x168] sm:$0xf]
                %696 = vst [vmem:[%s664 + $0xb4] sm:$0xf] %v695
                %v697 = vld [vmem:[%s663 + $0x180] sm:$0xf]
                %698 = vst [vmem:[%s664 + $0xc0] sm:$0xf] %v697
                %v699 = vld [vmem:[%s663 + $0x198] sm:$0xf]
                %700 = vst [vmem:[%s664 + $0xcc] sm:$0xf] %v699
                %v701 = vld [vmem:[%s663 + $0x1b0] sm:$0xf]
                %702 = vst [vmem:[%s664 + $0xd8] sm:$0xf] %v701
                %v703 = vld [vmem:[%s663 + $0x1c8] sm:$0xf]
                %704 = vst [vmem:[%s664 + $0xe4] sm:$0xf] %v703
                %v705 = vld [vmem:[%s663 + $0x1e0] sm:$0xf]
                %706 = vst [vmem:[%s664 + $0xf0] sm:$0xf] %v705
                %v707 = vld [vmem:[%s663 + $0x1f8] sm:$0xf]
                %708 = vst [vmem:[%s664 + $0xfc] sm:$0xf] %v707
                %v709 = vld [vmem:[%s663 + $0x210] sm:$0xf]
                %710 = vst [vmem:[%s664 + $0x108] sm:$0xf] %v709
                %v711 = vld [vmem:[%s663 + $0x228] sm:$0xf]
                %712 = vst [vmem:[%s664 + $0x114] sm:$0xf] %v711
                %v713 = vld [vmem:[%s663 + $0x240] sm:$0xf]
                %714 = vst [vmem:[%s664 + $0x120] sm:$0xf] %v713
                %v715 = vld [vmem:[%s663 + $0x258] sm:$0xf]
                %716 = vst [vmem:[%s664 + $0x12c] sm:$0xf] %v715
                %v717 = vld [vmem:[%s663 + $0x270] sm:$0xf]
                %718 = vst [vmem:[%s664 + $0x138] sm:$0xf] %v717
                %v719 = vld [vmem:[%s663 + $0x288] sm:$0xf]
                %720 = vst [vmem:[%s664 + $0x144] sm:$0xf] %v719
                %v721 = vld [vmem:[%s663 + $0x2a0] sm:$0xf]
                %722 = vst [vmem:[%s664 + $0x150] sm:$0xf] %v721
                %v723 = vld [vmem:[%s663 + $0x2b8] sm:$0xf]
                %724 = vst [vmem:[%s664 + $0x15c] sm:$0xf] %v723
                %v725 = vld [vmem:[%s663 + $0x2d0] sm:$0xf]
                %726 = vst [vmem:[%s664 + $0x168] sm:$0xf] %v725
                %v727 = vld [vmem:[%s663 + $0x2e8] sm:$0xf]
                %728 = vst [vmem:[%s664 + $0x174] sm:$0xf] %v727
                %v729 = vld [vmem:[%s663 + $0x300] sm:$0xf]
                %730 = vst [vmem:[%s664 + $0x180] sm:$0xf] %v729
                %v731 = vld [vmem:[%s663 + $0x318] sm:$0xf]
                %732 = vst [vmem:[%s664 + $0x18c] sm:$0xf] %v731
                %v733 = vld [vmem:[%s663 + $0x330] sm:$0xf]
                %734 = vst [vmem:[%s664 + $0x198] sm:$0xf] %v733
                %v735 = vld [vmem:[%s663 + $0x348] sm:$0xf]
                %736 = vst [vmem:[%s664 + $0x1a4] sm:$0xf] %v735
                %v737 = vld [vmem:[%s663 + $0x360] sm:$0xf]
                %738 = vst [vmem:[%s664 + $0x1b0] sm:$0xf] %v737
                %v739 = vld [vmem:[%s663 + $0x378] sm:$0xf]
                %740 = vst [vmem:[%s664 + $0x1bc] sm:$0xf] %v739
                %v741 = vld [vmem:[%s663 + $0x390] sm:$0xf]
                %742 = vst [vmem:[%s664 + $0x1c8] sm:$0xf] %v741
                %v743 = vld [vmem:[%s663 + $0x3a8] sm:$0xf]
                %744 = vst [vmem:[%s664 + $0x1d4] sm:$0xf] %v743
                %v745 = vld [vmem:[%s663 + $0x3c0] sm:$0xf]
                %746 = vst [vmem:[%s664 + $0x1e0] sm:$0xf] %v745
                %v747 = vld [vmem:[%s663 + $0x3d8] sm:$0xf]
                %748 = vst [vmem:[%s664 + $0x1ec] sm:$0xf] %v747
                %v749 = vld [vmem:[%s663 + $0x3f0] sm:$0xf]
                %750 = vst [vmem:[%s664 + $0x1f8] sm:$0xf] %v749
                %v751 = vld [vmem:[%s663 + $0x408] sm:$0xf]
                %752 = vst [vmem:[%s664 + $0x204] sm:$0xf] %v751
                %v753 = vld [vmem:[%s663 + $0x420] sm:$0xf]
                %754 = vst [vmem:[%s664 + $0x210] sm:$0xf] %v753
                %v755 = vld [vmem:[%s663 + $0x438] sm:$0xf]
                %756 = vst [vmem:[%s664 + $0x21c] sm:$0xf] %v755
                %v757 = vld [vmem:[%s663 + $0x450] sm:$0xf]
                %758 = vst [vmem:[%s664 + $0x228] sm:$0xf] %v757
                %v759 = vld [vmem:[%s663 + $0x468] sm:$0xf]
                %760 = vst [vmem:[%s664 + $0x234] sm:$0xf] %v759
                %v761 = vld [vmem:[%s663 + $0x480] sm:$0xf]
                %762 = vst [vmem:[%s664 + $0x240] sm:$0xf] %v761
                %v763 = vld [vmem:[%s663 + $0x498] sm:$0xf]
                %764 = vst [vmem:[%s664 + $0x24c] sm:$0xf] %v763
                %v765 = vld [vmem:[%s663 + $0x4b0] sm:$0xf]
                %766 = vst [vmem:[%s664 + $0x258] sm:$0xf] %v765
                %v767 = vld [vmem:[%s663 + $0x4c8] sm:$0xf]
                %768 = vst [vmem:[%s664 + $0x264] sm:$0xf] %v767
                %v769 = vld [vmem:[%s663 + $0x4e0] sm:$0xf]
                %770 = vst [vmem:[%s664 + $0x270] sm:$0xf] %v769
                %v771 = vld [vmem:[%s663 + $0x4f8] sm:$0xf]
                %772 = vst [vmem:[%s664 + $0x27c] sm:$0xf] %v771
                %v773 = vld [vmem:[%s663 + $0x510] sm:$0xf]
                %774 = vst [vmem:[%s664 + $0x288] sm:$0xf] %v773
                %v775 = vld [vmem:[%s663 + $0x528] sm:$0xf]
                %776 = vst [vmem:[%s664 + $0x294] sm:$0xf] %v775
                %v777 = vld [vmem:[%s663 + $0x540] sm:$0xf]
                %778 = vst [vmem:[%s664 + $0x2a0] sm:$0xf] %v777
                %v779 = vld [vmem:[%s663 + $0x558] sm:$0xf]
                %780 = vst [vmem:[%s664 + $0x2ac] sm:$0xf] %v779
                %v781 = vld [vmem:[%s663 + $0x570] sm:$0xf]
                %782 = vst [vmem:[%s664 + $0x2b8] sm:$0xf] %v781
                %v783 = vld [vmem:[%s663 + $0x588] sm:$0xf]
                %784 = vst [vmem:[%s664 + $0x2c4] sm:$0xf] %v783
                %v785 = vld [vmem:[%s663 + $0x5a0] sm:$0xf]
                %786 = vst [vmem:[%s664 + $0x2d0] sm:$0xf] %v785
                %v787 = vld [vmem:[%s663 + $0x5b8] sm:$0xf]
                %788 = vst [vmem:[%s664 + $0x2dc] sm:$0xf] %v787
                %v789 = vld [vmem:[%s663 + $0x5d0] sm:$0xf]
                %790 = vst [vmem:[%s664 + $0x2e8] sm:$0xf] %v789
                %v791 = vld [vmem:[%s663 + $0x5e8] sm:$0xf]
                %792 = vst [vmem:[%s664 + $0x2f4] sm:$0xf] %v791
                %v793 = vld [vmem:[%s663 + $0x600] sm:$0xf]
                %794 = vst [vmem:[%s664 + $0x300] sm:$0xf] %v793
                %v795 = vld [vmem:[%s663 + $0x618] sm:$0xf]
                %796 = vst [vmem:[%s664 + $0x30c] sm:$0xf] %v795
                %v797 = vld [vmem:[%s663 + $0x630] sm:$0xf]
                %798 = vst [vmem:[%s664 + $0x318] sm:$0xf] %v797
                %v799 = vld [vmem:[%s663 + $0x648] sm:$0xf]
                %800 = vst [vmem:[%s664 + $0x324] sm:$0xf] %v799
                %v801 = vld [vmem:[%s663 + $0x660] sm:$0xf]
                %802 = vst [vmem:[%s664 + $0x330] sm:$0xf] %v801
                %v803 = vld [vmem:[%s663 + $0x678] sm:$0xf]
                %804 = vst [vmem:[%s664 + $0x33c] sm:$0xf] %v803
                %v805 = vld [vmem:[%s663 + $0x690] sm:$0xf]
                %806 = vst [vmem:[%s664 + $0x348] sm:$0xf] %v805
                %v807 = vld [vmem:[%s663 + $0x6a8] sm:$0xf]
                %808 = vst [vmem:[%s664 + $0x354] sm:$0xf] %v807
                %v809 = vld [vmem:[%s663 + $0x6c0] sm:$0xf]
                %810 = vst [vmem:[%s664 + $0x360] sm:$0xf] %v809
                %v811 = vld [vmem:[%s663 + $0x6d8] sm:$0xf]
                %812 = vst [vmem:[%s664 + $0x36c] sm:$0xf] %v811
                %v813 = vld [vmem:[%s663 + $0x6f0] sm:$0xf]
                %814 = vst [vmem:[%s664 + $0x378] sm:$0xf] %v813
                %v815 = vld [vmem:[%s663 + $0x708] sm:$0xf]
                %816 = vst [vmem:[%s664 + $0x384] sm:$0xf] %v815
                %v817 = vld [vmem:[%s663 + $0x720] sm:$0xf]
                %818 = vst [vmem:[%s664 + $0x390] sm:$0xf] %v817
                %v819 = vld [vmem:[%s663 + $0x738] sm:$0xf]
                %820 = vst [vmem:[%s664 + $0x39c] sm:$0xf] %v819
                %v821 = vld [vmem:[%s663 + $0x750] sm:$0xf]
                %822 = vst [vmem:[%s664 + $0x3a8] sm:$0xf] %v821
                %v823 = vld [vmem:[%s663 + $0x768] sm:$0xf]
                %824 = vst [vmem:[%s664 + $0x3b4] sm:$0xf] %v823
                %v825 = vld [vmem:[%s663 + $0x780] sm:$0xf]
                %826 = vst [vmem:[%s664 + $0x3c0] sm:$0xf] %v825
                %v827 = vld [vmem:[%s663 + $0x798] sm:$0xf]
                %828 = vst [vmem:[%s664 + $0x3cc] sm:$0xf] %v827
                %v829 = vld [vmem:[%s663 + $0x7b0] sm:$0xf]
                %830 = vst [vmem:[%s664 + $0x3d8] sm:$0xf] %v829
                %v831 = vld [vmem:[%s663 + $0x7c8] sm:$0xf]
                %832 = vst [vmem:[%s664 + $0x3e4] sm:$0xf] %v831
                %v833 = vld [vmem:[%s663 + $0x7e0] sm:$0xf]
                %834 = vst [vmem:[%s664 + $0x3f0] sm:$0xf] %v833
                %v835 = vld [vmem:[%s663 + $0x7f8] sm:$0xf]
                %836 = vst [vmem:[%s664 + $0x3fc] sm:$0xf] %v835
                %v837 = vld [vmem:[%s663 + $0x810] sm:$0xf]
                %838 = vst [vmem:[%s664 + $0x408] sm:$0xf] %v837
                %v839 = vld [vmem:[%s663 + $0x828] sm:$0xf]
                %840 = vst [vmem:[%s664 + $0x414] sm:$0xf] %v839
                %v841 = vld [vmem:[%s663 + $0x840] sm:$0xf]
                %842 = vst [vmem:[%s664 + $0x420] sm:$0xf] %v841
                %v843 = vld [vmem:[%s663 + $0x858] sm:$0xf]
                %844 = vst [vmem:[%s664 + $0x42c] sm:$0xf] %v843
                %v845 = vld [vmem:[%s663 + $0x870] sm:$0xf]
                %846 = vst [vmem:[%s664 + $0x438] sm:$0xf] %v845
                %v847 = vld [vmem:[%s663 + $0x888] sm:$0xf]
                %848 = vst [vmem:[%s664 + $0x444] sm:$0xf] %v847
                %v849 = vld [vmem:[%s663 + $0x8a0] sm:$0xf]
                %850 = vst [vmem:[%s664 + $0x450] sm:$0xf] %v849
                %v851 = vld [vmem:[%s663 + $0x8b8] sm:$0xf]
                %852 = vst [vmem:[%s664 + $0x45c] sm:$0xf] %v851
                %v853 = vld [vmem:[%s663 + $0x8d0] sm:$0xf]
                %854 = vst [vmem:[%s664 + $0x468] sm:$0xf] %v853
                %v855 = vld [vmem:[%s663 + $0x8e8] sm:$0xf]
                %856 = vst [vmem:[%s664 + $0x474] sm:$0xf] %v855
                %v857 = vld [vmem:[%s663 + $0x900] sm:$0xf]
                %858 = vst [vmem:[%s664 + $0x480] sm:$0xf] %v857
                %v859 = vld [vmem:[%s663 + $0x918] sm:$0xf]
                %860 = vst [vmem:[%s664 + $0x48c] sm:$0xf] %v859
                %v861 = vld [vmem:[%s663 + $0x930] sm:$0xf]
                %862 = vst [vmem:[%s664 + $0x498] sm:$0xf] %v861
                %v863 = vld [vmem:[%s663 + $0x948] sm:$0xf]
                %864 = vst [vmem:[%s664 + $0x4a4] sm:$0xf] %v863
                %v865 = vld [vmem:[%s663 + $0x960] sm:$0xf]
                %866 = vst [vmem:[%s664 + $0x4b0] sm:$0xf] %v865
                %v867 = vld [vmem:[%s663 + $0x978] sm:$0xf]
                %868 = vst [vmem:[%s664 + $0x4bc] sm:$0xf] %v867
                %v869 = vld [vmem:[%s663 + $0x990] sm:$0xf]
                %870 = vst [vmem:[%s664 + $0x4c8] sm:$0xf] %v869
                %v871 = vld [vmem:[%s663 + $0x9a8] sm:$0xf]
                %872 = vst [vmem:[%s664 + $0x4d4] sm:$0xf] %v871
                %v873 = vld [vmem:[%s663 + $0x9c0] sm:$0xf]
                %874 = vst [vmem:[%s664 + $0x4e0] sm:$0xf] %v873
                %v875 = vld [vmem:[%s663 + $0x9d8] sm:$0xf]
                %876 = vst [vmem:[%s664 + $0x4ec] sm:$0xf] %v875
                %v877 = vld [vmem:[%s663 + $0x9f0] sm:$0xf]
                %878 = vst [vmem:[%s664 + $0x4f8] sm:$0xf] %v877
                %v879 = vld [vmem:[%s663 + $0xa08] sm:$0xf]
                %880 = vst [vmem:[%s664 + $0x504] sm:$0xf] %v879
                %v881 = vld [vmem:[%s663 + $0xa20] sm:$0xf]
                %882 = vst [vmem:[%s664 + $0x510] sm:$0xf] %v881
                %v883 = vld [vmem:[%s663 + $0xa38] sm:$0xf]
                %884 = vst [vmem:[%s664 + $0x51c] sm:$0xf] %v883
                %v885 = vld [vmem:[%s663 + $0xa50] sm:$0xf]
                %886 = vst [vmem:[%s664 + $0x528] sm:$0xf] %v885
                %v887 = vld [vmem:[%s663 + $0xa68] sm:$0xf]
                %888 = vst [vmem:[%s664 + $0x534] sm:$0xf] %v887
                %v889 = vld [vmem:[%s663 + $0xa80] sm:$0xf]
                %890 = vst [vmem:[%s664 + $0x540] sm:$0xf] %v889
                %v891 = vld [vmem:[%s663 + $0xa98] sm:$0xf]
                %892 = vst [vmem:[%s664 + $0x54c] sm:$0xf] %v891
                %v893 = vld [vmem:[%s663 + $0xab0] sm:$0xf]
                %894 = vst [vmem:[%s664 + $0x558] sm:$0xf] %v893
                %v895 = vld [vmem:[%s663 + $0xac8] sm:$0xf]
                %896 = vst [vmem:[%s664 + $0x564] sm:$0xf] %v895
                %v897 = vld [vmem:[%s663 + $0xae0] sm:$0xf]
                %898 = vst [vmem:[%s664 + $0x570] sm:$0xf] %v897
                %v899 = vld [vmem:[%s663 + $0xaf8] sm:$0xf]
                %900 = vst [vmem:[%s664 + $0x57c] sm:$0xf] %v899
                %v901 = vld [vmem:[%s663 + $0xb10] sm:$0xf]
                %902 = vst [vmem:[%s664 + $0x588] sm:$0xf] %v901
                %v903 = vld [vmem:[%s663 + $0xb28] sm:$0xf]
                %904 = vst [vmem:[%s664 + $0x594] sm:$0xf] %v903
                %v905 = vld [vmem:[%s663 + $0xb40] sm:$0xf]
                %906 = vst [vmem:[%s664 + $0x5a0] sm:$0xf] %v905
                %v907 = vld [vmem:[%s663 + $0xb58] sm:$0xf]
                %908 = vst [vmem:[%s664 + $0x5ac] sm:$0xf] %v907
                %v909 = vld [vmem:[%s663 + $0xb70] sm:$0xf]
                %910 = vst [vmem:[%s664 + $0x5b8] sm:$0xf] %v909
                %v911 = vld [vmem:[%s663 + $0xb88] sm:$0xf]
                %912 = vst [vmem:[%s664 + $0x5c4] sm:$0xf] %v911
                %v913 = vld [vmem:[%s663 + $0xba0] sm:$0xf]
                %914 = vst [vmem:[%s664 + $0x5d0] sm:$0xf] %v913
                %v915 = vld [vmem:[%s663 + $0xbb8] sm:$0xf]
                %916 = vst [vmem:[%s664 + $0x5dc] sm:$0xf] %v915
                %v917 = vld [vmem:[%s663 + $0xbd0] sm:$0xf]
                %918 = vst [vmem:[%s664 + $0x5e8] sm:$0xf] %v917
                %v919 = vld [vmem:[%s663 + $0xbe8] sm:$0xf]
                %920 = vst [vmem:[%s664 + $0x5f4] sm:$0xf] %v919
                %v921 = vld [vmem:[%s663 + $0xc00] sm:$0xf]
                %922 = vst [vmem:[%s664 + $0x600] sm:$0xf] %v921
                %v923 = vld [vmem:[%s663 + $0xc18] sm:$0xf]
                %924 = vst [vmem:[%s664 + $0x60c] sm:$0xf] %v923
                %v925 = vld [vmem:[%s663 + $0xc30] sm:$0xf]
                %926 = vst [vmem:[%s664 + $0x618] sm:$0xf] %v925
                %v927 = vld [vmem:[%s663 + $0xc48] sm:$0xf]
                %928 = vst [vmem:[%s664 + $0x624] sm:$0xf] %v927
                %v929 = vld [vmem:[%s663 + $0xc60] sm:$0xf]
                %930 = vst [vmem:[%s664 + $0x630] sm:$0xf] %v929
                %v931 = vld [vmem:[%s663 + $0xc78] sm:$0xf]
                %932 = vst [vmem:[%s664 + $0x63c] sm:$0xf] %v931
                %v933 = vld [vmem:[%s663 + $0xc90] sm:$0xf]
                %934 = vst [vmem:[%s664 + $0x648] sm:$0xf] %v933
                %v935 = vld [vmem:[%s663 + $0xca8] sm:$0xf]
                %936 = vst [vmem:[%s664 + $0x654] sm:$0xf] %v935
                %v937 = vld [vmem:[%s663 + $0xcc0] sm:$0xf]
                %938 = vst [vmem:[%s664 + $0x660] sm:$0xf] %v937
                %v939 = vld [vmem:[%s663 + $0xcd8] sm:$0xf]
                %940 = vst [vmem:[%s664 + $0x66c] sm:$0xf] %v939
                %v941 = vld [vmem:[%s663 + $0xcf0] sm:$0xf]
                %942 = vst [vmem:[%s664 + $0x678] sm:$0xf] %v941
                %v943 = vld [vmem:[%s663 + $0xd08] sm:$0xf]
                %944 = vst [vmem:[%s664 + $0x684] sm:$0xf] %v943
                %v945 = vld [vmem:[%s663 + $0xd20] sm:$0xf]
                %946 = vst [vmem:[%s664 + $0x690] sm:$0xf] %v945
                %v947 = vld [vmem:[%s663 + $0xd38] sm:$0xf]
                %948 = vst [vmem:[%s664 + $0x69c] sm:$0xf] %v947
                %v949 = vld [vmem:[%s663 + $0xd50] sm:$0xf]
                %950 = vst [vmem:[%s664 + $0x6a8] sm:$0xf] %v949
                %v951 = vld [vmem:[%s663 + $0xd68] sm:$0xf]
                %952 = vst [vmem:[%s664 + $0x6b4] sm:$0xf] %v951
                %v953 = vld [vmem:[%s663 + $0xd80] sm:$0xf]
                %954 = vst [vmem:[%s664 + $0x6c0] sm:$0xf] %v953
                %v955 = vld [vmem:[%s663 + $0xd98] sm:$0xf]
                %956 = vst [vmem:[%s664 + $0x6cc] sm:$0xf] %v955
                %v957 = vld [vmem:[%s663 + $0xdb0] sm:$0xf]
                %958 = vst [vmem:[%s664 + $0x6d8] sm:$0xf] %v957
                %v959 = vld [vmem:[%s663 + $0xdc8] sm:$0xf]
                %960 = vst [vmem:[%s664 + $0x6e4] sm:$0xf] %v959
                %v961 = vld [vmem:[%s663 + $0xde0] sm:$0xf]
                %962 = vst [vmem:[%s664 + $0x6f0] sm:$0xf] %v961
                %v963 = vld [vmem:[%s663 + $0xdf8] sm:$0xf]
                %964 = vst [vmem:[%s664 + $0x6fc] sm:$0xf] %v963
                %v965 = vld [vmem:[%s663 + $0xe10] sm:$0xf]
                %966 = vst [vmem:[%s664 + $0x708] sm:$0xf] %v965
                %v967 = vld [vmem:[%s663 + $0xe28] sm:$0xf]
                %968 = vst [vmem:[%s664 + $0x714] sm:$0xf] %v967
                %v969 = vld [vmem:[%s663 + $0xe40] sm:$0xf]
                %970 = vst [vmem:[%s664 + $0x720] sm:$0xf] %v969
                %v971 = vld [vmem:[%s663 + $0xe58] sm:$0xf]
                %972 = vst [vmem:[%s664 + $0x72c] sm:$0xf] %v971
                %v973 = vld [vmem:[%s663 + $0xe70] sm:$0xf]
                %974 = vst [vmem:[%s664 + $0x738] sm:$0xf] %v973
                %v975 = vld [vmem:[%s663 + $0xe88] sm:$0xf]
                %976 = vst [vmem:[%s664 + $0x744] sm:$0xf] %v975
                %v977 = vld [vmem:[%s663 + $0xea0] sm:$0xf]
                %978 = vst [vmem:[%s664 + $0x750] sm:$0xf] %v977
                %v979 = vld [vmem:[%s663 + $0xeb8] sm:$0xf]
                %980 = vst [vmem:[%s664 + $0x75c] sm:$0xf] %v979
                %v981 = vld [vmem:[%s663 + $0xed0] sm:$0xf]
                %982 = vst [vmem:[%s664 + $0x768] sm:$0xf] %v981
                %v983 = vld [vmem:[%s663 + $0xee8] sm:$0xf]
                %984 = vst [vmem:[%s664 + $0x774] sm:$0xf] %v983
                %v985 = vld [vmem:[%s663 + $0xf00] sm:$0xf]
                %986 = vst [vmem:[%s664 + $0x780] sm:$0xf] %v985
                %v987 = vld [vmem:[%s663 + $0xf18] sm:$0xf]
                %988 = vst [vmem:[%s664 + $0x78c] sm:$0xf] %v987
                %v989 = vld [vmem:[%s663 + $0xf30] sm:$0xf]
                %990 = vst [vmem:[%s664 + $0x798] sm:$0xf] %v989
                %v991 = vld [vmem:[%s663 + $0xf48] sm:$0xf]
                %992 = vst [vmem:[%s664 + $0x7a4] sm:$0xf] %v991
                %v993 = vld [vmem:[%s663 + $0xf60] sm:$0xf]
                %994 = vst [vmem:[%s664 + $0x7b0] sm:$0xf] %v993
                %v995 = vld [vmem:[%s663 + $0xf78] sm:$0xf]
                %996 = vst [vmem:[%s664 + $0x7bc] sm:$0xf] %v995
                %v997 = vld [vmem:[%s663 + $0xf90] sm:$0xf]
                %998 = vst [vmem:[%s664 + $0x7c8] sm:$0xf] %v997
                %v999 = vld [vmem:[%s663 + $0xfa8] sm:$0xf]
                %1000 = vst [vmem:[%s664 + $0x7d4] sm:$0xf] %v999
                %v1001 = vld [vmem:[%s663 + $0xfc0] sm:$0xf]
                %1002 = vst [vmem:[%s664 + $0x7e0] sm:$0xf] %v1001
                %v1003 = vld [vmem:[%s663 + $0xfd8] sm:$0xf]
                %1004 = vst [vmem:[%s664 + $0x7ec] sm:$0xf] %v1003
                %v1005 = vld [vmem:[%s663 + $0xff0] sm:$0xf]
                %1006 = vst [vmem:[%s664 + $0x7f8] sm:$0xf] %v1005
                %v1007 = vld [vmem:[%s663 + $0x1008] sm:$0xf]
                %1008 = vst [vmem:[%s664 + $0x804] sm:$0xf] %v1007
                %v1009 = vld [vmem:[%s663 + $0x1020] sm:$0xf]
                %1010 = vst [vmem:[%s664 + $0x810] sm:$0xf] %v1009
                %v1011 = vld [vmem:[%s663 + $0x1038] sm:$0xf]
                %1012 = vst [vmem:[%s664 + $0x81c] sm:$0xf] %v1011
                %v1013 = vld [vmem:[%s663 + $0x1050] sm:$0xf]
                %1014 = vst [vmem:[%s664 + $0x828] sm:$0xf] %v1013
                %v1015 = vld [vmem:[%s663 + $0x1068] sm:$0xf]
                %1016 = vst [vmem:[%s664 + $0x834] sm:$0xf] %v1015
                %v1017 = vld [vmem:[%s663 + $0x1080] sm:$0xf]
                %1018 = vst [vmem:[%s664 + $0x840] sm:$0xf] %v1017
                %v1019 = vld [vmem:[%s663 + $0x1098] sm:$0xf]
                %1020 = vst [vmem:[%s664 + $0x84c] sm:$0xf] %v1019
                %v1021 = vld [vmem:[%s663 + $0x10b0] sm:$0xf]
                %1022 = vst [vmem:[%s664 + $0x858] sm:$0xf] %v1021
                %v1023 = vld [vmem:[%s663 + $0x10c8] sm:$0xf]
                %1024 = vst [vmem:[%s664 + $0x864] sm:$0xf] %v1023
                %v1025 = vld [vmem:[%s663 + $0x10e0] sm:$0xf]
                %1026 = vst [vmem:[%s664 + $0x870] sm:$0xf] %v1025
                %v1027 = vld [vmem:[%s663 + $0x10f8] sm:$0xf]
                %1028 = vst [vmem:[%s664 + $0x87c] sm:$0xf] %v1027
                %v1029 = vld [vmem:[%s663 + $0x1110] sm:$0xf]
                %1030 = vst [vmem:[%s664 + $0x888] sm:$0xf] %v1029
                %v1031 = vld [vmem:[%s663 + $0x1128] sm:$0xf]
                %1032 = vst [vmem:[%s664 + $0x894] sm:$0xf] %v1031
                %v1033 = vld [vmem:[%s663 + $0x1140] sm:$0xf]
                %1034 = vst [vmem:[%s664 + $0x8a0] sm:$0xf] %v1033
                %v1035 = vld [vmem:[%s663 + $0x1158] sm:$0xf]
                %1036 = vst [vmem:[%s664 + $0x8ac] sm:$0xf] %v1035
                %v1037 = vld [vmem:[%s663 + $0x1170] sm:$0xf]
                %1038 = vst [vmem:[%s664 + $0x8b8] sm:$0xf] %v1037
                %v1039 = vld [vmem:[%s663 + $0x1188] sm:$0xf]
                %1040 = vst [vmem:[%s664 + $0x8c4] sm:$0xf] %v1039
                %v1041 = vld [vmem:[%s663 + $0x11a0] sm:$0xf]
                %1042 = vst [vmem:[%s664 + $0x8d0] sm:$0xf] %v1041
                %v1043 = vld [vmem:[%s663 + $0x11b8] sm:$0xf]
                %1044 = vst [vmem:[%s664 + $0x8dc] sm:$0xf] %v1043
                %v1045 = vld [vmem:[%s663 + $0x11d0] sm:$0xf]
                %1046 = vst [vmem:[%s664 + $0x8e8] sm:$0xf] %v1045
                %v1047 = vld [vmem:[%s663 + $0x11e8] sm:$0xf]
                %1048 = vst [vmem:[%s664 + $0x8f4] sm:$0xf] %v1047
                %v1049 = vld [vmem:[%s663 + $0x1200] sm:$0xf]
                %1050 = vst [vmem:[%s664 + $0x900] sm:$0xf] %v1049
                %v1051 = vld [vmem:[%s663 + $0x1218] sm:$0xf]
                %1052 = vst [vmem:[%s664 + $0x90c] sm:$0xf] %v1051
                %v1053 = vld [vmem:[%s663 + $0x1230] sm:$0xf]
                %1054 = vst [vmem:[%s664 + $0x918] sm:$0xf] %v1053
                %v1055 = vld [vmem:[%s663 + $0x1248] sm:$0xf]
                %1056 = vst [vmem:[%s664 + $0x924] sm:$0xf] %v1055
                %v1057 = vld [vmem:[%s663 + $0x1260] sm:$0xf]
                %1058 = vst [vmem:[%s664 + $0x930] sm:$0xf] %v1057
                %v1059 = vld [vmem:[%s663 + $0x1278] sm:$0xf]
                %1060 = vst [vmem:[%s664 + $0x93c] sm:$0xf] %v1059
                %v1061 = vld [vmem:[%s663 + $0x1290] sm:$0xf]
                %1062 = vst [vmem:[%s664 + $0x948] sm:$0xf] %v1061
                %v1063 = vld [vmem:[%s663 + $0x12a8] sm:$0xf]
                %1064 = vst [vmem:[%s664 + $0x954] sm:$0xf] %v1063
                %v1065 = vld [vmem:[%s663 + $0x12c0] sm:$0xf]
                %1066 = vst [vmem:[%s664 + $0x960] sm:$0xf] %v1065
                %v1067 = vld [vmem:[%s663 + $0x12d8] sm:$0xf]
                %1068 = vst [vmem:[%s664 + $0x96c] sm:$0xf] %v1067
                %v1069 = vld [vmem:[%s663 + $0x12f0] sm:$0xf]
                %1070 = vst [vmem:[%s664 + $0x978] sm:$0xf] %v1069
                %v1071 = vld [vmem:[%s663 + $0x1308] sm:$0xf]
                %1072 = vst [vmem:[%s664 + $0x984] sm:$0xf] %v1071
                %v1073 = vld [vmem:[%s663 + $0x1320] sm:$0xf]
                %1074 = vst [vmem:[%s664 + $0x990] sm:$0xf] %v1073
                %v1075 = vld [vmem:[%s663 + $0x1338] sm:$0xf]
                %1076 = vst [vmem:[%s664 + $0x99c] sm:$0xf] %v1075
                %v1077 = vld [vmem:[%s663 + $0x1350] sm:$0xf]
                %1078 = vst [vmem:[%s664 + $0x9a8] sm:$0xf] %v1077
                %v1079 = vld [vmem:[%s663 + $0x1368] sm:$0xf]
                %1080 = vst [vmem:[%s664 + $0x9b4] sm:$0xf] %v1079
                %v1081 = vld [vmem:[%s663 + $0x1380] sm:$0xf]
                %1082 = vst [vmem:[%s664 + $0x9c0] sm:$0xf] %v1081
                %v1083 = vld [vmem:[%s663 + $0x1398] sm:$0xf]
                %1084 = vst [vmem:[%s664 + $0x9cc] sm:$0xf] %v1083
                %v1085 = vld [vmem:[%s663 + $0x13b0] sm:$0xf]
                %1086 = vst [vmem:[%s664 + $0x9d8] sm:$0xf] %v1085
                %v1087 = vld [vmem:[%s663 + $0x13c8] sm:$0xf]
                %1088 = vst [vmem:[%s664 + $0x9e4] sm:$0xf] %v1087
                %v1089 = vld [vmem:[%s663 + $0x13e0] sm:$0xf]
                %1090 = vst [vmem:[%s664 + $0x9f0] sm:$0xf] %v1089
                %v1091 = vld [vmem:[%s663 + $0x13f8] sm:$0xf]
                %1092 = vst [vmem:[%s664 + $0x9fc] sm:$0xf] %v1091
                %v1093 = vld [vmem:[%s663 + $0x1410] sm:$0xf]
                %1094 = vst [vmem:[%s664 + $0xa08] sm:$0xf] %v1093
                %v1095 = vld [vmem:[%s663 + $0x1428] sm:$0xf]
                %1096 = vst [vmem:[%s664 + $0xa14] sm:$0xf] %v1095
                %v1097 = vld [vmem:[%s663 + $0x1440] sm:$0xf]
                %1098 = vst [vmem:[%s664 + $0xa20] sm:$0xf] %v1097
                %v1099 = vld [vmem:[%s663 + $0x1458] sm:$0xf]
                %1100 = vst [vmem:[%s664 + $0xa2c] sm:$0xf] %v1099
                %v1101 = vld [vmem:[%s663 + $0x1470] sm:$0xf]
                %1102 = vst [vmem:[%s664 + $0xa38] sm:$0xf] %v1101
                %v1103 = vld [vmem:[%s663 + $0x1488] sm:$0xf]
                %1104 = vst [vmem:[%s664 + $0xa44] sm:$0xf] %v1103
                %v1105 = vld [vmem:[%s663 + $0x14a0] sm:$0xf]
                %1106 = vst [vmem:[%s664 + $0xa50] sm:$0xf] %v1105
                %v1107 = vld [vmem:[%s663 + $0x14b8] sm:$0xf]
                %1108 = vst [vmem:[%s664 + $0xa5c] sm:$0xf] %v1107
                %v1109 = vld [vmem:[%s663 + $0x14d0] sm:$0xf]
                %1110 = vst [vmem:[%s664 + $0xa68] sm:$0xf] %v1109
                %v1111 = vld [vmem:[%s663 + $0x14e8] sm:$0xf]
                %1112 = vst [vmem:[%s664 + $0xa74] sm:$0xf] %v1111
              $region44: #{network_forward.10} parent=31 // loop_footer
                %s662 = sadd.s32 1, %s658
              $region45: #{network_forward.10} parent=31 // loop_footer_branch
                %657 = sbr.rel target = $region41
              $region46: #{network_forward.10} parent=31 // loop_exit
                _
            $region32: #{network_forward.10} parent=27 // pred_fallthru
              _
          $region28: #{network_forward.10} parent=23 // pred_fallthru
            _
          %1113 = vnop
        $region24: #{network_forward.10} parent=15 // pred_fallthru
          _
        // Predicated region
        $region47: #{network_forward.10} parent=15 // pred_check
          %p1114 = pneg %p96
        $region48: #{network_forward.10} parent=15 // pred_check_branch
          %1116 = sbr.rel (%p1114) target = $region50
        $region49: #{network_forward.10} parent=15 // pred_region
          %s1117 = smul.u32 3, %s17
          %p1118 = scmp.lt.s32.totalorder %s1117, 5
          %s1119 = scalar_select %p1118, %s1117, 5
          %s1120 = smul.addr %s1119, 2
          %s1121 = scalar_lea.vmem %s2, %s1120
          %s1122 = smul.u32 3, %s17
        $region50: #{network_forward.10} parent=15 // pred_fallthru
          _
        // Predicated region
        $region51: #{network_forward.10} parent=15 // pred_check
          %p1123 = pneg %p122
        $region52: #{network_forward.10} parent=15 // pred_check_branch
          %1125 = sbr.rel (%p1123) target = $region54
        $region53: #{network_forward.10} parent=15 // pred_region
          %s1126 = smul.u32 48, %s17
          %p1127 = scmp.lt.s32.totalorder %s1126, 95
          %s1128 = scalar_select %p1127, %s1126, 95
          %s1129 = smul.addr %s1128, 4
          %s1130 = scalar_lea.vmem %s3, %s1129
          %s1131 = smul.u32 48, %s17
        $region54: #{network_forward.10} parent=15 // pred_fallthru
          _
      $region16: #{network_forward.10} parent=5 // pred_fallthru
        _
      %p1132 = scmp.le.s32.totalorder 1, %s10
      %p1133 = scmp.lt.s32.totalorder %s10, 9
      %p1134 = pnand %p1132, %p1133
      %p1135 = pneg %p1134
      // Predicated region
      $region55: #{network_forward.10} parent=5 // pred_check
        _
      $region56: #{network_forward.10} parent=5 // pred_check_branch
        %1137 = sbr.rel (%p1134) target = $region58
      $region57: #{network_forward.10} parent=5 // pred_region
        %s1138 = ssub.s32 %s10, 1
        %s1139 = sand.u32 %s63, 1
        %s1140 = sand.u32 %s63, 1
        %s1141 = smul.addr %s1140, 2688
        %s1142 = scalar_lea.vmem [#allocation3], %s1141
        // Predicated region
        $region59: #{network_forward.10} parent=57 // pred_check
          %p1143 = pneg %p76
        $region60: #{network_forward.10} parent=57 // pred_check_branch
          %1145 = sbr.rel (%p1143) target = $region62
        $region61: #{network_forward.10} parent=57 // pred_region
          _
        $region62: #{network_forward.10} parent=57 // pred_fallthru
          _
        %s1146 = smul.u32 14, %s20
        %p1147 = scmp.lt.s32.totalorder %s1146, 55
        %s1148 = scalar_select %p1147, %s1146, 55
        %s1149 = scalar_lea.vmem %s0, %s1148
        %p1150 = pneg %p48
        %p1151 = pneg %p45
        %s1152 = sand.u32 %s63, 1
        %s1153 = sand.u32 %s63, 1
        %s1154 = smul.addr %s1153, 2688
        %s1155 = scalar_lea.vmem [#allocation3], %s1154
        %p1156 = pneg %p76
        %p1157 = pneg %p73
        %s1158 = smul.u32 3, %s19
        %p1159 = scmp.lt.s32.totalorder %s1158, 5
        %s1160 = scalar_select %p1159, %s1158, 5
        %s1161 = smul.addr %s1160, 2
        %s1162 = scalar_lea.vmem %s2, %s1161
        %p1163 = pneg %p102
        %p1164 = pneg %p99
        %s1165 = smul.u32 48, %s19
        %p1166 = scmp.lt.s32.totalorder %s1165, 95
        %s1167 = scalar_select %p1166, %s1165, 95
        %s1168 = smul.addr %s1167, 4
        %s1169 = scalar_lea.vmem %s3, %s1168
        %p1170 = pneg %p128
        %p1171 = pneg %p125
        %p1172 = pneg %p154
        %p1173 = pneg %p151
        %p1174 = scmp.lt.s32.totalorder %s19, 1
        %s1175 = scalar_select %p1174, %s19, 1
        %s1176 = smul.addr %s1175, 2
        %s1177 = scalar_lea.vmem %s4, %s1176
        %s1178 = smul.u32 14, %s20
        %p1179 = scmp.lt.s32.totalorder %s1178, 55
        %s1180 = scalar_select %p1179, %s1178, 55
        %s1181 = scalar_lea.vmem %s0, %s1180
        %s1182 = smul.u32 14, %s20
        %s1183 = smul.u32 224, %s20
        %s1184 = smul.u32 3, %s19
        %s1185 = smul.u32 3, %s19
        %p1186 = scmp.lt.s32.totalorder %s1185, 5
        %s1187 = scalar_select %p1186, %s1185, 5
        %s1188 = smul.addr %s1187, 2
        %s1189 = scalar_lea.vmem %s2, %s1188
        %s1190 = smul.u32 3, %s19
        %s1191 = smul.u32 48, %s19
        %p1192 = scmp.lt.s32.totalorder %s1191, 95
        %s1193 = scalar_select %p1192, %s1191, 95
        %s1194 = smul.addr %s1193, 4
        %s1195 = scalar_lea.vmem %s3, %s1194
        %s1196 = smul.u32 48, %s19
        %p1197 = scmp.lt.s32.totalorder %s19, 1
        %s1198 = scalar_select %p1197, %s19, 1
        %s1199 = smul.addr %s1198, 2
        %s1200 = scalar_lea.vmem %s4, %s1199
        %p1202 = scmp.eq.s32.totalorder %s20, 0
        // Predicated region
        $region63: #{network_forward.10} parent=57 // pred_check
          %p1203 = pneg %p1202
        $region64: #{network_forward.10} parent=57 // pred_check_branch
          %1205 = sbr.rel (%p1203) target = $region66
        $region65: #{network_forward.10} parent=57 // pred_region
          %1206 = vst [vmem:[#allocation2] sm:$0x3f] 0.0
        $region66: #{network_forward.10} parent=57 // pred_fallthru
          _
        %v1207 = vld [vmem:[#allocation2] sm:$0x3f]
        %v1208 = vld [vmem:[%s1181] sm:$0xff]
        %v1209 = vld [vmem:[%s1181 + $0x8] sm:$0x3f]
        %v1210 = vld [vmem:[%s1142] sm:$0xff]
        %v1211 = vld [vmem:[%s1142 + $0x8] sm:$0xf]
        %v1212 = vld [vmem:[%s1142 + $0xc] sm:$0xff]
        %v1213 = vld [vmem:[%s1142 + $0x14] sm:$0xf]
        %v1214 = vld [vmem:[%s1142 + $0x18] sm:$0xff]
        %v1215 = vld [vmem:[%s1142 + $0x20] sm:$0xf]
        %v1216 = vld [vmem:[%s1142 + $0x24] sm:$0xff]
        %v1217 = vld [vmem:[%s1142 + $0x2c] sm:$0xf]
        %v1218 = vld [vmem:[%s1142 + $0x30] sm:$0xff]
        %v1219 = vld [vmem:[%s1142 + $0x38] sm:$0xf]
        %v1220 = vld [vmem:[%s1142 + $0x3c] sm:$0xff]
        %v1221 = vld [vmem:[%s1142 + $0x44] sm:$0xf]
        %v1222 = vld [vmem:[%s1142 + $0x48] sm:$0xff]
        %v1223 = vld [vmem:[%s1142 + $0x50] sm:$0xf]
        %v1224 = vld [vmem:[%s1142 + $0x54] sm:$0xff]
        %v1225 = vld [vmem:[%s1142 + $0x5c] sm:$0xf]
        %v1226 = vld [vmem:[%s1142 + $0x60] sm:$0xff]
        %v1227 = vld [vmem:[%s1142 + $0x68] sm:$0xf]
        %v1228 = vld [vmem:[%s1142 + $0x6c] sm:$0xff]
        %v1229 = vld [vmem:[%s1142 + $0x74] sm:$0xf]
        %v1230 = vld [vmem:[%s1142 + $0x78] sm:$0xff]
        %v1231 = vld [vmem:[%s1142 + $0x80] sm:$0xf]
        %v1232 = vld [vmem:[%s1142 + $0x84] sm:$0xff]
        %v1233 = vld [vmem:[%s1142 + $0x8c] sm:$0xf]
        %v1234 = vld [vmem:[%s1142 + $0x90] sm:$0xff]
        %v1235 = vld [vmem:[%s1142 + $0x98] sm:$0xf]
        %v1236 = vld [vmem:[%s1142 + $0x9c] sm:$0xff]
        %v1237 = vld [vmem:[%s1142 + $0xa4] sm:$0xf]
        %v1238 = vld [vmem:[%s1142 + $0xa8] sm:$0xff]
        %v1239 = vld [vmem:[%s1142 + $0xb0] sm:$0xf]
        %v1240 = vld [vmem:[%s1142 + $0xb4] sm:$0xff]
        %v1241 = vld [vmem:[%s1142 + $0xbc] sm:$0xf]
        %v1242 = vld [vmem:[%s1142 + $0xc0] sm:$0xff]
        %v1243 = vld [vmem:[%s1142 + $0xc8] sm:$0xf]
        %v1244 = vld [vmem:[%s1142 + $0xcc] sm:$0xff]
        %v1245 = vld [vmem:[%s1142 + $0xd4] sm:$0xf]
        %v1246 = vld [vmem:[%s1142 + $0xd8] sm:$0xff]
        %v1247 = vld [vmem:[%s1142 + $0xe0] sm:$0xf]
        %v1248 = vld [vmem:[%s1142 + $0xe4] sm:$0xff]
        %v1249 = vld [vmem:[%s1142 + $0xec] sm:$0xf]
        %v1250 = vld [vmem:[%s1142 + $0xf0] sm:$0xff]
        %v1251 = vld [vmem:[%s1142 + $0xf8] sm:$0xf]
        %v1252 = vld [vmem:[%s1142 + $0xfc] sm:$0xff]
        %v1253 = vld [vmem:[%s1142 + $0x104] sm:$0xf]
        %v1254 = vld [vmem:[%s1142 + $0x108] sm:$0xff]
        %v1255 = vld [vmem:[%s1142 + $0x110] sm:$0xf]
        %v1256 = vld [vmem:[%s1142 + $0x114] sm:$0xff]
        %v1257 = vld [vmem:[%s1142 + $0x11c] sm:$0xf]
        %v1258 = vld [vmem:[%s1142 + $0x120] sm:$0xff]
        %v1259 = vld [vmem:[%s1142 + $0x128] sm:$0xf]
        %v1260 = vld [vmem:[%s1142 + $0x12c] sm:$0xff]
        %v1261 = vld [vmem:[%s1142 + $0x134] sm:$0xf]
        %v1262 = vld [vmem:[%s1142 + $0x138] sm:$0xff]
        %v1263 = vld [vmem:[%s1142 + $0x140] sm:$0xf]
        %v1264 = vld [vmem:[%s1142 + $0x144] sm:$0xff]
        %v1265 = vld [vmem:[%s1142 + $0x14c] sm:$0xf]
        %v1266 = vld [vmem:[%s1142 + $0x150] sm:$0xff]
        %v1267 = vld [vmem:[%s1142 + $0x158] sm:$0xf]
        %v1268 = vld [vmem:[%s1142 + $0x15c] sm:$0xff]
        %v1269 = vld [vmem:[%s1142 + $0x164] sm:$0xf]
        %v1270 = vld [vmem:[%s1142 + $0x168] sm:$0xff]
        %v1271 = vld [vmem:[%s1142 + $0x170] sm:$0xf]
        %v1272 = vld [vmem:[%s1142 + $0x174] sm:$0xff]
        %v1273 = vld [vmem:[%s1142 + $0x17c] sm:$0xf]
        %v1274 = vld [vmem:[%s1142 + $0x180] sm:$0xff]
        %v1275 = vld [vmem:[%s1142 + $0x188] sm:$0xf]
        %v1276 = vld [vmem:[%s1142 + $0x18c] sm:$0xff]
        %v1277 = vld [vmem:[%s1142 + $0x194] sm:$0xf]
        %v1278 = vld [vmem:[%s1142 + $0x198] sm:$0xff]
        %v1279 = vld [vmem:[%s1142 + $0x1a0] sm:$0xf]
        %v1280 = vld [vmem:[%s1142 + $0x1a4] sm:$0xff]
        %v1281 = vld [vmem:[%s1142 + $0x1ac] sm:$0xf]
        %v1282 = vld [vmem:[%s1142 + $0x1b0] sm:$0xff]
        %v1283 = vld [vmem:[%s1142 + $0x1b8] sm:$0xf]
        %v1284 = vld [vmem:[%s1142 + $0x1bc] sm:$0xff]
        %v1285 = vld [vmem:[%s1142 + $0x1c4] sm:$0xf]
        %v1286 = vld [vmem:[%s1142 + $0x1c8] sm:$0xff]
        %v1287 = vld [vmem:[%s1142 + $0x1d0] sm:$0xf]
        %v1288 = vld [vmem:[%s1142 + $0x1d4] sm:$0xff]
        %v1289 = vld [vmem:[%s1142 + $0x1dc] sm:$0xf]
        %v1290 = vld [vmem:[%s1142 + $0x1e0] sm:$0xff]
        %v1291 = vld [vmem:[%s1142 + $0x1e8] sm:$0xf]
        %v1292 = vld [vmem:[%s1142 + $0x1ec] sm:$0xff]
        %v1293 = vld [vmem:[%s1142 + $0x1f4] sm:$0xf]
        %v1294 = vld [vmem:[%s1142 + $0x1f8] sm:$0xff]
        %v1295 = vld [vmem:[%s1142 + $0x200] sm:$0xf]
        %v1296 = vld [vmem:[%s1142 + $0x204] sm:$0xff]
        %v1297 = vld [vmem:[%s1142 + $0x20c] sm:$0xf]
        %v1298 = vld [vmem:[%s1142 + $0x210] sm:$0xff]
        %v1299 = vld [vmem:[%s1142 + $0x218] sm:$0xf]
        %v1300 = vld [vmem:[%s1142 + $0x21c] sm:$0xff]
        %v1301 = vld [vmem:[%s1142 + $0x224] sm:$0xf]
        %v1302 = vld [vmem:[%s1142 + $0x228] sm:$0xff]
        %v1303 = vld [vmem:[%s1142 + $0x230] sm:$0xf]
        %v1304 = vld [vmem:[%s1142 + $0x234] sm:$0xff]
        %v1305 = vld [vmem:[%s1142 + $0x23c] sm:$0xf]
        %v1306 = vld [vmem:[%s1142 + $0x240] sm:$0xff]
        %v1307 = vld [vmem:[%s1142 + $0x248] sm:$0xf]
        %v1308 = vld [vmem:[%s1142 + $0x24c] sm:$0xff]
        %v1309 = vld [vmem:[%s1142 + $0x254] sm:$0xf]
        %v1310 = vld [vmem:[%s1142 + $0x258] sm:$0xff]
        %v1311 = vld [vmem:[%s1142 + $0x260] sm:$0xf]
        %v1312 = vld [vmem:[%s1142 + $0x264] sm:$0xff]
        %v1313 = vld [vmem:[%s1142 + $0x26c] sm:$0xf]
        %v1314 = vld [vmem:[%s1142 + $0x270] sm:$0xff]
        %v1315 = vld [vmem:[%s1142 + $0x278] sm:$0xf]
        %v1316 = vld [vmem:[%s1142 + $0x27c] sm:$0xff]
        %v1317 = vld [vmem:[%s1142 + $0x284] sm:$0xf]
        %v1318 = vld [vmem:[%s1142 + $0x288] sm:$0xff]
        %v1319 = vld [vmem:[%s1142 + $0x290] sm:$0xf]
        %v1320 = vld [vmem:[%s1142 + $0x294] sm:$0xff]
        %v1321 = vld [vmem:[%s1142 + $0x29c] sm:$0xf]
        %v1322 = vld [vmem:[%s1142 + $0x2a0] sm:$0xff]
        %v1323 = vld [vmem:[%s1142 + $0x2a8] sm:$0xf]
        %v1324 = vld [vmem:[%s1142 + $0x2ac] sm:$0xff]
        %v1325 = vld [vmem:[%s1142 + $0x2b4] sm:$0xf]
        %v1326 = vld [vmem:[%s1142 + $0x2b8] sm:$0xff]
        %v1327 = vld [vmem:[%s1142 + $0x2c0] sm:$0xf]
        %v1328 = vld [vmem:[%s1142 + $0x2c4] sm:$0xff]
        %v1329 = vld [vmem:[%s1142 + $0x2cc] sm:$0xf]
        %v1330 = vld [vmem:[%s1142 + $0x2d0] sm:$0xff]
        %v1331 = vld [vmem:[%s1142 + $0x2d8] sm:$0xf]
        %v1332 = vld [vmem:[%s1142 + $0x2dc] sm:$0xff]
        %v1333 = vld [vmem:[%s1142 + $0x2e4] sm:$0xf]
        %v1334 = vld [vmem:[%s1142 + $0x2e8] sm:$0xff]
        %v1335 = vld [vmem:[%s1142 + $0x2f0] sm:$0xf]
        %v1336 = vld [vmem:[%s1142 + $0x2f4] sm:$0xff]
        %v1337 = vld [vmem:[%s1142 + $0x2fc] sm:$0xf]
        %v1338 = vld [vmem:[%s1142 + $0x300] sm:$0xff]
        %v1339 = vld [vmem:[%s1142 + $0x308] sm:$0xf]
        %v1340 = vld [vmem:[%s1142 + $0x30c] sm:$0xff]
        %v1341 = vld [vmem:[%s1142 + $0x314] sm:$0xf]
        %v1342 = vld [vmem:[%s1142 + $0x318] sm:$0xff]
        %v1343 = vld [vmem:[%s1142 + $0x320] sm:$0xf]
        %v1344 = vld [vmem:[%s1142 + $0x324] sm:$0xff]
        %v1345 = vld [vmem:[%s1142 + $0x32c] sm:$0xf]
        %v1346 = vld [vmem:[%s1142 + $0x330] sm:$0xff]
        %v1347 = vld [vmem:[%s1142 + $0x338] sm:$0xf]
        %v1348 = vld [vmem:[%s1142 + $0x33c] sm:$0xff]
        %v1349 = vld [vmem:[%s1142 + $0x344] sm:$0xf]
        %v1350 = vld [vmem:[%s1142 + $0x348] sm:$0xff]
        %v1351 = vld [vmem:[%s1142 + $0x350] sm:$0xf]
        %v1352 = vld [vmem:[%s1142 + $0x354] sm:$0xff]
        %v1353 = vld [vmem:[%s1142 + $0x35c] sm:$0xf]
        %v1354 = vld [vmem:[%s1142 + $0x360] sm:$0xff]
        %v1355 = vld [vmem:[%s1142 + $0x368] sm:$0xf]
        %v1356 = vld [vmem:[%s1142 + $0x36c] sm:$0xff]
        %v1357 = vld [vmem:[%s1142 + $0x374] sm:$0xf]
        %v1358 = vld [vmem:[%s1142 + $0x378] sm:$0xff]
        %v1359 = vld [vmem:[%s1142 + $0x380] sm:$0xf]
        %v1360 = vld [vmem:[%s1142 + $0x384] sm:$0xff]
        %v1361 = vld [vmem:[%s1142 + $0x38c] sm:$0xf]
        %v1362 = vld [vmem:[%s1142 + $0x390] sm:$0xff]
        %v1363 = vld [vmem:[%s1142 + $0x398] sm:$0xf]
        %v1364 = vld [vmem:[%s1142 + $0x39c] sm:$0xff]
        %v1365 = vld [vmem:[%s1142 + $0x3a4] sm:$0xf]
        %v1366 = vld [vmem:[%s1142 + $0x3a8] sm:$0xff]
        %v1367 = vld [vmem:[%s1142 + $0x3b0] sm:$0xf]
        %v1368 = vld [vmem:[%s1142 + $0x3b4] sm:$0xff]
        %v1369 = vld [vmem:[%s1142 + $0x3bc] sm:$0xf]
        %v1370 = vld [vmem:[%s1142 + $0x3c0] sm:$0xff]
        %v1371 = vld [vmem:[%s1142 + $0x3c8] sm:$0xf]
        %v1372 = vld [vmem:[%s1142 + $0x3cc] sm:$0xff]
        %v1373 = vld [vmem:[%s1142 + $0x3d4] sm:$0xf]
        %v1374 = vld [vmem:[%s1142 + $0x3d8] sm:$0xff]
        %v1375 = vld [vmem:[%s1142 + $0x3e0] sm:$0xf]
        %v1376 = vld [vmem:[%s1142 + $0x3e4] sm:$0xff]
        %v1377 = vld [vmem:[%s1142 + $0x3ec] sm:$0xf]
        %v1378 = vld [vmem:[%s1142 + $0x3f0] sm:$0xff]
        %v1379 = vld [vmem:[%s1142 + $0x3f8] sm:$0xf]
        %v1380 = vld [vmem:[%s1142 + $0x3fc] sm:$0xff]
        %v1381 = vld [vmem:[%s1142 + $0x404] sm:$0xf]
        %v1382 = vld [vmem:[%s1142 + $0x408] sm:$0xff]
        %v1383 = vld [vmem:[%s1142 + $0x410] sm:$0xf]
        %v1384 = vld [vmem:[%s1142 + $0x414] sm:$0xff]
        %v1385 = vld [vmem:[%s1142 + $0x41c] sm:$0xf]
        %v1386 = vld [vmem:[%s1142 + $0x420] sm:$0xff]
        %v1387 = vld [vmem:[%s1142 + $0x428] sm:$0xf]
        %v1388 = vld [vmem:[%s1142 + $0x42c] sm:$0xff]
        %v1389 = vld [vmem:[%s1142 + $0x434] sm:$0xf]
        %v1390 = vld [vmem:[%s1142 + $0x438] sm:$0xff]
        %v1391 = vld [vmem:[%s1142 + $0x440] sm:$0xf]
        %v1392 = vld [vmem:[%s1142 + $0x444] sm:$0xff]
        %v1393 = vld [vmem:[%s1142 + $0x44c] sm:$0xf]
        %v1394 = vld [vmem:[%s1142 + $0x450] sm:$0xff]
        %v1395 = vld [vmem:[%s1142 + $0x458] sm:$0xf]
        %v1396 = vld [vmem:[%s1142 + $0x45c] sm:$0xff]
        %v1397 = vld [vmem:[%s1142 + $0x464] sm:$0xf]
        %v1398 = vld [vmem:[%s1142 + $0x468] sm:$0xff]
        %v1399 = vld [vmem:[%s1142 + $0x470] sm:$0xf]
        %v1400 = vld [vmem:[%s1142 + $0x474] sm:$0xff]
        %v1401 = vld [vmem:[%s1142 + $0x47c] sm:$0xf]
        %v1402 = vld [vmem:[%s1142 + $0x480] sm:$0xff]
        %v1403 = vld [vmem:[%s1142 + $0x488] sm:$0xf]
        %v1404 = vld [vmem:[%s1142 + $0x48c] sm:$0xff]
        %v1405 = vld [vmem:[%s1142 + $0x494] sm:$0xf]
        %v1406 = vld [vmem:[%s1142 + $0x498] sm:$0xff]
        %v1407 = vld [vmem:[%s1142 + $0x4a0] sm:$0xf]
        %v1408 = vld [vmem:[%s1142 + $0x4a4] sm:$0xff]
        %v1409 = vld [vmem:[%s1142 + $0x4ac] sm:$0xf]
        %v1410 = vld [vmem:[%s1142 + $0x4b0] sm:$0xff]
        %v1411 = vld [vmem:[%s1142 + $0x4b8] sm:$0xf]
        %v1412 = vld [vmem:[%s1142 + $0x4bc] sm:$0xff]
        %v1413 = vld [vmem:[%s1142 + $0x4c4] sm:$0xf]
        %v1414 = vld [vmem:[%s1142 + $0x4c8] sm:$0xff]
        %v1415 = vld [vmem:[%s1142 + $0x4d0] sm:$0xf]
        %v1416 = vld [vmem:[%s1142 + $0x4d4] sm:$0xff]
        %v1417 = vld [vmem:[%s1142 + $0x4dc] sm:$0xf]
        %v1418 = vld [vmem:[%s1142 + $0x4e0] sm:$0xff]
        %v1419 = vld [vmem:[%s1142 + $0x4e8] sm:$0xf]
        %v1420 = vld [vmem:[%s1142 + $0x4ec] sm:$0xff]
        %v1421 = vld [vmem:[%s1142 + $0x4f4] sm:$0xf]
        %v1422 = vld [vmem:[%s1142 + $0x4f8] sm:$0xff]
        %v1423 = vld [vmem:[%s1142 + $0x500] sm:$0xf]
        %v1424 = vld [vmem:[%s1142 + $0x504] sm:$0xff]
        %v1425 = vld [vmem:[%s1142 + $0x50c] sm:$0xf]
        %v1426 = vld [vmem:[%s1142 + $0x510] sm:$0xff]
        %v1427 = vld [vmem:[%s1142 + $0x518] sm:$0xf]
        %v1428 = vld [vmem:[%s1142 + $0x51c] sm:$0xff]
        %v1429 = vld [vmem:[%s1142 + $0x524] sm:$0xf]
        %v1430 = vld [vmem:[%s1142 + $0x528] sm:$0xff]
        %v1431 = vld [vmem:[%s1142 + $0x530] sm:$0xf]
        %v1432 = vld [vmem:[%s1142 + $0x534] sm:$0xff]
        %v1433 = vld [vmem:[%s1142 + $0x53c] sm:$0xf]
        %v1434 = vld [vmem:[%s1142 + $0x540] sm:$0xff]
        %v1435 = vld [vmem:[%s1142 + $0x548] sm:$0xf]
        %v1436 = vld [vmem:[%s1142 + $0x54c] sm:$0xff]
        %v1437 = vld [vmem:[%s1142 + $0x554] sm:$0xf]
        %v1438 = vld [vmem:[%s1142 + $0x558] sm:$0xff]
        %v1439 = vld [vmem:[%s1142 + $0x560] sm:$0xf]
        %v1440 = vld [vmem:[%s1142 + $0x564] sm:$0xff]
        %v1441 = vld [vmem:[%s1142 + $0x56c] sm:$0xf]
        %v1442 = vld [vmem:[%s1142 + $0x570] sm:$0xff]
        %v1443 = vld [vmem:[%s1142 + $0x578] sm:$0xf]
        %v1444 = vld [vmem:[%s1142 + $0x57c] sm:$0xff]
        %v1445 = vld [vmem:[%s1142 + $0x584] sm:$0xf]
        %v1446 = vld [vmem:[%s1142 + $0x588] sm:$0xff]
        %v1447 = vld [vmem:[%s1142 + $0x590] sm:$0xf]
        %v1448 = vld [vmem:[%s1142 + $0x594] sm:$0xff]
        %v1449 = vld [vmem:[%s1142 + $0x59c] sm:$0xf]
        %v1450 = vld [vmem:[%s1142 + $0x5a0] sm:$0xff]
        %v1451 = vld [vmem:[%s1142 + $0x5a8] sm:$0xf]
        %v1452 = vld [vmem:[%s1142 + $0x5ac] sm:$0xff]
        %v1453 = vld [vmem:[%s1142 + $0x5b4] sm:$0xf]
        %v1454 = vld [vmem:[%s1142 + $0x5b8] sm:$0xff]
        %v1455 = vld [vmem:[%s1142 + $0x5c0] sm:$0xf]
        %v1456 = vld [vmem:[%s1142 + $0x5c4] sm:$0xff]
        %v1457 = vld [vmem:[%s1142 + $0x5cc] sm:$0xf]
        %v1458 = vld [vmem:[%s1142 + $0x5d0] sm:$0xff]
        %v1459 = vld [vmem:[%s1142 + $0x5d8] sm:$0xf]
        %v1460 = vld [vmem:[%s1142 + $0x5dc] sm:$0xff]
        %v1461 = vld [vmem:[%s1142 + $0x5e4] sm:$0xf]
        %v1462 = vld [vmem:[%s1142 + $0x5e8] sm:$0xff]
        %v1463 = vld [vmem:[%s1142 + $0x5f0] sm:$0xf]
        %v1464 = vld [vmem:[%s1142 + $0x5f4] sm:$0xff]
        %v1465 = vld [vmem:[%s1142 + $0x5fc] sm:$0xf]
        %v1466 = vld [vmem:[%s1142 + $0x600] sm:$0xff]
        %v1467 = vld [vmem:[%s1142 + $0x608] sm:$0xf]
        %v1468 = vld [vmem:[%s1142 + $0x60c] sm:$0xff]
        %v1469 = vld [vmem:[%s1142 + $0x614] sm:$0xf]
        %v1470 = vld [vmem:[%s1142 + $0x618] sm:$0xff]
        %v1471 = vld [vmem:[%s1142 + $0x620] sm:$0xf]
        %v1472 = vld [vmem:[%s1142 + $0x624] sm:$0xff]
        %v1473 = vld [vmem:[%s1142 + $0x62c] sm:$0xf]
        %v1474 = vld [vmem:[%s1142 + $0x630] sm:$0xff]
        %v1475 = vld [vmem:[%s1142 + $0x638] sm:$0xf]
        %v1476 = vld [vmem:[%s1142 + $0x63c] sm:$0xff]
        %v1477 = vld [vmem:[%s1142 + $0x644] sm:$0xf]
        %v1478 = vld [vmem:[%s1142 + $0x648] sm:$0xff]
        %v1479 = vld [vmem:[%s1142 + $0x650] sm:$0xf]
        %v1480 = vld [vmem:[%s1142 + $0x654] sm:$0xff]
        %v1481 = vld [vmem:[%s1142 + $0x65c] sm:$0xf]
        %v1482 = vld [vmem:[%s1142 + $0x660] sm:$0xff]
        %v1483 = vld [vmem:[%s1142 + $0x668] sm:$0xf]
        %v1484 = vld [vmem:[%s1142 + $0x66c] sm:$0xff]
        %v1485 = vld [vmem:[%s1142 + $0x674] sm:$0xf]
        %v1486 = vld [vmem:[%s1142 + $0x678] sm:$0xff]
        %v1487 = vld [vmem:[%s1142 + $0x680] sm:$0xf]
        %v1488 = vld [vmem:[%s1142 + $0x684] sm:$0xff]
        %v1489 = vld [vmem:[%s1142 + $0x68c] sm:$0xf]
        %v1490 = vld [vmem:[%s1142 + $0x690] sm:$0xff]
        %v1491 = vld [vmem:[%s1142 + $0x698] sm:$0xf]
        %v1492 = vld [vmem:[%s1142 + $0x69c] sm:$0xff]
        %v1493 = vld [vmem:[%s1142 + $0x6a4] sm:$0xf]
        %v1494 = vld [vmem:[%s1142 + $0x6a8] sm:$0xff]
        %v1495 = vld [vmem:[%s1142 + $0x6b0] sm:$0xf]
        %v1496 = vld [vmem:[%s1142 + $0x6b4] sm:$0xff]
        %v1497 = vld [vmem:[%s1142 + $0x6bc] sm:$0xf]
        %v1498 = vld [vmem:[%s1142 + $0x6c0] sm:$0xff]
        %v1499 = vld [vmem:[%s1142 + $0x6c8] sm:$0xf]
        %v1500 = vld [vmem:[%s1142 + $0x6cc] sm:$0xff]
        %v1501 = vld [vmem:[%s1142 + $0x6d4] sm:$0xf]
        %v1502 = vld [vmem:[%s1142 + $0x6d8] sm:$0xff]
        %v1503 = vld [vmem:[%s1142 + $0x6e0] sm:$0xf]
        %v1504 = vld [vmem:[%s1142 + $0x6e4] sm:$0xff]
        %v1505 = vld [vmem:[%s1142 + $0x6ec] sm:$0xf]
        %v1506 = vld [vmem:[%s1142 + $0x6f0] sm:$0xff]
        %v1507 = vld [vmem:[%s1142 + $0x6f8] sm:$0xf]
        %v1508 = vld [vmem:[%s1142 + $0x6fc] sm:$0xff]
        %v1509 = vld [vmem:[%s1142 + $0x704] sm:$0xf]
        %v1510 = vld [vmem:[%s1142 + $0x708] sm:$0xff]
        %v1511 = vld [vmem:[%s1142 + $0x710] sm:$0xf]
        %v1512 = vld [vmem:[%s1142 + $0x714] sm:$0xff]
        %v1513 = vld [vmem:[%s1142 + $0x71c] sm:$0xf]
        %v1514 = vld [vmem:[%s1142 + $0x720] sm:$0xff]
        %v1515 = vld [vmem:[%s1142 + $0x728] sm:$0xf]
        %v1516 = vld [vmem:[%s1142 + $0x72c] sm:$0xff]
        %v1517 = vld [vmem:[%s1142 + $0x734] sm:$0xf]
        %v1518 = vld [vmem:[%s1142 + $0x738] sm:$0xff]
        %v1519 = vld [vmem:[%s1142 + $0x740] sm:$0xf]
        %v1520 = vld [vmem:[%s1142 + $0x744] sm:$0xff]
        %v1521 = vld [vmem:[%s1142 + $0x74c] sm:$0xf]
        %v1522 = vld [vmem:[%s1142 + $0x750] sm:$0xff]
        %v1523 = vld [vmem:[%s1142 + $0x758] sm:$0xf]
        %v1524 = vld [vmem:[%s1142 + $0x75c] sm:$0xff]
        %v1525 = vld [vmem:[%s1142 + $0x764] sm:$0xf]
        %v1526 = vld [vmem:[%s1142 + $0x768] sm:$0xff]
        %v1527 = vld [vmem:[%s1142 + $0x770] sm:$0xf]
        %v1528 = vld [vmem:[%s1142 + $0x774] sm:$0xff]
        %v1529 = vld [vmem:[%s1142 + $0x77c] sm:$0xf]
        %v1530 = vld [vmem:[%s1142 + $0x780] sm:$0xff]
        %v1531 = vld [vmem:[%s1142 + $0x788] sm:$0xf]
        %v1532 = vld [vmem:[%s1142 + $0x78c] sm:$0xff]
        %v1533 = vld [vmem:[%s1142 + $0x794] sm:$0xf]
        %v1534 = vld [vmem:[%s1142 + $0x798] sm:$0xff]
        %v1535 = vld [vmem:[%s1142 + $0x7a0] sm:$0xf]
        %v1536 = vld [vmem:[%s1142 + $0x7a4] sm:$0xff]
        %v1537 = vld [vmem:[%s1142 + $0x7ac] sm:$0xf]
        %v1538 = vld [vmem:[%s1142 + $0x7b0] sm:$0xff]
        %v1539 = vld [vmem:[%s1142 + $0x7b8] sm:$0xf]
        %v1540 = vld [vmem:[%s1142 + $0x7bc] sm:$0xff]
        %v1541 = vld [vmem:[%s1142 + $0x7c4] sm:$0xf]
        %v1542 = vld [vmem:[%s1142 + $0x7c8] sm:$0xff]
        %v1543 = vld [vmem:[%s1142 + $0x7d0] sm:$0xf]
        %v1544 = vld [vmem:[%s1142 + $0x7d4] sm:$0xff]
        %v1545 = vld [vmem:[%s1142 + $0x7dc] sm:$0xf]
        %v1546 = vld [vmem:[%s1142 + $0x7e0] sm:$0xff]
        %v1547 = vld [vmem:[%s1142 + $0x7e8] sm:$0xf]
        %v1548 = vld [vmem:[%s1142 + $0x7ec] sm:$0xff]
        %v1549 = vld [vmem:[%s1142 + $0x7f4] sm:$0xf]
        %v1550 = vld [vmem:[%s1142 + $0x7f8] sm:$0xff]
        %v1551 = vld [vmem:[%s1142 + $0x800] sm:$0xf]
        %v1552 = vld [vmem:[%s1142 + $0x804] sm:$0xff]
        %v1553 = vld [vmem:[%s1142 + $0x80c] sm:$0xf]
        %v1554 = vld [vmem:[%s1142 + $0x810] sm:$0xff]
        %v1555 = vld [vmem:[%s1142 + $0x818] sm:$0xf]
        %v1556 = vld [vmem:[%s1142 + $0x81c] sm:$0xff]
        %v1557 = vld [vmem:[%s1142 + $0x824] sm:$0xf]
        %v1558 = vld [vmem:[%s1142 + $0x828] sm:$0xff]
        %v1559 = vld [vmem:[%s1142 + $0x830] sm:$0xf]
        %v1560 = vld [vmem:[%s1142 + $0x834] sm:$0xff]
        %v1561 = vld [vmem:[%s1142 + $0x83c] sm:$0xf]
        %v1562 = vld [vmem:[%s1142 + $0x840] sm:$0xff]
        %v1563 = vld [vmem:[%s1142 + $0x848] sm:$0xf]
        %v1564 = vld [vmem:[%s1142 + $0x84c] sm:$0xff]
        %v1565 = vld [vmem:[%s1142 + $0x854] sm:$0xf]
        %v1566 = vld [vmem:[%s1142 + $0x858] sm:$0xff]
        %v1567 = vld [vmem:[%s1142 + $0x860] sm:$0xf]
        %v1568 = vld [vmem:[%s1142 + $0x864] sm:$0xff]
        %v1569 = vld [vmem:[%s1142 + $0x86c] sm:$0xf]
        %v1570 = vld [vmem:[%s1142 + $0x870] sm:$0xff]
        %v1571 = vld [vmem:[%s1142 + $0x878] sm:$0xf]
        %v1572 = vld [vmem:[%s1142 + $0x87c] sm:$0xff]
        %v1573 = vld [vmem:[%s1142 + $0x884] sm:$0xf]
        %v1574 = vld [vmem:[%s1142 + $0x888] sm:$0xff]
        %v1575 = vld [vmem:[%s1142 + $0x890] sm:$0xf]
        %v1576 = vld [vmem:[%s1142 + $0x894] sm:$0xff]
        %v1577 = vld [vmem:[%s1142 + $0x89c] sm:$0xf]
        %v1578 = vld [vmem:[%s1142 + $0x8a0] sm:$0xff]
        %v1579 = vld [vmem:[%s1142 + $0x8a8] sm:$0xf]
        %v1580 = vld [vmem:[%s1142 + $0x8ac] sm:$0xff]
        %v1581 = vld [vmem:[%s1142 + $0x8b4] sm:$0xf]
        %v1582 = vld [vmem:[%s1142 + $0x8b8] sm:$0xff]
        %v1583 = vld [vmem:[%s1142 + $0x8c0] sm:$0xf]
        %v1584 = vld [vmem:[%s1142 + $0x8c4] sm:$0xff]
        %v1585 = vld [vmem:[%s1142 + $0x8cc] sm:$0xf]
        %v1586 = vld [vmem:[%s1142 + $0x8d0] sm:$0xff]
        %v1587 = vld [vmem:[%s1142 + $0x8d8] sm:$0xf]
        %v1588 = vld [vmem:[%s1142 + $0x8dc] sm:$0xff]
        %v1589 = vld [vmem:[%s1142 + $0x8e4] sm:$0xf]
        %v1590 = vld [vmem:[%s1142 + $0x8e8] sm:$0xff]
        %v1591 = vld [vmem:[%s1142 + $0x8f0] sm:$0xf]
        %v1592 = vld [vmem:[%s1142 + $0x8f4] sm:$0xff]
        %v1593 = vld [vmem:[%s1142 + $0x8fc] sm:$0xf]
        %v1594 = vld [vmem:[%s1142 + $0x900] sm:$0xff]
        %v1595 = vld [vmem:[%s1142 + $0x908] sm:$0xf]
        %v1596 = vld [vmem:[%s1142 + $0x90c] sm:$0xff]
        %v1597 = vld [vmem:[%s1142 + $0x914] sm:$0xf]
        %v1598 = vld [vmem:[%s1142 + $0x918] sm:$0xff]
        %v1599 = vld [vmem:[%s1142 + $0x920] sm:$0xf]
        %v1600 = vld [vmem:[%s1142 + $0x924] sm:$0xff]
        %v1601 = vld [vmem:[%s1142 + $0x92c] sm:$0xf]
        %v1602 = vld [vmem:[%s1142 + $0x930] sm:$0xff]
        %v1603 = vld [vmem:[%s1142 + $0x938] sm:$0xf]
        %v1604 = vld [vmem:[%s1142 + $0x93c] sm:$0xff]
        %v1605 = vld [vmem:[%s1142 + $0x944] sm:$0xf]
        %v1606 = vld [vmem:[%s1142 + $0x948] sm:$0xff]
        %v1607 = vld [vmem:[%s1142 + $0x950] sm:$0xf]
        %v1608 = vld [vmem:[%s1142 + $0x954] sm:$0xff]
        %v1609 = vld [vmem:[%s1142 + $0x95c] sm:$0xf]
        %v1610 = vld [vmem:[%s1142 + $0x960] sm:$0xff]
        %v1611 = vld [vmem:[%s1142 + $0x968] sm:$0xf]
        %v1612 = vld [vmem:[%s1142 + $0x96c] sm:$0xff]
        %v1613 = vld [vmem:[%s1142 + $0x974] sm:$0xf]
        %v1614 = vld [vmem:[%s1142 + $0x978] sm:$0xff]
        %v1615 = vld [vmem:[%s1142 + $0x980] sm:$0xf]
        %v1616 = vld [vmem:[%s1142 + $0x984] sm:$0xff]
        %v1617 = vld [vmem:[%s1142 + $0x98c] sm:$0xf]
        %v1618 = vld [vmem:[%s1142 + $0x990] sm:$0xff]
        %v1619 = vld [vmem:[%s1142 + $0x998] sm:$0xf]
        %v1620 = vld [vmem:[%s1142 + $0x99c] sm:$0xff]
        %v1621 = vld [vmem:[%s1142 + $0x9a4] sm:$0xf]
        %v1622 = vld [vmem:[%s1142 + $0x9a8] sm:$0xff]
        %v1623 = vld [vmem:[%s1142 + $0x9b0] sm:$0xf]
        %v1624 = vld [vmem:[%s1142 + $0x9b4] sm:$0xff]
        %v1625 = vld [vmem:[%s1142 + $0x9bc] sm:$0xf]
        %v1626 = vld [vmem:[%s1142 + $0x9c0] sm:$0xff]
        %v1627 = vld [vmem:[%s1142 + $0x9c8] sm:$0xf]
        %v1628 = vld [vmem:[%s1142 + $0x9cc] sm:$0xff]
        %v1629 = vld [vmem:[%s1142 + $0x9d4] sm:$0xf]
        %v1630 = vld [vmem:[%s1142 + $0x9d8] sm:$0xff]
        %v1631 = vld [vmem:[%s1142 + $0x9e0] sm:$0xf]
        %v1632 = vld [vmem:[%s1142 + $0x9e4] sm:$0xff]
        %v1633 = vld [vmem:[%s1142 + $0x9ec] sm:$0xf]
        %v1634 = vld [vmem:[%s1142 + $0x9f0] sm:$0xff]
        %v1635 = vld [vmem:[%s1142 + $0x9f8] sm:$0xf]
        %v1636 = vld [vmem:[%s1142 + $0x9fc] sm:$0xff]
        %v1637 = vld [vmem:[%s1142 + $0xa04] sm:$0xf]
        %v1638 = vld [vmem:[%s1142 + $0xa08] sm:$0xff]
        %v1639 = vld [vmem:[%s1142 + $0xa10] sm:$0xf]
        %v1640 = vld [vmem:[%s1142 + $0xa14] sm:$0xff]
        %v1641 = vld [vmem:[%s1142 + $0xa1c] sm:$0xf]
        %v1642 = vld [vmem:[%s1142 + $0xa20] sm:$0xff]
        %v1643 = vld [vmem:[%s1142 + $0xa28] sm:$0xf]
        %v1644 = vld [vmem:[%s1142 + $0xa2c] sm:$0xff]
        %v1645 = vld [vmem:[%s1142 + $0xa34] sm:$0xf]
        %v1646 = vld [vmem:[%s1142 + $0xa38] sm:$0xff]
        %v1647 = vld [vmem:[%s1142 + $0xa40] sm:$0xf]
        %v1648 = vld [vmem:[%s1142 + $0xa44] sm:$0xff]
        %v1649 = vld [vmem:[%s1142 + $0xa4c] sm:$0xf]
        %v1650 = vld [vmem:[%s1142 + $0xa50] sm:$0xff]
        %v1651 = vld [vmem:[%s1142 + $0xa58] sm:$0xf]
        %v1652 = vld [vmem:[%s1142 + $0xa5c] sm:$0xff]
        %v1653 = vld [vmem:[%s1142 + $0xa64] sm:$0xf]
        %v1654 = vld [vmem:[%s1142 + $0xa68] sm:$0xff]
        %v1655 = vld [vmem:[%s1142 + $0xa70] sm:$0xf]
        %v1656 = vld [vmem:[%s1142 + $0xa74] sm:$0xff]
        %v1657 = vld [vmem:[%s1142 + $0xa7c] sm:$0xf]
        %v1660 = vcombine.high %v1208, %v1208
        %v1662 = vunpack.c.l.s4 1966171168
        %v1663 = vunpack.c.0.s8 %v1662
        %v1664 = vlaneseq
        %v1665 = vshrl.u32 %v1664, 7
        %v1666 = vsub.s32 %v1663, %v1665
        %v1667 = vrot.slane %v1208, %v1666
        %v1669 = vunpack.c.l.s4 1966171168
        %v1670 = vunpack.c.0.s8 %v1669
        %v1671 = vlaneseq
        %v1672 = vshrl.u32 %v1671, 7
        %v1673 = vsub.s32 %v1670, %v1672
        %v1674 = vrot.slane %v1660, %v1673
        %v1675 = vcombine.high %v1667, %v1667
        %v1676 = vcombine.high %v1674, %v1674
        %v1678 = vunpack.c.l.s4 1966171168
        %v1679 = vunpack.c.0.s8 %v1678
        %v1680 = vlaneseq
        %v1681 = vshrl.u32 %v1680, 7
        %v1682 = vsub.s32 %v1679, %v1681
        %v1683 = vrot.slane %v1667, %v1682
        %v1685 = vunpack.c.l.s4 1966171168
        %v1686 = vunpack.c.0.s8 %v1685
        %v1687 = vlaneseq
        %v1688 = vshrl.u32 %v1687, 7
        %v1689 = vsub.s32 %v1686, %v1688
        %v1690 = vrot.slane %v1674, %v1689
        %v1692 = vunpack.c.l.s4 1966171168
        %v1693 = vunpack.c.0.s8 %v1692
        %v1694 = vlaneseq
        %v1695 = vshrl.u32 %v1694, 7
        %v1696 = vsub.s32 %v1693, %v1695
        %v1697 = vrot.slane %v1675, %v1696
        %v1699 = vunpack.c.l.s4 1966171168
        %v1700 = vunpack.c.0.s8 %v1699
        %v1701 = vlaneseq
        %v1702 = vshrl.u32 %v1701, 7
        %v1703 = vsub.s32 %v1700, %v1702
        %v1704 = vrot.slane %v1676, %v1703
        %v1705 = vcombine.high %v1683, %v1683
        %v1706 = vcombine.high %v1690, %v1690
        %v1707 = vcombine.high %v1697, %v1697
        %v1708 = vcombine.high %v1704, %v1704
        %v1709 = vcombine.high %v1209, %v1209
        %v1711 = vunpack.c.l.s4 1966171168
        %v1712 = vunpack.c.0.s8 %v1711
        %v1713 = vlaneseq
        %v1714 = vshrl.u32 %v1713, 7
        %v1715 = vsub.s32 %v1712, %v1714
        %v1716 = vrot.slane %v1209, %v1715
        %v1718 = vunpack.c.l.s4 1966171168
        %v1719 = vunpack.c.0.s8 %v1718
        %v1720 = vlaneseq
        %v1721 = vshrl.u32 %v1720, 7
        %v1722 = vsub.s32 %v1719, %v1721
        %v1723 = vrot.slane %v1709, %v1722
        %v1724 = vcombine.high %v1716, %v1716
        %v1725 = vcombine.high %v1723, %v1723
        %v1727 = vunpack.c.l.s4 1966171168
        %v1728 = vunpack.c.0.s8 %v1727
        %v1729 = vlaneseq
        %v1730 = vshrl.u32 %v1729, 7
        %v1731 = vsub.s32 %v1728, %v1730
        %v1732 = vrot.slane %v1716, %v1731
        %v1734 = vunpack.c.l.s4 1966171168
        %v1735 = vunpack.c.0.s8 %v1734
        %v1736 = vlaneseq
        %v1737 = vshrl.u32 %v1736, 7
        %v1738 = vsub.s32 %v1735, %v1737
        %v1739 = vrot.slane %v1723, %v1738
        %v1741 = vunpack.c.l.s4 1966171168
        %v1742 = vunpack.c.0.s8 %v1741
        %v1743 = vlaneseq
        %v1744 = vshrl.u32 %v1743, 7
        %v1745 = vsub.s32 %v1742, %v1744
        %v1746 = vrot.slane %v1724, %v1745
        %v1748 = vunpack.c.l.s4 1966171168
        %v1749 = vunpack.c.0.s8 %v1748
        %v1750 = vlaneseq
        %v1751 = vshrl.u32 %v1750, 7
        %v1752 = vsub.s32 %v1749, %v1751
        %v1753 = vrot.slane %v1725, %v1752
        %v1754 = vcombine.high %v1732, %v1732
        %v1755 = vcombine.high %v1746, %v1746
        %v2218 = vunpack.c.l.b16 %v1210
        %v2219 = vunpack.c.h.b16 %v1210
        %v2220 = vunpack.c.l.b16 %v1211
        %v2221 = vunpack.c.l.b16 %v1212
        %v2222 = vunpack.c.h.b16 %v1212
        %v2223 = vunpack.c.l.b16 %v1213
        %v2224 = vunpack.c.l.b16 %v1214
        %v2225 = vunpack.c.h.b16 %v1214
        %v2226 = vunpack.c.l.b16 %v1215
        %v2227 = vunpack.c.l.b16 %v1216
        %v2228 = vunpack.c.h.b16 %v1216
        %v2229 = vunpack.c.l.b16 %v1217
        %v2230 = vunpack.c.l.b16 %v1218
        %v2231 = vunpack.c.h.b16 %v1218
        %v2232 = vunpack.c.l.b16 %v1219
        %v2233 = vunpack.c.l.b16 %v1220
        %v2234 = vunpack.c.h.b16 %v1220
        %v2235 = vunpack.c.l.b16 %v1221
        %v2236 = vunpack.c.l.b16 %v1222
        %v2237 = vunpack.c.h.b16 %v1222
        %v2238 = vunpack.c.l.b16 %v1223
        %v2239 = vunpack.c.l.b16 %v1224
        %v2240 = vunpack.c.h.b16 %v1224
        %v2241 = vunpack.c.l.b16 %v1225
        %v2242 = vunpack.c.l.b16 %v1226
        %v2243 = vunpack.c.h.b16 %v1226
        %v2244 = vunpack.c.l.b16 %v1227
        %v2245 = vunpack.c.l.b16 %v1228
        %v2246 = vunpack.c.h.b16 %v1228
        %v2247 = vunpack.c.l.b16 %v1229
        %v2248 = vunpack.c.l.b16 %v1230
        %v2249 = vunpack.c.h.b16 %v1230
        %v2250 = vunpack.c.l.b16 %v1231
        %v2251 = vunpack.c.l.b16 %v1232
        %v2252 = vunpack.c.h.b16 %v1232
        %v2253 = vunpack.c.l.b16 %v1233
        %v2254 = vunpack.c.l.b16 %v1234
        %v2255 = vunpack.c.h.b16 %v1234
        %v2256 = vunpack.c.l.b16 %v1235
        %v2257 = vunpack.c.l.b16 %v1236
        %v2258 = vunpack.c.h.b16 %v1236
        %v2259 = vunpack.c.l.b16 %v1237
        %v2260 = vunpack.c.l.b16 %v1238
        %v2261 = vunpack.c.h.b16 %v1238
        %v2262 = vunpack.c.l.b16 %v1239
        %v2263 = vunpack.c.l.b16 %v1240
        %v2264 = vunpack.c.h.b16 %v1240
        %v2265 = vunpack.c.l.b16 %v1241
        %v2266 = vunpack.c.l.b16 %v1242
        %v2267 = vunpack.c.h.b16 %v1242
        %v2268 = vunpack.c.l.b16 %v1243
        %v2269 = vunpack.c.l.b16 %v1244
        %v2270 = vunpack.c.h.b16 %v1244
        %v2271 = vunpack.c.l.b16 %v1245
        %v2272 = vunpack.c.l.b16 %v1246
        %v2273 = vunpack.c.h.b16 %v1246
        %v2274 = vunpack.c.l.b16 %v1247
        %v2275 = vunpack.c.l.b16 %v1248
        %v2276 = vunpack.c.h.b16 %v1248
        %v2277 = vunpack.c.l.b16 %v1249
        %v2278 = vunpack.c.l.b16 %v1250
        %v2279 = vunpack.c.h.b16 %v1250
        %v2280 = vunpack.c.l.b16 %v1251
        %v2281 = vunpack.c.l.b16 %v1252
        %v2282 = vunpack.c.h.b16 %v1252
        %v2283 = vunpack.c.l.b16 %v1253
        %v2284 = vunpack.c.l.b16 %v1254
        %v2285 = vunpack.c.h.b16 %v1254
        %v2286 = vunpack.c.l.b16 %v1255
        %v2287 = vunpack.c.l.b16 %v1256
        %v2288 = vunpack.c.h.b16 %v1256
        %v2289 = vunpack.c.l.b16 %v1257
        %v2290 = vunpack.c.l.b16 %v1258
        %v2291 = vunpack.c.h.b16 %v1258
        %v2292 = vunpack.c.l.b16 %v1259
        %v2293 = vunpack.c.l.b16 %v1260
        %v2294 = vunpack.c.h.b16 %v1260
        %v2295 = vunpack.c.l.b16 %v1261
        %v2296 = vunpack.c.l.b16 %v1262
        %v2297 = vunpack.c.h.b16 %v1262
        %v2298 = vunpack.c.l.b16 %v1263
        %v2299 = vunpack.c.l.b16 %v1264
        %v2300 = vunpack.c.h.b16 %v1264
        %v2301 = vunpack.c.l.b16 %v1265
        %v2302 = vunpack.c.l.b16 %v1266
        %v2303 = vunpack.c.h.b16 %v1266
        %v2304 = vunpack.c.l.b16 %v1267
        %v2305 = vunpack.c.l.b16 %v1268
        %v2306 = vunpack.c.h.b16 %v1268
        %v2307 = vunpack.c.l.b16 %v1269
        %v2308 = vunpack.c.l.b16 %v1270
        %v2309 = vunpack.c.h.b16 %v1270
        %v2310 = vunpack.c.l.b16 %v1271
        %v2311 = vunpack.c.l.b16 %v1272
        %v2312 = vunpack.c.h.b16 %v1272
        %v2313 = vunpack.c.l.b16 %v1273
        %v2314 = vunpack.c.l.b16 %v1274
        %v2315 = vunpack.c.h.b16 %v1274
        %v2316 = vunpack.c.l.b16 %v1275
        %v2317 = vunpack.c.l.b16 %v1276
        %v2318 = vunpack.c.h.b16 %v1276
        %v2319 = vunpack.c.l.b16 %v1277
        %v2320 = vunpack.c.l.b16 %v1278
        %v2321 = vunpack.c.h.b16 %v1278
        %v2322 = vunpack.c.l.b16 %v1279
        %v2323 = vunpack.c.l.b16 %v1280
        %v2324 = vunpack.c.h.b16 %v1280
        %v2325 = vunpack.c.l.b16 %v1281
        %v2326 = vunpack.c.l.b16 %v1282
        %v2327 = vunpack.c.h.b16 %v1282
        %v2328 = vunpack.c.l.b16 %v1283
        %v2329 = vunpack.c.l.b16 %v1284
        %v2330 = vunpack.c.h.b16 %v1284
        %v2331 = vunpack.c.l.b16 %v1285
        %v2332 = vunpack.c.l.b16 %v1286
        %v2333 = vunpack.c.h.b16 %v1286
        %v2334 = vunpack.c.l.b16 %v1287
        %v2335 = vunpack.c.l.b16 %v1288
        %v2336 = vunpack.c.h.b16 %v1288
        %v2337 = vunpack.c.l.b16 %v1289
        %v2338 = vunpack.c.l.b16 %v1290
        %v2339 = vunpack.c.h.b16 %v1290
        %v2340 = vunpack.c.l.b16 %v1291
        %v2341 = vunpack.c.l.b16 %v1292
        %v2342 = vunpack.c.h.b16 %v1292
        %v2343 = vunpack.c.l.b16 %v1293
        %v2344 = vunpack.c.l.b16 %v1294
        %v2345 = vunpack.c.h.b16 %v1294
        %v2346 = vunpack.c.l.b16 %v1295
        %v2347 = vunpack.c.l.b16 %v1296
        %v2348 = vunpack.c.h.b16 %v1296
        %v2349 = vunpack.c.l.b16 %v1297
        %v2350 = vunpack.c.l.b16 %v1298
        %v2351 = vunpack.c.h.b16 %v1298
        %v2352 = vunpack.c.l.b16 %v1299
        %v2353 = vunpack.c.l.b16 %v1300
        %v2354 = vunpack.c.h.b16 %v1300
        %v2355 = vunpack.c.l.b16 %v1301
        %v2356 = vunpack.c.l.b16 %v1302
        %v2357 = vunpack.c.h.b16 %v1302
        %v2358 = vunpack.c.l.b16 %v1303
        %v2359 = vunpack.c.l.b16 %v1304
        %v2360 = vunpack.c.h.b16 %v1304
        %v2361 = vunpack.c.l.b16 %v1305
        %v2362 = vunpack.c.l.b16 %v1306
        %v2363 = vunpack.c.h.b16 %v1306
        %v2364 = vunpack.c.l.b16 %v1307
        %v2365 = vunpack.c.l.b16 %v1308
        %v2366 = vunpack.c.h.b16 %v1308
        %v2367 = vunpack.c.l.b16 %v1309
        %v2368 = vunpack.c.l.b16 %v1310
        %v2369 = vunpack.c.h.b16 %v1310
        %v2370 = vunpack.c.l.b16 %v1311
        %v2371 = vunpack.c.l.b16 %v1312
        %v2372 = vunpack.c.h.b16 %v1312
        %v2373 = vunpack.c.l.b16 %v1313
        %v2374 = vunpack.c.l.b16 %v1314
        %v2375 = vunpack.c.h.b16 %v1314
        %v2376 = vunpack.c.l.b16 %v1315
        %v2377 = vunpack.c.l.b16 %v1316
        %v2378 = vunpack.c.h.b16 %v1316
        %v2379 = vunpack.c.l.b16 %v1317
        %v2380 = vunpack.c.l.b16 %v1318
        %v2381 = vunpack.c.h.b16 %v1318
        %v2382 = vunpack.c.l.b16 %v1319
        %v2383 = vunpack.c.l.b16 %v1320
        %v2384 = vunpack.c.h.b16 %v1320
        %v2385 = vunpack.c.l.b16 %v1321
        %v2386 = vunpack.c.l.b16 %v1322
        %v2387 = vunpack.c.h.b16 %v1322
        %v2388 = vunpack.c.l.b16 %v1323
        %v2389 = vunpack.c.l.b16 %v1324
        %v2390 = vunpack.c.h.b16 %v1324
        %v2391 = vunpack.c.l.b16 %v1325
        %v2392 = vunpack.c.l.b16 %v1326
        %v2393 = vunpack.c.h.b16 %v1326
        %v2394 = vunpack.c.l.b16 %v1327
        %v2395 = vunpack.c.l.b16 %v1328
        %v2396 = vunpack.c.h.b16 %v1328
        %v2397 = vunpack.c.l.b16 %v1329
        %v2398 = vunpack.c.l.b16 %v1330
        %v2399 = vunpack.c.h.b16 %v1330
        %v2400 = vunpack.c.l.b16 %v1331
        %v2401 = vunpack.c.l.b16 %v1332
        %v2402 = vunpack.c.h.b16 %v1332
        %v2403 = vunpack.c.l.b16 %v1333
        %v2404 = vunpack.c.l.b16 %v1334
        %v2405 = vunpack.c.h.b16 %v1334
        %v2406 = vunpack.c.l.b16 %v1335
        %v2407 = vunpack.c.l.b16 %v1336
        %v2408 = vunpack.c.h.b16 %v1336
        %v2409 = vunpack.c.l.b16 %v1337
        %v2410 = vunpack.c.l.b16 %v1338
        %v2411 = vunpack.c.h.b16 %v1338
        %v2412 = vunpack.c.l.b16 %v1339
        %v2413 = vunpack.c.l.b16 %v1340
        %v2414 = vunpack.c.h.b16 %v1340
        %v2415 = vunpack.c.l.b16 %v1341
        %v2416 = vunpack.c.l.b16 %v1342
        %v2417 = vunpack.c.h.b16 %v1342
        %v2418 = vunpack.c.l.b16 %v1343
        %v2419 = vunpack.c.l.b16 %v1344
        %v2420 = vunpack.c.h.b16 %v1344
        %v2421 = vunpack.c.l.b16 %v1345
        %v2422 = vunpack.c.l.b16 %v1346
        %v2423 = vunpack.c.h.b16 %v1346
        %v2424 = vunpack.c.l.b16 %v1347
        %v2425 = vunpack.c.l.b16 %v1348
        %v2426 = vunpack.c.h.b16 %v1348
        %v2427 = vunpack.c.l.b16 %v1349
        %v2428 = vunpack.c.l.b16 %v1350
        %v2429 = vunpack.c.h.b16 %v1350
        %v2430 = vunpack.c.l.b16 %v1351
        %v2431 = vunpack.c.l.b16 %v1352
        %v2432 = vunpack.c.h.b16 %v1352
        %v2433 = vunpack.c.l.b16 %v1353
        %v2434 = vunpack.c.l.b16 %v1354
        %v2435 = vunpack.c.h.b16 %v1354
        %v2436 = vunpack.c.l.b16 %v1355
        %v2437 = vunpack.c.l.b16 %v1356
        %v2438 = vunpack.c.h.b16 %v1356
        %v2439 = vunpack.c.l.b16 %v1357
        %v2440 = vunpack.c.l.b16 %v1358
        %v2441 = vunpack.c.h.b16 %v1358
        %v2442 = vunpack.c.l.b16 %v1359
        %v2443 = vunpack.c.l.b16 %v1360
        %v2444 = vunpack.c.h.b16 %v1360
        %v2445 = vunpack.c.l.b16 %v1361
        %v2446 = vunpack.c.l.b16 %v1362
        %v2447 = vunpack.c.h.b16 %v1362
        %v2448 = vunpack.c.l.b16 %v1363
        %v2449 = vunpack.c.l.b16 %v1364
        %v2450 = vunpack.c.h.b16 %v1364
        %v2451 = vunpack.c.l.b16 %v1365
        %v2452 = vunpack.c.l.b16 %v1366
        %v2453 = vunpack.c.h.b16 %v1366
        %v2454 = vunpack.c.l.b16 %v1367
        %v2455 = vunpack.c.l.b16 %v1368
        %v2456 = vunpack.c.h.b16 %v1368
        %v2457 = vunpack.c.l.b16 %v1369
        %v2458 = vunpack.c.l.b16 %v1370
        %v2459 = vunpack.c.h.b16 %v1370
        %v2460 = vunpack.c.l.b16 %v1371
        %v2461 = vunpack.c.l.b16 %v1372
        %v2462 = vunpack.c.h.b16 %v1372
        %v2463 = vunpack.c.l.b16 %v1373
        %v2464 = vunpack.c.l.b16 %v1374
        %v2465 = vunpack.c.h.b16 %v1374
        %v2466 = vunpack.c.l.b16 %v1375
        %v2467 = vunpack.c.l.b16 %v1376
        %v2468 = vunpack.c.h.b16 %v1376
        %v2469 = vunpack.c.l.b16 %v1377
        %v2470 = vunpack.c.l.b16 %v1378
        %v2471 = vunpack.c.h.b16 %v1378
        %v2472 = vunpack.c.l.b16 %v1379
        %v2473 = vunpack.c.l.b16 %v1380
        %v2474 = vunpack.c.h.b16 %v1380
        %v2475 = vunpack.c.l.b16 %v1381
        %v2476 = vunpack.c.l.b16 %v1382
        %v2477 = vunpack.c.h.b16 %v1382
        %v2478 = vunpack.c.l.b16 %v1383
        %v2479 = vunpack.c.l.b16 %v1384
        %v2480 = vunpack.c.h.b16 %v1384
        %v2481 = vunpack.c.l.b16 %v1385
        %v2482 = vunpack.c.l.b16 %v1386
        %v2483 = vunpack.c.h.b16 %v1386
        %v2484 = vunpack.c.l.b16 %v1387
        %v2485 = vunpack.c.l.b16 %v1388
        %v2486 = vunpack.c.h.b16 %v1388
        %v2487 = vunpack.c.l.b16 %v1389
        %v2488 = vunpack.c.l.b16 %v1390
        %v2489 = vunpack.c.h.b16 %v1390
        %v2490 = vunpack.c.l.b16 %v1391
        %v2491 = vunpack.c.l.b16 %v1392
        %v2492 = vunpack.c.h.b16 %v1392
        %v2493 = vunpack.c.l.b16 %v1393
        %v2494 = vunpack.c.l.b16 %v1394
        %v2495 = vunpack.c.h.b16 %v1394
        %v2496 = vunpack.c.l.b16 %v1395
        %v2497 = vunpack.c.l.b16 %v1396
        %v2498 = vunpack.c.h.b16 %v1396
        %v2499 = vunpack.c.l.b16 %v1397
        %v2500 = vunpack.c.l.b16 %v1398
        %v2501 = vunpack.c.h.b16 %v1398
        %v2502 = vunpack.c.l.b16 %v1399
        %v2503 = vunpack.c.l.b16 %v1400
        %v2504 = vunpack.c.h.b16 %v1400
        %v2505 = vunpack.c.l.b16 %v1401
        %v2506 = vunpack.c.l.b16 %v1402
        %v2507 = vunpack.c.h.b16 %v1402
        %v2508 = vunpack.c.l.b16 %v1403
        %v2509 = vunpack.c.l.b16 %v1404
        %v2510 = vunpack.c.h.b16 %v1404
        %v2511 = vunpack.c.l.b16 %v1405
        %v2512 = vunpack.c.l.b16 %v1406
        %v2513 = vunpack.c.h.b16 %v1406
        %v2514 = vunpack.c.l.b16 %v1407
        %v2515 = vunpack.c.l.b16 %v1408
        %v2516 = vunpack.c.h.b16 %v1408
        %v2517 = vunpack.c.l.b16 %v1409
        %v2518 = vunpack.c.l.b16 %v1410
        %v2519 = vunpack.c.h.b16 %v1410
        %v2520 = vunpack.c.l.b16 %v1411
        %v2521 = vunpack.c.l.b16 %v1412
        %v2522 = vunpack.c.h.b16 %v1412
        %v2523 = vunpack.c.l.b16 %v1413
        %v2524 = vunpack.c.l.b16 %v1414
        %v2525 = vunpack.c.h.b16 %v1414
        %v2526 = vunpack.c.l.b16 %v1415
        %v2527 = vunpack.c.l.b16 %v1416
        %v2528 = vunpack.c.h.b16 %v1416
        %v2529 = vunpack.c.l.b16 %v1417
        %v2530 = vunpack.c.l.b16 %v1418
        %v2531 = vunpack.c.h.b16 %v1418
        %v2532 = vunpack.c.l.b16 %v1419
        %v2533 = vunpack.c.l.b16 %v1420
        %v2534 = vunpack.c.h.b16 %v1420
        %v2535 = vunpack.c.l.b16 %v1421
        %v2536 = vunpack.c.l.b16 %v1422
        %v2537 = vunpack.c.h.b16 %v1422
        %v2538 = vunpack.c.l.b16 %v1423
        %v2539 = vunpack.c.l.b16 %v1424
        %v2540 = vunpack.c.h.b16 %v1424
        %v2541 = vunpack.c.l.b16 %v1425
        %v2542 = vunpack.c.l.b16 %v1426
        %v2543 = vunpack.c.h.b16 %v1426
        %v2544 = vunpack.c.l.b16 %v1427
        %v2545 = vunpack.c.l.b16 %v1428
        %v2546 = vunpack.c.h.b16 %v1428
        %v2547 = vunpack.c.l.b16 %v1429
        %v2548 = vunpack.c.l.b16 %v1430
        %v2549 = vunpack.c.h.b16 %v1430
        %v2550 = vunpack.c.l.b16 %v1431
        %v2551 = vunpack.c.l.b16 %v1432
        %v2552 = vunpack.c.h.b16 %v1432
        %v2553 = vunpack.c.l.b16 %v1433
        %v2554 = vunpack.c.l.b16 %v1434
        %v2555 = vunpack.c.h.b16 %v1434
        %v2556 = vunpack.c.l.b16 %v1435
        %v2557 = vunpack.c.l.b16 %v1436
        %v2558 = vunpack.c.h.b16 %v1436
        %v2559 = vunpack.c.l.b16 %v1437
        %v2560 = vunpack.c.l.b16 %v1438
        %v2561 = vunpack.c.h.b16 %v1438
        %v2562 = vunpack.c.l.b16 %v1439
        %v2563 = vunpack.c.l.b16 %v1440
        %v2564 = vunpack.c.h.b16 %v1440
        %v2565 = vunpack.c.l.b16 %v1441
        %v2566 = vunpack.c.l.b16 %v1442
        %v2567 = vunpack.c.h.b16 %v1442
        %v2568 = vunpack.c.l.b16 %v1443
        %v2569 = vunpack.c.l.b16 %v1444
        %v2570 = vunpack.c.h.b16 %v1444
        %v2571 = vunpack.c.l.b16 %v1445
        %v2572 = vunpack.c.l.b16 %v1446
        %v2573 = vunpack.c.h.b16 %v1446
        %v2574 = vunpack.c.l.b16 %v1447
        %v2575 = vunpack.c.l.b16 %v1448
        %v2576 = vunpack.c.h.b16 %v1448
        %v2577 = vunpack.c.l.b16 %v1449
        %v2578 = vunpack.c.l.b16 %v1450
        %v2579 = vunpack.c.h.b16 %v1450
        %v2580 = vunpack.c.l.b16 %v1451
        %v2581 = vunpack.c.l.b16 %v1452
        %v2582 = vunpack.c.h.b16 %v1452
        %v2583 = vunpack.c.l.b16 %v1453
        %v2584 = vunpack.c.l.b16 %v1454
        %v2585 = vunpack.c.h.b16 %v1454
        %v2586 = vunpack.c.l.b16 %v1455
        %v2587 = vunpack.c.l.b16 %v1456
        %v2588 = vunpack.c.h.b16 %v1456
        %v2589 = vunpack.c.l.b16 %v1457
        %v2590 = vunpack.c.l.b16 %v1458
        %v2591 = vunpack.c.h.b16 %v1458
        %v2592 = vunpack.c.l.b16 %v1459
        %v2593 = vunpack.c.l.b16 %v1460
        %v2594 = vunpack.c.h.b16 %v1460
        %v2595 = vunpack.c.l.b16 %v1461
        %v2596 = vunpack.c.l.b16 %v1462
        %v2597 = vunpack.c.h.b16 %v1462
        %v2598 = vunpack.c.l.b16 %v1463
        %v2599 = vunpack.c.l.b16 %v1464
        %v2600 = vunpack.c.h.b16 %v1464
        %v2601 = vunpack.c.l.b16 %v1465
        %v2602 = vunpack.c.l.b16 %v1466
        %v2603 = vunpack.c.h.b16 %v1466
        %v2604 = vunpack.c.l.b16 %v1467
        %v2605 = vunpack.c.l.b16 %v1468
        %v2606 = vunpack.c.h.b16 %v1468
        %v2607 = vunpack.c.l.b16 %v1469
        %v2608 = vunpack.c.l.b16 %v1470
        %v2609 = vunpack.c.h.b16 %v1470
        %v2610 = vunpack.c.l.b16 %v1471
        %v2611 = vunpack.c.l.b16 %v1472
        %v2612 = vunpack.c.h.b16 %v1472
        %v2613 = vunpack.c.l.b16 %v1473
        %v2614 = vunpack.c.l.b16 %v1474
        %v2615 = vunpack.c.h.b16 %v1474
        %v2616 = vunpack.c.l.b16 %v1475
        %v2617 = vunpack.c.l.b16 %v1476
        %v2618 = vunpack.c.h.b16 %v1476
        %v2619 = vunpack.c.l.b16 %v1477
        %v2620 = vunpack.c.l.b16 %v1478
        %v2621 = vunpack.c.h.b16 %v1478
        %v2622 = vunpack.c.l.b16 %v1479
        %v2623 = vunpack.c.l.b16 %v1480
        %v2624 = vunpack.c.h.b16 %v1480
        %v2625 = vunpack.c.l.b16 %v1481
        %v2626 = vunpack.c.l.b16 %v1482
        %v2627 = vunpack.c.h.b16 %v1482
        %v2628 = vunpack.c.l.b16 %v1483
        %v2629 = vunpack.c.l.b16 %v1484
        %v2630 = vunpack.c.h.b16 %v1484
        %v2631 = vunpack.c.l.b16 %v1485
        %v2632 = vunpack.c.l.b16 %v1486
        %v2633 = vunpack.c.h.b16 %v1486
        %v2634 = vunpack.c.l.b16 %v1487
        %v2635 = vunpack.c.l.b16 %v1488
        %v2636 = vunpack.c.h.b16 %v1488
        %v2637 = vunpack.c.l.b16 %v1489
        %v2638 = vunpack.c.l.b16 %v1490
        %v2639 = vunpack.c.h.b16 %v1490
        %v2640 = vunpack.c.l.b16 %v1491
        %v2641 = vunpack.c.l.b16 %v1492
        %v2642 = vunpack.c.h.b16 %v1492
        %v2643 = vunpack.c.l.b16 %v1493
        %v2644 = vunpack.c.l.b16 %v1494
        %v2645 = vunpack.c.h.b16 %v1494
        %v2646 = vunpack.c.l.b16 %v1495
        %v2647 = vunpack.c.l.b16 %v1496
        %v2648 = vunpack.c.h.b16 %v1496
        %v2649 = vunpack.c.l.b16 %v1497
        %v2650 = vunpack.c.l.b16 %v1498
        %v2651 = vunpack.c.h.b16 %v1498
        %v2652 = vunpack.c.l.b16 %v1499
        %v2653 = vunpack.c.l.b16 %v1500
        %v2654 = vunpack.c.h.b16 %v1500
        %v2655 = vunpack.c.l.b16 %v1501
        %v2656 = vunpack.c.l.b16 %v1502
        %v2657 = vunpack.c.h.b16 %v1502
        %v2658 = vunpack.c.l.b16 %v1503
        %v2659 = vunpack.c.l.b16 %v1504
        %v2660 = vunpack.c.h.b16 %v1504
        %v2661 = vunpack.c.l.b16 %v1505
        %v2662 = vunpack.c.l.b16 %v1506
        %v2663 = vunpack.c.h.b16 %v1506
        %v2664 = vunpack.c.l.b16 %v1507
        %v2665 = vunpack.c.l.b16 %v1508
        %v2666 = vunpack.c.h.b16 %v1508
        %v2667 = vunpack.c.l.b16 %v1509
        %v2668 = vunpack.c.l.b16 %v1510
        %v2669 = vunpack.c.h.b16 %v1510
        %v2670 = vunpack.c.l.b16 %v1511
        %v2671 = vunpack.c.l.b16 %v1512
        %v2672 = vunpack.c.h.b16 %v1512
        %v2673 = vunpack.c.l.b16 %v1513
        %v2674 = vunpack.c.l.b16 %v1514
        %v2675 = vunpack.c.h.b16 %v1514
        %v2676 = vunpack.c.l.b16 %v1515
        %v2677 = vunpack.c.l.b16 %v1516
        %v2678 = vunpack.c.h.b16 %v1516
        %v2679 = vunpack.c.l.b16 %v1517
        %v2680 = vunpack.c.l.b16 %v1518
        %v2681 = vunpack.c.h.b16 %v1518
        %v2682 = vunpack.c.l.b16 %v1519
        %v2683 = vunpack.c.l.b16 %v1520
        %v2684 = vunpack.c.h.b16 %v1520
        %v2685 = vunpack.c.l.b16 %v1521
        %v2686 = vunpack.c.l.b16 %v1522
        %v2687 = vunpack.c.h.b16 %v1522
        %v2688 = vunpack.c.l.b16 %v1523
        %v2689 = vunpack.c.l.b16 %v1524
        %v2690 = vunpack.c.h.b16 %v1524
        %v2691 = vunpack.c.l.b16 %v1525
        %v2692 = vunpack.c.l.b16 %v1526
        %v2693 = vunpack.c.h.b16 %v1526
        %v2694 = vunpack.c.l.b16 %v1527
        %v2695 = vunpack.c.l.b16 %v1528
        %v2696 = vunpack.c.h.b16 %v1528
        %v2697 = vunpack.c.l.b16 %v1529
        %v2698 = vunpack.c.l.b16 %v1530
        %v2699 = vunpack.c.h.b16 %v1530
        %v2700 = vunpack.c.l.b16 %v1531
        %v2701 = vunpack.c.l.b16 %v1532
        %v2702 = vunpack.c.h.b16 %v1532
        %v2703 = vunpack.c.l.b16 %v1533
        %v2704 = vunpack.c.l.b16 %v1534
        %v2705 = vunpack.c.h.b16 %v1534
        %v2706 = vunpack.c.l.b16 %v1535
        %v2707 = vunpack.c.l.b16 %v1536
        %v2708 = vunpack.c.h.b16 %v1536
        %v2709 = vunpack.c.l.b16 %v1537
        %v2710 = vunpack.c.l.b16 %v1538
        %v2711 = vunpack.c.h.b16 %v1538
        %v2712 = vunpack.c.l.b16 %v1539
        %v2713 = vunpack.c.l.b16 %v1540
        %v2714 = vunpack.c.h.b16 %v1540
        %v2715 = vunpack.c.l.b16 %v1541
        %v2716 = vunpack.c.l.b16 %v1542
        %v2717 = vunpack.c.h.b16 %v1542
        %v2718 = vunpack.c.l.b16 %v1543
        %v2719 = vunpack.c.l.b16 %v1544
        %v2720 = vunpack.c.h.b16 %v1544
        %v2721 = vunpack.c.l.b16 %v1545
        %v2722 = vunpack.c.l.b16 %v1546
        %v2723 = vunpack.c.h.b16 %v1546
        %v2724 = vunpack.c.l.b16 %v1547
        %v2725 = vunpack.c.l.b16 %v1548
        %v2726 = vunpack.c.h.b16 %v1548
        %v2727 = vunpack.c.l.b16 %v1549
        %v2728 = vunpack.c.l.b16 %v1550
        %v2729 = vunpack.c.h.b16 %v1550
        %v2730 = vunpack.c.l.b16 %v1551
        %v2731 = vunpack.c.l.b16 %v1552
        %v2732 = vunpack.c.h.b16 %v1552
        %v2733 = vunpack.c.l.b16 %v1553
        %v2734 = vunpack.c.l.b16 %v1554
        %v2735 = vunpack.c.h.b16 %v1554
        %v2736 = vunpack.c.l.b16 %v1555
        %v2737 = vunpack.c.l.b16 %v1556
        %v2738 = vunpack.c.h.b16 %v1556
        %v2739 = vunpack.c.l.b16 %v1557
        %v2740 = vunpack.c.l.b16 %v1558
        %v2741 = vunpack.c.h.b16 %v1558
        %v2742 = vunpack.c.l.b16 %v1559
        %v2743 = vunpack.c.l.b16 %v1560
        %v2744 = vunpack.c.h.b16 %v1560
        %v2745 = vunpack.c.l.b16 %v1561
        %v2746 = vunpack.c.l.b16 %v1562
        %v2747 = vunpack.c.h.b16 %v1562
        %v2748 = vunpack.c.l.b16 %v1563
        %v2749 = vunpack.c.l.b16 %v1564
        %v2750 = vunpack.c.h.b16 %v1564
        %v2751 = vunpack.c.l.b16 %v1565
        %v2752 = vunpack.c.l.b16 %v1566
        %v2753 = vunpack.c.h.b16 %v1566
        %v2754 = vunpack.c.l.b16 %v1567
        %v2755 = vunpack.c.l.b16 %v1568
        %v2756 = vunpack.c.h.b16 %v1568
        %v2757 = vunpack.c.l.b16 %v1569
        %v2758 = vunpack.c.l.b16 %v1570
        %v2759 = vunpack.c.h.b16 %v1570
        %v2760 = vunpack.c.l.b16 %v1571
        %v2761 = vunpack.c.l.b16 %v1572
        %v2762 = vunpack.c.h.b16 %v1572
        %v2763 = vunpack.c.l.b16 %v1573
        %v2764 = vunpack.c.l.b16 %v1574
        %v2765 = vunpack.c.h.b16 %v1574
        %v2766 = vunpack.c.l.b16 %v1575
        %v2767 = vunpack.c.l.b16 %v1576
        %v2768 = vunpack.c.h.b16 %v1576
        %v2769 = vunpack.c.l.b16 %v1577
        %v2770 = vunpack.c.l.b16 %v1578
        %v2771 = vunpack.c.h.b16 %v1578
        %v2772 = vunpack.c.l.b16 %v1579
        %v2773 = vunpack.c.l.b16 %v1580
        %v2774 = vunpack.c.h.b16 %v1580
        %v2775 = vunpack.c.l.b16 %v1581
        %v2776 = vunpack.c.l.b16 %v1582
        %v2777 = vunpack.c.h.b16 %v1582
        %v2778 = vunpack.c.l.b16 %v1583
        %v2779 = vunpack.c.l.b16 %v1584
        %v2780 = vunpack.c.h.b16 %v1584
        %v2781 = vunpack.c.l.b16 %v1585
        %v2782 = vunpack.c.l.b16 %v1586
        %v2783 = vunpack.c.h.b16 %v1586
        %v2784 = vunpack.c.l.b16 %v1587
        %v2785 = vunpack.c.l.b16 %v1588
        %v2786 = vunpack.c.h.b16 %v1588
        %v2787 = vunpack.c.l.b16 %v1589
        %v2788 = vunpack.c.l.b16 %v1590
        %v2789 = vunpack.c.h.b16 %v1590
        %v2790 = vunpack.c.l.b16 %v1591
        %v2791 = vunpack.c.l.b16 %v1592
        %v2792 = vunpack.c.h.b16 %v1592
        %v2793 = vunpack.c.l.b16 %v1593
        %v2794 = vunpack.c.l.b16 %v1594
        %v2795 = vunpack.c.h.b16 %v1594
        %v2796 = vunpack.c.l.b16 %v1595
        %v2797 = vunpack.c.l.b16 %v1596
        %v2798 = vunpack.c.h.b16 %v1596
        %v2799 = vunpack.c.l.b16 %v1597
        %v2800 = vunpack.c.l.b16 %v1598
        %v2801 = vunpack.c.h.b16 %v1598
        %v2802 = vunpack.c.l.b16 %v1599
        %v2803 = vunpack.c.l.b16 %v1600
        %v2804 = vunpack.c.h.b16 %v1600
        %v2805 = vunpack.c.l.b16 %v1601
        %v2806 = vunpack.c.l.b16 %v1602
        %v2807 = vunpack.c.h.b16 %v1602
        %v2808 = vunpack.c.l.b16 %v1603
        %v2809 = vunpack.c.l.b16 %v1604
        %v2810 = vunpack.c.h.b16 %v1604
        %v2811 = vunpack.c.l.b16 %v1605
        %v2812 = vunpack.c.l.b16 %v1606
        %v2813 = vunpack.c.h.b16 %v1606
        %v2814 = vunpack.c.l.b16 %v1607
        %v2815 = vunpack.c.l.b16 %v1608
        %v2816 = vunpack.c.h.b16 %v1608
        %v2817 = vunpack.c.l.b16 %v1609
        %v2818 = vunpack.c.l.b16 %v1610
        %v2819 = vunpack.c.h.b16 %v1610
        %v2820 = vunpack.c.l.b16 %v1611
        %v2821 = vunpack.c.l.b16 %v1612
        %v2822 = vunpack.c.h.b16 %v1612
        %v2823 = vunpack.c.l.b16 %v1613
        %v2824 = vunpack.c.l.b16 %v1614
        %v2825 = vunpack.c.h.b16 %v1614
        %v2826 = vunpack.c.l.b16 %v1615
        %v2827 = vunpack.c.l.b16 %v1616
        %v2828 = vunpack.c.h.b16 %v1616
        %v2829 = vunpack.c.l.b16 %v1617
        %v2830 = vunpack.c.l.b16 %v1618
        %v2831 = vunpack.c.h.b16 %v1618
        %v2832 = vunpack.c.l.b16 %v1619
        %v2833 = vunpack.c.l.b16 %v1620
        %v2834 = vunpack.c.h.b16 %v1620
        %v2835 = vunpack.c.l.b16 %v1621
        %v2836 = vunpack.c.l.b16 %v1622
        %v2837 = vunpack.c.h.b16 %v1622
        %v2838 = vunpack.c.l.b16 %v1623
        %v2839 = vunpack.c.l.b16 %v1624
        %v2840 = vunpack.c.h.b16 %v1624
        %v2841 = vunpack.c.l.b16 %v1625
        %v2842 = vunpack.c.l.b16 %v1626
        %v2843 = vunpack.c.h.b16 %v1626
        %v2844 = vunpack.c.l.b16 %v1627
        %v2845 = vunpack.c.l.b16 %v1628
        %v2846 = vunpack.c.h.b16 %v1628
        %v2847 = vunpack.c.l.b16 %v1629
        %v2848 = vunpack.c.l.b16 %v1630
        %v2849 = vunpack.c.h.b16 %v1630
        %v2850 = vunpack.c.l.b16 %v1631
        %v2851 = vunpack.c.l.b16 %v1632
        %v2852 = vunpack.c.h.b16 %v1632
        %v2853 = vunpack.c.l.b16 %v1633
        %v2854 = vunpack.c.l.b16 %v1634
        %v2855 = vunpack.c.h.b16 %v1634
        %v2856 = vunpack.c.l.b16 %v1635
        %v2857 = vunpack.c.l.b16 %v1636
        %v2858 = vunpack.c.h.b16 %v1636
        %v2859 = vunpack.c.l.b16 %v1637
        %v2860 = vunpack.c.l.b16 %v1638
        %v2861 = vunpack.c.h.b16 %v1638
        %v2862 = vunpack.c.l.b16 %v1639
        %v2863 = vunpack.c.l.b16 %v1640
        %v2864 = vunpack.c.h.b16 %v1640
        %v2865 = vunpack.c.l.b16 %v1641
        %v2866 = vunpack.c.l.b16 %v1642
        %v2867 = vunpack.c.h.b16 %v1642
        %v2868 = vunpack.c.l.b16 %v1643
        %v2869 = vunpack.c.l.b16 %v1644
        %v2870 = vunpack.c.h.b16 %v1644
        %v2871 = vunpack.c.l.b16 %v1645
        %v2872 = vunpack.c.l.b16 %v1646
        %v2873 = vunpack.c.h.b16 %v1646
        %v2874 = vunpack.c.l.b16 %v1647
        %v2875 = vunpack.c.l.b16 %v1648
        %v2876 = vunpack.c.h.b16 %v1648
        %v2877 = vunpack.c.l.b16 %v1649
        %v2878 = vunpack.c.l.b16 %v1650
        %v2879 = vunpack.c.h.b16 %v1650
        %v2880 = vunpack.c.l.b16 %v1651
        %v2881 = vunpack.c.l.b16 %v1652
        %v2882 = vunpack.c.h.b16 %v1652
        %v2883 = vunpack.c.l.b16 %v1653
        %v2884 = vunpack.c.l.b16 %v1654
        %v2885 = vunpack.c.h.b16 %v1654
        %v2886 = vunpack.c.l.b16 %v1655
        %v2887 = vunpack.c.l.b16 %v1656
        %v2888 = vunpack.c.h.b16 %v1656
        %v2889 = vunpack.c.l.b16 %v1657
        %v2890 = vpack.c.b16 %v2221, %v2218
        %v2891 = vpack.c.b16 %v2222, %v2219
        %v2892 = vpack.c.b16 %v2223, %v2220
        %v2893 = vpack.c.b16 %v2227, %v2224
        %v2894 = vpack.c.b16 %v2228, %v2225
        %v2895 = vpack.c.b16 %v2229, %v2226
        %v2896 = vpack.c.b16 %v2233, %v2230
        %v2897 = vpack.c.b16 %v2234, %v2231
        %v2898 = vpack.c.b16 %v2235, %v2232
        %v2899 = vpack.c.b16 %v2239, %v2236
        %v2900 = vpack.c.b16 %v2240, %v2237
        %v2901 = vpack.c.b16 %v2241, %v2238
        %v2902 = vpack.c.b16 %v2245, %v2242
        %v2903 = vpack.c.b16 %v2246, %v2243
        %v2904 = vpack.c.b16 %v2247, %v2244
        %v2905 = vpack.c.b16 %v2251, %v2248
        %v2906 = vpack.c.b16 %v2252, %v2249
        %v2907 = vpack.c.b16 %v2253, %v2250
        %v2908 = vpack.c.b16 %v2257, %v2254
        %v2909 = vpack.c.b16 %v2258, %v2255
        %v2910 = vpack.c.b16 %v2259, %v2256
        %v2911 = vpack.c.b16 %v2263, %v2260
        %v2912 = vpack.c.b16 %v2264, %v2261
        %v2913 = vpack.c.b16 %v2265, %v2262
        %v2914 = vpack.c.b16 %v2269, %v2266
        %v2915 = vpack.c.b16 %v2270, %v2267
        %v2916 = vpack.c.b16 %v2271, %v2268
        %v2917 = vpack.c.b16 %v2275, %v2272
        %v2918 = vpack.c.b16 %v2276, %v2273
        %v2919 = vpack.c.b16 %v2277, %v2274
        %v2920 = vpack.c.b16 %v2281, %v2278
        %v2921 = vpack.c.b16 %v2282, %v2279
        %v2922 = vpack.c.b16 %v2283, %v2280
        %v2923 = vpack.c.b16 %v2287, %v2284
        %v2924 = vpack.c.b16 %v2288, %v2285
        %v2925 = vpack.c.b16 %v2289, %v2286
        %v2926 = vpack.c.b16 %v2293, %v2290
        %v2927 = vpack.c.b16 %v2294, %v2291
        %v2928 = vpack.c.b16 %v2295, %v2292
        %v2929 = vpack.c.b16 %v2299, %v2296
        %v2930 = vpack.c.b16 %v2300, %v2297
        %v2931 = vpack.c.b16 %v2301, %v2298
        %v2932 = vpack.c.b16 %v2305, %v2302
        %v2933 = vpack.c.b16 %v2306, %v2303
        %v2934 = vpack.c.b16 %v2307, %v2304
        %v2935 = vpack.c.b16 %v2311, %v2308
        %v2936 = vpack.c.b16 %v2312, %v2309
        %v2937 = vpack.c.b16 %v2313, %v2310
        %v2938 = vpack.c.b16 %v2317, %v2314
        %v2939 = vpack.c.b16 %v2318, %v2315
        %v2940 = vpack.c.b16 %v2319, %v2316
        %v2941 = vpack.c.b16 %v2323, %v2320
        %v2942 = vpack.c.b16 %v2324, %v2321
        %v2943 = vpack.c.b16 %v2325, %v2322
        %v2944 = vpack.c.b16 %v2329, %v2326
        %v2945 = vpack.c.b16 %v2330, %v2327
        %v2946 = vpack.c.b16 %v2331, %v2328
        %v2947 = vpack.c.b16 %v2335, %v2332
        %v2948 = vpack.c.b16 %v2336, %v2333
        %v2949 = vpack.c.b16 %v2337, %v2334
        %v2950 = vpack.c.b16 %v2341, %v2338
        %v2951 = vpack.c.b16 %v2342, %v2339
        %v2952 = vpack.c.b16 %v2343, %v2340
        %v2953 = vpack.c.b16 %v2347, %v2344
        %v2954 = vpack.c.b16 %v2348, %v2345
        %v2955 = vpack.c.b16 %v2349, %v2346
        %v2956 = vpack.c.b16 %v2353, %v2350
        %v2957 = vpack.c.b16 %v2354, %v2351
        %v2958 = vpack.c.b16 %v2355, %v2352
        %v2959 = vpack.c.b16 %v2359, %v2356
        %v2960 = vpack.c.b16 %v2360, %v2357
        %v2961 = vpack.c.b16 %v2361, %v2358
        %v2962 = vpack.c.b16 %v2365, %v2362
        %v2963 = vpack.c.b16 %v2366, %v2363
        %v2964 = vpack.c.b16 %v2367, %v2364
        %v2965 = vpack.c.b16 %v2371, %v2368
        %v2966 = vpack.c.b16 %v2372, %v2369
        %v2967 = vpack.c.b16 %v2373, %v2370
        %v2968 = vpack.c.b16 %v2377, %v2374
        %v2969 = vpack.c.b16 %v2378, %v2375
        %v2970 = vpack.c.b16 %v2379, %v2376
        %v2971 = vpack.c.b16 %v2383, %v2380
        %v2972 = vpack.c.b16 %v2384, %v2381
        %v2973 = vpack.c.b16 %v2385, %v2382
        %v2974 = vpack.c.b16 %v2389, %v2386
        %v2975 = vpack.c.b16 %v2390, %v2387
        %v2976 = vpack.c.b16 %v2391, %v2388
        %v2977 = vpack.c.b16 %v2395, %v2392
        %v2978 = vpack.c.b16 %v2396, %v2393
        %v2979 = vpack.c.b16 %v2397, %v2394
        %v2980 = vpack.c.b16 %v2401, %v2398
        %v2981 = vpack.c.b16 %v2402, %v2399
        %v2982 = vpack.c.b16 %v2403, %v2400
        %v2983 = vpack.c.b16 %v2407, %v2404
        %v2984 = vpack.c.b16 %v2408, %v2405
        %v2985 = vpack.c.b16 %v2409, %v2406
        %v2986 = vpack.c.b16 %v2413, %v2410
        %v2987 = vpack.c.b16 %v2414, %v2411
        %v2988 = vpack.c.b16 %v2415, %v2412
        %v2989 = vpack.c.b16 %v2419, %v2416
        %v2990 = vpack.c.b16 %v2420, %v2417
        %v2991 = vpack.c.b16 %v2421, %v2418
        %v2992 = vpack.c.b16 %v2425, %v2422
        %v2993 = vpack.c.b16 %v2426, %v2423
        %v2994 = vpack.c.b16 %v2427, %v2424
        %v2995 = vpack.c.b16 %v2431, %v2428
        %v2996 = vpack.c.b16 %v2432, %v2429
        %v2997 = vpack.c.b16 %v2433, %v2430
        %v2998 = vpack.c.b16 %v2437, %v2434
        %v2999 = vpack.c.b16 %v2438, %v2435
        %v3000 = vpack.c.b16 %v2439, %v2436
        %v3001 = vpack.c.b16 %v2443, %v2440
        %v3002 = vpack.c.b16 %v2444, %v2441
        %v3003 = vpack.c.b16 %v2445, %v2442
        %v3004 = vpack.c.b16 %v2449, %v2446
        %v3005 = vpack.c.b16 %v2450, %v2447
        %v3006 = vpack.c.b16 %v2451, %v2448
        %v3007 = vpack.c.b16 %v2455, %v2452
        %v3008 = vpack.c.b16 %v2456, %v2453
        %v3009 = vpack.c.b16 %v2457, %v2454
        %v3010 = vpack.c.b16 %v2461, %v2458
        %v3011 = vpack.c.b16 %v2462, %v2459
        %v3012 = vpack.c.b16 %v2463, %v2460
        %v3013 = vpack.c.b16 %v2467, %v2464
        %v3014 = vpack.c.b16 %v2468, %v2465
        %v3015 = vpack.c.b16 %v2469, %v2466
        %v3016 = vpack.c.b16 %v2473, %v2470
        %v3017 = vpack.c.b16 %v2474, %v2471
        %v3018 = vpack.c.b16 %v2475, %v2472
        %v3019 = vpack.c.b16 %v2479, %v2476
        %v3020 = vpack.c.b16 %v2480, %v2477
        %v3021 = vpack.c.b16 %v2481, %v2478
        %v3022 = vpack.c.b16 %v2485, %v2482
        %v3023 = vpack.c.b16 %v2486, %v2483
        %v3024 = vpack.c.b16 %v2487, %v2484
        %v3025 = vpack.c.b16 %v2491, %v2488
        %v3026 = vpack.c.b16 %v2492, %v2489
        %v3027 = vpack.c.b16 %v2493, %v2490
        %v3028 = vpack.c.b16 %v2497, %v2494
        %v3029 = vpack.c.b16 %v2498, %v2495
        %v3030 = vpack.c.b16 %v2499, %v2496
        %v3031 = vpack.c.b16 %v2503, %v2500
        %v3032 = vpack.c.b16 %v2504, %v2501
        %v3033 = vpack.c.b16 %v2505, %v2502
        %v3034 = vpack.c.b16 %v2509, %v2506
        %v3035 = vpack.c.b16 %v2510, %v2507
        %v3036 = vpack.c.b16 %v2511, %v2508
        %v3037 = vpack.c.b16 %v2515, %v2512
        %v3038 = vpack.c.b16 %v2516, %v2513
        %v3039 = vpack.c.b16 %v2517, %v2514
        %v3040 = vpack.c.b16 %v2521, %v2518
        %v3041 = vpack.c.b16 %v2522, %v2519
        %v3042 = vpack.c.b16 %v2523, %v2520
        %v3043 = vpack.c.b16 %v2527, %v2524
        %v3044 = vpack.c.b16 %v2528, %v2525
        %v3045 = vpack.c.b16 %v2529, %v2526
        %v3046 = vpack.c.b16 %v2533, %v2530
        %v3047 = vpack.c.b16 %v2534, %v2531
        %v3048 = vpack.c.b16 %v2535, %v2532
        %v3049 = vpack.c.b16 %v2539, %v2536
        %v3050 = vpack.c.b16 %v2540, %v2537
        %v3051 = vpack.c.b16 %v2541, %v2538
        %v3052 = vpack.c.b16 %v2545, %v2542
        %v3053 = vpack.c.b16 %v2546, %v2543
        %v3054 = vpack.c.b16 %v2547, %v2544
        %v3055 = vpack.c.b16 %v2551, %v2548
        %v3056 = vpack.c.b16 %v2552, %v2549
        %v3057 = vpack.c.b16 %v2553, %v2550
        %v3058 = vpack.c.b16 %v2557, %v2554
        %v3059 = vpack.c.b16 %v2558, %v2555
        %v3060 = vpack.c.b16 %v2559, %v2556
        %v3061 = vpack.c.b16 %v2563, %v2560
        %v3062 = vpack.c.b16 %v2564, %v2561
        %v3063 = vpack.c.b16 %v2565, %v2562
        %v3064 = vpack.c.b16 %v2569, %v2566
        %v3065 = vpack.c.b16 %v2570, %v2567
        %v3066 = vpack.c.b16 %v2571, %v2568
        %v3067 = vpack.c.b16 %v2575, %v2572
        %v3068 = vpack.c.b16 %v2576, %v2573
        %v3069 = vpack.c.b16 %v2577, %v2574
        %v3070 = vpack.c.b16 %v2581, %v2578
        %v3071 = vpack.c.b16 %v2582, %v2579
        %v3072 = vpack.c.b16 %v2583, %v2580
        %v3073 = vpack.c.b16 %v2587, %v2584
        %v3074 = vpack.c.b16 %v2588, %v2585
        %v3075 = vpack.c.b16 %v2589, %v2586
        %v3076 = vpack.c.b16 %v2593, %v2590
        %v3077 = vpack.c.b16 %v2594, %v2591
        %v3078 = vpack.c.b16 %v2595, %v2592
        %v3079 = vpack.c.b16 %v2599, %v2596
        %v3080 = vpack.c.b16 %v2600, %v2597
        %v3081 = vpack.c.b16 %v2601, %v2598
        %v3082 = vpack.c.b16 %v2605, %v2602
        %v3083 = vpack.c.b16 %v2606, %v2603
        %v3084 = vpack.c.b16 %v2607, %v2604
        %v3085 = vpack.c.b16 %v2611, %v2608
        %v3086 = vpack.c.b16 %v2612, %v2609
        %v3087 = vpack.c.b16 %v2613, %v2610
        %v3088 = vpack.c.b16 %v2617, %v2614
        %v3089 = vpack.c.b16 %v2618, %v2615
        %v3090 = vpack.c.b16 %v2619, %v2616
        %v3091 = vpack.c.b16 %v2623, %v2620
        %v3092 = vpack.c.b16 %v2624, %v2621
        %v3093 = vpack.c.b16 %v2625, %v2622
        %v3094 = vpack.c.b16 %v2629, %v2626
        %v3095 = vpack.c.b16 %v2630, %v2627
        %v3096 = vpack.c.b16 %v2631, %v2628
        %v3097 = vpack.c.b16 %v2635, %v2632
        %v3098 = vpack.c.b16 %v2636, %v2633
        %v3099 = vpack.c.b16 %v2637, %v2634
        %v3100 = vpack.c.b16 %v2641, %v2638
        %v3101 = vpack.c.b16 %v2642, %v2639
        %v3102 = vpack.c.b16 %v2643, %v2640
        %v3103 = vpack.c.b16 %v2647, %v2644
        %v3104 = vpack.c.b16 %v2648, %v2645
        %v3105 = vpack.c.b16 %v2649, %v2646
        %v3106 = vpack.c.b16 %v2653, %v2650
        %v3107 = vpack.c.b16 %v2654, %v2651
        %v3108 = vpack.c.b16 %v2655, %v2652
        %v3109 = vpack.c.b16 %v2659, %v2656
        %v3110 = vpack.c.b16 %v2660, %v2657
        %v3111 = vpack.c.b16 %v2661, %v2658
        %v3112 = vpack.c.b16 %v2665, %v2662
        %v3113 = vpack.c.b16 %v2666, %v2663
        %v3114 = vpack.c.b16 %v2667, %v2664
        %v3115 = vpack.c.b16 %v2671, %v2668
        %v3116 = vpack.c.b16 %v2672, %v2669
        %v3117 = vpack.c.b16 %v2673, %v2670
        %v3118 = vpack.c.b16 %v2677, %v2674
        %v3119 = vpack.c.b16 %v2678, %v2675
        %v3120 = vpack.c.b16 %v2679, %v2676
        %v3121 = vpack.c.b16 %v2683, %v2680
        %v3122 = vpack.c.b16 %v2684, %v2681
        %v3123 = vpack.c.b16 %v2685, %v2682
        %v3124 = vpack.c.b16 %v2689, %v2686
        %v3125 = vpack.c.b16 %v2690, %v2687
        %v3126 = vpack.c.b16 %v2691, %v2688
        %v3127 = vpack.c.b16 %v2695, %v2692
        %v3128 = vpack.c.b16 %v2696, %v2693
        %v3129 = vpack.c.b16 %v2697, %v2694
        %v3130 = vpack.c.b16 %v2701, %v2698
        %v3131 = vpack.c.b16 %v2702, %v2699
        %v3132 = vpack.c.b16 %v2703, %v2700
        %v3133 = vpack.c.b16 %v2707, %v2704
        %v3134 = vpack.c.b16 %v2708, %v2705
        %v3135 = vpack.c.b16 %v2709, %v2706
        %v3136 = vpack.c.b16 %v2713, %v2710
        %v3137 = vpack.c.b16 %v2714, %v2711
        %v3138 = vpack.c.b16 %v2715, %v2712
        %v3139 = vpack.c.b16 %v2719, %v2716
        %v3140 = vpack.c.b16 %v2720, %v2717
        %v3141 = vpack.c.b16 %v2721, %v2718
        %v3142 = vpack.c.b16 %v2725, %v2722
        %v3143 = vpack.c.b16 %v2726, %v2723
        %v3144 = vpack.c.b16 %v2727, %v2724
        %v3145 = vpack.c.b16 %v2731, %v2728
        %v3146 = vpack.c.b16 %v2732, %v2729
        %v3147 = vpack.c.b16 %v2733, %v2730
        %v3148 = vpack.c.b16 %v2737, %v2734
        %v3149 = vpack.c.b16 %v2738, %v2735
        %v3150 = vpack.c.b16 %v2739, %v2736
        %v3151 = vpack.c.b16 %v2743, %v2740
        %v3152 = vpack.c.b16 %v2744, %v2741
        %v3153 = vpack.c.b16 %v2745, %v2742
        %v3154 = vpack.c.b16 %v2749, %v2746
        %v3155 = vpack.c.b16 %v2750, %v2747
        %v3156 = vpack.c.b16 %v2751, %v2748
        %v3157 = vpack.c.b16 %v2755, %v2752
        %v3158 = vpack.c.b16 %v2756, %v2753
        %v3159 = vpack.c.b16 %v2757, %v2754
        %v3160 = vpack.c.b16 %v2761, %v2758
        %v3161 = vpack.c.b16 %v2762, %v2759
        %v3162 = vpack.c.b16 %v2763, %v2760
        %v3163 = vpack.c.b16 %v2767, %v2764
        %v3164 = vpack.c.b16 %v2768, %v2765
        %v3165 = vpack.c.b16 %v2769, %v2766
        %v3166 = vpack.c.b16 %v2773, %v2770
        %v3167 = vpack.c.b16 %v2774, %v2771
        %v3168 = vpack.c.b16 %v2775, %v2772
        %v3169 = vpack.c.b16 %v2779, %v2776
        %v3170 = vpack.c.b16 %v2780, %v2777
        %v3171 = vpack.c.b16 %v2781, %v2778
        %v3172 = vpack.c.b16 %v2785, %v2782
        %v3173 = vpack.c.b16 %v2786, %v2783
        %v3174 = vpack.c.b16 %v2787, %v2784
        %v3175 = vpack.c.b16 %v2791, %v2788
        %v3176 = vpack.c.b16 %v2792, %v2789
        %v3177 = vpack.c.b16 %v2793, %v2790
        %v3178 = vpack.c.b16 %v2797, %v2794
        %v3179 = vpack.c.b16 %v2798, %v2795
        %v3180 = vpack.c.b16 %v2799, %v2796
        %v3181 = vpack.c.b16 %v2803, %v2800
        %v3182 = vpack.c.b16 %v2804, %v2801
        %v3183 = vpack.c.b16 %v2805, %v2802
        %v3184 = vpack.c.b16 %v2809, %v2806
        %v3185 = vpack.c.b16 %v2810, %v2807
        %v3186 = vpack.c.b16 %v2811, %v2808
        %v3187 = vpack.c.b16 %v2815, %v2812
        %v3188 = vpack.c.b16 %v2816, %v2813
        %v3189 = vpack.c.b16 %v2817, %v2814
        %v3190 = vpack.c.b16 %v2821, %v2818
        %v3191 = vpack.c.b16 %v2822, %v2819
        %v3192 = vpack.c.b16 %v2823, %v2820
        %v3193 = vpack.c.b16 %v2827, %v2824
        %v3194 = vpack.c.b16 %v2828, %v2825
        %v3195 = vpack.c.b16 %v2829, %v2826
        %v3196 = vpack.c.b16 %v2833, %v2830
        %v3197 = vpack.c.b16 %v2834, %v2831
        %v3198 = vpack.c.b16 %v2835, %v2832
        %v3199 = vpack.c.b16 %v2839, %v2836
        %v3200 = vpack.c.b16 %v2840, %v2837
        %v3201 = vpack.c.b16 %v2841, %v2838
        %v3202 = vpack.c.b16 %v2845, %v2842
        %v3203 = vpack.c.b16 %v2846, %v2843
        %v3204 = vpack.c.b16 %v2847, %v2844
        %v3205 = vpack.c.b16 %v2851, %v2848
        %v3206 = vpack.c.b16 %v2852, %v2849
        %v3207 = vpack.c.b16 %v2853, %v2850
        %v3208 = vpack.c.b16 %v2857, %v2854
        %v3209 = vpack.c.b16 %v2858, %v2855
        %v3210 = vpack.c.b16 %v2859, %v2856
        %v3211 = vpack.c.b16 %v2863, %v2860
        %v3212 = vpack.c.b16 %v2864, %v2861
        %v3213 = vpack.c.b16 %v2865, %v2862
        %v3214 = vpack.c.b16 %v2869, %v2866
        %v3215 = vpack.c.b16 %v2870, %v2867
        %v3216 = vpack.c.b16 %v2871, %v2868
        %v3217 = vpack.c.b16 %v2875, %v2872
        %v3218 = vpack.c.b16 %v2876, %v2873
        %v3219 = vpack.c.b16 %v2877, %v2874
        %v3220 = vpack.c.b16 %v2881, %v2878
        %v3221 = vpack.c.b16 %v2882, %v2879
        %v3222 = vpack.c.b16 %v2883, %v2880
        %v3223 = vpack.c.b16 %v2887, %v2884
        %v3224 = vpack.c.b16 %v2888, %v2885
        %v3225 = vpack.c.b16 %v2889, %v2886
        %3562 = vmatprep.subr.bf16.mxu0 %v2891
        %3563 = vmatpush1.bf16.msra.mxu0 %v2890
        %3564 = vmatprep.subr.bf16.mxu0 %v2894
        %3565 = vmatpush1.bf16.msra.mxu0 %v2893
        %3566 = vmatprep.subr.bf16.mxu0 %v2897
        %3567 = vmatpush1.bf16.msra.mxu0 %v2896
        %3568 = vmatprep.subr.bf16.mxu0 %v2900
        %3569 = vmatpush1.bf16.msra.mxu0 %v2899
        %3570 = vmatprep.subr.bf16.mxu0 %v2903
        %3571 = vmatpush1.bf16.msra.mxu0 %v2902
        %3572 = vmatprep.subr.bf16.mxu0 %v2906
        %3573 = vmatpush1.bf16.msra.mxu0 %v2905
        %3574 = vmatprep.subr.bf16.mxu0 %v2909
        %3575 = vmatpush1.bf16.msra.mxu0 %v2908
        %3576 = vmatprep.subr.bf16.mxu0 %v2912
        %3577 = vmatpush1.bf16.msra.mxu0 %v2911
        %3578 = vmatprep.subr.bf16.mxu0 %v2915
        %3579 = vmatpush1.bf16.msra.mxu0 %v2914
        %3580 = vmatprep.subr.bf16.mxu0 %v2918
        %3581 = vmatpush1.bf16.msra.mxu0 %v2917
        %3582 = vmatprep.subr.bf16.mxu0 %v2921
        %3583 = vmatpush1.bf16.msra.mxu0 %v2920
        %3584 = vmatprep.subr.bf16.mxu0 %v2924
        %3585 = vmatpush1.bf16.msra.mxu0 %v2923
        %3586 = vmatprep.subr.bf16.mxu0 %v2927
        %3587 = vmatpush1.bf16.msra.mxu0 %v2926
        %3588 = vmatprep.subr.bf16.mxu0 %v2930
        %3589 = vmatpush1.bf16.msra.mxu0 %v2929
        %3590 = vmatprep.subr.bf16.mxu0 %v2933
        %3591 = vmatpush1.bf16.msra.mxu0 %v2932
        %3592 = vmatprep.subr.bf16.mxu0 %v2936
        %3593 = vmatpush1.bf16.msra.mxu0 %v2935
        %3594 = vmatprep.mubr.bf16.mxu0 %v1697
        %3595 = vmatmul.mubr.bf16.gmra.mrb[0].mxu0 %v1683
        %v3596 = vpop.f32.mrb[0].mxu0
        %v3597 = vadd.f32 0.0, %v3596
        %v3598 = vpop.f32.mrb[0].mxu0
        %v3599 = vadd.f32 0.0, %v3598
        %v3600 = vpop.f32.mrb[0].mxu0
        %v3601 = vpop.f32.mrb[0].mxu0
        %3602 = vdwg.mxu0
        %3603 = vmatprep.subr.bf16.mxu0 %v2939
        %3604 = vmatpush1.bf16.msra.mxu0 %v2938
        %3605 = vmatprep.subr.bf16.mxu0 %v2942
        %3606 = vmatpush1.bf16.msra.mxu0 %v2941
        %3607 = vmatprep.subr.bf16.mxu0 %v2945
        %3608 = vmatpush1.bf16.msra.mxu0 %v2944
        %3609 = vmatprep.subr.bf16.mxu0 %v2948
        %3610 = vmatpush1.bf16.msra.mxu0 %v2947
        %3611 = vmatprep.subr.bf16.mxu0 %v2951
        %3612 = vmatpush1.bf16.msra.mxu0 %v2950
        %3613 = vmatprep.subr.bf16.mxu0 %v2954
        %3614 = vmatpush1.bf16.msra.mxu0 %v2953
        %3615 = vmatprep.subr.bf16.mxu0 %v2957
        %3616 = vmatpush1.bf16.msra.mxu0 %v2956
        %3617 = vmatprep.subr.bf16.mxu0 %v2960
        %3618 = vmatpush1.bf16.msra.mxu0 %v2959
        %3619 = vmatprep.subr.bf16.mxu0 %v2963
        %3620 = vmatpush1.bf16.msra.mxu0 %v2962
        %3621 = vmatprep.subr.bf16.mxu0 %v2966
        %3622 = vmatpush1.bf16.msra.mxu0 %v2965
        %3623 = vmatprep.subr.bf16.mxu0 %v2969
        %3624 = vmatpush1.bf16.msra.mxu0 %v2968
        %3625 = vmatprep.subr.bf16.mxu0 %v2972
        %3626 = vmatpush1.bf16.msra.mxu0 %v2971
        %3627 = vmatprep.subr.bf16.mxu0 %v2975
        %3628 = vmatpush1.bf16.msra.mxu0 %v2974
        %3629 = vmatprep.subr.bf16.mxu0 %v2978
        %3630 = vmatpush1.bf16.msra.mxu0 %v2977
        %3631 = vmatprep.subr.bf16.mxu0 %v2981
        %3632 = vmatpush1.bf16.msra.mxu0 %v2980
        %3633 = vmatprep.subr.bf16.mxu0 %v2984
        %3634 = vmatpush1.bf16.msra.mxu0 %v2983
        %3635 = vmatprep.mubr.bf16.mxu0 %v1707
        %3636 = vmatmul.mubr.bf16.gmra.mrb[0].mxu0 %v1705
        %v3637 = vpop.f32.mrb[0].mxu0
        %v3638 = vadd.f32 %v3597, %v3637
        %v3639 = vpop.f32.mrb[0].mxu0
        %v3640 = vadd.f32 %v3599, %v3639
        %v3641 = vpop.f32.mrb[0].mxu0
        %v3642 = vpop.f32.mrb[0].mxu0
        %3643 = vdwg.mxu0
        %3644 = vmatprep.subr.bf16.mxu0 %v2987
        %3645 = vmatpush1.bf16.msra.mxu0 %v2986
        %3646 = vmatprep.subr.bf16.mxu0 %v2990
        %3647 = vmatpush1.bf16.msra.mxu0 %v2989
        %3648 = vmatprep.subr.bf16.mxu0 %v2993
        %3649 = vmatpush1.bf16.msra.mxu0 %v2992
        %3650 = vmatprep.subr.bf16.mxu0 %v2996
        %3651 = vmatpush1.bf16.msra.mxu0 %v2995
        %3652 = vmatprep.subr.bf16.mxu0 %v2999
        %3653 = vmatpush1.bf16.msra.mxu0 %v2998
        %3654 = vmatprep.subr.bf16.mxu0 %v3002
        %3655 = vmatpush1.bf16.msra.mxu0 %v3001
        %3656 = vmatprep.subr.bf16.mxu0 %v3005
        %3657 = vmatpush1.bf16.msra.mxu0 %v3004
        %3658 = vmatprep.subr.bf16.mxu0 %v3008
        %3659 = vmatpush1.bf16.msra.mxu0 %v3007
        %3660 = vmatprep.subr.bf16.mxu0 %v3011
        %3661 = vmatpush1.bf16.msra.mxu0 %v3010
        %3662 = vmatprep.subr.bf16.mxu0 %v3014
        %3663 = vmatpush1.bf16.msra.mxu0 %v3013
        %3664 = vmatprep.subr.bf16.mxu0 %v3017
        %3665 = vmatpush1.bf16.msra.mxu0 %v3016
        %3666 = vmatprep.subr.bf16.mxu0 %v3020
        %3667 = vmatpush1.bf16.msra.mxu0 %v3019
        %3668 = vmatprep.subr.bf16.mxu0 %v3023
        %3669 = vmatpush1.bf16.msra.mxu0 %v3022
        %3670 = vmatprep.subr.bf16.mxu0 %v3026
        %3671 = vmatpush1.bf16.msra.mxu0 %v3025
        %3672 = vmatprep.subr.bf16.mxu0 %v3029
        %3673 = vmatpush1.bf16.msra.mxu0 %v3028
        %3674 = vmatprep.subr.bf16.mxu0 %v3032
        %3675 = vmatpush1.bf16.msra.mxu0 %v3031
        %3676 = vmatprep.mubr.bf16.mxu0 %v1704
        %3677 = vmatmul.mubr.bf16.gmra.mrb[0].mxu0 %v1690
        %v3678 = vpop.f32.mrb[0].mxu0
        %v3679 = vadd.f32 %v3638, %v3678
        %v3680 = vpop.f32.mrb[0].mxu0
        %v3681 = vadd.f32 %v3640, %v3680
        %v3682 = vpop.f32.mrb[0].mxu0
        %v3683 = vpop.f32.mrb[0].mxu0
        %3684 = vdwg.mxu0
        %3685 = vmatprep.subr.bf16.mxu0 %v3035
        %3686 = vmatpush1.bf16.msra.mxu0 %v3034
        %3687 = vmatprep.subr.bf16.mxu0 %v3038
        %3688 = vmatpush1.bf16.msra.mxu0 %v3037
        %3689 = vmatprep.subr.bf16.mxu0 %v3041
        %3690 = vmatpush1.bf16.msra.mxu0 %v3040
        %3691 = vmatprep.subr.bf16.mxu0 %v3044
        %3692 = vmatpush1.bf16.msra.mxu0 %v3043
        %3693 = vmatprep.subr.bf16.mxu0 %v3047
        %3694 = vmatpush1.bf16.msra.mxu0 %v3046
        %3695 = vmatprep.subr.bf16.mxu0 %v3050
        %3696 = vmatpush1.bf16.msra.mxu0 %v3049
        %3697 = vmatprep.subr.bf16.mxu0 %v3053
        %3698 = vmatpush1.bf16.msra.mxu0 %v3052
        %3699 = vmatprep.subr.bf16.mxu0 %v3056
        %3700 = vmatpush1.bf16.msra.mxu0 %v3055
        %3701 = vmatprep.subr.bf16.mxu0 %v3059
        %3702 = vmatpush1.bf16.msra.mxu0 %v3058
        %3703 = vmatprep.subr.bf16.mxu0 %v3062
        %3704 = vmatpush1.bf16.msra.mxu0 %v3061
        %3705 = vmatprep.subr.bf16.mxu0 %v3065
        %3706 = vmatpush1.bf16.msra.mxu0 %v3064
        %3707 = vmatprep.subr.bf16.mxu0 %v3068
        %3708 = vmatpush1.bf16.msra.mxu0 %v3067
        %3709 = vmatprep.subr.bf16.mxu0 %v3071
        %3710 = vmatpush1.bf16.msra.mxu0 %v3070
        %3711 = vmatprep.subr.bf16.mxu0 %v3074
        %3712 = vmatpush1.bf16.msra.mxu0 %v3073
        %3713 = vmatprep.subr.bf16.mxu0 %v3077
        %3714 = vmatpush1.bf16.msra.mxu0 %v3076
        %3715 = vmatprep.subr.bf16.mxu0 %v3080
        %3716 = vmatpush1.bf16.msra.mxu0 %v3079
        %3717 = vmatprep.mubr.bf16.mxu0 %v1708
        %3718 = vmatmul.mubr.bf16.gmra.mrb[0].mxu0 %v1706
        %v3719 = vpop.f32.mrb[0].mxu0
        %v3720 = vadd.f32 %v3679, %v3719
        %v3721 = vpop.f32.mrb[0].mxu0
        %v3722 = vadd.f32 %v3681, %v3721
        %v3723 = vpop.f32.mrb[0].mxu0
        %v3724 = vpop.f32.mrb[0].mxu0
        %3725 = vdwg.mxu0
        %3726 = vmatprep.subr.bf16.mxu0 %v3083
        %3727 = vmatpush1.bf16.msra.mxu0 %v3082
        %3728 = vmatprep.subr.bf16.mxu0 %v3086
        %3729 = vmatpush1.bf16.msra.mxu0 %v3085
        %3730 = vmatprep.subr.bf16.mxu0 %v3089
        %3731 = vmatpush1.bf16.msra.mxu0 %v3088
        %3732 = vmatprep.subr.bf16.mxu0 %v3092
        %3733 = vmatpush1.bf16.msra.mxu0 %v3091
        %3734 = vmatprep.subr.bf16.mxu0 %v3095
        %3735 = vmatpush1.bf16.msra.mxu0 %v3094
        %3736 = vmatprep.subr.bf16.mxu0 %v3098
        %3737 = vmatpush1.bf16.msra.mxu0 %v3097
        %3738 = vmatprep.subr.bf16.mxu0 %v3101
        %3739 = vmatpush1.bf16.msra.mxu0 %v3100
        %3740 = vmatprep.subr.bf16.mxu0 %v3104
        %3741 = vmatpush1.bf16.msra.mxu0 %v3103
        %3742 = vmatprep.subr.bf16.mxu0 %v3107
        %3743 = vmatpush1.bf16.msra.mxu0 %v3106
        %3744 = vmatprep.subr.bf16.mxu0 %v3110
        %3745 = vmatpush1.bf16.msra.mxu0 %v3109
        %3746 = vmatprep.subr.bf16.mxu0 %v3113
        %3747 = vmatpush1.bf16.msra.mxu0 %v3112
        %3748 = vmatprep.subr.bf16.mxu0 %v3116
        %3749 = vmatpush1.bf16.msra.mxu0 %v3115
        %3750 = vmatprep.subr.bf16.mxu0 %v3119
        %3751 = vmatpush1.bf16.msra.mxu0 %v3118
        %3752 = vmatprep.subr.bf16.mxu0 %v3122
        %3753 = vmatpush1.bf16.msra.mxu0 %v3121
        %3754 = vmatprep.subr.bf16.mxu0 %v3125
        %3755 = vmatpush1.bf16.msra.mxu0 %v3124
        %3756 = vmatprep.subr.bf16.mxu0 %v3128
        %3757 = vmatpush1.bf16.msra.mxu0 %v3127
        %3758 = vmatprep.mubr.bf16.mxu0 %v1746
        %3759 = vmatmul.mubr.bf16.gmra.mrb[0].mxu0 %v1732
        %v3760 = vpop.f32.mrb[0].mxu0
        %v3761 = vadd.f32 %v3720, %v3760
        %v3762 = vpop.f32.mrb[0].mxu0
        %v3763 = vadd.f32 %v3722, %v3762
        %v3764 = vpop.f32.mrb[0].mxu0
        %v3765 = vpop.f32.mrb[0].mxu0
        %3766 = vdwg.mxu0
        %3767 = vmatprep.subr.bf16.mxu0 %v3131
        %3768 = vmatpush1.bf16.msra.mxu0 %v3130
        %3769 = vmatprep.subr.bf16.mxu0 %v3134
        %3770 = vmatpush1.bf16.msra.mxu0 %v3133
        %3771 = vmatprep.subr.bf16.mxu0 %v3137
        %3772 = vmatpush1.bf16.msra.mxu0 %v3136
        %3773 = vmatprep.subr.bf16.mxu0 %v3140
        %3774 = vmatpush1.bf16.msra.mxu0 %v3139
        %3775 = vmatprep.subr.bf16.mxu0 %v3143
        %3776 = vmatpush1.bf16.msra.mxu0 %v3142
        %3777 = vmatprep.subr.bf16.mxu0 %v3146
        %3778 = vmatpush1.bf16.msra.mxu0 %v3145
        %3779 = vmatprep.subr.bf16.mxu0 %v3149
        %3780 = vmatpush1.bf16.msra.mxu0 %v3148
        %3781 = vmatprep.subr.bf16.mxu0 %v3152
        %3782 = vmatpush1.bf16.msra.mxu0 %v3151
        %3783 = vmatprep.subr.bf16.mxu0 %v3155
        %3784 = vmatpush1.bf16.msra.mxu0 %v3154
        %3785 = vmatprep.subr.bf16.mxu0 %v3158
        %3786 = vmatpush1.bf16.msra.mxu0 %v3157
        %3787 = vmatprep.subr.bf16.mxu0 %v3161
        %3788 = vmatpush1.bf16.msra.mxu0 %v3160
        %3789 = vmatprep.subr.bf16.mxu0 %v3164
        %3790 = vmatpush1.bf16.msra.mxu0 %v3163
        %3791 = vmatprep.subr.bf16.mxu0 %v3167
        %3792 = vmatpush1.bf16.msra.mxu0 %v3166
        %3793 = vmatprep.subr.bf16.mxu0 %v3170
        %3794 = vmatpush1.bf16.msra.mxu0 %v3169
        %3795 = vmatprep.subr.bf16.mxu0 %v3173
        %3796 = vmatpush1.bf16.msra.mxu0 %v3172
        %3797 = vmatprep.subr.bf16.mxu0 %v3176
        %3798 = vmatpush1.bf16.msra.mxu0 %v3175
        %3799 = vmatprep.mubr.bf16.mxu0 %v1755
        %3800 = vmatmul.mubr.bf16.gmra.mrb[0].mxu0 %v1754
        %v3801 = vpop.f32.mrb[0].mxu0
        %v3802 = vadd.f32 %v3761, %v3801
        %v3803 = vpop.f32.mrb[0].mxu0
        %v3804 = vadd.f32 %v3763, %v3803
        %v3805 = vpop.f32.mrb[0].mxu0
        %v3806 = vpop.f32.mrb[0].mxu0
        %3807 = vdwg.mxu0
        %3808 = vmatprep.subr.bf16.mxu0 %v3179
        %3809 = vmatpush1.bf16.msra.mxu0 %v3178
        %3810 = vmatprep.subr.bf16.mxu0 %v3182
        %3811 = vmatpush1.bf16.msra.mxu0 %v3181
        %3812 = vmatprep.subr.bf16.mxu0 %v3185
        %3813 = vmatpush1.bf16.msra.mxu0 %v3184
        %3814 = vmatprep.subr.bf16.mxu0 %v3188
        %3815 = vmatpush1.bf16.msra.mxu0 %v3187
        %3816 = vmatprep.subr.bf16.mxu0 %v3191
        %3817 = vmatpush1.bf16.msra.mxu0 %v3190
        %3818 = vmatprep.subr.bf16.mxu0 %v3194
        %3819 = vmatpush1.bf16.msra.mxu0 %v3193
        %3820 = vmatprep.subr.bf16.mxu0 %v3197
        %3821 = vmatpush1.bf16.msra.mxu0 %v3196
        %3822 = vmatprep.subr.bf16.mxu0 %v3200
        %3823 = vmatpush1.bf16.msra.mxu0 %v3199
        %3824 = vmatprep.subr.bf16.mxu0 %v3203
        %3825 = vmatpush1.bf16.msra.mxu0 %v3202
        %3826 = vmatprep.subr.bf16.mxu0 %v3206
        %3827 = vmatpush1.bf16.msra.mxu0 %v3205
        %3828 = vmatprep.subr.bf16.mxu0 %v3209
        %3829 = vmatpush1.bf16.msra.mxu0 %v3208
        %3830 = vmatprep.subr.bf16.mxu0 %v3212
        %3831 = vmatpush1.bf16.msra.mxu0 %v3211
        %3832 = vmatprep.subr.bf16.mxu0 %v3215
        %3833 = vmatpush1.bf16.msra.mxu0 %v3214
        %3834 = vmatprep.subr.bf16.mxu0 %v3218
        %3835 = vmatpush1.bf16.msra.mxu0 %v3217
        %3836 = vmatprep.subr.bf16.mxu0 %v3221
        %3837 = vmatpush1.bf16.msra.mxu0 %v3220
        %3838 = vmatprep.subr.bf16.mxu0 %v3224
        %3839 = vmatpush1.bf16.msra.mxu0 %v3223
        %3840 = vmatprep.mubr.bf16.mxu0 %v1753
        %3841 = vmatmul.mubr.bf16.gmra.mrb[0].mxu0 %v1739
        %v3842 = vpop.f32.mrb[0].mxu0
        %v3843 = vadd.f32 %v3802, %v3842
        %v3844 = vpop.f32.mrb[0].mxu0
        %v3845 = vadd.f32 %v3804, %v3844
        %v3846 = vpop.f32.mrb[0].mxu0
        %v3847 = vpop.f32.mrb[0].mxu0
        %3848 = vdwg.mxu0
        %3849 = vmatprep.subr.bf16.mxu0 0
        %3850 = vmatpush1.bf16.msra.mxu0 %v2892
        %3851 = vmatprep.subr.bf16.mxu0 0
        %3852 = vmatpush1.bf16.msra.mxu0 %v2895
        %3853 = vmatprep.subr.bf16.mxu0 0
        %3854 = vmatpush1.bf16.msra.mxu0 %v2898
        %3855 = vmatprep.subr.bf16.mxu0 0
        %3856 = vmatpush1.bf16.msra.mxu0 %v2901
        %3857 = vmatprep.subr.bf16.mxu0 0
        %3858 = vmatpush1.bf16.msra.mxu0 %v2904
        %3859 = vmatprep.subr.bf16.mxu0 0
        %3860 = vmatpush1.bf16.msra.mxu0 %v2907
        %3861 = vmatprep.subr.bf16.mxu0 0
        %3862 = vmatpush1.bf16.msra.mxu0 %v2910
        %3863 = vmatprep.subr.bf16.mxu0 0
        %3864 = vmatpush1.bf16.msra.mxu0 %v2913
        %3865 = vmatprep.subr.bf16.mxu0 0
        %3866 = vmatpush1.bf16.msra.mxu0 %v2916
        %3867 = vmatprep.subr.bf16.mxu0 0
        %3868 = vmatpush1.bf16.msra.mxu0 %v2919
        %3869 = vmatprep.subr.bf16.mxu0 0
        %3870 = vmatpush1.bf16.msra.mxu0 %v2922
        %3871 = vmatprep.subr.bf16.mxu0 0
        %3872 = vmatpush1.bf16.msra.mxu0 %v2925
        %3873 = vmatprep.subr.bf16.mxu0 0
        %3874 = vmatpush1.bf16.msra.mxu0 %v2928
        %3875 = vmatprep.subr.bf16.mxu0 0
        %3876 = vmatpush1.bf16.msra.mxu0 %v2931
        %3877 = vmatprep.subr.bf16.mxu0 0
        %3878 = vmatpush1.bf16.msra.mxu0 %v2934
        %3879 = vmatprep.subr.bf16.mxu0 0
        %3880 = vmatpush1.bf16.msra.mxu0 %v2937
        %3881 = vmatprep.mubr.bf16.mxu0 %v1697
        %3882 = vmatmul.mubr.bf16.gmra.mrb[0].mxu0 %v1683
        %v3883 = vpop.f32.mrb[0].mxu0
        %v3884 = vadd.f32 0.0, %v3883
        %v3885 = vpop.f32.mrb[0].mxu0
        %v3886 = vpop.f32.mrb[0].mxu0
        %v3887 = vpop.f32.mrb[0].mxu0
        %3888 = vdwg.mxu0
        %3889 = vmatprep.subr.bf16.mxu0 0
        %3890 = vmatpush1.bf16.msra.mxu0 %v2940
        %3891 = vmatprep.subr.bf16.mxu0 0
        %3892 = vmatpush1.bf16.msra.mxu0 %v2943
        %3893 = vmatprep.subr.bf16.mxu0 0
        %3894 = vmatpush1.bf16.msra.mxu0 %v2946
        %3895 = vmatprep.subr.bf16.mxu0 0
        %3896 = vmatpush1.bf16.msra.mxu0 %v2949
        %3897 = vmatprep.subr.bf16.mxu0 0
        %3898 = vmatpush1.bf16.msra.mxu0 %v2952
        %3899 = vmatprep.subr.bf16.mxu0 0
        %3900 = vmatpush1.bf16.msra.mxu0 %v2955
        %3901 = vmatprep.subr.bf16.mxu0 0
        %3902 = vmatpush1.bf16.msra.mxu0 %v2958
        %3903 = vmatprep.subr.bf16.mxu0 0
        %3904 = vmatpush1.bf16.msra.mxu0 %v2961
        %3905 = vmatprep.subr.bf16.mxu0 0
        %3906 = vmatpush1.bf16.msra.mxu0 %v2964
        %3907 = vmatprep.subr.bf16.mxu0 0
        %3908 = vmatpush1.bf16.msra.mxu0 %v2967
        %3909 = vmatprep.subr.bf16.mxu0 0
        %3910 = vmatpush1.bf16.msra.mxu0 %v2970
        %3911 = vmatprep.subr.bf16.mxu0 0
        %3912 = vmatpush1.bf16.msra.mxu0 %v2973
        %3913 = vmatprep.subr.bf16.mxu0 0
        %3914 = vmatpush1.bf16.msra.mxu0 %v2976
        %3915 = vmatprep.subr.bf16.mxu0 0
        %3916 = vmatpush1.bf16.msra.mxu0 %v2979
        %3917 = vmatprep.subr.bf16.mxu0 0
        %3918 = vmatpush1.bf16.msra.mxu0 %v2982
        %3919 = vmatprep.subr.bf16.mxu0 0
        %3920 = vmatpush1.bf16.msra.mxu0 %v2985
        %3921 = vmatprep.mubr.bf16.mxu0 %v1707
        %3922 = vmatmul.mubr.bf16.gmra.mrb[0].mxu0 %v1705
        %v3923 = vpop.f32.mrb[0].mxu0
        %v3924 = vadd.f32 %v3884, %v3923
        %v3925 = vpop.f32.mrb[0].mxu0
        %v3926 = vpop.f32.mrb[0].mxu0
        %v3927 = vpop.f32.mrb[0].mxu0
        %3928 = vdwg.mxu0
        %3929 = vmatprep.subr.bf16.mxu0 0
        %3930 = vmatpush1.bf16.msra.mxu0 %v2988
        %3931 = vmatprep.subr.bf16.mxu0 0
        %3932 = vmatpush1.bf16.msra.mxu0 %v2991
        %3933 = vmatprep.subr.bf16.mxu0 0
        %3934 = vmatpush1.bf16.msra.mxu0 %v2994
        %3935 = vmatprep.subr.bf16.mxu0 0
        %3936 = vmatpush1.bf16.msra.mxu0 %v2997
        %3937 = vmatprep.subr.bf16.mxu0 0
        %3938 = vmatpush1.bf16.msra.mxu0 %v3000
        %3939 = vmatprep.subr.bf16.mxu0 0
        %3940 = vmatpush1.bf16.msra.mxu0 %v3003
        %3941 = vmatprep.subr.bf16.mxu0 0
        %3942 = vmatpush1.bf16.msra.mxu0 %v3006
        %3943 = vmatprep.subr.bf16.mxu0 0
        %3944 = vmatpush1.bf16.msra.mxu0 %v3009
        %3945 = vmatprep.subr.bf16.mxu0 0
        %3946 = vmatpush1.bf16.msra.mxu0 %v3012
        %3947 = vmatprep.subr.bf16.mxu0 0
        %3948 = vmatpush1.bf16.msra.mxu0 %v3015
        %3949 = vmatprep.subr.bf16.mxu0 0
        %3950 = vmatpush1.bf16.msra.mxu0 %v3018
        %3951 = vmatprep.subr.bf16.mxu0 0
        %3952 = vmatpush1.bf16.msra.mxu0 %v3021
        %3953 = vmatprep.subr.bf16.mxu0 0
        %3954 = vmatpush1.bf16.msra.mxu0 %v3024
        %3955 = vmatprep.subr.bf16.mxu0 0
        %3956 = vmatpush1.bf16.msra.mxu0 %v3027
        %3957 = vmatprep.subr.bf16.mxu0 0
        %3958 = vmatpush1.bf16.msra.mxu0 %v3030
        %3959 = vmatprep.subr.bf16.mxu0 0
        %3960 = vmatpush1.bf16.msra.mxu0 %v3033
        %3961 = vmatprep.mubr.bf16.mxu0 %v1704
        %3962 = vmatmul.mubr.bf16.gmra.mrb[0].mxu0 %v1690
        %v3963 = vpop.f32.mrb[0].mxu0
        %v3964 = vadd.f32 %v3924, %v3963
        %v3965 = vpop.f32.mrb[0].mxu0
        %v3966 = vpop.f32.mrb[0].mxu0
        %v3967 = vpop.f32.mrb[0].mxu0
        %3968 = vdwg.mxu0
        %3969 = vmatprep.subr.bf16.mxu0 0
        %3970 = vmatpush1.bf16.msra.mxu0 %v3036
        %3971 = vmatprep.subr.bf16.mxu0 0
        %3972 = vmatpush1.bf16.msra.mxu0 %v3039
        %3973 = vmatprep.subr.bf16.mxu0 0
        %3974 = vmatpush1.bf16.msra.mxu0 %v3042
        %3975 = vmatprep.subr.bf16.mxu0 0
        %3976 = vmatpush1.bf16.msra.mxu0 %v3045
        %3977 = vmatprep.subr.bf16.mxu0 0
        %3978 = vmatpush1.bf16.msra.mxu0 %v3048
        %3979 = vmatprep.subr.bf16.mxu0 0
        %3980 = vmatpush1.bf16.msra.mxu0 %v3051
        %3981 = vmatprep.subr.bf16.mxu0 0
        %3982 = vmatpush1.bf16.msra.mxu0 %v3054
        %3983 = vmatprep.subr.bf16.mxu0 0
        %3984 = vmatpush1.bf16.msra.mxu0 %v3057
        %3985 = vmatprep.subr.bf16.mxu0 0
        %3986 = vmatpush1.bf16.msra.mxu0 %v3060
        %3987 = vmatprep.subr.bf16.mxu0 0
        %3988 = vmatpush1.bf16.msra.mxu0 %v3063
        %3989 = vmatprep.subr.bf16.mxu0 0
        %3990 = vmatpush1.bf16.msra.mxu0 %v3066
        %3991 = vmatprep.subr.bf16.mxu0 0
        %3992 = vmatpush1.bf16.msra.mxu0 %v3069
        %3993 = vmatprep.subr.bf16.mxu0 0
        %3994 = vmatpush1.bf16.msra.mxu0 %v3072
        %3995 = vmatprep.subr.bf16.mxu0 0
        %3996 = vmatpush1.bf16.msra.mxu0 %v3075
        %3997 = vmatprep.subr.bf16.mxu0 0
        %3998 = vmatpush1.bf16.msra.mxu0 %v3078
        %3999 = vmatprep.subr.bf16.mxu0 0
        %4000 = vmatpush1.bf16.msra.mxu0 %v3081
        %4001 = vmatprep.mubr.bf16.mxu0 %v1708
        %4002 = vmatmul.mubr.bf16.gmra.mrb[0].mxu0 %v1706
        %v4003 = vpop.f32.mrb[0].mxu0
        %v4004 = vadd.f32 %v3964, %v4003
        %v4005 = vpop.f32.mrb[0].mxu0
        %v4006 = vpop.f32.mrb[0].mxu0
        %v4007 = vpop.f32.mrb[0].mxu0
        %4008 = vdwg.mxu0
        %4009 = vmatprep.subr.bf16.mxu0 0
        %4010 = vmatpush1.bf16.msra.mxu0 %v3084
        %4011 = vmatprep.subr.bf16.mxu0 0
        %4012 = vmatpush1.bf16.msra.mxu0 %v3087
        %4013 = vmatprep.subr.bf16.mxu0 0
        %4014 = vmatpush1.bf16.msra.mxu0 %v3090
        %4015 = vmatprep.subr.bf16.mxu0 0
        %4016 = vmatpush1.bf16.msra.mxu0 %v3093
        %4017 = vmatprep.subr.bf16.mxu0 0
        %4018 = vmatpush1.bf16.msra.mxu0 %v3096
        %4019 = vmatprep.subr.bf16.mxu0 0
        %4020 = vmatpush1.bf16.msra.mxu0 %v3099
        %4021 = vmatprep.subr.bf16.mxu0 0
        %4022 = vmatpush1.bf16.msra.mxu0 %v3102
        %4023 = vmatprep.subr.bf16.mxu0 0
        %4024 = vmatpush1.bf16.msra.mxu0 %v3105
        %4025 = vmatprep.subr.bf16.mxu0 0
        %4026 = vmatpush1.bf16.msra.mxu0 %v3108
        %4027 = vmatprep.subr.bf16.mxu0 0
        %4028 = vmatpush1.bf16.msra.mxu0 %v3111
        %4029 = vmatprep.subr.bf16.mxu0 0
        %4030 = vmatpush1.bf16.msra.mxu0 %v3114
        %4031 = vmatprep.subr.bf16.mxu0 0
        %4032 = vmatpush1.bf16.msra.mxu0 %v3117
        %4033 = vmatprep.subr.bf16.mxu0 0
        %4034 = vmatpush1.bf16.msra.mxu0 %v3120
        %4035 = vmatprep.subr.bf16.mxu0 0
        %4036 = vmatpush1.bf16.msra.mxu0 %v3123
        %4037 = vmatprep.subr.bf16.mxu0 0
        %4038 = vmatpush1.bf16.msra.mxu0 %v3126
        %4039 = vmatprep.subr.bf16.mxu0 0
        %4040 = vmatpush1.bf16.msra.mxu0 %v3129
        %4041 = vmatprep.mubr.bf16.mxu0 %v1746
        %4042 = vmatmul.mubr.bf16.gmra.mrb[0].mxu0 %v1732
        %v4043 = vpop.f32.mrb[0].mxu0
        %v4044 = vadd.f32 %v4004, %v4043
        %v4045 = vpop.f32.mrb[0].mxu0
        %v4046 = vpop.f32.mrb[0].mxu0
        %v4047 = vpop.f32.mrb[0].mxu0
        %4048 = vdwg.mxu0
        %4049 = vmatprep.subr.bf16.mxu0 0
        %4050 = vmatpush1.bf16.msra.mxu0 %v3132
        %4051 = vmatprep.subr.bf16.mxu0 0
        %4052 = vmatpush1.bf16.msra.mxu0 %v3135
        %4053 = vmatprep.subr.bf16.mxu0 0
        %4054 = vmatpush1.bf16.msra.mxu0 %v3138
        %4055 = vmatprep.subr.bf16.mxu0 0
        %4056 = vmatpush1.bf16.msra.mxu0 %v3141
        %4057 = vmatprep.subr.bf16.mxu0 0
        %4058 = vmatpush1.bf16.msra.mxu0 %v3144
        %4059 = vmatprep.subr.bf16.mxu0 0
        %4060 = vmatpush1.bf16.msra.mxu0 %v3147
        %4061 = vmatprep.subr.bf16.mxu0 0
        %4062 = vmatpush1.bf16.msra.mxu0 %v3150
        %4063 = vmatprep.subr.bf16.mxu0 0
        %4064 = vmatpush1.bf16.msra.mxu0 %v3153
        %4065 = vmatprep.subr.bf16.mxu0 0
        %4066 = vmatpush1.bf16.msra.mxu0 %v3156
        %4067 = vmatprep.subr.bf16.mxu0 0
        %4068 = vmatpush1.bf16.msra.mxu0 %v3159
        %4069 = vmatprep.subr.bf16.mxu0 0
        %4070 = vmatpush1.bf16.msra.mxu0 %v3162
        %4071 = vmatprep.subr.bf16.mxu0 0
        %4072 = vmatpush1.bf16.msra.mxu0 %v3165
        %4073 = vmatprep.subr.bf16.mxu0 0
        %4074 = vmatpush1.bf16.msra.mxu0 %v3168
        %4075 = vmatprep.subr.bf16.mxu0 0
        %4076 = vmatpush1.bf16.msra.mxu0 %v3171
        %4077 = vmatprep.subr.bf16.mxu0 0
        %4078 = vmatpush1.bf16.msra.mxu0 %v3174
        %4079 = vmatprep.subr.bf16.mxu0 0
        %4080 = vmatpush1.bf16.msra.mxu0 %v3177
        %4081 = vmatprep.mubr.bf16.mxu0 %v1755
        %4082 = vmatmul.mubr.bf16.gmra.mrb[0].mxu0 %v1754
        %v4083 = vpop.f32.mrb[0].mxu0
        %v4084 = vadd.f32 %v4044, %v4083
        %v4085 = vpop.f32.mrb[0].mxu0
        %v4086 = vpop.f32.mrb[0].mxu0
        %v4087 = vpop.f32.mrb[0].mxu0
        %4088 = vdwg.mxu0
        %4089 = vmatprep.subr.bf16.mxu0 0
        %4090 = vmatpush1.bf16.msra.mxu0 %v3180
        %4091 = vmatprep.subr.bf16.mxu0 0
        %4092 = vmatpush1.bf16.msra.mxu0 %v3183
        %4093 = vmatprep.subr.bf16.mxu0 0
        %4094 = vmatpush1.bf16.msra.mxu0 %v3186
        %4095 = vmatprep.subr.bf16.mxu0 0
        %4096 = vmatpush1.bf16.msra.mxu0 %v3189
        %4097 = vmatprep.subr.bf16.mxu0 0
        %4098 = vmatpush1.bf16.msra.mxu0 %v3192
        %4099 = vmatprep.subr.bf16.mxu0 0
        %4100 = vmatpush1.bf16.msra.mxu0 %v3195
        %4101 = vmatprep.subr.bf16.mxu0 0
        %4102 = vmatpush1.bf16.msra.mxu0 %v3198
        %4103 = vmatprep.subr.bf16.mxu0 0
        %4104 = vmatpush1.bf16.msra.mxu0 %v3201
        %4105 = vmatprep.subr.bf16.mxu0 0
        %4106 = vmatpush1.bf16.msra.mxu0 %v3204
        %4107 = vmatprep.subr.bf16.mxu0 0
        %4108 = vmatpush1.bf16.msra.mxu0 %v3207
        %4109 = vmatprep.subr.bf16.mxu0 0
        %4110 = vmatpush1.bf16.msra.mxu0 %v3210
        %4111 = vmatprep.subr.bf16.mxu0 0
        %4112 = vmatpush1.bf16.msra.mxu0 %v3213
        %4113 = vmatprep.subr.bf16.mxu0 0
        %4114 = vmatpush1.bf16.msra.mxu0 %v3216
        %4115 = vmatprep.subr.bf16.mxu0 0
        %4116 = vmatpush1.bf16.msra.mxu0 %v3219
        %4117 = vmatprep.subr.bf16.mxu0 0
        %4118 = vmatpush1.bf16.msra.mxu0 %v3222
        %4119 = vmatprep.subr.bf16.mxu0 0
        %4120 = vmatpush1.bf16.msra.mxu0 %v3225
        %4121 = vmatprep.mubr.bf16.mxu0 %v1753
        %4122 = vmatmul.mubr.bf16.gmra.mrb[0].mxu0 %v1739
        %v4123 = vpop.f32.mrb[0].mxu0
        %v4124 = vadd.f32 %v4084, %v4123
        %v4125 = vpop.f32.mrb[0].mxu0
        %v4126 = vpop.f32.mrb[0].mxu0
        %v4127 = vpop.f32.mrb[0].mxu0
        %4128 = vdwg.mxu0
        %v4132 = vcombine.low %v3843, %v3845
        %v4134 = vunpack.c.l.s4 1983009808
        %v4135 = vunpack.c.0.s8 %v4134
        %v4136 = vlaneseq
        %v4137 = vshrl.u32 %v4136, 7
        %v4138 = vsub.s32 %v4135, %v4137
        %v4139 = vrot.slane %v4132, %v4138
        %v4141 = vunpack.c.l.s4 1983009808
        %v4142 = vunpack.c.0.s8 %v4141
        %v4143 = vlaneseq
        %v4144 = vshrl.u32 %v4143, 7
        %v4145 = vsub.s32 %v4142, %v4144
        %v4146 = vrot.slane %v4124, %v4145
        %v4147 = vcombine.low %v4139, %v4146
        %v4149 = vadd.f32 %v1207, %v4147
        %4150 = vst [vmem:[#allocation2] sm:$0x3f] %v4149
        %p4151 = scmp.eq.s32.totalorder %s20, 3
        // Predicated region
        $region67: #{network_forward.10} parent=57 // pred_check
          %p4152 = pneg %p4151
        $region68: #{network_forward.10} parent=57 // pred_check_branch
          %4154 = sbr.rel (%p4152) target = $region70
        $region69: #{network_forward.10} parent=57 // pred_region
          %v4155 = vld [vmem:[#allocation2] sm:$0x3f]
          %v4156 = vld [vmem:[%s1189] ss:$2 sm:$0x7]
          %v4158 = vlaneseq
          %v4159 = vshrl.u32 %v4158, 7
          %v4160 = vsub.s32 0, %v4159
          %v4161 = vrot.slane %v4156, %v4160
          %v4162 = vlaneseq
          %v4163 = vshrl.u32 %v4162, 7
          %v4164 = vsub.s32 1, %v4163
          %v4165 = vrot.slane %v4156, %v4164
          %v4166 = vlaneseq
          %v4167 = vshrl.u32 %v4166, 7
          %v4168 = vsub.s32 2, %v4167
          %v4169 = vrot.slane %v4156, %v4168
          %v4170 = vcombine.low %v4161, %v4165
          %v4172 = vunpack.c.l.s4 1983009808
          %v4173 = vunpack.c.0.s8 %v4172
          %v4174 = vlaneseq
          %v4175 = vshrl.u32 %v4174, 7
          %v4176 = vsub.s32 %v4173, %v4175
          %v4177 = vrot.slane %v4170, %v4176
          %v4179 = vunpack.c.l.s4 1983009808
          %v4180 = vunpack.c.0.s8 %v4179
          %v4181 = vlaneseq
          %v4182 = vshrl.u32 %v4181, 7
          %v4183 = vsub.s32 %v4180, %v4182
          %v4184 = vrot.slane %v4169, %v4183
          %v4185 = vcombine.low %v4177, %v4184
          %v4187 = vmul.f32 %v4155, %v4185
          %s4188 = scalar_lea.vmem %s1189, 1
          %v4189 = vld [vmem:[%s4188] ss:$2 sm:$0x7]
          %v4191 = vlaneseq
          %v4192 = vshrl.u32 %v4191, 7
          %v4193 = vsub.s32 0, %v4192
          %v4194 = vrot.slane %v4189, %v4193
          %v4195 = vlaneseq
          %v4196 = vshrl.u32 %v4195, 7
          %v4197 = vsub.s32 1, %v4196
          %v4198 = vrot.slane %v4189, %v4197
          %v4199 = vlaneseq
          %v4200 = vshrl.u32 %v4199, 7
          %v4201 = vsub.s32 2, %v4200
          %v4202 = vrot.slane %v4189, %v4201
          %v4203 = vcombine.low %v4194, %v4198
          %v4205 = vunpack.c.l.s4 1983009808
          %v4206 = vunpack.c.0.s8 %v4205
          %v4207 = vlaneseq
          %v4208 = vshrl.u32 %v4207, 7
          %v4209 = vsub.s32 %v4206, %v4208
          %v4210 = vrot.slane %v4203, %v4209
          %v4212 = vunpack.c.l.s4 1983009808
          %v4213 = vunpack.c.0.s8 %v4212
          %v4214 = vlaneseq
          %v4215 = vshrl.u32 %v4214, 7
          %v4216 = vsub.s32 %v4213, %v4215
          %v4217 = vrot.slane %v4202, %v4216
          %v4218 = vcombine.low %v4210, %v4217
          %v4220 = vadd.f32 %v4187, %v4218
          %v4221 = vmax.f32 %v4220, 0.0
          %v4223 = vcombine.high %v4221, %v4221
          %v4225 = vunpack.c.l.s4 1983009808
          %v4226 = vunpack.c.0.s8 %v4225
          %v4227 = vlaneseq
          %v4228 = vshrl.u32 %v4227, 7
          %v4229 = vsub.s32 %v4226, %v4228
          %v4230 = vrot.slane %v4221, %v4229
          %v4232 = vunpack.c.l.s4 1983009808
          %v4233 = vunpack.c.0.s8 %v4232
          %v4234 = vlaneseq
          %v4235 = vshrl.u32 %v4234, 7
          %v4236 = vsub.s32 %v4233, %v4235
          %v4237 = vrot.slane %v4223, %v4236
          %v4238 = vcombine.high %v4230, %v4230
          %v4242 = vpack.c.bf16 %v4230, %v4230
          %v4243 = vpack.c.bf16 %v4238, %v4238
          %v4244 = vpack.c.bf16 %v4237, %v4237
          %v4245 = vld [vmem:[%s1195] sm:$0xf]
          %v4246 = vld [vmem:[%s1195 + $0x4] sm:$0xf]
          %v4247 = vld [vmem:[%s1195 + $0x8] sm:$0xf]
          %v4248 = vld [vmem:[%s1195 + $0xc] sm:$0xf]
          %v4249 = vld [vmem:[%s1195 + $0x10] sm:$0xf]
          %v4250 = vld [vmem:[%s1195 + $0x14] sm:$0xf]
          %v4251 = vld [vmem:[%s1195 + $0x18] sm:$0xf]
          %v4252 = vld [vmem:[%s1195 + $0x1c] sm:$0xf]
          %v4253 = vld [vmem:[%s1195 + $0x20] sm:$0xf]
          %v4254 = vld [vmem:[%s1195 + $0x24] sm:$0xf]
          %v4255 = vld [vmem:[%s1195 + $0x28] sm:$0xf]
          %v4256 = vld [vmem:[%s1195 + $0x2c] sm:$0xf]
          %v4257 = vld [vmem:[%s1195 + $0x30] sm:$0xf]
          %v4258 = vld [vmem:[%s1195 + $0x34] sm:$0xf]
          %v4259 = vld [vmem:[%s1195 + $0x38] sm:$0xf]
          %v4260 = vld [vmem:[%s1195 + $0x3c] sm:$0xf]
          %v4261 = vld [vmem:[%s1195 + $0x40] sm:$0xf]
          %v4262 = vld [vmem:[%s1195 + $0x44] sm:$0xf]
          %v4263 = vld [vmem:[%s1195 + $0x48] sm:$0xf]
          %v4264 = vld [vmem:[%s1195 + $0x4c] sm:$0xf]
          %v4265 = vld [vmem:[%s1195 + $0x50] sm:$0xf]
          %v4266 = vld [vmem:[%s1195 + $0x54] sm:$0xf]
          %v4267 = vld [vmem:[%s1195 + $0x58] sm:$0xf]
          %v4268 = vld [vmem:[%s1195 + $0x5c] sm:$0xf]
          %v4269 = vld [vmem:[%s1195 + $0x60] sm:$0xf]
          %v4270 = vld [vmem:[%s1195 + $0x64] sm:$0xf]
          %v4271 = vld [vmem:[%s1195 + $0x68] sm:$0xf]
          %v4272 = vld [vmem:[%s1195 + $0x6c] sm:$0xf]
          %v4273 = vld [vmem:[%s1195 + $0x70] sm:$0xf]
          %v4274 = vld [vmem:[%s1195 + $0x74] sm:$0xf]
          %v4275 = vld [vmem:[%s1195 + $0x78] sm:$0xf]
          %v4276 = vld [vmem:[%s1195 + $0x7c] sm:$0xf]
          %v4277 = vld [vmem:[%s1195 + $0x80] sm:$0xf]
          %v4278 = vld [vmem:[%s1195 + $0x84] sm:$0xf]
          %v4279 = vld [vmem:[%s1195 + $0x88] sm:$0xf]
          %v4280 = vld [vmem:[%s1195 + $0x8c] sm:$0xf]
          %v4281 = vld [vmem:[%s1195 + $0x90] sm:$0xf]
          %v4282 = vld [vmem:[%s1195 + $0x94] sm:$0xf]
          %v4283 = vld [vmem:[%s1195 + $0x98] sm:$0xf]
          %v4284 = vld [vmem:[%s1195 + $0x9c] sm:$0xf]
          %v4285 = vld [vmem:[%s1195 + $0xa0] sm:$0xf]
          %v4286 = vld [vmem:[%s1195 + $0xa4] sm:$0xf]
          %v4287 = vld [vmem:[%s1195 + $0xa8] sm:$0xf]
          %v4288 = vld [vmem:[%s1195 + $0xac] sm:$0xf]
          %v4289 = vld [vmem:[%s1195 + $0xb0] sm:$0xf]
          %v4290 = vld [vmem:[%s1195 + $0xb4] sm:$0xf]
          %v4291 = vld [vmem:[%s1195 + $0xb8] sm:$0xf]
          %v4292 = vld [vmem:[%s1195 + $0xbc] sm:$0xf]
          %v4341 = vunpack.c.l.b16 %v4245
          %v4342 = vunpack.c.l.b16 %v4246
          %v4343 = vunpack.c.l.b16 %v4247
          %v4344 = vunpack.c.l.b16 %v4248
          %v4345 = vunpack.c.l.b16 %v4249
          %v4346 = vunpack.c.l.b16 %v4250
          %v4347 = vunpack.c.l.b16 %v4251
          %v4348 = vunpack.c.l.b16 %v4252
          %v4349 = vunpack.c.l.b16 %v4253
          %v4350 = vunpack.c.l.b16 %v4254
          %v4351 = vunpack.c.l.b16 %v4255
          %v4352 = vunpack.c.l.b16 %v4256
          %v4353 = vunpack.c.l.b16 %v4257
          %v4354 = vunpack.c.l.b16 %v4258
          %v4355 = vunpack.c.l.b16 %v4259
          %v4356 = vunpack.c.l.b16 %v4260
          %v4357 = vunpack.c.l.b16 %v4261
          %v4358 = vunpack.c.l.b16 %v4262
          %v4359 = vunpack.c.l.b16 %v4263
          %v4360 = vunpack.c.l.b16 %v4264
          %v4361 = vunpack.c.l.b16 %v4265
          %v4362 = vunpack.c.l.b16 %v4266
          %v4363 = vunpack.c.l.b16 %v4267
          %v4364 = vunpack.c.l.b16 %v4268
          %v4365 = vunpack.c.l.b16 %v4269
          %v4366 = vunpack.c.l.b16 %v4270
          %v4367 = vunpack.c.l.b16 %v4271
          %v4368 = vunpack.c.l.b16 %v4272
          %v4369 = vunpack.c.l.b16 %v4273
          %v4370 = vunpack.c.l.b16 %v4274
          %v4371 = vunpack.c.l.b16 %v4275
          %v4372 = vunpack.c.l.b16 %v4276
          %v4373 = vunpack.c.l.b16 %v4277
          %v4374 = vunpack.c.l.b16 %v4278
          %v4375 = vunpack.c.l.b16 %v4279
          %v4376 = vunpack.c.l.b16 %v4280
          %v4377 = vunpack.c.l.b16 %v4281
          %v4378 = vunpack.c.l.b16 %v4282
          %v4379 = vunpack.c.l.b16 %v4283
          %v4380 = vunpack.c.l.b16 %v4284
          %v4381 = vunpack.c.l.b16 %v4285
          %v4382 = vunpack.c.l.b16 %v4286
          %v4383 = vunpack.c.l.b16 %v4287
          %v4384 = vunpack.c.l.b16 %v4288
          %v4385 = vunpack.c.l.b16 %v4289
          %v4386 = vunpack.c.l.b16 %v4290
          %v4387 = vunpack.c.l.b16 %v4291
          %v4388 = vunpack.c.l.b16 %v4292
          %v4389 = vpack.c.b16 %v4342, %v4341
          %v4390 = vpack.c.b16 %v4344, %v4343
          %v4391 = vpack.c.b16 %v4346, %v4345
          %v4392 = vpack.c.b16 %v4348, %v4347
          %v4393 = vpack.c.b16 %v4350, %v4349
          %v4394 = vpack.c.b16 %v4352, %v4351
          %v4395 = vpack.c.b16 %v4354, %v4353
          %v4396 = vpack.c.b16 %v4356, %v4355
          %v4397 = vpack.c.b16 %v4358, %v4357
          %v4398 = vpack.c.b16 %v4360, %v4359
          %v4399 = vpack.c.b16 %v4362, %v4361
          %v4400 = vpack.c.b16 %v4364, %v4363
          %v4401 = vpack.c.b16 %v4366, %v4365
          %v4402 = vpack.c.b16 %v4368, %v4367
          %v4403 = vpack.c.b16 %v4370, %v4369
          %v4404 = vpack.c.b16 %v4372, %v4371
          %v4405 = vpack.c.b16 %v4374, %v4373
          %v4406 = vpack.c.b16 %v4376, %v4375
          %v4407 = vpack.c.b16 %v4378, %v4377
          %v4408 = vpack.c.b16 %v4380, %v4379
          %v4409 = vpack.c.b16 %v4382, %v4381
          %v4410 = vpack.c.b16 %v4384, %v4383
          %v4411 = vpack.c.b16 %v4386, %v4385
          %v4412 = vpack.c.b16 %v4388, %v4387
          %4437 = vmatprep.subr.bf16.mxu0 0
          %4438 = vmatpush1.bf16.msra.mxu0 %v4389
          %4439 = vmatprep.subr.bf16.mxu0 0
          %4440 = vmatpush1.bf16.msra.mxu0 %v4390
          %4441 = vmatprep.subr.bf16.mxu0 0
          %4442 = vmatpush1.bf16.msra.mxu0 %v4391
          %4443 = vmatprep.subr.bf16.mxu0 0
          %4444 = vmatpush1.bf16.msra.mxu0 %v4392
          %4445 = vmatprep.subr.bf16.mxu0 0
          %4446 = vmatpush1.bf16.msra.mxu0 %v4393
          %4447 = vmatprep.subr.bf16.mxu0 0
          %4448 = vmatpush1.bf16.msra.mxu0 %v4394
          %4449 = vmatprep.subr.bf16.mxu0 0
          %4450 = vmatpush1.bf16.msra.mxu0 %v4395
          %4451 = vmatprep.subr.bf16.mxu0 0
          %4452 = vmatpush1.bf16.msra.mxu0 %v4396
          %4453 = vmatprep.subr.bf16.mxu0 0
          %4454 = vmatpush1.bf16.msra.mxu0 %v4397
          %4455 = vmatprep.subr.bf16.mxu0 0
          %4456 = vmatpush1.bf16.msra.mxu0 %v4398
          %4457 = vmatprep.subr.bf16.mxu0 0
          %4458 = vmatpush1.bf16.msra.mxu0 %v4399
          %4459 = vmatprep.subr.bf16.mxu0 0
          %4460 = vmatpush1.bf16.msra.mxu0 %v4400
          %4461 = vmatprep.subr.bf16.mxu0 0
          %4462 = vmatpush1.bf16.msra.mxu0 %v4401
          %4463 = vmatprep.subr.bf16.mxu0 0
          %4464 = vmatpush1.bf16.msra.mxu0 %v4402
          %4465 = vmatprep.subr.bf16.mxu0 0
          %4466 = vmatpush1.bf16.msra.mxu0 %v4403
          %4467 = vmatprep.subr.bf16.mxu0 0
          %4468 = vmatpush1.bf16.msra.mxu0 %v4404
          %4469 = vmatprep.mubr.bf16.mxu0 %v4243
          %4470 = vmatmul.mubr.bf16.gmra.mrb[0].mxu0 %v4242
          %v4471 = vpop.f32.mrb[0].mxu0
          %v4472 = vadd.f32 0.0, %v4471
          %v4473 = vpop.f32.mrb[0].mxu0
          %v4474 = vpop.f32.mrb[0].mxu0
          %v4475 = vpop.f32.mrb[0].mxu0
          %4476 = vdwg.mxu0
          %4477 = vmatprep.subr.bf16.mxu0 0
          %4478 = vmatpush1.bf16.msra.mxu0 %v4405
          %4479 = vmatprep.subr.bf16.mxu0 0
          %4480 = vmatpush1.bf16.msra.mxu0 %v4406
          %4481 = vmatprep.subr.bf16.mxu0 0
          %4482 = vmatpush1.bf16.msra.mxu0 %v4407
          %4483 = vmatprep.subr.bf16.mxu0 0
          %4484 = vmatpush1.bf16.msra.mxu0 %v4408
          %4485 = vmatprep.subr.bf16.mxu0 0
          %4486 = vmatpush1.bf16.msra.mxu0 %v4409
          %4487 = vmatprep.subr.bf16.mxu0 0
          %4488 = vmatpush1.bf16.msra.mxu0 %v4410
          %4489 = vmatprep.subr.bf16.mxu0 0
          %4490 = vmatpush1.bf16.msra.mxu0 %v4411
          %4491 = vmatprep.subr.bf16.mxu0 0
          %4492 = vmatpush1.bf16.msra.mxu0 %v4412
          %4493 = vmatprep.subr.bf16.mxu0 0
          %4494 = vmatpush1.bf16.msra.mxu0 0
          %4495 = vmatprep.subr.bf16.mxu0 0
          %4496 = vmatpush1.bf16.msra.mxu0 0
          %4497 = vmatprep.subr.bf16.mxu0 0
          %4498 = vmatpush1.bf16.msra.mxu0 0
          %4499 = vmatprep.subr.bf16.mxu0 0
          %4500 = vmatpush1.bf16.msra.mxu0 0
          %4501 = vmatprep.subr.bf16.mxu0 0
          %4502 = vmatpush1.bf16.msra.mxu0 0
          %4503 = vmatprep.subr.bf16.mxu0 0
          %4504 = vmatpush1.bf16.msra.mxu0 0
          %4505 = vmatprep.subr.bf16.mxu0 0
          %4506 = vmatpush1.bf16.msra.mxu0 0
          %4507 = vmatprep.subr.bf16.mxu0 0
          %4508 = vmatpush1.bf16.msra.mxu0 0
          %4509 = vmatprep.mubr.bf16.mxu0 0
          %4510 = vmatmul.mubr.bf16.gmra.mrb[0].mxu0 %v4244
          %v4511 = vpop.f32.mrb[0].mxu0
          %v4512 = vadd.f32 %v4472, %v4511
          %v4513 = vpop.f32.mrb[0].mxu0
          %v4514 = vpop.f32.mrb[0].mxu0
          %v4515 = vpop.f32.mrb[0].mxu0
          %4516 = vdwg.mxu0
          %4517 = vst [vmem:[%s1200] sm:$0x3] %v4512
        $region70: #{network_forward.10} parent=57 // pred_fallthru
          _
        %p4518 = scmp.lt.s32.totalorder %s19, 1
        %s4519 = scalar_select %p4518, %s19, 1
        %s4520 = smul.addr %s4519, 2
        %s4521 = scalar_lea.vmem %s4, %s4520
        // Predicated region
        $region71: #{network_forward.10} parent=57 // pred_check
          %p4522 = pneg %p151
        $region72: #{network_forward.10} parent=57 // pred_check_branch
          %4524 = sbr.rel (%p4522) target = $region74
        $region73: #{network_forward.10} parent=57 // pred_region
          _
        $region74: #{network_forward.10} parent=57 // pred_fallthru
          _
      $region58: #{network_forward.10} parent=5 // pred_fallthru
        _
      %p4525 = scmp.le.s32.totalorder 2, %s10
      // Predicated region
      $region75: #{network_forward.10} parent=5 // pred_check
        %p4526 = pneg %p4525
      $region76: #{network_forward.10} parent=5 // pred_check_branch
        %4528 = sbr.rel (%p4526) target = $region78
      $region77: #{network_forward.10} parent=5 // pred_region
        %s4529 = ssub.s32 %s10, 2
        // Predicated region
        $region79: #{network_forward.10} parent=77 // pred_check
          %p4530 = pneg %p157
        $region80: #{network_forward.10} parent=77 // pred_check_branch
          %4532 = sbr.rel (%p4530) target = $region82
        $region81: #{network_forward.10} parent=77 // pred_region
          %p4533 = scmp.lt.s32.totalorder %s21, 1
          %s4534 = scalar_select %p4533, %s21, 1
          %s4535 = smul.addr %s4534, 2
          %s4536 = scalar_lea.vmem %s4, %s4535
        $region82: #{network_forward.10} parent=77 // pred_fallthru
          _
      $region78: #{network_forward.10} parent=5 // pred_fallthru
        _
    $region6: #{network_forward.10} parent=1 // loop_footer
      %s14 = sadd.s32 1, %s10
    $region7: #{network_forward.10} parent=1 // loop_footer_branch
      %9 = sbr.rel target = $region3
    $region8: #{network_forward.10} parent=1 // loop_exit
      _

</llo_original>
